<compile_context>
chip_gen: v6e
topology: v6e:2x2x1
jax: 0.10.0
libtpu: 0.0.40
codegen_flags: <defaults>
</compile_context>

<pallas_src>
import jax
import jax.numpy as jnp
from jax.experimental import pallas as pl
from jax.experimental.pallas import tpu as pltpu

CIN, COUT = 3, 10
KH = KW = 3
H = W = 30            # conv output spatial (padding=1 keeps 30x30)
HP = WP = 32          # padded spatial -> 32*32 = 1024 lanes per image (8*128 aligned)
QSZ = HP * WP         # 1024
PH = PW = 15          # pooled spatial
FC_IN = COUT * PH * PW
FC_OUT = 10


def fused_kernel(x_ref, w_ref, cb_ref, wsc_ref, fcb_ref, o_ref):
    # x_ref  : (3, BT*1024)        padded images, c on sublanes, (b, h*32+w) on lanes
    # w_ref  : (9, 10, 3)          conv weights per tap, [tap, cout, cin]
    # cb_ref : (10, 1)             conv bias
    # wsc_ref: (10, 10, 1024)      fc weights scattered to q-space: [c, k, q], q minor
    # fcb_ref: (1, 10)             fc bias
    # o_ref  : (BT, 10)            logits for this batch block
    M = x_ref.shape[1]
    BT = M // QSZ
    xv = x_ref[...]                                   # (3, M)

    def shifted(v, s):
        # out[:, n] = v[:, n + s]   (wrap-around only lands in ignored pad columns)
        if s == 0:
            return v
        return jnp.concatenate([v[:, s:], v[:, :s]], axis=1)

    # --- conv as 9 shifted tap-matmuls, accumulated in f32 (lane-dense output) ---
    acc = None
    for ki in range(KH):
        for kj in range(KW):
            t = ki * KW + kj
            xs = shifted(xv, ki * WP + kj)            # (3, M)
            p = jnp.dot(w_ref[t], xs, preferred_element_type=jnp.float32)  # (10, M)
            acc = p if acc is None else acc + p
    acc = jnp.maximum(acc + cb_ref[...], 0.0)         # bias + ReLU, (10, M)

    # --- 2x2 max-pool, stride 2: shifted maxima; pooled value lives at q = 64*ph + 2*pw ---
    t1 = jnp.maximum(acc, shifted(acc, 1))            # pair-max along w
    t2 = jnp.maximum(t1, shifted(t1, WP))             # pair-max along h

    # --- FC: weights were scattered into q-space at trace time, so no gather is needed ---
    t2r = t2.reshape(COUT, BT, QSZ)                   # (c, b, q)
    part = jnp.einsum('cbq,ckq->cbk', t2r, wsc_ref[...],
                      preferred_element_type=jnp.float32)   # (10, BT, 10)
    o_ref[...] = part.sum(axis=0) + fcb_ref[...]


def my_module_forward(x_nchw, conv_w, conv_b, fc_w, fc_b):
    """x_nchw: (B, 3, 30, 30); conv_w: (10, 3, 3, 3); conv_b: (10,);
    fc_w: (10, 2250); fc_b: (10,).  Returns (B, 10)."""
    B = x_nchw.shape[0]
    BT = 8 if B >= 8 else B                 # images per grid step
    B_pad = ((B + BT - 1) // BT) * BT

    x = x_nchw.astype(jnp.float32)
    if B_pad != B:
        x = jnp.pad(x, ((0, B_pad - B), (0, 0), (0, 0), (0, 0)))

    # conv padding=1 plus pad to 32x32 (lane alignment), done once in XLA (trace time)
    xp = jnp.pad(x, ((0, 0), (0, 0), (1, HP - H - 1), (1, WP - W - 1)))   # (B,3,32,32)
    xflat = jnp.transpose(xp.reshape(B_pad, CIN, QSZ), (1, 0, 2)).reshape(CIN, B_pad * QSZ)

    # conv weights grouped per tap: (9, 10, 3), tap index = ki*3 + kj
    w_taps = jnp.transpose(conv_w.astype(jnp.float32), (2, 3, 0, 1)).reshape(KH * KW, COUT, CIN)
    cb = conv_b.astype(jnp.float32).reshape(COUT, 1)

    # fc weights scattered to conv-output q-space (q = 64*ph + 2*pw), lane-dense (q minor)
    fcw4 = fc_w.astype(jnp.float32).reshape(FC_OUT, COUT, PH, PW)          # (k, c, ph, pw)
    wsc = jnp.zeros((COUT, FC_OUT, HP, WP), jnp.float32)
    wsc = wsc.at[:, :, 0:2 * PH:2, 0:2 * PW:2].set(jnp.transpose(fcw4, (1, 0, 2, 3)))
    wsc = wsc.reshape(COUT, FC_OUT, QSZ)                                   # (c, k, 1024)
    fcb = fc_b.astype(jnp.float32).reshape(1, FC_OUT)

    out = pl.pallas_call(
        fused_kernel,
        out_shape=jax.ShapeDtypeStruct((B_pad, FC_OUT), jnp.float32),
        grid=(B_pad // BT,),
        in_specs=[
            pl.BlockSpec((CIN, BT * QSZ), lambda i: (0, i)),          # batch-block of images
            pl.BlockSpec((KH * KW, COUT, CIN), lambda i: (0, 0, 0)),  # conv weights (resident)
            pl.BlockSpec((COUT, 1), lambda i: (0, 0)),                # conv bias
            pl.BlockSpec((COUT, FC_OUT, QSZ), lambda i: (0, 0, 0)),   # scattered fc weights
            pl.BlockSpec((1, FC_OUT), lambda i: (0, 0)),              # fc bias
        ],
        out_specs=pl.BlockSpec((BT, FC_OUT), lambda i: (i, 0)),
        compiler_params=pltpu.CompilerParams(
            dimension_semantics=("parallel",)),       # batch blocks split across TCs (v7x)
    )(xflat, w_taps, cb, wsc, fcb)

    return out[:B]


def reference_forward(x_nchw, conv_w, conv_b, fc_w, fc_b):
    y = jax.lax.conv_general_dilated(
        x_nchw, conv_w, window_strides=(1, 1), padding=((1, 1), (1, 1)),
        dimension_numbers=("NCHW", "OIHW", "NCHW"))
    y = jax.nn.relu(y + conv_b.reshape(1, COUT, 1, 1))
    y = jax.lax.reduce_window(y, -jnp.inf, jax.lax.max,
                              (1, 1, 2, 2), (1, 1, 2, 2), "VALID")
    flat = y.reshape(y.shape[0], -1)
    return flat @ fc_w.T + fc_b


if __name__ == "__main__":
    key = jax.random.PRNGKey(0)
    k_x, k_cw, k_cb, k_fw, k_fb = jax.random.split(key, 5)

    B = 2
    x = jax.random.normal(k_x, (B, 3, 30, 30), dtype=jnp.float32)
    conv_w = 0.1 * jax.random.normal(k_cw, (COUT, CIN, KH, KW), dtype=jnp.float32)
    conv_b = 0.1 * jax.random.normal(k_cb, (COUT,), dtype=jnp.float32)
    fc_w = 0.01 * jax.random.normal(k_fw, (FC_OUT, FC_IN), dtype=jnp.float32)
    fc_b = 0.01 * jax.random.normal(k_fb, (FC_OUT,), dtype=jnp.float32)

    out = jax.jit(my_module_forward)(x, conv_w, conv_b, fc_w, fc_b)
    out = jax.block_until_ready(out)

    ref = reference_forward(x, conv_w, conv_b, fc_w, fc_b)
    assert out.shape == (B, FC_OUT)
    assert jnp.allclose(out, ref, rtol=1e-3, atol=1e-3), (out, ref)

    print("KERNEL_OK")
</pallas_src>

<mosaic_0001>
module attributes {stable_mosaic.version = 11 : i64} {
  func.func @fused_kernel(%arg0: i32, %arg1: memref<3x2048xf32, #tpu.memory_space<vmem>>, %arg2: memref<9x10x3xf32, #tpu.memory_space<vmem>>, %arg3: memref<10x1xf32, #tpu.memory_space<vmem>>, %arg4: memref<10x10x1024xf32, #tpu.memory_space<vmem>>, %arg5: memref<1x10xf32, #tpu.memory_space<vmem>>, %arg6: memref<2x10xf32, #tpu.memory_space<vmem>>) attributes {dimension_semantics = [#tpu.dimension_semantics<parallel>], iteration_bounds = array<i64: 1>, scalar_prefetch = 0 : i64, scratch_operands = 0 : i64, tpu.core_type = #tpu.core_type<tc>, window_params = [{transform_indices = @transform_0, window_bounds = array<i64: 3, 2048>}, {pipeline_mode = #tpu.pipeline_mode<synchronous>, transform_indices = @transform_1, window_bounds = array<i64: 9, 10, 3>}, {pipeline_mode = #tpu.pipeline_mode<synchronous>, transform_indices = @transform_2, window_bounds = array<i64: 10, 1>}, {pipeline_mode = #tpu.pipeline_mode<synchronous>, transform_indices = @transform_3, window_bounds = array<i64: 10, 10, 1024>}, {pipeline_mode = #tpu.pipeline_mode<synchronous>, transform_indices = @transform_4, window_bounds = array<i64: 1, 10>}, {transform_indices = @transform_5, window_bounds = array<i64: 2, 10>}]} {
    %c0 = arith.constant 0 : index
    %c0_0 = arith.constant 0 : index
    %0 = vector.load %arg1[%c0, %c0_0] : memref<3x2048xf32, #tpu.memory_space<vmem>>, vector<3x2048xf32>
    %c0_1 = arith.constant 0 : index
    %c0_2 = arith.constant 0 : index
    %c0_3 = arith.constant 0 : index
    %1 = vector.load %arg2[%c0_1, %c0_2, %c0_3] : memref<9x10x3xf32, #tpu.memory_space<vmem>>, vector<1x10x3xf32>
    %2 = vector.shape_cast %1 : vector<1x10x3xf32> to vector<10x3xf32>
    %cst = arith.constant dense<0.000000e+00> : vector<10x2048xf32>
    %3 = tpu.matmul %2, %0, %cst {dimension_numbers = #tpu.dot_dimension_numbers<[1], [0], [0], [1], [0, 0, 1, 1], [], []>} : vector<10x3xf32>, vector<3x2048xf32>, vector<10x2048xf32> -> vector<10x2048xf32>
    %4 = vector.extract_strided_slice %0 {offsets = [0, 1], sizes = [3, 2047], strides = [1, 1]} : vector<3x2048xf32> to vector<3x2047xf32>
    %5 = vector.extract_strided_slice %0 {offsets = [0, 0], sizes = [3, 1], strides = [1, 1]} : vector<3x2048xf32> to vector<3x1xf32>
    %6 = tpu.concatenate %4, %5 in 1 : vector<3x2047xf32>, vector<3x1xf32> -> vector<3x2048xf32>
    %c1 = arith.constant 1 : index
    %c0_4 = arith.constant 0 : index
    %c0_5 = arith.constant 0 : index
    %7 = vector.load %arg2[%c1, %c0_4, %c0_5] : memref<9x10x3xf32, #tpu.memory_space<vmem>>, vector<1x10x3xf32>
    %8 = vector.shape_cast %7 : vector<1x10x3xf32> to vector<10x3xf32>
    %cst_6 = arith.constant dense<0.000000e+00> : vector<10x2048xf32>
    %9 = tpu.matmul %8, %6, %cst_6 {dimension_numbers = #tpu.dot_dimension_numbers<[1], [0], [0], [1], [0, 0, 1, 1], [], []>} : vector<10x3xf32>, vector<3x2048xf32>, vector<10x2048xf32> -> vector<10x2048xf32>
    %10 = arith.addf %3, %9 : vector<10x2048xf32>
    %11 = vector.extract_strided_slice %0 {offsets = [0, 2], sizes = [3, 2046], strides = [1, 1]} : vector<3x2048xf32> to vector<3x2046xf32>
    %12 = vector.extract_strided_slice %0 {offsets = [0, 0], sizes = [3, 2], strides = [1, 1]} : vector<3x2048xf32> to vector<3x2xf32>
    %13 = tpu.concatenate %11, %12 in 1 : vector<3x2046xf32>, vector<3x2xf32> -> vector<3x2048xf32>
    %c2 = arith.constant 2 : index
    %c0_7 = arith.constant 0 : index
    %c0_8 = arith.constant 0 : index
    %14 = vector.load %arg2[%c2, %c0_7, %c0_8] : memref<9x10x3xf32, #tpu.memory_space<vmem>>, vector<1x10x3xf32>
    %15 = vector.shape_cast %14 : vector<1x10x3xf32> to vector<10x3xf32>
    %cst_9 = arith.constant dense<0.000000e+00> : vector<10x2048xf32>
    %16 = tpu.matmul %15, %13, %cst_9 {dimension_numbers = #tpu.dot_dimension_numbers<[1], [0], [0], [1], [0, 0, 1, 1], [], []>} : vector<10x3xf32>, vector<3x2048xf32>, vector<10x2048xf32> -> vector<10x2048xf32>
    %17 = arith.addf %10, %16 : vector<10x2048xf32>
    %18 = vector.extract_strided_slice %0 {offsets = [0, 32], sizes = [3, 2016], strides = [1, 1]} : vector<3x2048xf32> to vector<3x2016xf32>
    %19 = vector.extract_strided_slice %0 {offsets = [0, 0], sizes = [3, 32], strides = [1, 1]} : vector<3x2048xf32> to vector<3x32xf32>
    %20 = tpu.concatenate %18, %19 in 1 : vector<3x2016xf32>, vector<3x32xf32> -> vector<3x2048xf32>
    %c3 = arith.constant 3 : index
    %c0_10 = arith.constant 0 : index
    %c0_11 = arith.constant 0 : index
    %21 = vector.load %arg2[%c3, %c0_10, %c0_11] : memref<9x10x3xf32, #tpu.memory_space<vmem>>, vector<1x10x3xf32>
    %22 = vector.shape_cast %21 : vector<1x10x3xf32> to vector<10x3xf32>
    %cst_12 = arith.constant dense<0.000000e+00> : vector<10x2048xf32>
    %23 = tpu.matmul %22, %20, %cst_12 {dimension_numbers = #tpu.dot_dimension_numbers<[1], [0], [0], [1], [0, 0, 1, 1], [], []>} : vector<10x3xf32>, vector<3x2048xf32>, vector<10x2048xf32> -> vector<10x2048xf32>
    %24 = arith.addf %17, %23 : vector<10x2048xf32>
    %25 = vector.extract_strided_slice %0 {offsets = [0, 33], sizes = [3, 2015], strides = [1, 1]} : vector<3x2048xf32> to vector<3x2015xf32>
    %26 = vector.extract_strided_slice %0 {offsets = [0, 0], sizes = [3, 33], strides = [1, 1]} : vector<3x2048xf32> to vector<3x33xf32>
    %27 = tpu.concatenate %25, %26 in 1 : vector<3x2015xf32>, vector<3x33xf32> -> vector<3x2048xf32>
    %c4 = arith.constant 4 : index
    %c0_13 = arith.constant 0 : index
    %c0_14 = arith.constant 0 : index
    %28 = vector.load %arg2[%c4, %c0_13, %c0_14] : memref<9x10x3xf32, #tpu.memory_space<vmem>>, vector<1x10x3xf32>
    %29 = vector.shape_cast %28 : vector<1x10x3xf32> to vector<10x3xf32>
    %cst_15 = arith.constant dense<0.000000e+00> : vector<10x2048xf32>
    %30 = tpu.matmul %29, %27, %cst_15 {dimension_numbers = #tpu.dot_dimension_numbers<[1], [0], [0], [1], [0, 0, 1, 1], [], []>} : vector<10x3xf32>, vector<3x2048xf32>, vector<10x2048xf32> -> vector<10x2048xf32>
    %31 = arith.addf %24, %30 : vector<10x2048xf32>
    %32 = vector.extract_strided_slice %0 {offsets = [0, 34], sizes = [3, 2014], strides = [1, 1]} : vector<3x2048xf32> to vector<3x2014xf32>
    %33 = vector.extract_strided_slice %0 {offsets = [0, 0], sizes = [3, 34], strides = [1, 1]} : vector<3x2048xf32> to vector<3x34xf32>
    %34 = tpu.concatenate %32, %33 in 1 : vector<3x2014xf32>, vector<3x34xf32> -> vector<3x2048xf32>
    %c5 = arith.constant 5 : index
    %c0_16 = arith.constant 0 : index
    %c0_17 = arith.constant 0 : index
    %35 = vector.load %arg2[%c5, %c0_16, %c0_17] : memref<9x10x3xf32, #tpu.memory_space<vmem>>, vector<1x10x3xf32>
    %36 = vector.shape_cast %35 : vector<1x10x3xf32> to vector<10x3xf32>
    %cst_18 = arith.constant dense<0.000000e+00> : vector<10x2048xf32>
    %37 = tpu.matmul %36, %34, %cst_18 {dimension_numbers = #tpu.dot_dimension_numbers<[1], [0], [0], [1], [0, 0, 1, 1], [], []>} : vector<10x3xf32>, vector<3x2048xf32>, vector<10x2048xf32> -> vector<10x2048xf32>
    %38 = arith.addf %31, %37 : vector<10x2048xf32>
    %39 = vector.extract_strided_slice %0 {offsets = [0, 64], sizes = [3, 1984], strides = [1, 1]} : vector<3x2048xf32> to vector<3x1984xf32>
    %40 = vector.extract_strided_slice %0 {offsets = [0, 0], sizes = [3, 64], strides = [1, 1]} : vector<3x2048xf32> to vector<3x64xf32>
    %41 = tpu.concatenate %39, %40 in 1 : vector<3x1984xf32>, vector<3x64xf32> -> vector<3x2048xf32>
    %c6 = arith.constant 6 : index
    %c0_19 = arith.constant 0 : index
    %c0_20 = arith.constant 0 : index
    %42 = vector.load %arg2[%c6, %c0_19, %c0_20] : memref<9x10x3xf32, #tpu.memory_space<vmem>>, vector<1x10x3xf32>
    %43 = vector.shape_cast %42 : vector<1x10x3xf32> to vector<10x3xf32>
    %cst_21 = arith.constant dense<0.000000e+00> : vector<10x2048xf32>
    %44 = tpu.matmul %43, %41, %cst_21 {dimension_numbers = #tpu.dot_dimension_numbers<[1], [0], [0], [1], [0, 0, 1, 1], [], []>} : vector<10x3xf32>, vector<3x2048xf32>, vector<10x2048xf32> -> vector<10x2048xf32>
    %45 = arith.addf %38, %44 : vector<10x2048xf32>
    %46 = vector.extract_strided_slice %0 {offsets = [0, 65], sizes = [3, 1983], strides = [1, 1]} : vector<3x2048xf32> to vector<3x1983xf32>
    %47 = vector.extract_strided_slice %0 {offsets = [0, 0], sizes = [3, 65], strides = [1, 1]} : vector<3x2048xf32> to vector<3x65xf32>
    %48 = tpu.concatenate %46, %47 in 1 : vector<3x1983xf32>, vector<3x65xf32> -> vector<3x2048xf32>
    %c7 = arith.constant 7 : index
    %c0_22 = arith.constant 0 : index
    %c0_23 = arith.constant 0 : index
    %49 = vector.load %arg2[%c7, %c0_22, %c0_23] : memref<9x10x3xf32, #tpu.memory_space<vmem>>, vector<1x10x3xf32>
    %50 = vector.shape_cast %49 : vector<1x10x3xf32> to vector<10x3xf32>
    %cst_24 = arith.constant dense<0.000000e+00> : vector<10x2048xf32>
    %51 = tpu.matmul %50, %48, %cst_24 {dimension_numbers = #tpu.dot_dimension_numbers<[1], [0], [0], [1], [0, 0, 1, 1], [], []>} : vector<10x3xf32>, vector<3x2048xf32>, vector<10x2048xf32> -> vector<10x2048xf32>
    %52 = arith.addf %45, %51 : vector<10x2048xf32>
    %53 = vector.extract_strided_slice %0 {offsets = [0, 66], sizes = [3, 1982], strides = [1, 1]} : vector<3x2048xf32> to vector<3x1982xf32>
    %54 = vector.extract_strided_slice %0 {offsets = [0, 0], sizes = [3, 66], strides = [1, 1]} : vector<3x2048xf32> to vector<3x66xf32>
    %55 = tpu.concatenate %53, %54 in 1 : vector<3x1982xf32>, vector<3x66xf32> -> vector<3x2048xf32>
    %c8 = arith.constant 8 : index
    %c0_25 = arith.constant 0 : index
    %c0_26 = arith.constant 0 : index
    %56 = vector.load %arg2[%c8, %c0_25, %c0_26] : memref<9x10x3xf32, #tpu.memory_space<vmem>>, vector<1x10x3xf32>
    %57 = vector.shape_cast %56 : vector<1x10x3xf32> to vector<10x3xf32>
    %cst_27 = arith.constant dense<0.000000e+00> : vector<10x2048xf32>
    %58 = tpu.matmul %57, %55, %cst_27 {dimension_numbers = #tpu.dot_dimension_numbers<[1], [0], [0], [1], [0, 0, 1, 1], [], []>} : vector<10x3xf32>, vector<3x2048xf32>, vector<10x2048xf32> -> vector<10x2048xf32>
    %59 = arith.addf %52, %58 : vector<10x2048xf32>
    %c0_28 = arith.constant 0 : index
    %c0_29 = arith.constant 0 : index
    %60 = vector.load %arg3[%c0_28, %c0_29] : memref<10x1xf32, #tpu.memory_space<vmem>>, vector<10x1xf32>
    %61 = vector.broadcast %60 : vector<10x1xf32> to vector<10x2048xf32>
    %62 = arith.addf %59, %61 : vector<10x2048xf32>
    %cst_30 = arith.constant 0.000000e+00 : f32
    %63 = vector.broadcast %cst_30 : f32 to vector<10x2048xf32>
    %64 = arith.maximumf %62, %63 : vector<10x2048xf32>
    %65 = vector.extract_strided_slice %64 {offsets = [0, 1], sizes = [10, 2047], strides = [1, 1]} : vector<10x2048xf32> to vector<10x2047xf32>
    %66 = vector.extract_strided_slice %64 {offsets = [0, 0], sizes = [10, 1], strides = [1, 1]} : vector<10x2048xf32> to vector<10x1xf32>
    %67 = tpu.concatenate %65, %66 in 1 : vector<10x2047xf32>, vector<10x1xf32> -> vector<10x2048xf32>
    %68 = arith.maximumf %64, %67 : vector<10x2048xf32>
    %69 = vector.extract_strided_slice %68 {offsets = [0, 32], sizes = [10, 2016], strides = [1, 1]} : vector<10x2048xf32> to vector<10x2016xf32>
    %70 = vector.extract_strided_slice %68 {offsets = [0, 0], sizes = [10, 32], strides = [1, 1]} : vector<10x2048xf32> to vector<10x32xf32>
    %71 = tpu.concatenate %69, %70 in 1 : vector<10x2016xf32>, vector<10x32xf32> -> vector<10x2048xf32>
    %72 = arith.maximumf %68, %71 : vector<10x2048xf32>
    %73 = vector.shape_cast %72 : vector<10x2048xf32> to vector<10x2x1024xf32>
    %c0_31 = arith.constant 0 : index
    %c0_32 = arith.constant 0 : index
    %c0_33 = arith.constant 0 : index
    %74 = vector.load %arg4[%c0_31, %c0_32, %c0_33] : memref<10x10x1024xf32, #tpu.memory_space<vmem>>, vector<10x10x1024xf32>
    "tpu.trace_start"() <{level = 10 : i32, message = "cbq,ckq->cbk"}> : () -> ()
    %cst_34 = arith.constant dense<0.000000e+00> : vector<10x2x10xf32>
    %75 = tpu.matmul %73, %74, %cst_34 {dimension_numbers = #tpu.dot_dimension_numbers<[2], [2], [1], [1], [0, 0, 0, 1, 1, 1], [0], [0]>} : vector<10x2x1024xf32>, vector<10x10x1024xf32>, vector<10x2x10xf32> -> vector<10x2x10xf32>
    "tpu.trace_stop"() : () -> ()
    %cst_35 = arith.constant dense<0.000000e+00> : vector<2x10xf32>
    %76 = vector.multi_reduction <add>, %75, %cst_35 [0] : vector<10x2x10xf32> to vector<2x10xf32>
    %c0_36 = arith.constant 0 : index
    %c0_37 = arith.constant 0 : index
    %77 = vector.load %arg5[%c0_36, %c0_37] : memref<1x10xf32, #tpu.memory_space<vmem>>, vector<1x10xf32>
    %78 = vector.broadcast %77 : vector<1x10xf32> to vector<2x10xf32>
    %79 = arith.addf %76, %78 : vector<2x10xf32>
    %c0_38 = arith.constant 0 : index
    %c0_39 = arith.constant 0 : index
    %80 = vector.load %arg6[%c0_38, %c0_39] : memref<2x10xf32, #tpu.memory_space<vmem>>, vector<2x10xf32>
    tpu.vector_store %arg6[%c0_38, %c0_39], %79 {strides = array<i32>} : memref<2x10xf32, #tpu.memory_space<vmem>>, vector<2x10xf32>,
    return
  }
  func.func @transform_0(%arg0: i32) -> (i32, i32) {
    %c0_i32 = arith.constant 0 : i32
    %c0_i32_0 = arith.constant 0 : i32
    return %c0_i32, %arg0 : i32, i32
  }
  func.func @transform_1(%arg0: i32) -> (i32, i32, i32) {
    %c0_i32 = arith.constant 0 : i32
    %c0_i32_0 = arith.constant 0 : i32
    %c0_i32_1 = arith.constant 0 : i32
    %c0_i32_2 = arith.constant 0 : i32
    return %c0_i32, %c0_i32_0, %c0_i32_1 : i32, i32, i32
  }
  func.func @transform_2(%arg0: i32) -> (i32, i32) {
    %c0_i32 = arith.constant 0 : i32
    %c0_i32_0 = arith.constant 0 : i32
    %c0_i32_1 = arith.constant 0 : i32
    return %c0_i32, %c0_i32_0 : i32, i32
  }
  func.func @transform_3(%arg0: i32) -> (i32, i32, i32) {
    %c0_i32 = arith.constant 0 : i32
    %c0_i32_0 = arith.constant 0 : i32
    %c0_i32_1 = arith.constant 0 : i32
    %c0_i32_2 = arith.constant 0 : i32
    return %c0_i32, %c0_i32_0, %c0_i32_1 : i32, i32, i32
  }
  func.func @transform_4(%arg0: i32) -> (i32, i32) {
    %c0_i32 = arith.constant 0 : i32
    %c0_i32_0 = arith.constant 0 : i32
    %c0_i32_1 = arith.constant 0 : i32
    return %c0_i32, %c0_i32_0 : i32, i32
  }
  func.func @transform_5(%arg0: i32) -> (i32, i32) {
    %c0_i32 = arith.constant 0 : i32
    %c0_i32_0 = arith.constant 0 : i32
    return %arg0, %c0_i32 : i32, i32
  }
}

</mosaic_0001>

<llo_original>
// kernel: my_module_forward.1
$region0: #{my_module_forward.1}
  #allocation0 [shape = 'u32[]', space=smem, size = 0x4, offset = 0x4, fixed_abs, tag = 'smem constant byte address 0x4 - core index']
  #allocation1 [shape = 'u32[144,128]{1,0:T(1,128)}', space=vmem, size = 0x12000, scoped, tag = 'internal scratch']
  %s0 = inlined_call_operand.vmem [shape: f32[3,2048], index: 0, kind: input, shape index: {}]
  %s1 = inlined_call_operand.vmem [shape: f32[9,10,3], index: 1, kind: input, shape index: {}]
  %s2 = inlined_call_operand.vmem [shape: f32[10,1], index: 2, kind: input, shape index: {}]
  %s3 = inlined_call_operand.vmem [shape: f32[10,10,1024], index: 3, kind: input, shape index: {}]
  %s4 = inlined_call_operand.vmem [shape: f32[1,10], index: 4, kind: input, shape index: {}]
  %s5 = inlined_call_operand.hbm [shape: f32[2,10], index: 5, kind: output, shape index: {}]
  %s6 = sld [smem:[#allocation0]]
  $region30: #{my_module_forward.1} parent=0
    _
  %s8 = ssub.s32 1, %s6
  %s9 = scalar_select 0, %s8, %s6
  $region1: #{my_module_forward.1} parent=0
    #allocation2 [shape = 'u8[1024]{0}', space=vmem, size = 0x400, scoped, tag = 'output window, operand 0, single buffered']
    #allocation3 [shape = 's32[1]{0}', space=sflag, size = 0x4, scoped, tag = 'scoped memory for my_module_forward.1']
    %10 = vsyncpa [#allocation3], 0
    // Predicated region
    $region2: #{my_module_forward.1} parent=1 // pred_check
      _
    $region3: #{my_module_forward.1} parent=1 // pred_check_branch
      %12 = sbr.rel (0) target = $region5
    $region4: #{my_module_forward.1} parent=1 // pred_region
      _
    $region5: #{my_module_forward.1} parent=1 // pred_fallthru
      _
    // Predicated region
    $region6: #{my_module_forward.1} parent=1 // pred_check
      _
    $region7: #{my_module_forward.1} parent=1 // pred_check_branch
      %14 = sbr.rel (0) target = $region9
    $region8: #{my_module_forward.1} parent=1 // pred_region
      _
    $region9: #{my_module_forward.1} parent=1 // pred_fallthru
      _
    // Predicated region
    $region10: #{my_module_forward.1} parent=1 // pred_check
      _
    $region11: #{my_module_forward.1} parent=1 // pred_check_branch
      %16 = sbr.rel (0) target = $region13
    $region12: #{my_module_forward.1} parent=1 // pred_region
      _
    $region13: #{my_module_forward.1} parent=1 // pred_fallthru
      _
    // Predicated region
    $region14: #{my_module_forward.1} parent=1 // pred_check
      _
    $region15: #{my_module_forward.1} parent=1 // pred_check_branch
      %18 = sbr.rel (0) target = $region17
    $region16: #{my_module_forward.1} parent=1 // pred_region
      _
    $region17: #{my_module_forward.1} parent=1 // pred_fallthru
      _
    // Predicated region
    $region18: #{my_module_forward.1} parent=1 // pred_check
      _
    $region19: #{my_module_forward.1} parent=1 // pred_check_branch
      %20 = sbr.rel (0) target = $region21
    $region20: #{my_module_forward.1} parent=1 // pred_region
      _
    $region21: #{my_module_forward.1} parent=1 // pred_fallthru
      _
    %v21 = vld [vmem:[%s0] sm:$0x77]
    %v22 = vld [vmem:[%s0 + $0x8] sm:$0x77]
    %v23 = vld [vmem:[%s0 + $0x10] sm:$0x77]
    %v24 = vld [vmem:[%s0 + $0x18] sm:$0x77]
    %v25 = vld [vmem:[%s0 + $0x20] sm:$0x77]
    %v26 = vld [vmem:[%s0 + $0x28] sm:$0x77]
    %v27 = vld [vmem:[%s0 + $0x30] sm:$0x77]
    %v28 = vld [vmem:[%s0 + $0x38] sm:$0x77]
    %v29 = vld [vmem:[%s1] sm:$0xff]
    %v30 = vld [vmem:[%s1 + $0x8] sm:$0x3]
    %v39 = vcombine.high %v21, %v21
    %v40 = vcombine.high %v22, %v22
    %v41 = vcombine.high %v23, %v23
    %v42 = vcombine.high %v24, %v24
    %v43 = vcombine.high %v25, %v25
    %v44 = vcombine.high %v26, %v26
    %v45 = vcombine.high %v27, %v27
    %v46 = vcombine.high %v28, %v28
    %47 = vrot.lane.b32.xlu0 %v21, 127
    %v48 = vpop.permute.xlu0 %47
    %49 = vrot.lane.b32.xlu0 %v39, 127
    %v50 = vpop.permute.xlu0 %49
    %51 = vrot.lane.b32.xlu0 %v22, 127
    %v52 = vpop.permute.xlu0 %51
    %53 = vrot.lane.b32.xlu0 %v40, 127
    %v54 = vpop.permute.xlu0 %53
    %55 = vrot.lane.b32.xlu0 %v23, 127
    %v56 = vpop.permute.xlu0 %55
    %57 = vrot.lane.b32.xlu0 %v41, 127
    %v58 = vpop.permute.xlu0 %57
    %59 = vrot.lane.b32.xlu0 %v24, 127
    %v60 = vpop.permute.xlu0 %59
    %61 = vrot.lane.b32.xlu0 %v42, 127
    %v62 = vpop.permute.xlu0 %61
    %63 = vrot.lane.b32.xlu0 %v25, 127
    %v64 = vpop.permute.xlu0 %63
    %65 = vrot.lane.b32.xlu0 %v43, 127
    %v66 = vpop.permute.xlu0 %65
    %67 = vrot.lane.b32.xlu0 %v26, 127
    %v68 = vpop.permute.xlu0 %67
    %69 = vrot.lane.b32.xlu0 %v44, 127
    %v70 = vpop.permute.xlu0 %69
    %71 = vrot.lane.b32.xlu0 %v27, 127
    %v72 = vpop.permute.xlu0 %71
    %73 = vrot.lane.b32.xlu0 %v45, 127
    %v74 = vpop.permute.xlu0 %73
    %75 = vrot.lane.b32.xlu0 %v28, 127
    %v76 = vpop.permute.xlu0 %75
    %77 = vrot.lane.b32.xlu0 %v46, 127
    %v78 = vpop.permute.xlu0 %77
    %vm79 = vcmask 1039360
    %v80 = vsel %vm79, %v48, %v50
    %v81 = vsel %vm79, %v50, %v52
    %v82 = vsel %vm79, %v52, %v54
    %v83 = vsel %vm79, %v54, %v56
    %v84 = vsel %vm79, %v56, %v58
    %v85 = vsel %vm79, %v58, %v60
    %v86 = vsel %vm79, %v60, %v62
    %v87 = vsel %vm79, %v62, %v64
    %v88 = vsel %vm79, %v64, %v66
    %v89 = vsel %vm79, %v66, %v68
    %v90 = vsel %vm79, %v68, %v70
    %v91 = vsel %vm79, %v70, %v72
    %v92 = vsel %vm79, %v72, %v74
    %v93 = vsel %vm79, %v74, %v76
    %v94 = vsel %vm79, %v76, %v78
    %v97 = vsel %vm79, %v78, %v48
    %s98 = scalar_lea.vmem %s1, 16
    %v99 = vld [vmem:[%s98] sm:$0xff]
    %v100 = vld [vmem:[%s98 + $0x8] sm:$0x3]
    %vm101 = vcmask 23552
    %v103 = vsel %vm101, %v99, 0
    %v106 = vsel %vm101, %v100, 0
    %vm108 = vcmask 1042432
    %v109 = vsel %vm108, %v80, 0
    %v111 = vsel %vm108, %v81, 0
    %v113 = vsel %vm108, %v82, 0
    %v115 = vsel %vm108, %v83, 0
    %v117 = vsel %vm108, %v84, 0
    %v119 = vsel %vm108, %v85, 0
    %v121 = vsel %vm108, %v86, 0
    %v123 = vsel %vm108, %v87, 0
    %v125 = vsel %vm108, %v88, 0
    %v127 = vsel %vm108, %v89, 0
    %v129 = vsel %vm108, %v90, 0
    %v131 = vsel %vm108, %v91, 0
    %v133 = vsel %vm108, %v92, 0
    %v135 = vsel %vm108, %v93, 0
    %v137 = vsel %vm108, %v94, 0
    %v140 = vsel %vm108, %v97, 0
    %142 = vmatprep.subr.mxu0 0.0
    %143 = vmatpush1.msra.mxu0 0.0
    %144 = vmatprep.subr.mxu0 0.0
    %145 = vmatpush1.msra.mxu0 0.0
    %146 = vmatprep.subr.mxu0 0.0
    %147 = vmatpush1.msra.mxu0 0.0
    %148 = vmatprep.subr.mxu0 0.0
    %149 = vmatpush1.msra.mxu0 0.0
    %150 = vmatprep.subr.mxu0 0.0
    %151 = vmatpush1.msra.mxu0 0.0
    %152 = vmatprep.subr.mxu0 0.0
    %153 = vmatpush1.msra.mxu0 0.0
    %154 = vmatprep.subr.mxu0 0.0
    %155 = vmatpush1.msra.mxu0 0.0
    %156 = vmatprep.subr.mxu0 0.0
    %157 = vmatpush1.msra.mxu0 0.0
    %158 = vmatprep.subr.mxu0 0.0
    %159 = vmatpush1.msra.mxu0 0.0
    %160 = vmatprep.subr.mxu0 0.0
    %161 = vmatpush1.msra.mxu0 0.0
    %162 = vmatprep.subr.mxu0 0.0
    %163 = vmatpush1.msra.mxu0 0.0
    %164 = vmatprep.subr.mxu0 0.0
    %165 = vmatpush1.msra.mxu0 0.0
    %166 = vmatprep.subr.mxu0 0.0
    %167 = vmatpush1.msra.mxu0 0.0
    %168 = vmatprep.subr.mxu0 0.0
    %169 = vmatpush1.msra.mxu0 0.0
    %170 = vmatprep.subr.mxu0 0.0
    %171 = vmatpush1.msra.mxu0 0.0
    %172 = vmatprep.subr.mxu0 %v111
    %173 = vmatpush1.msra.mxu0 %v109
    %174 = vmatprep.subr.mxu0 0.0
    %175 = vmatpush2.msra.mxu0 0.0
    %176 = vmatprep.subr.mxu0 0.0
    %177 = vmatpush2.msra.mxu0 0.0
    %178 = vmatprep.subr.mxu0 0.0
    %179 = vmatpush2.msra.mxu0 0.0
    %180 = vmatprep.subr.mxu0 0.0
    %181 = vmatpush2.msra.mxu0 0.0
    %182 = vmatprep.subr.mxu0 0.0
    %183 = vmatpush2.msra.mxu0 0.0
    %184 = vmatprep.subr.mxu0 0.0
    %185 = vmatpush2.msra.mxu0 0.0
    %186 = vmatprep.subr.mxu0 0.0
    %187 = vmatpush2.msra.mxu0 0.0
    %188 = vmatprep.subr.mxu0 0.0
    %189 = vmatpush2.msra.mxu0 0.0
    %190 = vmatprep.subr.mxu0 0.0
    %191 = vmatpush2.msra.mxu0 0.0
    %192 = vmatprep.subr.mxu0 0.0
    %193 = vmatpush2.msra.mxu0 0.0
    %194 = vmatprep.subr.mxu0 0.0
    %195 = vmatpush2.msra.mxu0 0.0
    %196 = vmatprep.subr.mxu0 0.0
    %197 = vmatpush2.msra.mxu0 0.0
    %198 = vmatprep.subr.mxu0 0.0
    %199 = vmatpush2.msra.mxu0 0.0
    %200 = vmatprep.subr.mxu0 0.0
    %201 = vmatpush2.msra.mxu0 0.0
    %202 = vmatprep.subr.mxu0 0.0
    %203 = vmatpush2.msra.mxu0 0.0
    %204 = vmatprep.subr.mxu0 0.0
    %205 = vmatpush2.msra.mxu0 0.0
    %206 = vmatprep.mubr.f32.mxu0 0.0
    %207 = vmatmul.mubr.f32.gmra.mxu0 %v103
    %v208 = vpop.f32.mrf.mxu0
    %v209 = vadd.f32 0.0, %v208
    %v210 = vpop.f32.mrf.mxu0
    %v211 = vadd.f32 0.0, %v210
    %212 = vmatprep.mubr.f32.mxu0 0.0
    %213 = vmatmul.mubr.f32.gmra.mxu0 %v106
    %v214 = vpop.f32.mrf.mxu0
    %v215 = vadd.f32 0.0, %v214
    %v216 = vpop.f32.mrf.mxu0
    %v217 = vadd.f32 0.0, %v216
    %218 = vdwg.mxu0
    %219 = vmatprep.subr.mxu0 0.0
    %220 = vmatpush1.msra.mxu0 0.0
    %221 = vmatprep.subr.mxu0 0.0
    %222 = vmatpush1.msra.mxu0 0.0
    %223 = vmatprep.subr.mxu0 0.0
    %224 = vmatpush1.msra.mxu0 0.0
    %225 = vmatprep.subr.mxu0 0.0
    %226 = vmatpush1.msra.mxu0 0.0
    %227 = vmatprep.subr.mxu0 0.0
    %228 = vmatpush1.msra.mxu0 0.0
    %229 = vmatprep.subr.mxu0 0.0
    %230 = vmatpush1.msra.mxu0 0.0
    %231 = vmatprep.subr.mxu0 0.0
    %232 = vmatpush1.msra.mxu0 0.0
    %233 = vmatprep.subr.mxu0 0.0
    %234 = vmatpush1.msra.mxu0 0.0
    %235 = vmatprep.subr.mxu0 0.0
    %236 = vmatpush1.msra.mxu0 0.0
    %237 = vmatprep.subr.mxu0 0.0
    %238 = vmatpush1.msra.mxu0 0.0
    %239 = vmatprep.subr.mxu0 0.0
    %240 = vmatpush1.msra.mxu0 0.0
    %241 = vmatprep.subr.mxu0 0.0
    %242 = vmatpush1.msra.mxu0 0.0
    %243 = vmatprep.subr.mxu0 0.0
    %244 = vmatpush1.msra.mxu0 0.0
    %245 = vmatprep.subr.mxu0 0.0
    %246 = vmatpush1.msra.mxu0 0.0
    %247 = vmatprep.subr.mxu0 0.0
    %248 = vmatpush1.msra.mxu0 0.0
    %249 = vmatprep.subr.mxu0 %v115
    %250 = vmatpush1.msra.mxu0 %v113
    %251 = vmatprep.subr.mxu0 0.0
    %252 = vmatpush2.msra.mxu0 0.0
    %253 = vmatprep.subr.mxu0 0.0
    %254 = vmatpush2.msra.mxu0 0.0
    %255 = vmatprep.subr.mxu0 0.0
    %256 = vmatpush2.msra.mxu0 0.0
    %257 = vmatprep.subr.mxu0 0.0
    %258 = vmatpush2.msra.mxu0 0.0
    %259 = vmatprep.subr.mxu0 0.0
    %260 = vmatpush2.msra.mxu0 0.0
    %261 = vmatprep.subr.mxu0 0.0
    %262 = vmatpush2.msra.mxu0 0.0
    %263 = vmatprep.subr.mxu0 0.0
    %264 = vmatpush2.msra.mxu0 0.0
    %265 = vmatprep.subr.mxu0 0.0
    %266 = vmatpush2.msra.mxu0 0.0
    %267 = vmatprep.subr.mxu0 0.0
    %268 = vmatpush2.msra.mxu0 0.0
    %269 = vmatprep.subr.mxu0 0.0
    %270 = vmatpush2.msra.mxu0 0.0
    %271 = vmatprep.subr.mxu0 0.0
    %272 = vmatpush2.msra.mxu0 0.0
    %273 = vmatprep.subr.mxu0 0.0
    %274 = vmatpush2.msra.mxu0 0.0
    %275 = vmatprep.subr.mxu0 0.0
    %276 = vmatpush2.msra.mxu0 0.0
    %277 = vmatprep.subr.mxu0 0.0
    %278 = vmatpush2.msra.mxu0 0.0
    %279 = vmatprep.subr.mxu0 0.0
    %280 = vmatpush2.msra.mxu0 0.0
    %281 = vmatprep.subr.mxu0 0.0
    %282 = vmatpush2.msra.mxu0 0.0
    %283 = vmatprep.mubr.f32.mxu0 0.0
    %284 = vmatmul.mubr.f32.gmra.mxu0 %v103
    %v285 = vpop.f32.mrf.mxu0
    %v286 = vadd.f32 0.0, %v285
    %v287 = vpop.f32.mrf.mxu0
    %v288 = vadd.f32 0.0, %v287
    %289 = vmatprep.mubr.f32.mxu0 0.0
    %290 = vmatmul.mubr.f32.gmra.mxu0 %v106
    %v291 = vpop.f32.mrf.mxu0
    %v292 = vadd.f32 0.0, %v291
    %v293 = vpop.f32.mrf.mxu0
    %v294 = vadd.f32 0.0, %v293
    %295 = vdwg.mxu0
    %296 = vmatprep.subr.mxu0 0.0
    %297 = vmatpush1.msra.mxu0 0.0
    %298 = vmatprep.subr.mxu0 0.0
    %299 = vmatpush1.msra.mxu0 0.0
    %300 = vmatprep.subr.mxu0 0.0
    %301 = vmatpush1.msra.mxu0 0.0
    %302 = vmatprep.subr.mxu0 0.0
    %303 = vmatpush1.msra.mxu0 0.0
    %304 = vmatprep.subr.mxu0 0.0
    %305 = vmatpush1.msra.mxu0 0.0
    %306 = vmatprep.subr.mxu0 0.0
    %307 = vmatpush1.msra.mxu0 0.0
    %308 = vmatprep.subr.mxu0 0.0
    %309 = vmatpush1.msra.mxu0 0.0
    %310 = vmatprep.subr.mxu0 0.0
    %311 = vmatpush1.msra.mxu0 0.0
    %312 = vmatprep.subr.mxu0 0.0
    %313 = vmatpush1.msra.mxu0 0.0
    %314 = vmatprep.subr.mxu0 0.0
    %315 = vmatpush1.msra.mxu0 0.0
    %316 = vmatprep.subr.mxu0 0.0
    %317 = vmatpush1.msra.mxu0 0.0
    %318 = vmatprep.subr.mxu0 0.0
    %319 = vmatpush1.msra.mxu0 0.0
    %320 = vmatprep.subr.mxu0 0.0
    %321 = vmatpush1.msra.mxu0 0.0
    %322 = vmatprep.subr.mxu0 0.0
    %323 = vmatpush1.msra.mxu0 0.0
    %324 = vmatprep.subr.mxu0 0.0
    %325 = vmatpush1.msra.mxu0 0.0
    %326 = vmatprep.subr.mxu0 %v119
    %327 = vmatpush1.msra.mxu0 %v117
    %328 = vmatprep.subr.mxu0 0.0
    %329 = vmatpush2.msra.mxu0 0.0
    %330 = vmatprep.subr.mxu0 0.0
    %331 = vmatpush2.msra.mxu0 0.0
    %332 = vmatprep.subr.mxu0 0.0
    %333 = vmatpush2.msra.mxu0 0.0
    %334 = vmatprep.subr.mxu0 0.0
    %335 = vmatpush2.msra.mxu0 0.0
    %336 = vmatprep.subr.mxu0 0.0
    %337 = vmatpush2.msra.mxu0 0.0
    %338 = vmatprep.subr.mxu0 0.0
    %339 = vmatpush2.msra.mxu0 0.0
    %340 = vmatprep.subr.mxu0 0.0
    %341 = vmatpush2.msra.mxu0 0.0
    %342 = vmatprep.subr.mxu0 0.0
    %343 = vmatpush2.msra.mxu0 0.0
    %344 = vmatprep.subr.mxu0 0.0
    %345 = vmatpush2.msra.mxu0 0.0
    %346 = vmatprep.subr.mxu0 0.0
    %347 = vmatpush2.msra.mxu0 0.0
    %348 = vmatprep.subr.mxu0 0.0
    %349 = vmatpush2.msra.mxu0 0.0
    %350 = vmatprep.subr.mxu0 0.0
    %351 = vmatpush2.msra.mxu0 0.0
    %352 = vmatprep.subr.mxu0 0.0
    %353 = vmatpush2.msra.mxu0 0.0
    %354 = vmatprep.subr.mxu0 0.0
    %355 = vmatpush2.msra.mxu0 0.0
    %356 = vmatprep.subr.mxu0 0.0
    %357 = vmatpush2.msra.mxu0 0.0
    %358 = vmatprep.subr.mxu0 0.0
    %359 = vmatpush2.msra.mxu0 0.0
    %360 = vmatprep.mubr.f32.mxu0 0.0
    %361 = vmatmul.mubr.f32.gmra.mxu0 %v103
    %v362 = vpop.f32.mrf.mxu0
    %v363 = vadd.f32 0.0, %v362
    %v364 = vpop.f32.mrf.mxu0
    %v365 = vadd.f32 0.0, %v364
    %366 = vmatprep.mubr.f32.mxu0 0.0
    %367 = vmatmul.mubr.f32.gmra.mxu0 %v106
    %v368 = vpop.f32.mrf.mxu0
    %v369 = vadd.f32 0.0, %v368
    %v370 = vpop.f32.mrf.mxu0
    %v371 = vadd.f32 0.0, %v370
    %372 = vdwg.mxu0
    %373 = vmatprep.subr.mxu0 0.0
    %374 = vmatpush1.msra.mxu0 0.0
    %375 = vmatprep.subr.mxu0 0.0
    %376 = vmatpush1.msra.mxu0 0.0
    %377 = vmatprep.subr.mxu0 0.0
    %378 = vmatpush1.msra.mxu0 0.0
    %379 = vmatprep.subr.mxu0 0.0
    %380 = vmatpush1.msra.mxu0 0.0
    %381 = vmatprep.subr.mxu0 0.0
    %382 = vmatpush1.msra.mxu0 0.0
    %383 = vmatprep.subr.mxu0 0.0
    %384 = vmatpush1.msra.mxu0 0.0
    %385 = vmatprep.subr.mxu0 0.0
    %386 = vmatpush1.msra.mxu0 0.0
    %387 = vmatprep.subr.mxu0 0.0
    %388 = vmatpush1.msra.mxu0 0.0
    %389 = vmatprep.subr.mxu0 0.0
    %390 = vmatpush1.msra.mxu0 0.0
    %391 = vmatprep.subr.mxu0 0.0
    %392 = vmatpush1.msra.mxu0 0.0
    %393 = vmatprep.subr.mxu0 0.0
    %394 = vmatpush1.msra.mxu0 0.0
    %395 = vmatprep.subr.mxu0 0.0
    %396 = vmatpush1.msra.mxu0 0.0
    %397 = vmatprep.subr.mxu0 0.0
    %398 = vmatpush1.msra.mxu0 0.0
    %399 = vmatprep.subr.mxu0 0.0
    %400 = vmatpush1.msra.mxu0 0.0
    %401 = vmatprep.subr.mxu0 0.0
    %402 = vmatpush1.msra.mxu0 0.0
    %403 = vmatprep.subr.mxu0 %v123
    %404 = vmatpush1.msra.mxu0 %v121
    %405 = vmatprep.subr.mxu0 0.0
    %406 = vmatpush2.msra.mxu0 0.0
    %407 = vmatprep.subr.mxu0 0.0
    %408 = vmatpush2.msra.mxu0 0.0
    %409 = vmatprep.subr.mxu0 0.0
    %410 = vmatpush2.msra.mxu0 0.0
    %411 = vmatprep.subr.mxu0 0.0
    %412 = vmatpush2.msra.mxu0 0.0
    %413 = vmatprep.subr.mxu0 0.0
    %414 = vmatpush2.msra.mxu0 0.0
    %415 = vmatprep.subr.mxu0 0.0
    %416 = vmatpush2.msra.mxu0 0.0
    %417 = vmatprep.subr.mxu0 0.0
    %418 = vmatpush2.msra.mxu0 0.0
    %419 = vmatprep.subr.mxu0 0.0
    %420 = vmatpush2.msra.mxu0 0.0
    %421 = vmatprep.subr.mxu0 0.0
    %422 = vmatpush2.msra.mxu0 0.0
    %423 = vmatprep.subr.mxu0 0.0
    %424 = vmatpush2.msra.mxu0 0.0
    %425 = vmatprep.subr.mxu0 0.0
    %426 = vmatpush2.msra.mxu0 0.0
    %427 = vmatprep.subr.mxu0 0.0
    %428 = vmatpush2.msra.mxu0 0.0
    %429 = vmatprep.subr.mxu0 0.0
    %430 = vmatpush2.msra.mxu0 0.0
    %431 = vmatprep.subr.mxu0 0.0
    %432 = vmatpush2.msra.mxu0 0.0
    %433 = vmatprep.subr.mxu0 0.0
    %434 = vmatpush2.msra.mxu0 0.0
    %435 = vmatprep.subr.mxu0 0.0
    %436 = vmatpush2.msra.mxu0 0.0
    %437 = vmatprep.mubr.f32.mxu0 0.0
    %438 = vmatmul.mubr.f32.gmra.mxu0 %v103
    %v439 = vpop.f32.mrf.mxu0
    %v440 = vadd.f32 0.0, %v439
    %v441 = vpop.f32.mrf.mxu0
    %v442 = vadd.f32 0.0, %v441
    %443 = vmatprep.mubr.f32.mxu0 0.0
    %444 = vmatmul.mubr.f32.gmra.mxu0 %v106
    %v445 = vpop.f32.mrf.mxu0
    %v446 = vadd.f32 0.0, %v445
    %v447 = vpop.f32.mrf.mxu0
    %v448 = vadd.f32 0.0, %v447
    %449 = vdwg.mxu0
    %450 = vmatprep.subr.mxu0 0.0
    %451 = vmatpush1.msra.mxu0 0.0
    %452 = vmatprep.subr.mxu0 0.0
    %453 = vmatpush1.msra.mxu0 0.0
    %454 = vmatprep.subr.mxu0 0.0
    %455 = vmatpush1.msra.mxu0 0.0
    %456 = vmatprep.subr.mxu0 0.0
    %457 = vmatpush1.msra.mxu0 0.0
    %458 = vmatprep.subr.mxu0 0.0
    %459 = vmatpush1.msra.mxu0 0.0
    %460 = vmatprep.subr.mxu0 0.0
    %461 = vmatpush1.msra.mxu0 0.0
    %462 = vmatprep.subr.mxu0 0.0
    %463 = vmatpush1.msra.mxu0 0.0
    %464 = vmatprep.subr.mxu0 0.0
    %465 = vmatpush1.msra.mxu0 0.0
    %466 = vmatprep.subr.mxu0 0.0
    %467 = vmatpush1.msra.mxu0 0.0
    %468 = vmatprep.subr.mxu0 0.0
    %469 = vmatpush1.msra.mxu0 0.0
    %470 = vmatprep.subr.mxu0 0.0
    %471 = vmatpush1.msra.mxu0 0.0
    %472 = vmatprep.subr.mxu0 0.0
    %473 = vmatpush1.msra.mxu0 0.0
    %474 = vmatprep.subr.mxu0 0.0
    %475 = vmatpush1.msra.mxu0 0.0
    %476 = vmatprep.subr.mxu0 0.0
    %477 = vmatpush1.msra.mxu0 0.0
    %478 = vmatprep.subr.mxu0 0.0
    %479 = vmatpush1.msra.mxu0 0.0
    %480 = vmatprep.subr.mxu0 %v127
    %481 = vmatpush1.msra.mxu0 %v125
    %482 = vmatprep.subr.mxu0 0.0
    %483 = vmatpush2.msra.mxu0 0.0
    %484 = vmatprep.subr.mxu0 0.0
    %485 = vmatpush2.msra.mxu0 0.0
    %486 = vmatprep.subr.mxu0 0.0
    %487 = vmatpush2.msra.mxu0 0.0
    %488 = vmatprep.subr.mxu0 0.0
    %489 = vmatpush2.msra.mxu0 0.0
    %490 = vmatprep.subr.mxu0 0.0
    %491 = vmatpush2.msra.mxu0 0.0
    %492 = vmatprep.subr.mxu0 0.0
    %493 = vmatpush2.msra.mxu0 0.0
    %494 = vmatprep.subr.mxu0 0.0
    %495 = vmatpush2.msra.mxu0 0.0
    %496 = vmatprep.subr.mxu0 0.0
    %497 = vmatpush2.msra.mxu0 0.0
    %498 = vmatprep.subr.mxu0 0.0
    %499 = vmatpush2.msra.mxu0 0.0
    %500 = vmatprep.subr.mxu0 0.0
    %501 = vmatpush2.msra.mxu0 0.0
    %502 = vmatprep.subr.mxu0 0.0
    %503 = vmatpush2.msra.mxu0 0.0
    %504 = vmatprep.subr.mxu0 0.0
    %505 = vmatpush2.msra.mxu0 0.0
    %506 = vmatprep.subr.mxu0 0.0
    %507 = vmatpush2.msra.mxu0 0.0
    %508 = vmatprep.subr.mxu0 0.0
    %509 = vmatpush2.msra.mxu0 0.0
    %510 = vmatprep.subr.mxu0 0.0
    %511 = vmatpush2.msra.mxu0 0.0
    %512 = vmatprep.subr.mxu0 0.0
    %513 = vmatpush2.msra.mxu0 0.0
    %514 = vmatprep.mubr.f32.mxu0 0.0
    %515 = vmatmul.mubr.f32.gmra.mxu0 %v103
    %v516 = vpop.f32.mrf.mxu0
    %v517 = vadd.f32 0.0, %v516
    %v518 = vpop.f32.mrf.mxu0
    %v519 = vadd.f32 0.0, %v518
    %520 = vmatprep.mubr.f32.mxu0 0.0
    %521 = vmatmul.mubr.f32.gmra.mxu0 %v106
    %v522 = vpop.f32.mrf.mxu0
    %v523 = vadd.f32 0.0, %v522
    %v524 = vpop.f32.mrf.mxu0
    %v525 = vadd.f32 0.0, %v524
    %526 = vdwg.mxu0
    %527 = vmatprep.subr.mxu0 0.0
    %528 = vmatpush1.msra.mxu0 0.0
    %529 = vmatprep.subr.mxu0 0.0
    %530 = vmatpush1.msra.mxu0 0.0
    %531 = vmatprep.subr.mxu0 0.0
    %532 = vmatpush1.msra.mxu0 0.0
    %533 = vmatprep.subr.mxu0 0.0
    %534 = vmatpush1.msra.mxu0 0.0
    %535 = vmatprep.subr.mxu0 0.0
    %536 = vmatpush1.msra.mxu0 0.0
    %537 = vmatprep.subr.mxu0 0.0
    %538 = vmatpush1.msra.mxu0 0.0
    %539 = vmatprep.subr.mxu0 0.0
    %540 = vmatpush1.msra.mxu0 0.0
    %541 = vmatprep.subr.mxu0 0.0
    %542 = vmatpush1.msra.mxu0 0.0
    %543 = vmatprep.subr.mxu0 0.0
    %544 = vmatpush1.msra.mxu0 0.0
    %545 = vmatprep.subr.mxu0 0.0
    %546 = vmatpush1.msra.mxu0 0.0
    %547 = vmatprep.subr.mxu0 0.0
    %548 = vmatpush1.msra.mxu0 0.0
    %549 = vmatprep.subr.mxu0 0.0
    %550 = vmatpush1.msra.mxu0 0.0
    %551 = vmatprep.subr.mxu0 0.0
    %552 = vmatpush1.msra.mxu0 0.0
    %553 = vmatprep.subr.mxu0 0.0
    %554 = vmatpush1.msra.mxu0 0.0
    %555 = vmatprep.subr.mxu0 0.0
    %556 = vmatpush1.msra.mxu0 0.0
    %557 = vmatprep.subr.mxu0 %v131
    %558 = vmatpush1.msra.mxu0 %v129
    %559 = vmatprep.subr.mxu0 0.0
    %560 = vmatpush2.msra.mxu0 0.0
    %561 = vmatprep.subr.mxu0 0.0
    %562 = vmatpush2.msra.mxu0 0.0
    %563 = vmatprep.subr.mxu0 0.0
    %564 = vmatpush2.msra.mxu0 0.0
    %565 = vmatprep.subr.mxu0 0.0
    %566 = vmatpush2.msra.mxu0 0.0
    %567 = vmatprep.subr.mxu0 0.0
    %568 = vmatpush2.msra.mxu0 0.0
    %569 = vmatprep.subr.mxu0 0.0
    %570 = vmatpush2.msra.mxu0 0.0
    %571 = vmatprep.subr.mxu0 0.0
    %572 = vmatpush2.msra.mxu0 0.0
    %573 = vmatprep.subr.mxu0 0.0
    %574 = vmatpush2.msra.mxu0 0.0
    %575 = vmatprep.subr.mxu0 0.0
    %576 = vmatpush2.msra.mxu0 0.0
    %577 = vmatprep.subr.mxu0 0.0
    %578 = vmatpush2.msra.mxu0 0.0
    %579 = vmatprep.subr.mxu0 0.0
    %580 = vmatpush2.msra.mxu0 0.0
    %581 = vmatprep.subr.mxu0 0.0
    %582 = vmatpush2.msra.mxu0 0.0
    %583 = vmatprep.subr.mxu0 0.0
    %584 = vmatpush2.msra.mxu0 0.0
    %585 = vmatprep.subr.mxu0 0.0
    %586 = vmatpush2.msra.mxu0 0.0
    %587 = vmatprep.subr.mxu0 0.0
    %588 = vmatpush2.msra.mxu0 0.0
    %589 = vmatprep.subr.mxu0 0.0
    %590 = vmatpush2.msra.mxu0 0.0
    %591 = vmatprep.mubr.f32.mxu0 0.0
    %592 = vmatmul.mubr.f32.gmra.mxu0 %v103
    %v593 = vpop.f32.mrf.mxu0
    %v594 = vadd.f32 0.0, %v593
    %v595 = vpop.f32.mrf.mxu0
    %v596 = vadd.f32 0.0, %v595
    %597 = vmatprep.mubr.f32.mxu0 0.0
    %598 = vmatmul.mubr.f32.gmra.mxu0 %v106
    %v599 = vpop.f32.mrf.mxu0
    %v600 = vadd.f32 0.0, %v599
    %v601 = vpop.f32.mrf.mxu0
    %v602 = vadd.f32 0.0, %v601
    %603 = vdwg.mxu0
    %604 = vmatprep.subr.mxu0 0.0
    %605 = vmatpush1.msra.mxu0 0.0
    %606 = vmatprep.subr.mxu0 0.0
    %607 = vmatpush1.msra.mxu0 0.0
    %608 = vmatprep.subr.mxu0 0.0
    %609 = vmatpush1.msra.mxu0 0.0
    %610 = vmatprep.subr.mxu0 0.0
    %611 = vmatpush1.msra.mxu0 0.0
    %612 = vmatprep.subr.mxu0 0.0
    %613 = vmatpush1.msra.mxu0 0.0
    %614 = vmatprep.subr.mxu0 0.0
    %615 = vmatpush1.msra.mxu0 0.0
    %616 = vmatprep.subr.mxu0 0.0
    %617 = vmatpush1.msra.mxu0 0.0
    %618 = vmatprep.subr.mxu0 0.0
    %619 = vmatpush1.msra.mxu0 0.0
    %620 = vmatprep.subr.mxu0 0.0
    %621 = vmatpush1.msra.mxu0 0.0
    %622 = vmatprep.subr.mxu0 0.0
    %623 = vmatpush1.msra.mxu0 0.0
    %624 = vmatprep.subr.mxu0 0.0
    %625 = vmatpush1.msra.mxu0 0.0
    %626 = vmatprep.subr.mxu0 0.0
    %627 = vmatpush1.msra.mxu0 0.0
    %628 = vmatprep.subr.mxu0 0.0
    %629 = vmatpush1.msra.mxu0 0.0
    %630 = vmatprep.subr.mxu0 0.0
    %631 = vmatpush1.msra.mxu0 0.0
    %632 = vmatprep.subr.mxu0 0.0
    %633 = vmatpush1.msra.mxu0 0.0
    %634 = vmatprep.subr.mxu0 %v135
    %635 = vmatpush1.msra.mxu0 %v133
    %636 = vmatprep.subr.mxu0 0.0
    %637 = vmatpush2.msra.mxu0 0.0
    %638 = vmatprep.subr.mxu0 0.0
    %639 = vmatpush2.msra.mxu0 0.0
    %640 = vmatprep.subr.mxu0 0.0
    %641 = vmatpush2.msra.mxu0 0.0
    %642 = vmatprep.subr.mxu0 0.0
    %643 = vmatpush2.msra.mxu0 0.0
    %644 = vmatprep.subr.mxu0 0.0
    %645 = vmatpush2.msra.mxu0 0.0
    %646 = vmatprep.subr.mxu0 0.0
    %647 = vmatpush2.msra.mxu0 0.0
    %648 = vmatprep.subr.mxu0 0.0
    %649 = vmatpush2.msra.mxu0 0.0
    %650 = vmatprep.subr.mxu0 0.0
    %651 = vmatpush2.msra.mxu0 0.0
    %652 = vmatprep.subr.mxu0 0.0
    %653 = vmatpush2.msra.mxu0 0.0
    %654 = vmatprep.subr.mxu0 0.0
    %655 = vmatpush2.msra.mxu0 0.0
    %656 = vmatprep.subr.mxu0 0.0
    %657 = vmatpush2.msra.mxu0 0.0
    %658 = vmatprep.subr.mxu0 0.0
    %659 = vmatpush2.msra.mxu0 0.0
    %660 = vmatprep.subr.mxu0 0.0
    %661 = vmatpush2.msra.mxu0 0.0
    %662 = vmatprep.subr.mxu0 0.0
    %663 = vmatpush2.msra.mxu0 0.0
    %664 = vmatprep.subr.mxu0 0.0
    %665 = vmatpush2.msra.mxu0 0.0
    %666 = vmatprep.subr.mxu0 0.0
    %667 = vmatpush2.msra.mxu0 0.0
    %668 = vmatprep.mubr.f32.mxu0 0.0
    %669 = vmatmul.mubr.f32.gmra.mxu0 %v103
    %v670 = vpop.f32.mrf.mxu0
    %v671 = vadd.f32 0.0, %v670
    %v672 = vpop.f32.mrf.mxu0
    %v673 = vadd.f32 0.0, %v672
    %674 = vmatprep.mubr.f32.mxu0 0.0
    %675 = vmatmul.mubr.f32.gmra.mxu0 %v106
    %v676 = vpop.f32.mrf.mxu0
    %v677 = vadd.f32 0.0, %v676
    %v678 = vpop.f32.mrf.mxu0
    %v679 = vadd.f32 0.0, %v678
    %680 = vdwg.mxu0
    %681 = vmatprep.subr.mxu0 0.0
    %682 = vmatpush1.msra.mxu0 0.0
    %683 = vmatprep.subr.mxu0 0.0
    %684 = vmatpush1.msra.mxu0 0.0
    %685 = vmatprep.subr.mxu0 0.0
    %686 = vmatpush1.msra.mxu0 0.0
    %687 = vmatprep.subr.mxu0 0.0
    %688 = vmatpush1.msra.mxu0 0.0
    %689 = vmatprep.subr.mxu0 0.0
    %690 = vmatpush1.msra.mxu0 0.0
    %691 = vmatprep.subr.mxu0 0.0
    %692 = vmatpush1.msra.mxu0 0.0
    %693 = vmatprep.subr.mxu0 0.0
    %694 = vmatpush1.msra.mxu0 0.0
    %695 = vmatprep.subr.mxu0 0.0
    %696 = vmatpush1.msra.mxu0 0.0
    %697 = vmatprep.subr.mxu0 0.0
    %698 = vmatpush1.msra.mxu0 0.0
    %699 = vmatprep.subr.mxu0 0.0
    %700 = vmatpush1.msra.mxu0 0.0
    %701 = vmatprep.subr.mxu0 0.0
    %702 = vmatpush1.msra.mxu0 0.0
    %703 = vmatprep.subr.mxu0 0.0
    %704 = vmatpush1.msra.mxu0 0.0
    %705 = vmatprep.subr.mxu0 0.0
    %706 = vmatpush1.msra.mxu0 0.0
    %707 = vmatprep.subr.mxu0 0.0
    %708 = vmatpush1.msra.mxu0 0.0
    %709 = vmatprep.subr.mxu0 0.0
    %710 = vmatpush1.msra.mxu0 0.0
    %711 = vmatprep.subr.mxu0 %v140
    %712 = vmatpush1.msra.mxu0 %v137
    %713 = vmatprep.subr.mxu0 0.0
    %714 = vmatpush2.msra.mxu0 0.0
    %715 = vmatprep.subr.mxu0 0.0
    %716 = vmatpush2.msra.mxu0 0.0
    %717 = vmatprep.subr.mxu0 0.0
    %718 = vmatpush2.msra.mxu0 0.0
    %719 = vmatprep.subr.mxu0 0.0
    %720 = vmatpush2.msra.mxu0 0.0
    %721 = vmatprep.subr.mxu0 0.0
    %722 = vmatpush2.msra.mxu0 0.0
    %723 = vmatprep.subr.mxu0 0.0
    %724 = vmatpush2.msra.mxu0 0.0
    %725 = vmatprep.subr.mxu0 0.0
    %726 = vmatpush2.msra.mxu0 0.0
    %727 = vmatprep.subr.mxu0 0.0
    %728 = vmatpush2.msra.mxu0 0.0
    %729 = vmatprep.subr.mxu0 0.0
    %730 = vmatpush2.msra.mxu0 0.0
    %731 = vmatprep.subr.mxu0 0.0
    %732 = vmatpush2.msra.mxu0 0.0
    %733 = vmatprep.subr.mxu0 0.0
    %734 = vmatpush2.msra.mxu0 0.0
    %735 = vmatprep.subr.mxu0 0.0
    %736 = vmatpush2.msra.mxu0 0.0
    %737 = vmatprep.subr.mxu0 0.0
    %738 = vmatpush2.msra.mxu0 0.0
    %739 = vmatprep.subr.mxu0 0.0
    %740 = vmatpush2.msra.mxu0 0.0
    %741 = vmatprep.subr.mxu0 0.0
    %742 = vmatpush2.msra.mxu0 0.0
    %743 = vmatprep.subr.mxu0 0.0
    %744 = vmatpush2.msra.mxu0 0.0
    %745 = vmatprep.mubr.f32.mxu0 0.0
    %746 = vmatmul.mubr.f32.gmra.mxu0 %v103
    %v747 = vpop.f32.mrf.mxu0
    %v748 = vadd.f32 0.0, %v747
    %v749 = vpop.f32.mrf.mxu0
    %v750 = vadd.f32 0.0, %v749
    %751 = vmatprep.mubr.f32.mxu0 0.0
    %752 = vmatmul.mubr.f32.gmra.mxu0 %v106
    %v753 = vpop.f32.mrf.mxu0
    %v754 = vadd.f32 0.0, %v753
    %v755 = vpop.f32.mrf.mxu0
    %v756 = vadd.f32 0.0, %v755
    %757 = vdwg.mxu0
    %v759 = vsel %vm101, %v29, 0
    %v762 = vsel %vm101, %v30, 0
    %v764 = vsel %vm108, %v21, 0
    %v766 = vsel %vm108, %v39, 0
    %v768 = vsel %vm108, %v22, 0
    %v770 = vsel %vm108, %v40, 0
    %v772 = vsel %vm108, %v23, 0
    %v774 = vsel %vm108, %v41, 0
    %v776 = vsel %vm108, %v24, 0
    %v778 = vsel %vm108, %v42, 0
    %v780 = vsel %vm108, %v25, 0
    %v782 = vsel %vm108, %v43, 0
    %v784 = vsel %vm108, %v26, 0
    %v786 = vsel %vm108, %v44, 0
    %v788 = vsel %vm108, %v27, 0
    %v790 = vsel %vm108, %v45, 0
    %v792 = vsel %vm108, %v28, 0
    %v794 = vsel %vm108, %v46, 0
    %796 = vmatprep.subr.mxu0 0.0
    %797 = vmatpush1.msra.mxu0 0.0
    %798 = vmatprep.subr.mxu0 0.0
    %799 = vmatpush1.msra.mxu0 0.0
    %800 = vmatprep.subr.mxu0 0.0
    %801 = vmatpush1.msra.mxu0 0.0
    %802 = vmatprep.subr.mxu0 0.0
    %803 = vmatpush1.msra.mxu0 0.0
    %804 = vmatprep.subr.mxu0 0.0
    %805 = vmatpush1.msra.mxu0 0.0
    %806 = vmatprep.subr.mxu0 0.0
    %807 = vmatpush1.msra.mxu0 0.0
    %808 = vmatprep.subr.mxu0 0.0
    %809 = vmatpush1.msra.mxu0 0.0
    %810 = vmatprep.subr.mxu0 0.0
    %811 = vmatpush1.msra.mxu0 0.0
    %812 = vmatprep.subr.mxu0 0.0
    %813 = vmatpush1.msra.mxu0 0.0
    %814 = vmatprep.subr.mxu0 0.0
    %815 = vmatpush1.msra.mxu0 0.0
    %816 = vmatprep.subr.mxu0 0.0
    %817 = vmatpush1.msra.mxu0 0.0
    %818 = vmatprep.subr.mxu0 0.0
    %819 = vmatpush1.msra.mxu0 0.0
    %820 = vmatprep.subr.mxu0 0.0
    %821 = vmatpush1.msra.mxu0 0.0
    %822 = vmatprep.subr.mxu0 0.0
    %823 = vmatpush1.msra.mxu0 0.0
    %824 = vmatprep.subr.mxu0 0.0
    %825 = vmatpush1.msra.mxu0 0.0
    %826 = vmatprep.subr.mxu0 %v766
    %827 = vmatpush1.msra.mxu0 %v764
    %828 = vmatprep.subr.mxu0 0.0
    %829 = vmatpush2.msra.mxu0 0.0
    %830 = vmatprep.subr.mxu0 0.0
    %831 = vmatpush2.msra.mxu0 0.0
    %832 = vmatprep.subr.mxu0 0.0
    %833 = vmatpush2.msra.mxu0 0.0
    %834 = vmatprep.subr.mxu0 0.0
    %835 = vmatpush2.msra.mxu0 0.0
    %836 = vmatprep.subr.mxu0 0.0
    %837 = vmatpush2.msra.mxu0 0.0
    %838 = vmatprep.subr.mxu0 0.0
    %839 = vmatpush2.msra.mxu0 0.0
    %840 = vmatprep.subr.mxu0 0.0
    %841 = vmatpush2.msra.mxu0 0.0
    %842 = vmatprep.subr.mxu0 0.0
    %843 = vmatpush2.msra.mxu0 0.0
    %844 = vmatprep.subr.mxu0 0.0
    %845 = vmatpush2.msra.mxu0 0.0
    %846 = vmatprep.subr.mxu0 0.0
    %847 = vmatpush2.msra.mxu0 0.0
    %848 = vmatprep.subr.mxu0 0.0
    %849 = vmatpush2.msra.mxu0 0.0
    %850 = vmatprep.subr.mxu0 0.0
    %851 = vmatpush2.msra.mxu0 0.0
    %852 = vmatprep.subr.mxu0 0.0
    %853 = vmatpush2.msra.mxu0 0.0
    %854 = vmatprep.subr.mxu0 0.0
    %855 = vmatpush2.msra.mxu0 0.0
    %856 = vmatprep.subr.mxu0 0.0
    %857 = vmatpush2.msra.mxu0 0.0
    %858 = vmatprep.subr.mxu0 0.0
    %859 = vmatpush2.msra.mxu0 0.0
    %860 = vmatprep.mubr.f32.mxu0 0.0
    %861 = vmatmul.mubr.f32.gmra.mxu0 %v759
    %v862 = vpop.f32.mrf.mxu0
    %v863 = vadd.f32 %v209, %v862
    %v864 = vpop.f32.mrf.mxu0
    %v865 = vadd.f32 %v211, %v864
    %866 = vmatprep.mubr.f32.mxu0 0.0
    %867 = vmatmul.mubr.f32.gmra.mxu0 %v762
    %v868 = vpop.f32.mrf.mxu0
    %v869 = vadd.f32 %v215, %v868
    %v870 = vpop.f32.mrf.mxu0
    %v871 = vadd.f32 %v217, %v870
    %872 = vdwg.mxu0
    %873 = vmatprep.subr.mxu0 0.0
    %874 = vmatpush1.msra.mxu0 0.0
    %875 = vmatprep.subr.mxu0 0.0
    %876 = vmatpush1.msra.mxu0 0.0
    %877 = vmatprep.subr.mxu0 0.0
    %878 = vmatpush1.msra.mxu0 0.0
    %879 = vmatprep.subr.mxu0 0.0
    %880 = vmatpush1.msra.mxu0 0.0
    %881 = vmatprep.subr.mxu0 0.0
    %882 = vmatpush1.msra.mxu0 0.0
    %883 = vmatprep.subr.mxu0 0.0
    %884 = vmatpush1.msra.mxu0 0.0
    %885 = vmatprep.subr.mxu0 0.0
    %886 = vmatpush1.msra.mxu0 0.0
    %887 = vmatprep.subr.mxu0 0.0
    %888 = vmatpush1.msra.mxu0 0.0
    %889 = vmatprep.subr.mxu0 0.0
    %890 = vmatpush1.msra.mxu0 0.0
    %891 = vmatprep.subr.mxu0 0.0
    %892 = vmatpush1.msra.mxu0 0.0
    %893 = vmatprep.subr.mxu0 0.0
    %894 = vmatpush1.msra.mxu0 0.0
    %895 = vmatprep.subr.mxu0 0.0
    %896 = vmatpush1.msra.mxu0 0.0
    %897 = vmatprep.subr.mxu0 0.0
    %898 = vmatpush1.msra.mxu0 0.0
    %899 = vmatprep.subr.mxu0 0.0
    %900 = vmatpush1.msra.mxu0 0.0
    %901 = vmatprep.subr.mxu0 0.0
    %902 = vmatpush1.msra.mxu0 0.0
    %903 = vmatprep.subr.mxu0 %v770
    %904 = vmatpush1.msra.mxu0 %v768
    %905 = vmatprep.subr.mxu0 0.0
    %906 = vmatpush2.msra.mxu0 0.0
    %907 = vmatprep.subr.mxu0 0.0
    %908 = vmatpush2.msra.mxu0 0.0
    %909 = vmatprep.subr.mxu0 0.0
    %910 = vmatpush2.msra.mxu0 0.0
    %911 = vmatprep.subr.mxu0 0.0
    %912 = vmatpush2.msra.mxu0 0.0
    %913 = vmatprep.subr.mxu0 0.0
    %914 = vmatpush2.msra.mxu0 0.0
    %915 = vmatprep.subr.mxu0 0.0
    %916 = vmatpush2.msra.mxu0 0.0
    %917 = vmatprep.subr.mxu0 0.0
    %918 = vmatpush2.msra.mxu0 0.0
    %919 = vmatprep.subr.mxu0 0.0
    %920 = vmatpush2.msra.mxu0 0.0
    %921 = vmatprep.subr.mxu0 0.0
    %922 = vmatpush2.msra.mxu0 0.0
    %923 = vmatprep.subr.mxu0 0.0
    %924 = vmatpush2.msra.mxu0 0.0
    %925 = vmatprep.subr.mxu0 0.0
    %926 = vmatpush2.msra.mxu0 0.0
    %927 = vmatprep.subr.mxu0 0.0
    %928 = vmatpush2.msra.mxu0 0.0
    %929 = vmatprep.subr.mxu0 0.0
    %930 = vmatpush2.msra.mxu0 0.0
    %931 = vmatprep.subr.mxu0 0.0
    %932 = vmatpush2.msra.mxu0 0.0
    %933 = vmatprep.subr.mxu0 0.0
    %934 = vmatpush2.msra.mxu0 0.0
    %935 = vmatprep.subr.mxu0 0.0
    %936 = vmatpush2.msra.mxu0 0.0
    %937 = vmatprep.mubr.f32.mxu0 0.0
    %938 = vmatmul.mubr.f32.gmra.mxu0 %v759
    %v939 = vpop.f32.mrf.mxu0
    %v940 = vadd.f32 %v286, %v939
    %v941 = vpop.f32.mrf.mxu0
    %v942 = vadd.f32 %v288, %v941
    %943 = vmatprep.mubr.f32.mxu0 0.0
    %944 = vmatmul.mubr.f32.gmra.mxu0 %v762
    %v945 = vpop.f32.mrf.mxu0
    %v946 = vadd.f32 %v292, %v945
    %v947 = vpop.f32.mrf.mxu0
    %v948 = vadd.f32 %v294, %v947
    %949 = vdwg.mxu0
    %950 = vmatprep.subr.mxu0 0.0
    %951 = vmatpush1.msra.mxu0 0.0
    %952 = vmatprep.subr.mxu0 0.0
    %953 = vmatpush1.msra.mxu0 0.0
    %954 = vmatprep.subr.mxu0 0.0
    %955 = vmatpush1.msra.mxu0 0.0
    %956 = vmatprep.subr.mxu0 0.0
    %957 = vmatpush1.msra.mxu0 0.0
    %958 = vmatprep.subr.mxu0 0.0
    %959 = vmatpush1.msra.mxu0 0.0
    %960 = vmatprep.subr.mxu0 0.0
    %961 = vmatpush1.msra.mxu0 0.0
    %962 = vmatprep.subr.mxu0 0.0
    %963 = vmatpush1.msra.mxu0 0.0
    %964 = vmatprep.subr.mxu0 0.0
    %965 = vmatpush1.msra.mxu0 0.0
    %966 = vmatprep.subr.mxu0 0.0
    %967 = vmatpush1.msra.mxu0 0.0
    %968 = vmatprep.subr.mxu0 0.0
    %969 = vmatpush1.msra.mxu0 0.0
    %970 = vmatprep.subr.mxu0 0.0
    %971 = vmatpush1.msra.mxu0 0.0
    %972 = vmatprep.subr.mxu0 0.0
    %973 = vmatpush1.msra.mxu0 0.0
    %974 = vmatprep.subr.mxu0 0.0
    %975 = vmatpush1.msra.mxu0 0.0
    %976 = vmatprep.subr.mxu0 0.0
    %977 = vmatpush1.msra.mxu0 0.0
    %978 = vmatprep.subr.mxu0 0.0
    %979 = vmatpush1.msra.mxu0 0.0
    %980 = vmatprep.subr.mxu0 %v774
    %981 = vmatpush1.msra.mxu0 %v772
    %982 = vmatprep.subr.mxu0 0.0
    %983 = vmatpush2.msra.mxu0 0.0
    %984 = vmatprep.subr.mxu0 0.0
    %985 = vmatpush2.msra.mxu0 0.0
    %986 = vmatprep.subr.mxu0 0.0
    %987 = vmatpush2.msra.mxu0 0.0
    %988 = vmatprep.subr.mxu0 0.0
    %989 = vmatpush2.msra.mxu0 0.0
    %990 = vmatprep.subr.mxu0 0.0
    %991 = vmatpush2.msra.mxu0 0.0
    %992 = vmatprep.subr.mxu0 0.0
    %993 = vmatpush2.msra.mxu0 0.0
    %994 = vmatprep.subr.mxu0 0.0
    %995 = vmatpush2.msra.mxu0 0.0
    %996 = vmatprep.subr.mxu0 0.0
    %997 = vmatpush2.msra.mxu0 0.0
    %998 = vmatprep.subr.mxu0 0.0
    %999 = vmatpush2.msra.mxu0 0.0
    %1000 = vmatprep.subr.mxu0 0.0
    %1001 = vmatpush2.msra.mxu0 0.0
    %1002 = vmatprep.subr.mxu0 0.0
    %1003 = vmatpush2.msra.mxu0 0.0
    %1004 = vmatprep.subr.mxu0 0.0
    %1005 = vmatpush2.msra.mxu0 0.0
    %1006 = vmatprep.subr.mxu0 0.0
    %1007 = vmatpush2.msra.mxu0 0.0
    %1008 = vmatprep.subr.mxu0 0.0
    %1009 = vmatpush2.msra.mxu0 0.0
    %1010 = vmatprep.subr.mxu0 0.0
    %1011 = vmatpush2.msra.mxu0 0.0
    %1012 = vmatprep.subr.mxu0 0.0
    %1013 = vmatpush2.msra.mxu0 0.0
    %1014 = vmatprep.mubr.f32.mxu0 0.0
    %1015 = vmatmul.mubr.f32.gmra.mxu0 %v759
    %v1016 = vpop.f32.mrf.mxu0
    %v1017 = vadd.f32 %v363, %v1016
    %v1018 = vpop.f32.mrf.mxu0
    %v1019 = vadd.f32 %v365, %v1018
    %1020 = vmatprep.mubr.f32.mxu0 0.0
    %1021 = vmatmul.mubr.f32.gmra.mxu0 %v762
    %v1022 = vpop.f32.mrf.mxu0
    %v1023 = vadd.f32 %v369, %v1022
    %v1024 = vpop.f32.mrf.mxu0
    %v1025 = vadd.f32 %v371, %v1024
    %1026 = vdwg.mxu0
    %1027 = vmatprep.subr.mxu0 0.0
    %1028 = vmatpush1.msra.mxu0 0.0
    %1029 = vmatprep.subr.mxu0 0.0
    %1030 = vmatpush1.msra.mxu0 0.0
    %1031 = vmatprep.subr.mxu0 0.0
    %1032 = vmatpush1.msra.mxu0 0.0
    %1033 = vmatprep.subr.mxu0 0.0
    %1034 = vmatpush1.msra.mxu0 0.0
    %1035 = vmatprep.subr.mxu0 0.0
    %1036 = vmatpush1.msra.mxu0 0.0
    %1037 = vmatprep.subr.mxu0 0.0
    %1038 = vmatpush1.msra.mxu0 0.0
    %1039 = vmatprep.subr.mxu0 0.0
    %1040 = vmatpush1.msra.mxu0 0.0
    %1041 = vmatprep.subr.mxu0 0.0
    %1042 = vmatpush1.msra.mxu0 0.0
    %1043 = vmatprep.subr.mxu0 0.0
    %1044 = vmatpush1.msra.mxu0 0.0
    %1045 = vmatprep.subr.mxu0 0.0
    %1046 = vmatpush1.msra.mxu0 0.0
    %1047 = vmatprep.subr.mxu0 0.0
    %1048 = vmatpush1.msra.mxu0 0.0
    %1049 = vmatprep.subr.mxu0 0.0
    %1050 = vmatpush1.msra.mxu0 0.0
    %1051 = vmatprep.subr.mxu0 0.0
    %1052 = vmatpush1.msra.mxu0 0.0
    %1053 = vmatprep.subr.mxu0 0.0
    %1054 = vmatpush1.msra.mxu0 0.0
    %1055 = vmatprep.subr.mxu0 0.0
    %1056 = vmatpush1.msra.mxu0 0.0
    %1057 = vmatprep.subr.mxu0 %v778
    %1058 = vmatpush1.msra.mxu0 %v776
    %1059 = vmatprep.subr.mxu0 0.0
    %1060 = vmatpush2.msra.mxu0 0.0
    %1061 = vmatprep.subr.mxu0 0.0
    %1062 = vmatpush2.msra.mxu0 0.0
    %1063 = vmatprep.subr.mxu0 0.0
    %1064 = vmatpush2.msra.mxu0 0.0
    %1065 = vmatprep.subr.mxu0 0.0
    %1066 = vmatpush2.msra.mxu0 0.0
    %1067 = vmatprep.subr.mxu0 0.0
    %1068 = vmatpush2.msra.mxu0 0.0
    %1069 = vmatprep.subr.mxu0 0.0
    %1070 = vmatpush2.msra.mxu0 0.0
    %1071 = vmatprep.subr.mxu0 0.0
    %1072 = vmatpush2.msra.mxu0 0.0
    %1073 = vmatprep.subr.mxu0 0.0
    %1074 = vmatpush2.msra.mxu0 0.0
    %1075 = vmatprep.subr.mxu0 0.0
    %1076 = vmatpush2.msra.mxu0 0.0
    %1077 = vmatprep.subr.mxu0 0.0
    %1078 = vmatpush2.msra.mxu0 0.0
    %1079 = vmatprep.subr.mxu0 0.0
    %1080 = vmatpush2.msra.mxu0 0.0
    %1081 = vmatprep.subr.mxu0 0.0
    %1082 = vmatpush2.msra.mxu0 0.0
    %1083 = vmatprep.subr.mxu0 0.0
    %1084 = vmatpush2.msra.mxu0 0.0
    %1085 = vmatprep.subr.mxu0 0.0
    %1086 = vmatpush2.msra.mxu0 0.0
    %1087 = vmatprep.subr.mxu0 0.0
    %1088 = vmatpush2.msra.mxu0 0.0
    %1089 = vmatprep.subr.mxu0 0.0
    %1090 = vmatpush2.msra.mxu0 0.0
    %1091 = vmatprep.mubr.f32.mxu0 0.0
    %1092 = vmatmul.mubr.f32.gmra.mxu0 %v759
    %v1093 = vpop.f32.mrf.mxu0
    %v1094 = vadd.f32 %v440, %v1093
    %v1095 = vpop.f32.mrf.mxu0
    %v1096 = vadd.f32 %v442, %v1095
    %1097 = vmatprep.mubr.f32.mxu0 0.0
    %1098 = vmatmul.mubr.f32.gmra.mxu0 %v762
    %v1099 = vpop.f32.mrf.mxu0
    %v1100 = vadd.f32 %v446, %v1099
    %v1101 = vpop.f32.mrf.mxu0
    %v1102 = vadd.f32 %v448, %v1101
    %1103 = vdwg.mxu0
    %1104 = vmatprep.subr.mxu0 0.0
    %1105 = vmatpush1.msra.mxu0 0.0
    %1106 = vmatprep.subr.mxu0 0.0
    %1107 = vmatpush1.msra.mxu0 0.0
    %1108 = vmatprep.subr.mxu0 0.0
    %1109 = vmatpush1.msra.mxu0 0.0
    %1110 = vmatprep.subr.mxu0 0.0
    %1111 = vmatpush1.msra.mxu0 0.0
    %1112 = vmatprep.subr.mxu0 0.0
    %1113 = vmatpush1.msra.mxu0 0.0
    %1114 = vmatprep.subr.mxu0 0.0
    %1115 = vmatpush1.msra.mxu0 0.0
    %1116 = vmatprep.subr.mxu0 0.0
    %1117 = vmatpush1.msra.mxu0 0.0
    %1118 = vmatprep.subr.mxu0 0.0
    %1119 = vmatpush1.msra.mxu0 0.0
    %1120 = vmatprep.subr.mxu0 0.0
    %1121 = vmatpush1.msra.mxu0 0.0
    %1122 = vmatprep.subr.mxu0 0.0
    %1123 = vmatpush1.msra.mxu0 0.0
    %1124 = vmatprep.subr.mxu0 0.0
    %1125 = vmatpush1.msra.mxu0 0.0
    %1126 = vmatprep.subr.mxu0 0.0
    %1127 = vmatpush1.msra.mxu0 0.0
    %1128 = vmatprep.subr.mxu0 0.0
    %1129 = vmatpush1.msra.mxu0 0.0
    %1130 = vmatprep.subr.mxu0 0.0
    %1131 = vmatpush1.msra.mxu0 0.0
    %1132 = vmatprep.subr.mxu0 0.0
    %1133 = vmatpush1.msra.mxu0 0.0
    %1134 = vmatprep.subr.mxu0 %v782
    %1135 = vmatpush1.msra.mxu0 %v780
    %1136 = vmatprep.subr.mxu0 0.0
    %1137 = vmatpush2.msra.mxu0 0.0
    %1138 = vmatprep.subr.mxu0 0.0
    %1139 = vmatpush2.msra.mxu0 0.0
    %1140 = vmatprep.subr.mxu0 0.0
    %1141 = vmatpush2.msra.mxu0 0.0
    %1142 = vmatprep.subr.mxu0 0.0
    %1143 = vmatpush2.msra.mxu0 0.0
    %1144 = vmatprep.subr.mxu0 0.0
    %1145 = vmatpush2.msra.mxu0 0.0
    %1146 = vmatprep.subr.mxu0 0.0
    %1147 = vmatpush2.msra.mxu0 0.0
    %1148 = vmatprep.subr.mxu0 0.0
    %1149 = vmatpush2.msra.mxu0 0.0
    %1150 = vmatprep.subr.mxu0 0.0
    %1151 = vmatpush2.msra.mxu0 0.0
    %1152 = vmatprep.subr.mxu0 0.0
    %1153 = vmatpush2.msra.mxu0 0.0
    %1154 = vmatprep.subr.mxu0 0.0
    %1155 = vmatpush2.msra.mxu0 0.0
    %1156 = vmatprep.subr.mxu0 0.0
    %1157 = vmatpush2.msra.mxu0 0.0
    %1158 = vmatprep.subr.mxu0 0.0
    %1159 = vmatpush2.msra.mxu0 0.0
    %1160 = vmatprep.subr.mxu0 0.0
    %1161 = vmatpush2.msra.mxu0 0.0
    %1162 = vmatprep.subr.mxu0 0.0
    %1163 = vmatpush2.msra.mxu0 0.0
    %1164 = vmatprep.subr.mxu0 0.0
    %1165 = vmatpush2.msra.mxu0 0.0
    %1166 = vmatprep.subr.mxu0 0.0
    %1167 = vmatpush2.msra.mxu0 0.0
    %1168 = vmatprep.mubr.f32.mxu0 0.0
    %1169 = vmatmul.mubr.f32.gmra.mxu0 %v759
    %v1170 = vpop.f32.mrf.mxu0
    %v1171 = vadd.f32 %v517, %v1170
    %v1172 = vpop.f32.mrf.mxu0
    %v1173 = vadd.f32 %v519, %v1172
    %1174 = vmatprep.mubr.f32.mxu0 0.0
    %1175 = vmatmul.mubr.f32.gmra.mxu0 %v762
    %v1176 = vpop.f32.mrf.mxu0
    %v1177 = vadd.f32 %v523, %v1176
    %v1178 = vpop.f32.mrf.mxu0
    %v1179 = vadd.f32 %v525, %v1178
    %1180 = vdwg.mxu0
    %1181 = vmatprep.subr.mxu0 0.0
    %1182 = vmatpush1.msra.mxu0 0.0
    %1183 = vmatprep.subr.mxu0 0.0
    %1184 = vmatpush1.msra.mxu0 0.0
    %1185 = vmatprep.subr.mxu0 0.0
    %1186 = vmatpush1.msra.mxu0 0.0
    %1187 = vmatprep.subr.mxu0 0.0
    %1188 = vmatpush1.msra.mxu0 0.0
    %1189 = vmatprep.subr.mxu0 0.0
    %1190 = vmatpush1.msra.mxu0 0.0
    %1191 = vmatprep.subr.mxu0 0.0
    %1192 = vmatpush1.msra.mxu0 0.0
    %1193 = vmatprep.subr.mxu0 0.0
    %1194 = vmatpush1.msra.mxu0 0.0
    %1195 = vmatprep.subr.mxu0 0.0
    %1196 = vmatpush1.msra.mxu0 0.0
    %1197 = vmatprep.subr.mxu0 0.0
    %1198 = vmatpush1.msra.mxu0 0.0
    %1199 = vmatprep.subr.mxu0 0.0
    %1200 = vmatpush1.msra.mxu0 0.0
    %1201 = vmatprep.subr.mxu0 0.0
    %1202 = vmatpush1.msra.mxu0 0.0
    %1203 = vmatprep.subr.mxu0 0.0
    %1204 = vmatpush1.msra.mxu0 0.0
    %1205 = vmatprep.subr.mxu0 0.0
    %1206 = vmatpush1.msra.mxu0 0.0
    %1207 = vmatprep.subr.mxu0 0.0
    %1208 = vmatpush1.msra.mxu0 0.0
    %1209 = vmatprep.subr.mxu0 0.0
    %1210 = vmatpush1.msra.mxu0 0.0
    %1211 = vmatprep.subr.mxu0 %v786
    %1212 = vmatpush1.msra.mxu0 %v784
    %1213 = vmatprep.subr.mxu0 0.0
    %1214 = vmatpush2.msra.mxu0 0.0
    %1215 = vmatprep.subr.mxu0 0.0
    %1216 = vmatpush2.msra.mxu0 0.0
    %1217 = vmatprep.subr.mxu0 0.0
    %1218 = vmatpush2.msra.mxu0 0.0
    %1219 = vmatprep.subr.mxu0 0.0
    %1220 = vmatpush2.msra.mxu0 0.0
    %1221 = vmatprep.subr.mxu0 0.0
    %1222 = vmatpush2.msra.mxu0 0.0
    %1223 = vmatprep.subr.mxu0 0.0
    %1224 = vmatpush2.msra.mxu0 0.0
    %1225 = vmatprep.subr.mxu0 0.0
    %1226 = vmatpush2.msra.mxu0 0.0
    %1227 = vmatprep.subr.mxu0 0.0
    %1228 = vmatpush2.msra.mxu0 0.0
    %1229 = vmatprep.subr.mxu0 0.0
    %1230 = vmatpush2.msra.mxu0 0.0
    %1231 = vmatprep.subr.mxu0 0.0
    %1232 = vmatpush2.msra.mxu0 0.0
    %1233 = vmatprep.subr.mxu0 0.0
    %1234 = vmatpush2.msra.mxu0 0.0
    %1235 = vmatprep.subr.mxu0 0.0
    %1236 = vmatpush2.msra.mxu0 0.0
    %1237 = vmatprep.subr.mxu0 0.0
    %1238 = vmatpush2.msra.mxu0 0.0
    %1239 = vmatprep.subr.mxu0 0.0
    %1240 = vmatpush2.msra.mxu0 0.0
    %1241 = vmatprep.subr.mxu0 0.0
    %1242 = vmatpush2.msra.mxu0 0.0
    %1243 = vmatprep.subr.mxu0 0.0
    %1244 = vmatpush2.msra.mxu0 0.0
    %1245 = vmatprep.mubr.f32.mxu0 0.0
    %1246 = vmatmul.mubr.f32.gmra.mxu0 %v759
    %v1247 = vpop.f32.mrf.mxu0
    %v1248 = vadd.f32 %v594, %v1247
    %v1249 = vpop.f32.mrf.mxu0
    %v1250 = vadd.f32 %v596, %v1249
    %1251 = vmatprep.mubr.f32.mxu0 0.0
    %1252 = vmatmul.mubr.f32.gmra.mxu0 %v762
    %v1253 = vpop.f32.mrf.mxu0
    %v1254 = vadd.f32 %v600, %v1253
    %v1255 = vpop.f32.mrf.mxu0
    %v1256 = vadd.f32 %v602, %v1255
    %1257 = vdwg.mxu0
    %1258 = vmatprep.subr.mxu0 0.0
    %1259 = vmatpush1.msra.mxu0 0.0
    %1260 = vmatprep.subr.mxu0 0.0
    %1261 = vmatpush1.msra.mxu0 0.0
    %1262 = vmatprep.subr.mxu0 0.0
    %1263 = vmatpush1.msra.mxu0 0.0
    %1264 = vmatprep.subr.mxu0 0.0
    %1265 = vmatpush1.msra.mxu0 0.0
    %1266 = vmatprep.subr.mxu0 0.0
    %1267 = vmatpush1.msra.mxu0 0.0
    %1268 = vmatprep.subr.mxu0 0.0
    %1269 = vmatpush1.msra.mxu0 0.0
    %1270 = vmatprep.subr.mxu0 0.0
    %1271 = vmatpush1.msra.mxu0 0.0
    %1272 = vmatprep.subr.mxu0 0.0
    %1273 = vmatpush1.msra.mxu0 0.0
    %1274 = vmatprep.subr.mxu0 0.0
    %1275 = vmatpush1.msra.mxu0 0.0
    %1276 = vmatprep.subr.mxu0 0.0
    %1277 = vmatpush1.msra.mxu0 0.0
    %1278 = vmatprep.subr.mxu0 0.0
    %1279 = vmatpush1.msra.mxu0 0.0
    %1280 = vmatprep.subr.mxu0 0.0
    %1281 = vmatpush1.msra.mxu0 0.0
    %1282 = vmatprep.subr.mxu0 0.0
    %1283 = vmatpush1.msra.mxu0 0.0
    %1284 = vmatprep.subr.mxu0 0.0
    %1285 = vmatpush1.msra.mxu0 0.0
    %1286 = vmatprep.subr.mxu0 0.0
    %1287 = vmatpush1.msra.mxu0 0.0
    %1288 = vmatprep.subr.mxu0 %v790
    %1289 = vmatpush1.msra.mxu0 %v788
    %1290 = vmatprep.subr.mxu0 0.0
    %1291 = vmatpush2.msra.mxu0 0.0
    %1292 = vmatprep.subr.mxu0 0.0
    %1293 = vmatpush2.msra.mxu0 0.0
    %1294 = vmatprep.subr.mxu0 0.0
    %1295 = vmatpush2.msra.mxu0 0.0
    %1296 = vmatprep.subr.mxu0 0.0
    %1297 = vmatpush2.msra.mxu0 0.0
    %1298 = vmatprep.subr.mxu0 0.0
    %1299 = vmatpush2.msra.mxu0 0.0
    %1300 = vmatprep.subr.mxu0 0.0
    %1301 = vmatpush2.msra.mxu0 0.0
    %1302 = vmatprep.subr.mxu0 0.0
    %1303 = vmatpush2.msra.mxu0 0.0
    %1304 = vmatprep.subr.mxu0 0.0
    %1305 = vmatpush2.msra.mxu0 0.0
    %1306 = vmatprep.subr.mxu0 0.0
    %1307 = vmatpush2.msra.mxu0 0.0
    %1308 = vmatprep.subr.mxu0 0.0
    %1309 = vmatpush2.msra.mxu0 0.0
    %1310 = vmatprep.subr.mxu0 0.0
    %1311 = vmatpush2.msra.mxu0 0.0
    %1312 = vmatprep.subr.mxu0 0.0
    %1313 = vmatpush2.msra.mxu0 0.0
    %1314 = vmatprep.subr.mxu0 0.0
    %1315 = vmatpush2.msra.mxu0 0.0
    %1316 = vmatprep.subr.mxu0 0.0
    %1317 = vmatpush2.msra.mxu0 0.0
    %1318 = vmatprep.subr.mxu0 0.0
    %1319 = vmatpush2.msra.mxu0 0.0
    %1320 = vmatprep.subr.mxu0 0.0
    %1321 = vmatpush2.msra.mxu0 0.0
    %1322 = vmatprep.mubr.f32.mxu0 0.0
    %1323 = vmatmul.mubr.f32.gmra.mxu0 %v759
    %v1324 = vpop.f32.mrf.mxu0
    %v1325 = vadd.f32 %v671, %v1324
    %v1326 = vpop.f32.mrf.mxu0
    %v1327 = vadd.f32 %v673, %v1326
    %1328 = vmatprep.mubr.f32.mxu0 0.0
    %1329 = vmatmul.mubr.f32.gmra.mxu0 %v762
    %v1330 = vpop.f32.mrf.mxu0
    %v1331 = vadd.f32 %v677, %v1330
    %v1332 = vpop.f32.mrf.mxu0
    %v1333 = vadd.f32 %v679, %v1332
    %1334 = vdwg.mxu0
    %1335 = vmatprep.subr.mxu0 0.0
    %1336 = vmatpush1.msra.mxu0 0.0
    %1337 = vmatprep.subr.mxu0 0.0
    %1338 = vmatpush1.msra.mxu0 0.0
    %1339 = vmatprep.subr.mxu0 0.0
    %1340 = vmatpush1.msra.mxu0 0.0
    %1341 = vmatprep.subr.mxu0 0.0
    %1342 = vmatpush1.msra.mxu0 0.0
    %1343 = vmatprep.subr.mxu0 0.0
    %1344 = vmatpush1.msra.mxu0 0.0
    %1345 = vmatprep.subr.mxu0 0.0
    %1346 = vmatpush1.msra.mxu0 0.0
    %1347 = vmatprep.subr.mxu0 0.0
    %1348 = vmatpush1.msra.mxu0 0.0
    %1349 = vmatprep.subr.mxu0 0.0
    %1350 = vmatpush1.msra.mxu0 0.0
    %1351 = vmatprep.subr.mxu0 0.0
    %1352 = vmatpush1.msra.mxu0 0.0
    %1353 = vmatprep.subr.mxu0 0.0
    %1354 = vmatpush1.msra.mxu0 0.0
    %1355 = vmatprep.subr.mxu0 0.0
    %1356 = vmatpush1.msra.mxu0 0.0
    %1357 = vmatprep.subr.mxu0 0.0
    %1358 = vmatpush1.msra.mxu0 0.0
    %1359 = vmatprep.subr.mxu0 0.0
    %1360 = vmatpush1.msra.mxu0 0.0
    %1361 = vmatprep.subr.mxu0 0.0
    %1362 = vmatpush1.msra.mxu0 0.0
    %1363 = vmatprep.subr.mxu0 0.0
    %1364 = vmatpush1.msra.mxu0 0.0
    %1365 = vmatprep.subr.mxu0 %v794
    %1366 = vmatpush1.msra.mxu0 %v792
    %1367 = vmatprep.subr.mxu0 0.0
    %1368 = vmatpush2.msra.mxu0 0.0
    %1369 = vmatprep.subr.mxu0 0.0
    %1370 = vmatpush2.msra.mxu0 0.0
    %1371 = vmatprep.subr.mxu0 0.0
    %1372 = vmatpush2.msra.mxu0 0.0
    %1373 = vmatprep.subr.mxu0 0.0
    %1374 = vmatpush2.msra.mxu0 0.0
    %1375 = vmatprep.subr.mxu0 0.0
    %1376 = vmatpush2.msra.mxu0 0.0
    %1377 = vmatprep.subr.mxu0 0.0
    %1378 = vmatpush2.msra.mxu0 0.0
    %1379 = vmatprep.subr.mxu0 0.0
    %1380 = vmatpush2.msra.mxu0 0.0
    %1381 = vmatprep.subr.mxu0 0.0
    %1382 = vmatpush2.msra.mxu0 0.0
    %1383 = vmatprep.subr.mxu0 0.0
    %1384 = vmatpush2.msra.mxu0 0.0
    %1385 = vmatprep.subr.mxu0 0.0
    %1386 = vmatpush2.msra.mxu0 0.0
    %1387 = vmatprep.subr.mxu0 0.0
    %1388 = vmatpush2.msra.mxu0 0.0
    %1389 = vmatprep.subr.mxu0 0.0
    %1390 = vmatpush2.msra.mxu0 0.0
    %1391 = vmatprep.subr.mxu0 0.0
    %1392 = vmatpush2.msra.mxu0 0.0
    %1393 = vmatprep.subr.mxu0 0.0
    %1394 = vmatpush2.msra.mxu0 0.0
    %1395 = vmatprep.subr.mxu0 0.0
    %1396 = vmatpush2.msra.mxu0 0.0
    %1397 = vmatprep.subr.mxu0 0.0
    %1398 = vmatpush2.msra.mxu0 0.0
    %1399 = vmatprep.mubr.f32.mxu0 0.0
    %1400 = vmatmul.mubr.f32.gmra.mxu0 %v759
    %v1401 = vpop.f32.mrf.mxu0
    %v1402 = vadd.f32 %v748, %v1401
    %v1403 = vpop.f32.mrf.mxu0
    %v1404 = vadd.f32 %v750, %v1403
    %1405 = vmatprep.mubr.f32.mxu0 0.0
    %1406 = vmatmul.mubr.f32.gmra.mxu0 %v762
    %v1407 = vpop.f32.mrf.mxu0
    %v1408 = vadd.f32 %v754, %v1407
    %v1409 = vpop.f32.mrf.mxu0
    %v1410 = vadd.f32 %v756, %v1409
    %1411 = vdwg.mxu0
    %1412 = vrot.lane.b32.xlu0 %v21, 126
    %v1413 = vpop.permute.xlu0 %1412
    %1414 = vrot.lane.b32.xlu0 %v39, 126
    %v1415 = vpop.permute.xlu0 %1414
    %1416 = vrot.lane.b32.xlu0 %v22, 126
    %v1417 = vpop.permute.xlu0 %1416
    %1418 = vrot.lane.b32.xlu0 %v40, 126
    %v1419 = vpop.permute.xlu0 %1418
    %1420 = vrot.lane.b32.xlu0 %v23, 126
    %v1421 = vpop.permute.xlu0 %1420
    %1422 = vrot.lane.b32.xlu0 %v41, 126
    %v1423 = vpop.permute.xlu0 %1422
    %1424 = vrot.lane.b32.xlu0 %v24, 126
    %v1425 = vpop.permute.xlu0 %1424
    %1426 = vrot.lane.b32.xlu0 %v42, 126
    %v1427 = vpop.permute.xlu0 %1426
    %1428 = vrot.lane.b32.xlu0 %v25, 126
    %v1429 = vpop.permute.xlu0 %1428
    %1430 = vrot.lane.b32.xlu0 %v43, 126
    %v1431 = vpop.permute.xlu0 %1430
    %1432 = vrot.lane.b32.xlu0 %v26, 126
    %v1433 = vpop.permute.xlu0 %1432
    %1434 = vrot.lane.b32.xlu0 %v44, 126
    %v1435 = vpop.permute.xlu0 %1434
    %1436 = vrot.lane.b32.xlu0 %v27, 126
    %v1437 = vpop.permute.xlu0 %1436
    %1438 = vrot.lane.b32.xlu0 %v45, 126
    %v1439 = vpop.permute.xlu0 %1438
    %1440 = vrot.lane.b32.xlu0 %v28, 126
    %v1441 = vpop.permute.xlu0 %1440
    %1442 = vrot.lane.b32.xlu0 %v46, 126
    %v1443 = vpop.permute.xlu0 %1442
    %vm1444 = vcmask 1031168
    %v1445 = vsel %vm1444, %v1413, %v1415
    %v1446 = vsel %vm1444, %v1415, %v1417
    %v1447 = vsel %vm1444, %v1417, %v1419
    %v1448 = vsel %vm1444, %v1419, %v1421
    %v1449 = vsel %vm1444, %v1421, %v1423
    %v1450 = vsel %vm1444, %v1423, %v1425
    %v1451 = vsel %vm1444, %v1425, %v1427
    %v1452 = vsel %vm1444, %v1427, %v1429
    %v1453 = vsel %vm1444, %v1429, %v1431
    %v1454 = vsel %vm1444, %v1431, %v1433
    %v1455 = vsel %vm1444, %v1433, %v1435
    %v1456 = vsel %vm1444, %v1435, %v1437
    %v1457 = vsel %vm1444, %v1437, %v1439
    %v1458 = vsel %vm1444, %v1439, %v1441
    %v1459 = vsel %vm1444, %v1441, %v1443
    %v1462 = vsel %vm1444, %v1443, %v1413
    %s1463 = scalar_lea.vmem %s1, 32
    %v1464 = vld [vmem:[%s1463] sm:$0xff]
    %v1465 = vld [vmem:[%s1463 + $0x8] sm:$0x3]
    %v1467 = vsel %vm101, %v1464, 0
    %v1470 = vsel %vm101, %v1465, 0
    %v1472 = vsel %vm108, %v1445, 0
    %v1474 = vsel %vm108, %v1446, 0
    %v1476 = vsel %vm108, %v1447, 0
    %v1478 = vsel %vm108, %v1448, 0
    %v1480 = vsel %vm108, %v1449, 0
    %v1482 = vsel %vm108, %v1450, 0
    %v1484 = vsel %vm108, %v1451, 0
    %v1486 = vsel %vm108, %v1452, 0
    %v1488 = vsel %vm108, %v1453, 0
    %v1490 = vsel %vm108, %v1454, 0
    %v1492 = vsel %vm108, %v1455, 0
    %v1494 = vsel %vm108, %v1456, 0
    %v1496 = vsel %vm108, %v1457, 0
    %v1498 = vsel %vm108, %v1458, 0
    %v1500 = vsel %vm108, %v1459, 0
    %v1503 = vsel %vm108, %v1462, 0
    %1505 = vmatprep.subr.mxu0 0.0
    %1506 = vmatpush1.msra.mxu0 0.0
    %1507 = vmatprep.subr.mxu0 0.0
    %1508 = vmatpush1.msra.mxu0 0.0
    %1509 = vmatprep.subr.mxu0 0.0
    %1510 = vmatpush1.msra.mxu0 0.0
    %1511 = vmatprep.subr.mxu0 0.0
    %1512 = vmatpush1.msra.mxu0 0.0
    %1513 = vmatprep.subr.mxu0 0.0
    %1514 = vmatpush1.msra.mxu0 0.0
    %1515 = vmatprep.subr.mxu0 0.0
    %1516 = vmatpush1.msra.mxu0 0.0
    %1517 = vmatprep.subr.mxu0 0.0
    %1518 = vmatpush1.msra.mxu0 0.0
    %1519 = vmatprep.subr.mxu0 0.0
    %1520 = vmatpush1.msra.mxu0 0.0
    %1521 = vmatprep.subr.mxu0 0.0
    %1522 = vmatpush1.msra.mxu0 0.0
    %1523 = vmatprep.subr.mxu0 0.0
    %1524 = vmatpush1.msra.mxu0 0.0
    %1525 = vmatprep.subr.mxu0 0.0
    %1526 = vmatpush1.msra.mxu0 0.0
    %1527 = vmatprep.subr.mxu0 0.0
    %1528 = vmatpush1.msra.mxu0 0.0
    %1529 = vmatprep.subr.mxu0 0.0
    %1530 = vmatpush1.msra.mxu0 0.0
    %1531 = vmatprep.subr.mxu0 0.0
    %1532 = vmatpush1.msra.mxu0 0.0
    %1533 = vmatprep.subr.mxu0 0.0
    %1534 = vmatpush1.msra.mxu0 0.0
    %1535 = vmatprep.subr.mxu0 %v1474
    %1536 = vmatpush1.msra.mxu0 %v1472
    %1537 = vmatprep.subr.mxu0 0.0
    %1538 = vmatpush2.msra.mxu0 0.0
    %1539 = vmatprep.subr.mxu0 0.0
    %1540 = vmatpush2.msra.mxu0 0.0
    %1541 = vmatprep.subr.mxu0 0.0
    %1542 = vmatpush2.msra.mxu0 0.0
    %1543 = vmatprep.subr.mxu0 0.0
    %1544 = vmatpush2.msra.mxu0 0.0
    %1545 = vmatprep.subr.mxu0 0.0
    %1546 = vmatpush2.msra.mxu0 0.0
    %1547 = vmatprep.subr.mxu0 0.0
    %1548 = vmatpush2.msra.mxu0 0.0
    %1549 = vmatprep.subr.mxu0 0.0
    %1550 = vmatpush2.msra.mxu0 0.0
    %1551 = vmatprep.subr.mxu0 0.0
    %1552 = vmatpush2.msra.mxu0 0.0
    %1553 = vmatprep.subr.mxu0 0.0
    %1554 = vmatpush2.msra.mxu0 0.0
    %1555 = vmatprep.subr.mxu0 0.0
    %1556 = vmatpush2.msra.mxu0 0.0
    %1557 = vmatprep.subr.mxu0 0.0
    %1558 = vmatpush2.msra.mxu0 0.0
    %1559 = vmatprep.subr.mxu0 0.0
    %1560 = vmatpush2.msra.mxu0 0.0
    %1561 = vmatprep.subr.mxu0 0.0
    %1562 = vmatpush2.msra.mxu0 0.0
    %1563 = vmatprep.subr.mxu0 0.0
    %1564 = vmatpush2.msra.mxu0 0.0
    %1565 = vmatprep.subr.mxu0 0.0
    %1566 = vmatpush2.msra.mxu0 0.0
    %1567 = vmatprep.subr.mxu0 0.0
    %1568 = vmatpush2.msra.mxu0 0.0
    %1569 = vmatprep.mubr.f32.mxu0 0.0
    %1570 = vmatmul.mubr.f32.gmra.mxu0 %v1467
    %v1571 = vpop.f32.mrf.mxu0
    %v1572 = vadd.f32 0.0, %v1571
    %v1573 = vpop.f32.mrf.mxu0
    %v1574 = vadd.f32 0.0, %v1573
    %1575 = vmatprep.mubr.f32.mxu0 0.0
    %1576 = vmatmul.mubr.f32.gmra.mxu0 %v1470
    %v1577 = vpop.f32.mrf.mxu0
    %v1578 = vadd.f32 0.0, %v1577
    %v1579 = vpop.f32.mrf.mxu0
    %v1580 = vadd.f32 0.0, %v1579
    %1581 = vdwg.mxu0
    %1582 = vmatprep.subr.mxu0 0.0
    %1583 = vmatpush1.msra.mxu0 0.0
    %1584 = vmatprep.subr.mxu0 0.0
    %1585 = vmatpush1.msra.mxu0 0.0
    %1586 = vmatprep.subr.mxu0 0.0
    %1587 = vmatpush1.msra.mxu0 0.0
    %1588 = vmatprep.subr.mxu0 0.0
    %1589 = vmatpush1.msra.mxu0 0.0
    %1590 = vmatprep.subr.mxu0 0.0
    %1591 = vmatpush1.msra.mxu0 0.0
    %1592 = vmatprep.subr.mxu0 0.0
    %1593 = vmatpush1.msra.mxu0 0.0
    %1594 = vmatprep.subr.mxu0 0.0
    %1595 = vmatpush1.msra.mxu0 0.0
    %1596 = vmatprep.subr.mxu0 0.0
    %1597 = vmatpush1.msra.mxu0 0.0
    %1598 = vmatprep.subr.mxu0 0.0
    %1599 = vmatpush1.msra.mxu0 0.0
    %1600 = vmatprep.subr.mxu0 0.0
    %1601 = vmatpush1.msra.mxu0 0.0
    %1602 = vmatprep.subr.mxu0 0.0
    %1603 = vmatpush1.msra.mxu0 0.0
    %1604 = vmatprep.subr.mxu0 0.0
    %1605 = vmatpush1.msra.mxu0 0.0
    %1606 = vmatprep.subr.mxu0 0.0
    %1607 = vmatpush1.msra.mxu0 0.0
    %1608 = vmatprep.subr.mxu0 0.0
    %1609 = vmatpush1.msra.mxu0 0.0
    %1610 = vmatprep.subr.mxu0 0.0
    %1611 = vmatpush1.msra.mxu0 0.0
    %1612 = vmatprep.subr.mxu0 %v1478
    %1613 = vmatpush1.msra.mxu0 %v1476
    %1614 = vmatprep.subr.mxu0 0.0
    %1615 = vmatpush2.msra.mxu0 0.0
    %1616 = vmatprep.subr.mxu0 0.0
    %1617 = vmatpush2.msra.mxu0 0.0
    %1618 = vmatprep.subr.mxu0 0.0
    %1619 = vmatpush2.msra.mxu0 0.0
    %1620 = vmatprep.subr.mxu0 0.0
    %1621 = vmatpush2.msra.mxu0 0.0
    %1622 = vmatprep.subr.mxu0 0.0
    %1623 = vmatpush2.msra.mxu0 0.0
    %1624 = vmatprep.subr.mxu0 0.0
    %1625 = vmatpush2.msra.mxu0 0.0
    %1626 = vmatprep.subr.mxu0 0.0
    %1627 = vmatpush2.msra.mxu0 0.0
    %1628 = vmatprep.subr.mxu0 0.0
    %1629 = vmatpush2.msra.mxu0 0.0
    %1630 = vmatprep.subr.mxu0 0.0
    %1631 = vmatpush2.msra.mxu0 0.0
    %1632 = vmatprep.subr.mxu0 0.0
    %1633 = vmatpush2.msra.mxu0 0.0
    %1634 = vmatprep.subr.mxu0 0.0
    %1635 = vmatpush2.msra.mxu0 0.0
    %1636 = vmatprep.subr.mxu0 0.0
    %1637 = vmatpush2.msra.mxu0 0.0
    %1638 = vmatprep.subr.mxu0 0.0
    %1639 = vmatpush2.msra.mxu0 0.0
    %1640 = vmatprep.subr.mxu0 0.0
    %1641 = vmatpush2.msra.mxu0 0.0
    %1642 = vmatprep.subr.mxu0 0.0
    %1643 = vmatpush2.msra.mxu0 0.0
    %1644 = vmatprep.subr.mxu0 0.0
    %1645 = vmatpush2.msra.mxu0 0.0
    %1646 = vmatprep.mubr.f32.mxu0 0.0
    %1647 = vmatmul.mubr.f32.gmra.mxu0 %v1467
    %v1648 = vpop.f32.mrf.mxu0
    %v1649 = vadd.f32 0.0, %v1648
    %v1650 = vpop.f32.mrf.mxu0
    %v1651 = vadd.f32 0.0, %v1650
    %1652 = vmatprep.mubr.f32.mxu0 0.0
    %1653 = vmatmul.mubr.f32.gmra.mxu0 %v1470
    %v1654 = vpop.f32.mrf.mxu0
    %v1655 = vadd.f32 0.0, %v1654
    %v1656 = vpop.f32.mrf.mxu0
    %v1657 = vadd.f32 0.0, %v1656
    %1658 = vdwg.mxu0
    %1659 = vmatprep.subr.mxu0 0.0
    %1660 = vmatpush1.msra.mxu0 0.0
    %1661 = vmatprep.subr.mxu0 0.0
    %1662 = vmatpush1.msra.mxu0 0.0
    %1663 = vmatprep.subr.mxu0 0.0
    %1664 = vmatpush1.msra.mxu0 0.0
    %1665 = vmatprep.subr.mxu0 0.0
    %1666 = vmatpush1.msra.mxu0 0.0
    %1667 = vmatprep.subr.mxu0 0.0
    %1668 = vmatpush1.msra.mxu0 0.0
    %1669 = vmatprep.subr.mxu0 0.0
    %1670 = vmatpush1.msra.mxu0 0.0
    %1671 = vmatprep.subr.mxu0 0.0
    %1672 = vmatpush1.msra.mxu0 0.0
    %1673 = vmatprep.subr.mxu0 0.0
    %1674 = vmatpush1.msra.mxu0 0.0
    %1675 = vmatprep.subr.mxu0 0.0
    %1676 = vmatpush1.msra.mxu0 0.0
    %1677 = vmatprep.subr.mxu0 0.0
    %1678 = vmatpush1.msra.mxu0 0.0
    %1679 = vmatprep.subr.mxu0 0.0
    %1680 = vmatpush1.msra.mxu0 0.0
    %1681 = vmatprep.subr.mxu0 0.0
    %1682 = vmatpush1.msra.mxu0 0.0
    %1683 = vmatprep.subr.mxu0 0.0
    %1684 = vmatpush1.msra.mxu0 0.0
    %1685 = vmatprep.subr.mxu0 0.0
    %1686 = vmatpush1.msra.mxu0 0.0
    %1687 = vmatprep.subr.mxu0 0.0
    %1688 = vmatpush1.msra.mxu0 0.0
    %1689 = vmatprep.subr.mxu0 %v1482
    %1690 = vmatpush1.msra.mxu0 %v1480
    %1691 = vmatprep.subr.mxu0 0.0
    %1692 = vmatpush2.msra.mxu0 0.0
    %1693 = vmatprep.subr.mxu0 0.0
    %1694 = vmatpush2.msra.mxu0 0.0
    %1695 = vmatprep.subr.mxu0 0.0
    %1696 = vmatpush2.msra.mxu0 0.0
    %1697 = vmatprep.subr.mxu0 0.0
    %1698 = vmatpush2.msra.mxu0 0.0
    %1699 = vmatprep.subr.mxu0 0.0
    %1700 = vmatpush2.msra.mxu0 0.0
    %1701 = vmatprep.subr.mxu0 0.0
    %1702 = vmatpush2.msra.mxu0 0.0
    %1703 = vmatprep.subr.mxu0 0.0
    %1704 = vmatpush2.msra.mxu0 0.0
    %1705 = vmatprep.subr.mxu0 0.0
    %1706 = vmatpush2.msra.mxu0 0.0
    %1707 = vmatprep.subr.mxu0 0.0
    %1708 = vmatpush2.msra.mxu0 0.0
    %1709 = vmatprep.subr.mxu0 0.0
    %1710 = vmatpush2.msra.mxu0 0.0
    %1711 = vmatprep.subr.mxu0 0.0
    %1712 = vmatpush2.msra.mxu0 0.0
    %1713 = vmatprep.subr.mxu0 0.0
    %1714 = vmatpush2.msra.mxu0 0.0
    %1715 = vmatprep.subr.mxu0 0.0
    %1716 = vmatpush2.msra.mxu0 0.0
    %1717 = vmatprep.subr.mxu0 0.0
    %1718 = vmatpush2.msra.mxu0 0.0
    %1719 = vmatprep.subr.mxu0 0.0
    %1720 = vmatpush2.msra.mxu0 0.0
    %1721 = vmatprep.subr.mxu0 0.0
    %1722 = vmatpush2.msra.mxu0 0.0
    %1723 = vmatprep.mubr.f32.mxu0 0.0
    %1724 = vmatmul.mubr.f32.gmra.mxu0 %v1467
    %v1725 = vpop.f32.mrf.mxu0
    %v1726 = vadd.f32 0.0, %v1725
    %v1727 = vpop.f32.mrf.mxu0
    %v1728 = vadd.f32 0.0, %v1727
    %1729 = vmatprep.mubr.f32.mxu0 0.0
    %1730 = vmatmul.mubr.f32.gmra.mxu0 %v1470
    %v1731 = vpop.f32.mrf.mxu0
    %v1732 = vadd.f32 0.0, %v1731
    %v1733 = vpop.f32.mrf.mxu0
    %v1734 = vadd.f32 0.0, %v1733
    %1735 = vdwg.mxu0
    %1736 = vmatprep.subr.mxu0 0.0
    %1737 = vmatpush1.msra.mxu0 0.0
    %1738 = vmatprep.subr.mxu0 0.0
    %1739 = vmatpush1.msra.mxu0 0.0
    %1740 = vmatprep.subr.mxu0 0.0
    %1741 = vmatpush1.msra.mxu0 0.0
    %1742 = vmatprep.subr.mxu0 0.0
    %1743 = vmatpush1.msra.mxu0 0.0
    %1744 = vmatprep.subr.mxu0 0.0
    %1745 = vmatpush1.msra.mxu0 0.0
    %1746 = vmatprep.subr.mxu0 0.0
    %1747 = vmatpush1.msra.mxu0 0.0
    %1748 = vmatprep.subr.mxu0 0.0
    %1749 = vmatpush1.msra.mxu0 0.0
    %1750 = vmatprep.subr.mxu0 0.0
    %1751 = vmatpush1.msra.mxu0 0.0
    %1752 = vmatprep.subr.mxu0 0.0
    %1753 = vmatpush1.msra.mxu0 0.0
    %1754 = vmatprep.subr.mxu0 0.0
    %1755 = vmatpush1.msra.mxu0 0.0
    %1756 = vmatprep.subr.mxu0 0.0
    %1757 = vmatpush1.msra.mxu0 0.0
    %1758 = vmatprep.subr.mxu0 0.0
    %1759 = vmatpush1.msra.mxu0 0.0
    %1760 = vmatprep.subr.mxu0 0.0
    %1761 = vmatpush1.msra.mxu0 0.0
    %1762 = vmatprep.subr.mxu0 0.0
    %1763 = vmatpush1.msra.mxu0 0.0
    %1764 = vmatprep.subr.mxu0 0.0
    %1765 = vmatpush1.msra.mxu0 0.0
    %1766 = vmatprep.subr.mxu0 %v1486
    %1767 = vmatpush1.msra.mxu0 %v1484
    %1768 = vmatprep.subr.mxu0 0.0
    %1769 = vmatpush2.msra.mxu0 0.0
    %1770 = vmatprep.subr.mxu0 0.0
    %1771 = vmatpush2.msra.mxu0 0.0
    %1772 = vmatprep.subr.mxu0 0.0
    %1773 = vmatpush2.msra.mxu0 0.0
    %1774 = vmatprep.subr.mxu0 0.0
    %1775 = vmatpush2.msra.mxu0 0.0
    %1776 = vmatprep.subr.mxu0 0.0
    %1777 = vmatpush2.msra.mxu0 0.0
    %1778 = vmatprep.subr.mxu0 0.0
    %1779 = vmatpush2.msra.mxu0 0.0
    %1780 = vmatprep.subr.mxu0 0.0
    %1781 = vmatpush2.msra.mxu0 0.0
    %1782 = vmatprep.subr.mxu0 0.0
    %1783 = vmatpush2.msra.mxu0 0.0
    %1784 = vmatprep.subr.mxu0 0.0
    %1785 = vmatpush2.msra.mxu0 0.0
    %1786 = vmatprep.subr.mxu0 0.0
    %1787 = vmatpush2.msra.mxu0 0.0
    %1788 = vmatprep.subr.mxu0 0.0
    %1789 = vmatpush2.msra.mxu0 0.0
    %1790 = vmatprep.subr.mxu0 0.0
    %1791 = vmatpush2.msra.mxu0 0.0
    %1792 = vmatprep.subr.mxu0 0.0
    %1793 = vmatpush2.msra.mxu0 0.0
    %1794 = vmatprep.subr.mxu0 0.0
    %1795 = vmatpush2.msra.mxu0 0.0
    %1796 = vmatprep.subr.mxu0 0.0
    %1797 = vmatpush2.msra.mxu0 0.0
    %1798 = vmatprep.subr.mxu0 0.0
    %1799 = vmatpush2.msra.mxu0 0.0
    %1800 = vmatprep.mubr.f32.mxu0 0.0
    %1801 = vmatmul.mubr.f32.gmra.mxu0 %v1467
    %v1802 = vpop.f32.mrf.mxu0
    %v1803 = vadd.f32 0.0, %v1802
    %v1804 = vpop.f32.mrf.mxu0
    %v1805 = vadd.f32 0.0, %v1804
    %1806 = vmatprep.mubr.f32.mxu0 0.0
    %1807 = vmatmul.mubr.f32.gmra.mxu0 %v1470
    %v1808 = vpop.f32.mrf.mxu0
    %v1809 = vadd.f32 0.0, %v1808
    %v1810 = vpop.f32.mrf.mxu0
    %v1811 = vadd.f32 0.0, %v1810
    %1812 = vdwg.mxu0
    %1813 = vmatprep.subr.mxu0 0.0
    %1814 = vmatpush1.msra.mxu0 0.0
    %1815 = vmatprep.subr.mxu0 0.0
    %1816 = vmatpush1.msra.mxu0 0.0
    %1817 = vmatprep.subr.mxu0 0.0
    %1818 = vmatpush1.msra.mxu0 0.0
    %1819 = vmatprep.subr.mxu0 0.0
    %1820 = vmatpush1.msra.mxu0 0.0
    %1821 = vmatprep.subr.mxu0 0.0
    %1822 = vmatpush1.msra.mxu0 0.0
    %1823 = vmatprep.subr.mxu0 0.0
    %1824 = vmatpush1.msra.mxu0 0.0
    %1825 = vmatprep.subr.mxu0 0.0
    %1826 = vmatpush1.msra.mxu0 0.0
    %1827 = vmatprep.subr.mxu0 0.0
    %1828 = vmatpush1.msra.mxu0 0.0
    %1829 = vmatprep.subr.mxu0 0.0
    %1830 = vmatpush1.msra.mxu0 0.0
    %1831 = vmatprep.subr.mxu0 0.0
    %1832 = vmatpush1.msra.mxu0 0.0
    %1833 = vmatprep.subr.mxu0 0.0
    %1834 = vmatpush1.msra.mxu0 0.0
    %1835 = vmatprep.subr.mxu0 0.0
    %1836 = vmatpush1.msra.mxu0 0.0
    %1837 = vmatprep.subr.mxu0 0.0
    %1838 = vmatpush1.msra.mxu0 0.0
    %1839 = vmatprep.subr.mxu0 0.0
    %1840 = vmatpush1.msra.mxu0 0.0
    %1841 = vmatprep.subr.mxu0 0.0
    %1842 = vmatpush1.msra.mxu0 0.0
    %1843 = vmatprep.subr.mxu0 %v1490
    %1844 = vmatpush1.msra.mxu0 %v1488
    %1845 = vmatprep.subr.mxu0 0.0
    %1846 = vmatpush2.msra.mxu0 0.0
    %1847 = vmatprep.subr.mxu0 0.0
    %1848 = vmatpush2.msra.mxu0 0.0
    %1849 = vmatprep.subr.mxu0 0.0
    %1850 = vmatpush2.msra.mxu0 0.0
    %1851 = vmatprep.subr.mxu0 0.0
    %1852 = vmatpush2.msra.mxu0 0.0
    %1853 = vmatprep.subr.mxu0 0.0
    %1854 = vmatpush2.msra.mxu0 0.0
    %1855 = vmatprep.subr.mxu0 0.0
    %1856 = vmatpush2.msra.mxu0 0.0
    %1857 = vmatprep.subr.mxu0 0.0
    %1858 = vmatpush2.msra.mxu0 0.0
    %1859 = vmatprep.subr.mxu0 0.0
    %1860 = vmatpush2.msra.mxu0 0.0
    %1861 = vmatprep.subr.mxu0 0.0
    %1862 = vmatpush2.msra.mxu0 0.0
    %1863 = vmatprep.subr.mxu0 0.0
    %1864 = vmatpush2.msra.mxu0 0.0
    %1865 = vmatprep.subr.mxu0 0.0
    %1866 = vmatpush2.msra.mxu0 0.0
    %1867 = vmatprep.subr.mxu0 0.0
    %1868 = vmatpush2.msra.mxu0 0.0
    %1869 = vmatprep.subr.mxu0 0.0
    %1870 = vmatpush2.msra.mxu0 0.0
    %1871 = vmatprep.subr.mxu0 0.0
    %1872 = vmatpush2.msra.mxu0 0.0
    %1873 = vmatprep.subr.mxu0 0.0
    %1874 = vmatpush2.msra.mxu0 0.0
    %1875 = vmatprep.subr.mxu0 0.0
    %1876 = vmatpush2.msra.mxu0 0.0
    %1877 = vmatprep.mubr.f32.mxu0 0.0
    %1878 = vmatmul.mubr.f32.gmra.mxu0 %v1467
    %v1879 = vpop.f32.mrf.mxu0
    %v1880 = vadd.f32 0.0, %v1879
    %v1881 = vpop.f32.mrf.mxu0
    %v1882 = vadd.f32 0.0, %v1881
    %1883 = vmatprep.mubr.f32.mxu0 0.0
    %1884 = vmatmul.mubr.f32.gmra.mxu0 %v1470
    %v1885 = vpop.f32.mrf.mxu0
    %v1886 = vadd.f32 0.0, %v1885
    %v1887 = vpop.f32.mrf.mxu0
    %v1888 = vadd.f32 0.0, %v1887
    %1889 = vdwg.mxu0
    %1890 = vmatprep.subr.mxu0 0.0
    %1891 = vmatpush1.msra.mxu0 0.0
    %1892 = vmatprep.subr.mxu0 0.0
    %1893 = vmatpush1.msra.mxu0 0.0
    %1894 = vmatprep.subr.mxu0 0.0
    %1895 = vmatpush1.msra.mxu0 0.0
    %1896 = vmatprep.subr.mxu0 0.0
    %1897 = vmatpush1.msra.mxu0 0.0
    %1898 = vmatprep.subr.mxu0 0.0
    %1899 = vmatpush1.msra.mxu0 0.0
    %1900 = vmatprep.subr.mxu0 0.0
    %1901 = vmatpush1.msra.mxu0 0.0
    %1902 = vmatprep.subr.mxu0 0.0
    %1903 = vmatpush1.msra.mxu0 0.0
    %1904 = vmatprep.subr.mxu0 0.0
    %1905 = vmatpush1.msra.mxu0 0.0
    %1906 = vmatprep.subr.mxu0 0.0
    %1907 = vmatpush1.msra.mxu0 0.0
    %1908 = vmatprep.subr.mxu0 0.0
    %1909 = vmatpush1.msra.mxu0 0.0
    %1910 = vmatprep.subr.mxu0 0.0
    %1911 = vmatpush1.msra.mxu0 0.0
    %1912 = vmatprep.subr.mxu0 0.0
    %1913 = vmatpush1.msra.mxu0 0.0
    %1914 = vmatprep.subr.mxu0 0.0
    %1915 = vmatpush1.msra.mxu0 0.0
    %1916 = vmatprep.subr.mxu0 0.0
    %1917 = vmatpush1.msra.mxu0 0.0
    %1918 = vmatprep.subr.mxu0 0.0
    %1919 = vmatpush1.msra.mxu0 0.0
    %1920 = vmatprep.subr.mxu0 %v1494
    %1921 = vmatpush1.msra.mxu0 %v1492
    %1922 = vmatprep.subr.mxu0 0.0
    %1923 = vmatpush2.msra.mxu0 0.0
    %1924 = vmatprep.subr.mxu0 0.0
    %1925 = vmatpush2.msra.mxu0 0.0
    %1926 = vmatprep.subr.mxu0 0.0
    %1927 = vmatpush2.msra.mxu0 0.0
    %1928 = vmatprep.subr.mxu0 0.0
    %1929 = vmatpush2.msra.mxu0 0.0
    %1930 = vmatprep.subr.mxu0 0.0
    %1931 = vmatpush2.msra.mxu0 0.0
    %1932 = vmatprep.subr.mxu0 0.0
    %1933 = vmatpush2.msra.mxu0 0.0
    %1934 = vmatprep.subr.mxu0 0.0
    %1935 = vmatpush2.msra.mxu0 0.0
    %1936 = vmatprep.subr.mxu0 0.0
    %1937 = vmatpush2.msra.mxu0 0.0
    %1938 = vmatprep.subr.mxu0 0.0
    %1939 = vmatpush2.msra.mxu0 0.0
    %1940 = vmatprep.subr.mxu0 0.0
    %1941 = vmatpush2.msra.mxu0 0.0
    %1942 = vmatprep.subr.mxu0 0.0
    %1943 = vmatpush2.msra.mxu0 0.0
    %1944 = vmatprep.subr.mxu0 0.0
    %1945 = vmatpush2.msra.mxu0 0.0
    %1946 = vmatprep.subr.mxu0 0.0
    %1947 = vmatpush2.msra.mxu0 0.0
    %1948 = vmatprep.subr.mxu0 0.0
    %1949 = vmatpush2.msra.mxu0 0.0
    %1950 = vmatprep.subr.mxu0 0.0
    %1951 = vmatpush2.msra.mxu0 0.0
    %1952 = vmatprep.subr.mxu0 0.0
    %1953 = vmatpush2.msra.mxu0 0.0
    %1954 = vmatprep.mubr.f32.mxu0 0.0
    %1955 = vmatmul.mubr.f32.gmra.mxu0 %v1467
    %v1956 = vpop.f32.mrf.mxu0
    %v1957 = vadd.f32 0.0, %v1956
    %v1958 = vpop.f32.mrf.mxu0
    %v1959 = vadd.f32 0.0, %v1958
    %1960 = vmatprep.mubr.f32.mxu0 0.0
    %1961 = vmatmul.mubr.f32.gmra.mxu0 %v1470
    %v1962 = vpop.f32.mrf.mxu0
    %v1963 = vadd.f32 0.0, %v1962
    %v1964 = vpop.f32.mrf.mxu0
    %v1965 = vadd.f32 0.0, %v1964
    %1966 = vdwg.mxu0
    %1967 = vmatprep.subr.mxu0 0.0
    %1968 = vmatpush1.msra.mxu0 0.0
    %1969 = vmatprep.subr.mxu0 0.0
    %1970 = vmatpush1.msra.mxu0 0.0
    %1971 = vmatprep.subr.mxu0 0.0
    %1972 = vmatpush1.msra.mxu0 0.0
    %1973 = vmatprep.subr.mxu0 0.0
    %1974 = vmatpush1.msra.mxu0 0.0
    %1975 = vmatprep.subr.mxu0 0.0
    %1976 = vmatpush1.msra.mxu0 0.0
    %1977 = vmatprep.subr.mxu0 0.0
    %1978 = vmatpush1.msra.mxu0 0.0
    %1979 = vmatprep.subr.mxu0 0.0
    %1980 = vmatpush1.msra.mxu0 0.0
    %1981 = vmatprep.subr.mxu0 0.0
    %1982 = vmatpush1.msra.mxu0 0.0
    %1983 = vmatprep.subr.mxu0 0.0
    %1984 = vmatpush1.msra.mxu0 0.0
    %1985 = vmatprep.subr.mxu0 0.0
    %1986 = vmatpush1.msra.mxu0 0.0
    %1987 = vmatprep.subr.mxu0 0.0
    %1988 = vmatpush1.msra.mxu0 0.0
    %1989 = vmatprep.subr.mxu0 0.0
    %1990 = vmatpush1.msra.mxu0 0.0
    %1991 = vmatprep.subr.mxu0 0.0
    %1992 = vmatpush1.msra.mxu0 0.0
    %1993 = vmatprep.subr.mxu0 0.0
    %1994 = vmatpush1.msra.mxu0 0.0
    %1995 = vmatprep.subr.mxu0 0.0
    %1996 = vmatpush1.msra.mxu0 0.0
    %1997 = vmatprep.subr.mxu0 %v1498
    %1998 = vmatpush1.msra.mxu0 %v1496
    %1999 = vmatprep.subr.mxu0 0.0
    %2000 = vmatpush2.msra.mxu0 0.0
    %2001 = vmatprep.subr.mxu0 0.0
    %2002 = vmatpush2.msra.mxu0 0.0
    %2003 = vmatprep.subr.mxu0 0.0
    %2004 = vmatpush2.msra.mxu0 0.0
    %2005 = vmatprep.subr.mxu0 0.0
    %2006 = vmatpush2.msra.mxu0 0.0
    %2007 = vmatprep.subr.mxu0 0.0
    %2008 = vmatpush2.msra.mxu0 0.0
    %2009 = vmatprep.subr.mxu0 0.0
    %2010 = vmatpush2.msra.mxu0 0.0
    %2011 = vmatprep.subr.mxu0 0.0
    %2012 = vmatpush2.msra.mxu0 0.0
    %2013 = vmatprep.subr.mxu0 0.0
    %2014 = vmatpush2.msra.mxu0 0.0
    %2015 = vmatprep.subr.mxu0 0.0
    %2016 = vmatpush2.msra.mxu0 0.0
    %2017 = vmatprep.subr.mxu0 0.0
    %2018 = vmatpush2.msra.mxu0 0.0
    %2019 = vmatprep.subr.mxu0 0.0
    %2020 = vmatpush2.msra.mxu0 0.0
    %2021 = vmatprep.subr.mxu0 0.0
    %2022 = vmatpush2.msra.mxu0 0.0
    %2023 = vmatprep.subr.mxu0 0.0
    %2024 = vmatpush2.msra.mxu0 0.0
    %2025 = vmatprep.subr.mxu0 0.0
    %2026 = vmatpush2.msra.mxu0 0.0
    %2027 = vmatprep.subr.mxu0 0.0
    %2028 = vmatpush2.msra.mxu0 0.0
    %2029 = vmatprep.subr.mxu0 0.0
    %2030 = vmatpush2.msra.mxu0 0.0
    %2031 = vmatprep.mubr.f32.mxu0 0.0
    %2032 = vmatmul.mubr.f32.gmra.mxu0 %v1467
    %v2033 = vpop.f32.mrf.mxu0
    %v2034 = vadd.f32 0.0, %v2033
    %v2035 = vpop.f32.mrf.mxu0
    %v2036 = vadd.f32 0.0, %v2035
    %2037 = vmatprep.mubr.f32.mxu0 0.0
    %2038 = vmatmul.mubr.f32.gmra.mxu0 %v1470
    %v2039 = vpop.f32.mrf.mxu0
    %v2040 = vadd.f32 0.0, %v2039
    %v2041 = vpop.f32.mrf.mxu0
    %v2042 = vadd.f32 0.0, %v2041
    %2043 = vdwg.mxu0
    %2044 = vmatprep.subr.mxu0 0.0
    %2045 = vmatpush1.msra.mxu0 0.0
    %2046 = vmatprep.subr.mxu0 0.0
    %2047 = vmatpush1.msra.mxu0 0.0
    %2048 = vmatprep.subr.mxu0 0.0
    %2049 = vmatpush1.msra.mxu0 0.0
    %2050 = vmatprep.subr.mxu0 0.0
    %2051 = vmatpush1.msra.mxu0 0.0
    %2052 = vmatprep.subr.mxu0 0.0
    %2053 = vmatpush1.msra.mxu0 0.0
    %2054 = vmatprep.subr.mxu0 0.0
    %2055 = vmatpush1.msra.mxu0 0.0
    %2056 = vmatprep.subr.mxu0 0.0
    %2057 = vmatpush1.msra.mxu0 0.0
    %2058 = vmatprep.subr.mxu0 0.0
    %2059 = vmatpush1.msra.mxu0 0.0
    %2060 = vmatprep.subr.mxu0 0.0
    %2061 = vmatpush1.msra.mxu0 0.0
    %2062 = vmatprep.subr.mxu0 0.0
    %2063 = vmatpush1.msra.mxu0 0.0
    %2064 = vmatprep.subr.mxu0 0.0
    %2065 = vmatpush1.msra.mxu0 0.0
    %2066 = vmatprep.subr.mxu0 0.0
    %2067 = vmatpush1.msra.mxu0 0.0
    %2068 = vmatprep.subr.mxu0 0.0
    %2069 = vmatpush1.msra.mxu0 0.0
    %2070 = vmatprep.subr.mxu0 0.0
    %2071 = vmatpush1.msra.mxu0 0.0
    %2072 = vmatprep.subr.mxu0 0.0
    %2073 = vmatpush1.msra.mxu0 0.0
    %2074 = vmatprep.subr.mxu0 %v1503
    %2075 = vmatpush1.msra.mxu0 %v1500
    %2076 = vmatprep.subr.mxu0 0.0
    %2077 = vmatpush2.msra.mxu0 0.0
    %2078 = vmatprep.subr.mxu0 0.0
    %2079 = vmatpush2.msra.mxu0 0.0
    %2080 = vmatprep.subr.mxu0 0.0
    %2081 = vmatpush2.msra.mxu0 0.0
    %2082 = vmatprep.subr.mxu0 0.0
    %2083 = vmatpush2.msra.mxu0 0.0
    %2084 = vmatprep.subr.mxu0 0.0
    %2085 = vmatpush2.msra.mxu0 0.0
    %2086 = vmatprep.subr.mxu0 0.0
    %2087 = vmatpush2.msra.mxu0 0.0
    %2088 = vmatprep.subr.mxu0 0.0
    %2089 = vmatpush2.msra.mxu0 0.0
    %2090 = vmatprep.subr.mxu0 0.0
    %2091 = vmatpush2.msra.mxu0 0.0
    %2092 = vmatprep.subr.mxu0 0.0
    %2093 = vmatpush2.msra.mxu0 0.0
    %2094 = vmatprep.subr.mxu0 0.0
    %2095 = vmatpush2.msra.mxu0 0.0
    %2096 = vmatprep.subr.mxu0 0.0
    %2097 = vmatpush2.msra.mxu0 0.0
    %2098 = vmatprep.subr.mxu0 0.0
    %2099 = vmatpush2.msra.mxu0 0.0
    %2100 = vmatprep.subr.mxu0 0.0
    %2101 = vmatpush2.msra.mxu0 0.0
    %2102 = vmatprep.subr.mxu0 0.0
    %2103 = vmatpush2.msra.mxu0 0.0
    %2104 = vmatprep.subr.mxu0 0.0
    %2105 = vmatpush2.msra.mxu0 0.0
    %2106 = vmatprep.subr.mxu0 0.0
    %2107 = vmatpush2.msra.mxu0 0.0
    %2108 = vmatprep.mubr.f32.mxu0 0.0
    %2109 = vmatmul.mubr.f32.gmra.mxu0 %v1467
    %v2110 = vpop.f32.mrf.mxu0
    %v2111 = vadd.f32 0.0, %v2110
    %v2112 = vpop.f32.mrf.mxu0
    %v2113 = vadd.f32 0.0, %v2112
    %2114 = vmatprep.mubr.f32.mxu0 0.0
    %2115 = vmatmul.mubr.f32.gmra.mxu0 %v1470
    %v2116 = vpop.f32.mrf.mxu0
    %v2117 = vadd.f32 0.0, %v2116
    %v2118 = vpop.f32.mrf.mxu0
    %v2119 = vadd.f32 0.0, %v2118
    %2120 = vdwg.mxu0
    %v2121 = vadd.f32 %v863, %v1572
    %v2122 = vadd.f32 %v865, %v1574
    %v2123 = vadd.f32 %v940, %v1649
    %v2124 = vadd.f32 %v942, %v1651
    %v2125 = vadd.f32 %v1017, %v1726
    %v2126 = vadd.f32 %v1019, %v1728
    %v2127 = vadd.f32 %v1094, %v1803
    %v2128 = vadd.f32 %v1096, %v1805
    %v2129 = vadd.f32 %v1171, %v1880
    %v2130 = vadd.f32 %v1173, %v1882
    %v2131 = vadd.f32 %v1248, %v1957
    %v2132 = vadd.f32 %v1250, %v1959
    %v2133 = vadd.f32 %v1325, %v2034
    %v2134 = vadd.f32 %v1327, %v2036
    %v2135 = vadd.f32 %v1402, %v2111
    %v2136 = vadd.f32 %v1404, %v2113
    %v2137 = vadd.f32 %v869, %v1578
    %v2138 = vadd.f32 %v871, %v1580
    %v2139 = vadd.f32 %v946, %v1655
    %v2140 = vadd.f32 %v948, %v1657
    %v2141 = vadd.f32 %v1023, %v1732
    %v2142 = vadd.f32 %v1025, %v1734
    %v2143 = vadd.f32 %v1100, %v1809
    %v2144 = vadd.f32 %v1102, %v1811
    %v2145 = vadd.f32 %v1177, %v1886
    %v2146 = vadd.f32 %v1179, %v1888
    %v2147 = vadd.f32 %v1254, %v1963
    %v2148 = vadd.f32 %v1256, %v1965
    %v2149 = vadd.f32 %v1331, %v2040
    %v2150 = vadd.f32 %v1333, %v2042
    %v2151 = vadd.f32 %v1408, %v2117
    %v2152 = vadd.f32 %v1410, %v2119
    %2153 = vrot.lane.b32.xlu0 %v21, 96
    %v2154 = vpop.permute.xlu0 %2153
    %2155 = vrot.lane.b32.xlu0 %v39, 96
    %v2156 = vpop.permute.xlu0 %2155
    %2157 = vrot.lane.b32.xlu0 %v22, 96
    %v2158 = vpop.permute.xlu0 %2157
    %2159 = vrot.lane.b32.xlu0 %v40, 96
    %v2160 = vpop.permute.xlu0 %2159
    %2161 = vrot.lane.b32.xlu0 %v23, 96
    %v2162 = vpop.permute.xlu0 %2161
    %2163 = vrot.lane.b32.xlu0 %v41, 96
    %v2164 = vpop.permute.xlu0 %2163
    %2165 = vrot.lane.b32.xlu0 %v24, 96
    %v2166 = vpop.permute.xlu0 %2165
    %2167 = vrot.lane.b32.xlu0 %v42, 96
    %v2168 = vpop.permute.xlu0 %2167
    %2169 = vrot.lane.b32.xlu0 %v25, 96
    %v2170 = vpop.permute.xlu0 %2169
    %2171 = vrot.lane.b32.xlu0 %v43, 96
    %v2172 = vpop.permute.xlu0 %2171
    %2173 = vrot.lane.b32.xlu0 %v26, 96
    %v2174 = vpop.permute.xlu0 %2173
    %2175 = vrot.lane.b32.xlu0 %v44, 96
    %v2176 = vpop.permute.xlu0 %2175
    %2177 = vrot.lane.b32.xlu0 %v27, 96
    %v2178 = vpop.permute.xlu0 %2177
    %2179 = vrot.lane.b32.xlu0 %v45, 96
    %v2180 = vpop.permute.xlu0 %2179
    %2181 = vrot.lane.b32.xlu0 %v28, 96
    %v2182 = vpop.permute.xlu0 %2181
    %2183 = vrot.lane.b32.xlu0 %v46, 96
    %v2184 = vpop.permute.xlu0 %2183
    %vm2185 = vcmask 785408
    %v2186 = vsel %vm2185, %v2154, %v2156
    %v2187 = vsel %vm2185, %v2156, %v2158
    %v2188 = vsel %vm2185, %v2158, %v2160
    %v2189 = vsel %vm2185, %v2160, %v2162
    %v2190 = vsel %vm2185, %v2162, %v2164
    %v2191 = vsel %vm2185, %v2164, %v2166
    %v2192 = vsel %vm2185, %v2166, %v2168
    %v2193 = vsel %vm2185, %v2168, %v2170
    %v2194 = vsel %vm2185, %v2170, %v2172
    %v2195 = vsel %vm2185, %v2172, %v2174
    %v2196 = vsel %vm2185, %v2174, %v2176
    %v2197 = vsel %vm2185, %v2176, %v2178
    %v2198 = vsel %vm2185, %v2178, %v2180
    %v2199 = vsel %vm2185, %v2180, %v2182
    %v2200 = vsel %vm2185, %v2182, %v2184
    %v2203 = vsel %vm2185, %v2184, %v2154
    %s2204 = scalar_lea.vmem %s1, 48
    %v2205 = vld [vmem:[%s2204] sm:$0xff]
    %v2206 = vld [vmem:[%s2204 + $0x8] sm:$0x3]
    %v2208 = vsel %vm101, %v2205, 0
    %v2211 = vsel %vm101, %v2206, 0
    %v2213 = vsel %vm108, %v2186, 0
    %v2215 = vsel %vm108, %v2187, 0
    %v2217 = vsel %vm108, %v2188, 0
    %v2219 = vsel %vm108, %v2189, 0
    %v2221 = vsel %vm108, %v2190, 0
    %v2223 = vsel %vm108, %v2191, 0
    %v2225 = vsel %vm108, %v2192, 0
    %v2227 = vsel %vm108, %v2193, 0
    %v2229 = vsel %vm108, %v2194, 0
    %v2231 = vsel %vm108, %v2195, 0
    %v2233 = vsel %vm108, %v2196, 0
    %v2235 = vsel %vm108, %v2197, 0
    %v2237 = vsel %vm108, %v2198, 0
    %v2239 = vsel %vm108, %v2199, 0
    %v2241 = vsel %vm108, %v2200, 0
    %v2244 = vsel %vm108, %v2203, 0
    %2246 = vmatprep.subr.mxu0 0.0
    %2247 = vmatpush1.msra.mxu0 0.0
    %2248 = vmatprep.subr.mxu0 0.0
    %2249 = vmatpush1.msra.mxu0 0.0
    %2250 = vmatprep.subr.mxu0 0.0
    %2251 = vmatpush1.msra.mxu0 0.0
    %2252 = vmatprep.subr.mxu0 0.0
    %2253 = vmatpush1.msra.mxu0 0.0
    %2254 = vmatprep.subr.mxu0 0.0
    %2255 = vmatpush1.msra.mxu0 0.0
    %2256 = vmatprep.subr.mxu0 0.0
    %2257 = vmatpush1.msra.mxu0 0.0
    %2258 = vmatprep.subr.mxu0 0.0
    %2259 = vmatpush1.msra.mxu0 0.0
    %2260 = vmatprep.subr.mxu0 0.0
    %2261 = vmatpush1.msra.mxu0 0.0
    %2262 = vmatprep.subr.mxu0 0.0
    %2263 = vmatpush1.msra.mxu0 0.0
    %2264 = vmatprep.subr.mxu0 0.0
    %2265 = vmatpush1.msra.mxu0 0.0
    %2266 = vmatprep.subr.mxu0 0.0
    %2267 = vmatpush1.msra.mxu0 0.0
    %2268 = vmatprep.subr.mxu0 0.0
    %2269 = vmatpush1.msra.mxu0 0.0
    %2270 = vmatprep.subr.mxu0 0.0
    %2271 = vmatpush1.msra.mxu0 0.0
    %2272 = vmatprep.subr.mxu0 0.0
    %2273 = vmatpush1.msra.mxu0 0.0
    %2274 = vmatprep.subr.mxu0 0.0
    %2275 = vmatpush1.msra.mxu0 0.0
    %2276 = vmatprep.subr.mxu0 %v2215
    %2277 = vmatpush1.msra.mxu0 %v2213
    %2278 = vmatprep.subr.mxu0 0.0
    %2279 = vmatpush2.msra.mxu0 0.0
    %2280 = vmatprep.subr.mxu0 0.0
    %2281 = vmatpush2.msra.mxu0 0.0
    %2282 = vmatprep.subr.mxu0 0.0
    %2283 = vmatpush2.msra.mxu0 0.0
    %2284 = vmatprep.subr.mxu0 0.0
    %2285 = vmatpush2.msra.mxu0 0.0
    %2286 = vmatprep.subr.mxu0 0.0
    %2287 = vmatpush2.msra.mxu0 0.0
    %2288 = vmatprep.subr.mxu0 0.0
    %2289 = vmatpush2.msra.mxu0 0.0
    %2290 = vmatprep.subr.mxu0 0.0
    %2291 = vmatpush2.msra.mxu0 0.0
    %2292 = vmatprep.subr.mxu0 0.0
    %2293 = vmatpush2.msra.mxu0 0.0
    %2294 = vmatprep.subr.mxu0 0.0
    %2295 = vmatpush2.msra.mxu0 0.0
    %2296 = vmatprep.subr.mxu0 0.0
    %2297 = vmatpush2.msra.mxu0 0.0
    %2298 = vmatprep.subr.mxu0 0.0
    %2299 = vmatpush2.msra.mxu0 0.0
    %2300 = vmatprep.subr.mxu0 0.0
    %2301 = vmatpush2.msra.mxu0 0.0
    %2302 = vmatprep.subr.mxu0 0.0
    %2303 = vmatpush2.msra.mxu0 0.0
    %2304 = vmatprep.subr.mxu0 0.0
    %2305 = vmatpush2.msra.mxu0 0.0
    %2306 = vmatprep.subr.mxu0 0.0
    %2307 = vmatpush2.msra.mxu0 0.0
    %2308 = vmatprep.subr.mxu0 0.0
    %2309 = vmatpush2.msra.mxu0 0.0
    %2310 = vmatprep.mubr.f32.mxu0 0.0
    %2311 = vmatmul.mubr.f32.gmra.mxu0 %v2208
    %v2312 = vpop.f32.mrf.mxu0
    %v2313 = vadd.f32 0.0, %v2312
    %v2314 = vpop.f32.mrf.mxu0
    %v2315 = vadd.f32 0.0, %v2314
    %2316 = vmatprep.mubr.f32.mxu0 0.0
    %2317 = vmatmul.mubr.f32.gmra.mxu0 %v2211
    %v2318 = vpop.f32.mrf.mxu0
    %v2319 = vadd.f32 0.0, %v2318
    %v2320 = vpop.f32.mrf.mxu0
    %v2321 = vadd.f32 0.0, %v2320
    %2322 = vdwg.mxu0
    %2323 = vmatprep.subr.mxu0 0.0
    %2324 = vmatpush1.msra.mxu0 0.0
    %2325 = vmatprep.subr.mxu0 0.0
    %2326 = vmatpush1.msra.mxu0 0.0
    %2327 = vmatprep.subr.mxu0 0.0
    %2328 = vmatpush1.msra.mxu0 0.0
    %2329 = vmatprep.subr.mxu0 0.0
    %2330 = vmatpush1.msra.mxu0 0.0
    %2331 = vmatprep.subr.mxu0 0.0
    %2332 = vmatpush1.msra.mxu0 0.0
    %2333 = vmatprep.subr.mxu0 0.0
    %2334 = vmatpush1.msra.mxu0 0.0
    %2335 = vmatprep.subr.mxu0 0.0
    %2336 = vmatpush1.msra.mxu0 0.0
    %2337 = vmatprep.subr.mxu0 0.0
    %2338 = vmatpush1.msra.mxu0 0.0
    %2339 = vmatprep.subr.mxu0 0.0
    %2340 = vmatpush1.msra.mxu0 0.0
    %2341 = vmatprep.subr.mxu0 0.0
    %2342 = vmatpush1.msra.mxu0 0.0
    %2343 = vmatprep.subr.mxu0 0.0
    %2344 = vmatpush1.msra.mxu0 0.0
    %2345 = vmatprep.subr.mxu0 0.0
    %2346 = vmatpush1.msra.mxu0 0.0
    %2347 = vmatprep.subr.mxu0 0.0
    %2348 = vmatpush1.msra.mxu0 0.0
    %2349 = vmatprep.subr.mxu0 0.0
    %2350 = vmatpush1.msra.mxu0 0.0
    %2351 = vmatprep.subr.mxu0 0.0
    %2352 = vmatpush1.msra.mxu0 0.0
    %2353 = vmatprep.subr.mxu0 %v2219
    %2354 = vmatpush1.msra.mxu0 %v2217
    %2355 = vmatprep.subr.mxu0 0.0
    %2356 = vmatpush2.msra.mxu0 0.0
    %2357 = vmatprep.subr.mxu0 0.0
    %2358 = vmatpush2.msra.mxu0 0.0
    %2359 = vmatprep.subr.mxu0 0.0
    %2360 = vmatpush2.msra.mxu0 0.0
    %2361 = vmatprep.subr.mxu0 0.0
    %2362 = vmatpush2.msra.mxu0 0.0
    %2363 = vmatprep.subr.mxu0 0.0
    %2364 = vmatpush2.msra.mxu0 0.0
    %2365 = vmatprep.subr.mxu0 0.0
    %2366 = vmatpush2.msra.mxu0 0.0
    %2367 = vmatprep.subr.mxu0 0.0
    %2368 = vmatpush2.msra.mxu0 0.0
    %2369 = vmatprep.subr.mxu0 0.0
    %2370 = vmatpush2.msra.mxu0 0.0
    %2371 = vmatprep.subr.mxu0 0.0
    %2372 = vmatpush2.msra.mxu0 0.0
    %2373 = vmatprep.subr.mxu0 0.0
    %2374 = vmatpush2.msra.mxu0 0.0
    %2375 = vmatprep.subr.mxu0 0.0
    %2376 = vmatpush2.msra.mxu0 0.0
    %2377 = vmatprep.subr.mxu0 0.0
    %2378 = vmatpush2.msra.mxu0 0.0
    %2379 = vmatprep.subr.mxu0 0.0
    %2380 = vmatpush2.msra.mxu0 0.0
    %2381 = vmatprep.subr.mxu0 0.0
    %2382 = vmatpush2.msra.mxu0 0.0
    %2383 = vmatprep.subr.mxu0 0.0
    %2384 = vmatpush2.msra.mxu0 0.0
    %2385 = vmatprep.subr.mxu0 0.0
    %2386 = vmatpush2.msra.mxu0 0.0
    %2387 = vmatprep.mubr.f32.mxu0 0.0
    %2388 = vmatmul.mubr.f32.gmra.mxu0 %v2208
    %v2389 = vpop.f32.mrf.mxu0
    %v2390 = vadd.f32 0.0, %v2389
    %v2391 = vpop.f32.mrf.mxu0
    %v2392 = vadd.f32 0.0, %v2391
    %2393 = vmatprep.mubr.f32.mxu0 0.0
    %2394 = vmatmul.mubr.f32.gmra.mxu0 %v2211
    %v2395 = vpop.f32.mrf.mxu0
    %v2396 = vadd.f32 0.0, %v2395
    %v2397 = vpop.f32.mrf.mxu0
    %v2398 = vadd.f32 0.0, %v2397
    %2399 = vdwg.mxu0
    %2400 = vmatprep.subr.mxu0 0.0
    %2401 = vmatpush1.msra.mxu0 0.0
    %2402 = vmatprep.subr.mxu0 0.0
    %2403 = vmatpush1.msra.mxu0 0.0
    %2404 = vmatprep.subr.mxu0 0.0
    %2405 = vmatpush1.msra.mxu0 0.0
    %2406 = vmatprep.subr.mxu0 0.0
    %2407 = vmatpush1.msra.mxu0 0.0
    %2408 = vmatprep.subr.mxu0 0.0
    %2409 = vmatpush1.msra.mxu0 0.0
    %2410 = vmatprep.subr.mxu0 0.0
    %2411 = vmatpush1.msra.mxu0 0.0
    %2412 = vmatprep.subr.mxu0 0.0
    %2413 = vmatpush1.msra.mxu0 0.0
    %2414 = vmatprep.subr.mxu0 0.0
    %2415 = vmatpush1.msra.mxu0 0.0
    %2416 = vmatprep.subr.mxu0 0.0
    %2417 = vmatpush1.msra.mxu0 0.0
    %2418 = vmatprep.subr.mxu0 0.0
    %2419 = vmatpush1.msra.mxu0 0.0
    %2420 = vmatprep.subr.mxu0 0.0
    %2421 = vmatpush1.msra.mxu0 0.0
    %2422 = vmatprep.subr.mxu0 0.0
    %2423 = vmatpush1.msra.mxu0 0.0
    %2424 = vmatprep.subr.mxu0 0.0
    %2425 = vmatpush1.msra.mxu0 0.0
    %2426 = vmatprep.subr.mxu0 0.0
    %2427 = vmatpush1.msra.mxu0 0.0
    %2428 = vmatprep.subr.mxu0 0.0
    %2429 = vmatpush1.msra.mxu0 0.0
    %2430 = vmatprep.subr.mxu0 %v2223
    %2431 = vmatpush1.msra.mxu0 %v2221
    %2432 = vmatprep.subr.mxu0 0.0
    %2433 = vmatpush2.msra.mxu0 0.0
    %2434 = vmatprep.subr.mxu0 0.0
    %2435 = vmatpush2.msra.mxu0 0.0
    %2436 = vmatprep.subr.mxu0 0.0
    %2437 = vmatpush2.msra.mxu0 0.0
    %2438 = vmatprep.subr.mxu0 0.0
    %2439 = vmatpush2.msra.mxu0 0.0
    %2440 = vmatprep.subr.mxu0 0.0
    %2441 = vmatpush2.msra.mxu0 0.0
    %2442 = vmatprep.subr.mxu0 0.0
    %2443 = vmatpush2.msra.mxu0 0.0
    %2444 = vmatprep.subr.mxu0 0.0
    %2445 = vmatpush2.msra.mxu0 0.0
    %2446 = vmatprep.subr.mxu0 0.0
    %2447 = vmatpush2.msra.mxu0 0.0
    %2448 = vmatprep.subr.mxu0 0.0
    %2449 = vmatpush2.msra.mxu0 0.0
    %2450 = vmatprep.subr.mxu0 0.0
    %2451 = vmatpush2.msra.mxu0 0.0
    %2452 = vmatprep.subr.mxu0 0.0
    %2453 = vmatpush2.msra.mxu0 0.0
    %2454 = vmatprep.subr.mxu0 0.0
    %2455 = vmatpush2.msra.mxu0 0.0
    %2456 = vmatprep.subr.mxu0 0.0
    %2457 = vmatpush2.msra.mxu0 0.0
    %2458 = vmatprep.subr.mxu0 0.0
    %2459 = vmatpush2.msra.mxu0 0.0
    %2460 = vmatprep.subr.mxu0 0.0
    %2461 = vmatpush2.msra.mxu0 0.0
    %2462 = vmatprep.subr.mxu0 0.0
    %2463 = vmatpush2.msra.mxu0 0.0
    %2464 = vmatprep.mubr.f32.mxu0 0.0
    %2465 = vmatmul.mubr.f32.gmra.mxu0 %v2208
    %v2466 = vpop.f32.mrf.mxu0
    %v2467 = vadd.f32 0.0, %v2466
    %v2468 = vpop.f32.mrf.mxu0
    %v2469 = vadd.f32 0.0, %v2468
    %2470 = vmatprep.mubr.f32.mxu0 0.0
    %2471 = vmatmul.mubr.f32.gmra.mxu0 %v2211
    %v2472 = vpop.f32.mrf.mxu0
    %v2473 = vadd.f32 0.0, %v2472
    %v2474 = vpop.f32.mrf.mxu0
    %v2475 = vadd.f32 0.0, %v2474
    %2476 = vdwg.mxu0
    %2477 = vmatprep.subr.mxu0 0.0
    %2478 = vmatpush1.msra.mxu0 0.0
    %2479 = vmatprep.subr.mxu0 0.0
    %2480 = vmatpush1.msra.mxu0 0.0
    %2481 = vmatprep.subr.mxu0 0.0
    %2482 = vmatpush1.msra.mxu0 0.0
    %2483 = vmatprep.subr.mxu0 0.0
    %2484 = vmatpush1.msra.mxu0 0.0
    %2485 = vmatprep.subr.mxu0 0.0
    %2486 = vmatpush1.msra.mxu0 0.0
    %2487 = vmatprep.subr.mxu0 0.0
    %2488 = vmatpush1.msra.mxu0 0.0
    %2489 = vmatprep.subr.mxu0 0.0
    %2490 = vmatpush1.msra.mxu0 0.0
    %2491 = vmatprep.subr.mxu0 0.0
    %2492 = vmatpush1.msra.mxu0 0.0
    %2493 = vmatprep.subr.mxu0 0.0
    %2494 = vmatpush1.msra.mxu0 0.0
    %2495 = vmatprep.subr.mxu0 0.0
    %2496 = vmatpush1.msra.mxu0 0.0
    %2497 = vmatprep.subr.mxu0 0.0
    %2498 = vmatpush1.msra.mxu0 0.0
    %2499 = vmatprep.subr.mxu0 0.0
    %2500 = vmatpush1.msra.mxu0 0.0
    %2501 = vmatprep.subr.mxu0 0.0
    %2502 = vmatpush1.msra.mxu0 0.0
    %2503 = vmatprep.subr.mxu0 0.0
    %2504 = vmatpush1.msra.mxu0 0.0
    %2505 = vmatprep.subr.mxu0 0.0
    %2506 = vmatpush1.msra.mxu0 0.0
    %2507 = vmatprep.subr.mxu0 %v2227
    %2508 = vmatpush1.msra.mxu0 %v2225
    %2509 = vmatprep.subr.mxu0 0.0
    %2510 = vmatpush2.msra.mxu0 0.0
    %2511 = vmatprep.subr.mxu0 0.0
    %2512 = vmatpush2.msra.mxu0 0.0
    %2513 = vmatprep.subr.mxu0 0.0
    %2514 = vmatpush2.msra.mxu0 0.0
    %2515 = vmatprep.subr.mxu0 0.0
    %2516 = vmatpush2.msra.mxu0 0.0
    %2517 = vmatprep.subr.mxu0 0.0
    %2518 = vmatpush2.msra.mxu0 0.0
    %2519 = vmatprep.subr.mxu0 0.0
    %2520 = vmatpush2.msra.mxu0 0.0
    %2521 = vmatprep.subr.mxu0 0.0
    %2522 = vmatpush2.msra.mxu0 0.0
    %2523 = vmatprep.subr.mxu0 0.0
    %2524 = vmatpush2.msra.mxu0 0.0
    %2525 = vmatprep.subr.mxu0 0.0
    %2526 = vmatpush2.msra.mxu0 0.0
    %2527 = vmatprep.subr.mxu0 0.0
    %2528 = vmatpush2.msra.mxu0 0.0
    %2529 = vmatprep.subr.mxu0 0.0
    %2530 = vmatpush2.msra.mxu0 0.0
    %2531 = vmatprep.subr.mxu0 0.0
    %2532 = vmatpush2.msra.mxu0 0.0
    %2533 = vmatprep.subr.mxu0 0.0
    %2534 = vmatpush2.msra.mxu0 0.0
    %2535 = vmatprep.subr.mxu0 0.0
    %2536 = vmatpush2.msra.mxu0 0.0
    %2537 = vmatprep.subr.mxu0 0.0
    %2538 = vmatpush2.msra.mxu0 0.0
    %2539 = vmatprep.subr.mxu0 0.0
    %2540 = vmatpush2.msra.mxu0 0.0
    %2541 = vmatprep.mubr.f32.mxu0 0.0
    %2542 = vmatmul.mubr.f32.gmra.mxu0 %v2208
    %v2543 = vpop.f32.mrf.mxu0
    %v2544 = vadd.f32 0.0, %v2543
    %v2545 = vpop.f32.mrf.mxu0
    %v2546 = vadd.f32 0.0, %v2545
    %2547 = vmatprep.mubr.f32.mxu0 0.0
    %2548 = vmatmul.mubr.f32.gmra.mxu0 %v2211
    %v2549 = vpop.f32.mrf.mxu0
    %v2550 = vadd.f32 0.0, %v2549
    %v2551 = vpop.f32.mrf.mxu0
    %v2552 = vadd.f32 0.0, %v2551
    %2553 = vdwg.mxu0
    %2554 = vmatprep.subr.mxu0 0.0
    %2555 = vmatpush1.msra.mxu0 0.0
    %2556 = vmatprep.subr.mxu0 0.0
    %2557 = vmatpush1.msra.mxu0 0.0
    %2558 = vmatprep.subr.mxu0 0.0
    %2559 = vmatpush1.msra.mxu0 0.0
    %2560 = vmatprep.subr.mxu0 0.0
    %2561 = vmatpush1.msra.mxu0 0.0
    %2562 = vmatprep.subr.mxu0 0.0
    %2563 = vmatpush1.msra.mxu0 0.0
    %2564 = vmatprep.subr.mxu0 0.0
    %2565 = vmatpush1.msra.mxu0 0.0
    %2566 = vmatprep.subr.mxu0 0.0
    %2567 = vmatpush1.msra.mxu0 0.0
    %2568 = vmatprep.subr.mxu0 0.0
    %2569 = vmatpush1.msra.mxu0 0.0
    %2570 = vmatprep.subr.mxu0 0.0
    %2571 = vmatpush1.msra.mxu0 0.0
    %2572 = vmatprep.subr.mxu0 0.0
    %2573 = vmatpush1.msra.mxu0 0.0
    %2574 = vmatprep.subr.mxu0 0.0
    %2575 = vmatpush1.msra.mxu0 0.0
    %2576 = vmatprep.subr.mxu0 0.0
    %2577 = vmatpush1.msra.mxu0 0.0
    %2578 = vmatprep.subr.mxu0 0.0
    %2579 = vmatpush1.msra.mxu0 0.0
    %2580 = vmatprep.subr.mxu0 0.0
    %2581 = vmatpush1.msra.mxu0 0.0
    %2582 = vmatprep.subr.mxu0 0.0
    %2583 = vmatpush1.msra.mxu0 0.0
    %2584 = vmatprep.subr.mxu0 %v2231
    %2585 = vmatpush1.msra.mxu0 %v2229
    %2586 = vmatprep.subr.mxu0 0.0
    %2587 = vmatpush2.msra.mxu0 0.0
    %2588 = vmatprep.subr.mxu0 0.0
    %2589 = vmatpush2.msra.mxu0 0.0
    %2590 = vmatprep.subr.mxu0 0.0
    %2591 = vmatpush2.msra.mxu0 0.0
    %2592 = vmatprep.subr.mxu0 0.0
    %2593 = vmatpush2.msra.mxu0 0.0
    %2594 = vmatprep.subr.mxu0 0.0
    %2595 = vmatpush2.msra.mxu0 0.0
    %2596 = vmatprep.subr.mxu0 0.0
    %2597 = vmatpush2.msra.mxu0 0.0
    %2598 = vmatprep.subr.mxu0 0.0
    %2599 = vmatpush2.msra.mxu0 0.0
    %2600 = vmatprep.subr.mxu0 0.0
    %2601 = vmatpush2.msra.mxu0 0.0
    %2602 = vmatprep.subr.mxu0 0.0
    %2603 = vmatpush2.msra.mxu0 0.0
    %2604 = vmatprep.subr.mxu0 0.0
    %2605 = vmatpush2.msra.mxu0 0.0
    %2606 = vmatprep.subr.mxu0 0.0
    %2607 = vmatpush2.msra.mxu0 0.0
    %2608 = vmatprep.subr.mxu0 0.0
    %2609 = vmatpush2.msra.mxu0 0.0
    %2610 = vmatprep.subr.mxu0 0.0
    %2611 = vmatpush2.msra.mxu0 0.0
    %2612 = vmatprep.subr.mxu0 0.0
    %2613 = vmatpush2.msra.mxu0 0.0
    %2614 = vmatprep.subr.mxu0 0.0
    %2615 = vmatpush2.msra.mxu0 0.0
    %2616 = vmatprep.subr.mxu0 0.0
    %2617 = vmatpush2.msra.mxu0 0.0
    %2618 = vmatprep.mubr.f32.mxu0 0.0
    %2619 = vmatmul.mubr.f32.gmra.mxu0 %v2208
    %v2620 = vpop.f32.mrf.mxu0
    %v2621 = vadd.f32 0.0, %v2620
    %v2622 = vpop.f32.mrf.mxu0
    %v2623 = vadd.f32 0.0, %v2622
    %2624 = vmatprep.mubr.f32.mxu0 0.0
    %2625 = vmatmul.mubr.f32.gmra.mxu0 %v2211
    %v2626 = vpop.f32.mrf.mxu0
    %v2627 = vadd.f32 0.0, %v2626
    %v2628 = vpop.f32.mrf.mxu0
    %v2629 = vadd.f32 0.0, %v2628
    %2630 = vdwg.mxu0
    %2631 = vmatprep.subr.mxu0 0.0
    %2632 = vmatpush1.msra.mxu0 0.0
    %2633 = vmatprep.subr.mxu0 0.0
    %2634 = vmatpush1.msra.mxu0 0.0
    %2635 = vmatprep.subr.mxu0 0.0
    %2636 = vmatpush1.msra.mxu0 0.0
    %2637 = vmatprep.subr.mxu0 0.0
    %2638 = vmatpush1.msra.mxu0 0.0
    %2639 = vmatprep.subr.mxu0 0.0
    %2640 = vmatpush1.msra.mxu0 0.0
    %2641 = vmatprep.subr.mxu0 0.0
    %2642 = vmatpush1.msra.mxu0 0.0
    %2643 = vmatprep.subr.mxu0 0.0
    %2644 = vmatpush1.msra.mxu0 0.0
    %2645 = vmatprep.subr.mxu0 0.0
    %2646 = vmatpush1.msra.mxu0 0.0
    %2647 = vmatprep.subr.mxu0 0.0
    %2648 = vmatpush1.msra.mxu0 0.0
    %2649 = vmatprep.subr.mxu0 0.0
    %2650 = vmatpush1.msra.mxu0 0.0
    %2651 = vmatprep.subr.mxu0 0.0
    %2652 = vmatpush1.msra.mxu0 0.0
    %2653 = vmatprep.subr.mxu0 0.0
    %2654 = vmatpush1.msra.mxu0 0.0
    %2655 = vmatprep.subr.mxu0 0.0
    %2656 = vmatpush1.msra.mxu0 0.0
    %2657 = vmatprep.subr.mxu0 0.0
    %2658 = vmatpush1.msra.mxu0 0.0
    %2659 = vmatprep.subr.mxu0 0.0
    %2660 = vmatpush1.msra.mxu0 0.0
    %2661 = vmatprep.subr.mxu0 %v2235
    %2662 = vmatpush1.msra.mxu0 %v2233
    %2663 = vmatprep.subr.mxu0 0.0
    %2664 = vmatpush2.msra.mxu0 0.0
    %2665 = vmatprep.subr.mxu0 0.0
    %2666 = vmatpush2.msra.mxu0 0.0
    %2667 = vmatprep.subr.mxu0 0.0
    %2668 = vmatpush2.msra.mxu0 0.0
    %2669 = vmatprep.subr.mxu0 0.0
    %2670 = vmatpush2.msra.mxu0 0.0
    %2671 = vmatprep.subr.mxu0 0.0
    %2672 = vmatpush2.msra.mxu0 0.0
    %2673 = vmatprep.subr.mxu0 0.0
    %2674 = vmatpush2.msra.mxu0 0.0
    %2675 = vmatprep.subr.mxu0 0.0
    %2676 = vmatpush2.msra.mxu0 0.0
    %2677 = vmatprep.subr.mxu0 0.0
    %2678 = vmatpush2.msra.mxu0 0.0
    %2679 = vmatprep.subr.mxu0 0.0
    %2680 = vmatpush2.msra.mxu0 0.0
    %2681 = vmatprep.subr.mxu0 0.0
    %2682 = vmatpush2.msra.mxu0 0.0
    %2683 = vmatprep.subr.mxu0 0.0
    %2684 = vmatpush2.msra.mxu0 0.0
    %2685 = vmatprep.subr.mxu0 0.0
    %2686 = vmatpush2.msra.mxu0 0.0
    %2687 = vmatprep.subr.mxu0 0.0
    %2688 = vmatpush2.msra.mxu0 0.0
    %2689 = vmatprep.subr.mxu0 0.0
    %2690 = vmatpush2.msra.mxu0 0.0
    %2691 = vmatprep.subr.mxu0 0.0
    %2692 = vmatpush2.msra.mxu0 0.0
    %2693 = vmatprep.subr.mxu0 0.0
    %2694 = vmatpush2.msra.mxu0 0.0
    %2695 = vmatprep.mubr.f32.mxu0 0.0
    %2696 = vmatmul.mubr.f32.gmra.mxu0 %v2208
    %v2697 = vpop.f32.mrf.mxu0
    %v2698 = vadd.f32 0.0, %v2697
    %v2699 = vpop.f32.mrf.mxu0
    %v2700 = vadd.f32 0.0, %v2699
    %2701 = vmatprep.mubr.f32.mxu0 0.0
    %2702 = vmatmul.mubr.f32.gmra.mxu0 %v2211
    %v2703 = vpop.f32.mrf.mxu0
    %v2704 = vadd.f32 0.0, %v2703
    %v2705 = vpop.f32.mrf.mxu0
    %v2706 = vadd.f32 0.0, %v2705
    %2707 = vdwg.mxu0
    %2708 = vmatprep.subr.mxu0 0.0
    %2709 = vmatpush1.msra.mxu0 0.0
    %2710 = vmatprep.subr.mxu0 0.0
    %2711 = vmatpush1.msra.mxu0 0.0
    %2712 = vmatprep.subr.mxu0 0.0
    %2713 = vmatpush1.msra.mxu0 0.0
    %2714 = vmatprep.subr.mxu0 0.0
    %2715 = vmatpush1.msra.mxu0 0.0
    %2716 = vmatprep.subr.mxu0 0.0
    %2717 = vmatpush1.msra.mxu0 0.0
    %2718 = vmatprep.subr.mxu0 0.0
    %2719 = vmatpush1.msra.mxu0 0.0
    %2720 = vmatprep.subr.mxu0 0.0
    %2721 = vmatpush1.msra.mxu0 0.0
    %2722 = vmatprep.subr.mxu0 0.0
    %2723 = vmatpush1.msra.mxu0 0.0
    %2724 = vmatprep.subr.mxu0 0.0
    %2725 = vmatpush1.msra.mxu0 0.0
    %2726 = vmatprep.subr.mxu0 0.0
    %2727 = vmatpush1.msra.mxu0 0.0
    %2728 = vmatprep.subr.mxu0 0.0
    %2729 = vmatpush1.msra.mxu0 0.0
    %2730 = vmatprep.subr.mxu0 0.0
    %2731 = vmatpush1.msra.mxu0 0.0
    %2732 = vmatprep.subr.mxu0 0.0
    %2733 = vmatpush1.msra.mxu0 0.0
    %2734 = vmatprep.subr.mxu0 0.0
    %2735 = vmatpush1.msra.mxu0 0.0
    %2736 = vmatprep.subr.mxu0 0.0
    %2737 = vmatpush1.msra.mxu0 0.0
    %2738 = vmatprep.subr.mxu0 %v2239
    %2739 = vmatpush1.msra.mxu0 %v2237
    %2740 = vmatprep.subr.mxu0 0.0
    %2741 = vmatpush2.msra.mxu0 0.0
    %2742 = vmatprep.subr.mxu0 0.0
    %2743 = vmatpush2.msra.mxu0 0.0
    %2744 = vmatprep.subr.mxu0 0.0
    %2745 = vmatpush2.msra.mxu0 0.0
    %2746 = vmatprep.subr.mxu0 0.0
    %2747 = vmatpush2.msra.mxu0 0.0
    %2748 = vmatprep.subr.mxu0 0.0
    %2749 = vmatpush2.msra.mxu0 0.0
    %2750 = vmatprep.subr.mxu0 0.0
    %2751 = vmatpush2.msra.mxu0 0.0
    %2752 = vmatprep.subr.mxu0 0.0
    %2753 = vmatpush2.msra.mxu0 0.0
    %2754 = vmatprep.subr.mxu0 0.0
    %2755 = vmatpush2.msra.mxu0 0.0
    %2756 = vmatprep.subr.mxu0 0.0
    %2757 = vmatpush2.msra.mxu0 0.0
    %2758 = vmatprep.subr.mxu0 0.0
    %2759 = vmatpush2.msra.mxu0 0.0
    %2760 = vmatprep.subr.mxu0 0.0
    %2761 = vmatpush2.msra.mxu0 0.0
    %2762 = vmatprep.subr.mxu0 0.0
    %2763 = vmatpush2.msra.mxu0 0.0
    %2764 = vmatprep.subr.mxu0 0.0
    %2765 = vmatpush2.msra.mxu0 0.0
    %2766 = vmatprep.subr.mxu0 0.0
    %2767 = vmatpush2.msra.mxu0 0.0
    %2768 = vmatprep.subr.mxu0 0.0
    %2769 = vmatpush2.msra.mxu0 0.0
    %2770 = vmatprep.subr.mxu0 0.0
    %2771 = vmatpush2.msra.mxu0 0.0
    %2772 = vmatprep.mubr.f32.mxu0 0.0
    %2773 = vmatmul.mubr.f32.gmra.mxu0 %v2208
    %v2774 = vpop.f32.mrf.mxu0
    %v2775 = vadd.f32 0.0, %v2774
    %v2776 = vpop.f32.mrf.mxu0
    %v2777 = vadd.f32 0.0, %v2776
    %2778 = vmatprep.mubr.f32.mxu0 0.0
    %2779 = vmatmul.mubr.f32.gmra.mxu0 %v2211
    %v2780 = vpop.f32.mrf.mxu0
    %v2781 = vadd.f32 0.0, %v2780
    %v2782 = vpop.f32.mrf.mxu0
    %v2783 = vadd.f32 0.0, %v2782
    %2784 = vdwg.mxu0
    %2785 = vmatprep.subr.mxu0 0.0
    %2786 = vmatpush1.msra.mxu0 0.0
    %2787 = vmatprep.subr.mxu0 0.0
    %2788 = vmatpush1.msra.mxu0 0.0
    %2789 = vmatprep.subr.mxu0 0.0
    %2790 = vmatpush1.msra.mxu0 0.0
    %2791 = vmatprep.subr.mxu0 0.0
    %2792 = vmatpush1.msra.mxu0 0.0
    %2793 = vmatprep.subr.mxu0 0.0
    %2794 = vmatpush1.msra.mxu0 0.0
    %2795 = vmatprep.subr.mxu0 0.0
    %2796 = vmatpush1.msra.mxu0 0.0
    %2797 = vmatprep.subr.mxu0 0.0
    %2798 = vmatpush1.msra.mxu0 0.0
    %2799 = vmatprep.subr.mxu0 0.0
    %2800 = vmatpush1.msra.mxu0 0.0
    %2801 = vmatprep.subr.mxu0 0.0
    %2802 = vmatpush1.msra.mxu0 0.0
    %2803 = vmatprep.subr.mxu0 0.0
    %2804 = vmatpush1.msra.mxu0 0.0
    %2805 = vmatprep.subr.mxu0 0.0
    %2806 = vmatpush1.msra.mxu0 0.0
    %2807 = vmatprep.subr.mxu0 0.0
    %2808 = vmatpush1.msra.mxu0 0.0
    %2809 = vmatprep.subr.mxu0 0.0
    %2810 = vmatpush1.msra.mxu0 0.0
    %2811 = vmatprep.subr.mxu0 0.0
    %2812 = vmatpush1.msra.mxu0 0.0
    %2813 = vmatprep.subr.mxu0 0.0
    %2814 = vmatpush1.msra.mxu0 0.0
    %2815 = vmatprep.subr.mxu0 %v2244
    %2816 = vmatpush1.msra.mxu0 %v2241
    %2817 = vmatprep.subr.mxu0 0.0
    %2818 = vmatpush2.msra.mxu0 0.0
    %2819 = vmatprep.subr.mxu0 0.0
    %2820 = vmatpush2.msra.mxu0 0.0
    %2821 = vmatprep.subr.mxu0 0.0
    %2822 = vmatpush2.msra.mxu0 0.0
    %2823 = vmatprep.subr.mxu0 0.0
    %2824 = vmatpush2.msra.mxu0 0.0
    %2825 = vmatprep.subr.mxu0 0.0
    %2826 = vmatpush2.msra.mxu0 0.0
    %2827 = vmatprep.subr.mxu0 0.0
    %2828 = vmatpush2.msra.mxu0 0.0
    %2829 = vmatprep.subr.mxu0 0.0
    %2830 = vmatpush2.msra.mxu0 0.0
    %2831 = vmatprep.subr.mxu0 0.0
    %2832 = vmatpush2.msra.mxu0 0.0
    %2833 = vmatprep.subr.mxu0 0.0
    %2834 = vmatpush2.msra.mxu0 0.0
    %2835 = vmatprep.subr.mxu0 0.0
    %2836 = vmatpush2.msra.mxu0 0.0
    %2837 = vmatprep.subr.mxu0 0.0
    %2838 = vmatpush2.msra.mxu0 0.0
    %2839 = vmatprep.subr.mxu0 0.0
    %2840 = vmatpush2.msra.mxu0 0.0
    %2841 = vmatprep.subr.mxu0 0.0
    %2842 = vmatpush2.msra.mxu0 0.0
    %2843 = vmatprep.subr.mxu0 0.0
    %2844 = vmatpush2.msra.mxu0 0.0
    %2845 = vmatprep.subr.mxu0 0.0
    %2846 = vmatpush2.msra.mxu0 0.0
    %2847 = vmatprep.subr.mxu0 0.0
    %2848 = vmatpush2.msra.mxu0 0.0
    %2849 = vmatprep.mubr.f32.mxu0 0.0
    %2850 = vmatmul.mubr.f32.gmra.mxu0 %v2208
    %v2851 = vpop.f32.mrf.mxu0
    %v2852 = vadd.f32 0.0, %v2851
    %v2853 = vpop.f32.mrf.mxu0
    %v2854 = vadd.f32 0.0, %v2853
    %2855 = vmatprep.mubr.f32.mxu0 0.0
    %2856 = vmatmul.mubr.f32.gmra.mxu0 %v2211
    %v2857 = vpop.f32.mrf.mxu0
    %v2858 = vadd.f32 0.0, %v2857
    %v2859 = vpop.f32.mrf.mxu0
    %v2860 = vadd.f32 0.0, %v2859
    %2861 = vdwg.mxu0
    %v2862 = vadd.f32 %v2121, %v2313
    %v2863 = vadd.f32 %v2122, %v2315
    %v2864 = vadd.f32 %v2123, %v2390
    %v2865 = vadd.f32 %v2124, %v2392
    %v2866 = vadd.f32 %v2125, %v2467
    %v2867 = vadd.f32 %v2126, %v2469
    %v2868 = vadd.f32 %v2127, %v2544
    %v2869 = vadd.f32 %v2128, %v2546
    %v2870 = vadd.f32 %v2129, %v2621
    %v2871 = vadd.f32 %v2130, %v2623
    %v2872 = vadd.f32 %v2131, %v2698
    %v2873 = vadd.f32 %v2132, %v2700
    %v2874 = vadd.f32 %v2133, %v2775
    %v2875 = vadd.f32 %v2134, %v2777
    %v2876 = vadd.f32 %v2135, %v2852
    %v2877 = vadd.f32 %v2136, %v2854
    %v2878 = vadd.f32 %v2137, %v2319
    %v2879 = vadd.f32 %v2138, %v2321
    %v2880 = vadd.f32 %v2139, %v2396
    %v2881 = vadd.f32 %v2140, %v2398
    %v2882 = vadd.f32 %v2141, %v2473
    %v2883 = vadd.f32 %v2142, %v2475
    %v2884 = vadd.f32 %v2143, %v2550
    %v2885 = vadd.f32 %v2144, %v2552
    %v2886 = vadd.f32 %v2145, %v2627
    %v2887 = vadd.f32 %v2146, %v2629
    %v2888 = vadd.f32 %v2147, %v2704
    %v2889 = vadd.f32 %v2148, %v2706
    %v2890 = vadd.f32 %v2149, %v2781
    %v2891 = vadd.f32 %v2150, %v2783
    %v2892 = vadd.f32 %v2151, %v2858
    %v2893 = vadd.f32 %v2152, %v2860
    %2894 = vrot.lane.b32.xlu0 %v21, 95
    %v2895 = vpop.permute.xlu0 %2894
    %2896 = vrot.lane.b32.xlu0 %v39, 95
    %v2897 = vpop.permute.xlu0 %2896
    %2898 = vrot.lane.b32.xlu0 %v22, 95
    %v2899 = vpop.permute.xlu0 %2898
    %2900 = vrot.lane.b32.xlu0 %v40, 95
    %v2901 = vpop.permute.xlu0 %2900
    %2902 = vrot.lane.b32.xlu0 %v23, 95
    %v2903 = vpop.permute.xlu0 %2902
    %2904 = vrot.lane.b32.xlu0 %v41, 95
    %v2905 = vpop.permute.xlu0 %2904
    %2906 = vrot.lane.b32.xlu0 %v24, 95
    %v2907 = vpop.permute.xlu0 %2906
    %2908 = vrot.lane.b32.xlu0 %v42, 95
    %v2909 = vpop.permute.xlu0 %2908
    %2910 = vrot.lane.b32.xlu0 %v25, 95
    %v2911 = vpop.permute.xlu0 %2910
    %2912 = vrot.lane.b32.xlu0 %v43, 95
    %v2913 = vpop.permute.xlu0 %2912
    %2914 = vrot.lane.b32.xlu0 %v26, 95
    %v2915 = vpop.permute.xlu0 %2914
    %2916 = vrot.lane.b32.xlu0 %v44, 95
    %v2917 = vpop.permute.xlu0 %2916
    %2918 = vrot.lane.b32.xlu0 %v27, 95
    %v2919 = vpop.permute.xlu0 %2918
    %2920 = vrot.lane.b32.xlu0 %v45, 95
    %v2921 = vpop.permute.xlu0 %2920
    %2922 = vrot.lane.b32.xlu0 %v28, 95
    %v2923 = vpop.permute.xlu0 %2922
    %2924 = vrot.lane.b32.xlu0 %v46, 95
    %v2925 = vpop.permute.xlu0 %2924
    %vm2926 = vcmask 777216
    %v2927 = vsel %vm2926, %v2895, %v2897
    %v2928 = vsel %vm2926, %v2897, %v2899
    %v2929 = vsel %vm2926, %v2899, %v2901
    %v2930 = vsel %vm2926, %v2901, %v2903
    %v2931 = vsel %vm2926, %v2903, %v2905
    %v2932 = vsel %vm2926, %v2905, %v2907
    %v2933 = vsel %vm2926, %v2907, %v2909
    %v2934 = vsel %vm2926, %v2909, %v2911
    %v2935 = vsel %vm2926, %v2911, %v2913
    %v2936 = vsel %vm2926, %v2913, %v2915
    %v2937 = vsel %vm2926, %v2915, %v2917
    %v2938 = vsel %vm2926, %v2917, %v2919
    %v2939 = vsel %vm2926, %v2919, %v2921
    %v2940 = vsel %vm2926, %v2921, %v2923
    %v2941 = vsel %vm2926, %v2923, %v2925
    %v2944 = vsel %vm2926, %v2925, %v2895
    %s2945 = scalar_lea.vmem %s1, 64
    %v2946 = vld [vmem:[%s2945] sm:$0xff]
    %v2947 = vld [vmem:[%s2945 + $0x8] sm:$0x3]
    %v2949 = vsel %vm101, %v2946, 0
    %v2952 = vsel %vm101, %v2947, 0
    %v2954 = vsel %vm108, %v2927, 0
    %v2956 = vsel %vm108, %v2928, 0
    %v2958 = vsel %vm108, %v2929, 0
    %v2960 = vsel %vm108, %v2930, 0
    %v2962 = vsel %vm108, %v2931, 0
    %v2964 = vsel %vm108, %v2932, 0
    %v2966 = vsel %vm108, %v2933, 0
    %v2968 = vsel %vm108, %v2934, 0
    %v2970 = vsel %vm108, %v2935, 0
    %v2972 = vsel %vm108, %v2936, 0
    %v2974 = vsel %vm108, %v2937, 0
    %v2976 = vsel %vm108, %v2938, 0
    %v2978 = vsel %vm108, %v2939, 0
    %v2980 = vsel %vm108, %v2940, 0
    %v2982 = vsel %vm108, %v2941, 0
    %v2985 = vsel %vm108, %v2944, 0
    %2987 = vmatprep.subr.mxu0 0.0
    %2988 = vmatpush1.msra.mxu0 0.0
    %2989 = vmatprep.subr.mxu0 0.0
    %2990 = vmatpush1.msra.mxu0 0.0
    %2991 = vmatprep.subr.mxu0 0.0
    %2992 = vmatpush1.msra.mxu0 0.0
    %2993 = vmatprep.subr.mxu0 0.0
    %2994 = vmatpush1.msra.mxu0 0.0
    %2995 = vmatprep.subr.mxu0 0.0
    %2996 = vmatpush1.msra.mxu0 0.0
    %2997 = vmatprep.subr.mxu0 0.0
    %2998 = vmatpush1.msra.mxu0 0.0
    %2999 = vmatprep.subr.mxu0 0.0
    %3000 = vmatpush1.msra.mxu0 0.0
    %3001 = vmatprep.subr.mxu0 0.0
    %3002 = vmatpush1.msra.mxu0 0.0
    %3003 = vmatprep.subr.mxu0 0.0
    %3004 = vmatpush1.msra.mxu0 0.0
    %3005 = vmatprep.subr.mxu0 0.0
    %3006 = vmatpush1.msra.mxu0 0.0
    %3007 = vmatprep.subr.mxu0 0.0
    %3008 = vmatpush1.msra.mxu0 0.0
    %3009 = vmatprep.subr.mxu0 0.0
    %3010 = vmatpush1.msra.mxu0 0.0
    %3011 = vmatprep.subr.mxu0 0.0
    %3012 = vmatpush1.msra.mxu0 0.0
    %3013 = vmatprep.subr.mxu0 0.0
    %3014 = vmatpush1.msra.mxu0 0.0
    %3015 = vmatprep.subr.mxu0 0.0
    %3016 = vmatpush1.msra.mxu0 0.0
    %3017 = vmatprep.subr.mxu0 %v2956
    %3018 = vmatpush1.msra.mxu0 %v2954
    %3019 = vmatprep.subr.mxu0 0.0
    %3020 = vmatpush2.msra.mxu0 0.0
    %3021 = vmatprep.subr.mxu0 0.0
    %3022 = vmatpush2.msra.mxu0 0.0
    %3023 = vmatprep.subr.mxu0 0.0
    %3024 = vmatpush2.msra.mxu0 0.0
    %3025 = vmatprep.subr.mxu0 0.0
    %3026 = vmatpush2.msra.mxu0 0.0
    %3027 = vmatprep.subr.mxu0 0.0
    %3028 = vmatpush2.msra.mxu0 0.0
    %3029 = vmatprep.subr.mxu0 0.0
    %3030 = vmatpush2.msra.mxu0 0.0
    %3031 = vmatprep.subr.mxu0 0.0
    %3032 = vmatpush2.msra.mxu0 0.0
    %3033 = vmatprep.subr.mxu0 0.0
    %3034 = vmatpush2.msra.mxu0 0.0
    %3035 = vmatprep.subr.mxu0 0.0
    %3036 = vmatpush2.msra.mxu0 0.0
    %3037 = vmatprep.subr.mxu0 0.0
    %3038 = vmatpush2.msra.mxu0 0.0
    %3039 = vmatprep.subr.mxu0 0.0
    %3040 = vmatpush2.msra.mxu0 0.0
    %3041 = vmatprep.subr.mxu0 0.0
    %3042 = vmatpush2.msra.mxu0 0.0
    %3043 = vmatprep.subr.mxu0 0.0
    %3044 = vmatpush2.msra.mxu0 0.0
    %3045 = vmatprep.subr.mxu0 0.0
    %3046 = vmatpush2.msra.mxu0 0.0
    %3047 = vmatprep.subr.mxu0 0.0
    %3048 = vmatpush2.msra.mxu0 0.0
    %3049 = vmatprep.subr.mxu0 0.0
    %3050 = vmatpush2.msra.mxu0 0.0
    %3051 = vmatprep.mubr.f32.mxu0 0.0
    %3052 = vmatmul.mubr.f32.gmra.mxu0 %v2949
    %v3053 = vpop.f32.mrf.mxu0
    %v3054 = vadd.f32 0.0, %v3053
    %v3055 = vpop.f32.mrf.mxu0
    %v3056 = vadd.f32 0.0, %v3055
    %3057 = vmatprep.mubr.f32.mxu0 0.0
    %3058 = vmatmul.mubr.f32.gmra.mxu0 %v2952
    %v3059 = vpop.f32.mrf.mxu0
    %v3060 = vadd.f32 0.0, %v3059
    %v3061 = vpop.f32.mrf.mxu0
    %v3062 = vadd.f32 0.0, %v3061
    %3063 = vdwg.mxu0
    %3064 = vmatprep.subr.mxu0 0.0
    %3065 = vmatpush1.msra.mxu0 0.0
    %3066 = vmatprep.subr.mxu0 0.0
    %3067 = vmatpush1.msra.mxu0 0.0
    %3068 = vmatprep.subr.mxu0 0.0
    %3069 = vmatpush1.msra.mxu0 0.0
    %3070 = vmatprep.subr.mxu0 0.0
    %3071 = vmatpush1.msra.mxu0 0.0
    %3072 = vmatprep.subr.mxu0 0.0
    %3073 = vmatpush1.msra.mxu0 0.0
    %3074 = vmatprep.subr.mxu0 0.0
    %3075 = vmatpush1.msra.mxu0 0.0
    %3076 = vmatprep.subr.mxu0 0.0
    %3077 = vmatpush1.msra.mxu0 0.0
    %3078 = vmatprep.subr.mxu0 0.0
    %3079 = vmatpush1.msra.mxu0 0.0
    %3080 = vmatprep.subr.mxu0 0.0
    %3081 = vmatpush1.msra.mxu0 0.0
    %3082 = vmatprep.subr.mxu0 0.0
    %3083 = vmatpush1.msra.mxu0 0.0
    %3084 = vmatprep.subr.mxu0 0.0
    %3085 = vmatpush1.msra.mxu0 0.0
    %3086 = vmatprep.subr.mxu0 0.0
    %3087 = vmatpush1.msra.mxu0 0.0
    %3088 = vmatprep.subr.mxu0 0.0
    %3089 = vmatpush1.msra.mxu0 0.0
    %3090 = vmatprep.subr.mxu0 0.0
    %3091 = vmatpush1.msra.mxu0 0.0
    %3092 = vmatprep.subr.mxu0 0.0
    %3093 = vmatpush1.msra.mxu0 0.0
    %3094 = vmatprep.subr.mxu0 %v2960
    %3095 = vmatpush1.msra.mxu0 %v2958
    %3096 = vmatprep.subr.mxu0 0.0
    %3097 = vmatpush2.msra.mxu0 0.0
    %3098 = vmatprep.subr.mxu0 0.0
    %3099 = vmatpush2.msra.mxu0 0.0
    %3100 = vmatprep.subr.mxu0 0.0
    %3101 = vmatpush2.msra.mxu0 0.0
    %3102 = vmatprep.subr.mxu0 0.0
    %3103 = vmatpush2.msra.mxu0 0.0
    %3104 = vmatprep.subr.mxu0 0.0
    %3105 = vmatpush2.msra.mxu0 0.0
    %3106 = vmatprep.subr.mxu0 0.0
    %3107 = vmatpush2.msra.mxu0 0.0
    %3108 = vmatprep.subr.mxu0 0.0
    %3109 = vmatpush2.msra.mxu0 0.0
    %3110 = vmatprep.subr.mxu0 0.0
    %3111 = vmatpush2.msra.mxu0 0.0
    %3112 = vmatprep.subr.mxu0 0.0
    %3113 = vmatpush2.msra.mxu0 0.0
    %3114 = vmatprep.subr.mxu0 0.0
    %3115 = vmatpush2.msra.mxu0 0.0
    %3116 = vmatprep.subr.mxu0 0.0
    %3117 = vmatpush2.msra.mxu0 0.0
    %3118 = vmatprep.subr.mxu0 0.0
    %3119 = vmatpush2.msra.mxu0 0.0
    %3120 = vmatprep.subr.mxu0 0.0
    %3121 = vmatpush2.msra.mxu0 0.0
    %3122 = vmatprep.subr.mxu0 0.0
    %3123 = vmatpush2.msra.mxu0 0.0
    %3124 = vmatprep.subr.mxu0 0.0
    %3125 = vmatpush2.msra.mxu0 0.0
    %3126 = vmatprep.subr.mxu0 0.0
    %3127 = vmatpush2.msra.mxu0 0.0
    %3128 = vmatprep.mubr.f32.mxu0 0.0
    %3129 = vmatmul.mubr.f32.gmra.mxu0 %v2949
    %v3130 = vpop.f32.mrf.mxu0
    %v3131 = vadd.f32 0.0, %v3130
    %v3132 = vpop.f32.mrf.mxu0
    %v3133 = vadd.f32 0.0, %v3132
    %3134 = vmatprep.mubr.f32.mxu0 0.0
    %3135 = vmatmul.mubr.f32.gmra.mxu0 %v2952
    %v3136 = vpop.f32.mrf.mxu0
    %v3137 = vadd.f32 0.0, %v3136
    %v3138 = vpop.f32.mrf.mxu0
    %v3139 = vadd.f32 0.0, %v3138
    %3140 = vdwg.mxu0
    %3141 = vmatprep.subr.mxu0 0.0
    %3142 = vmatpush1.msra.mxu0 0.0
    %3143 = vmatprep.subr.mxu0 0.0
    %3144 = vmatpush1.msra.mxu0 0.0
    %3145 = vmatprep.subr.mxu0 0.0
    %3146 = vmatpush1.msra.mxu0 0.0
    %3147 = vmatprep.subr.mxu0 0.0
    %3148 = vmatpush1.msra.mxu0 0.0
    %3149 = vmatprep.subr.mxu0 0.0
    %3150 = vmatpush1.msra.mxu0 0.0
    %3151 = vmatprep.subr.mxu0 0.0
    %3152 = vmatpush1.msra.mxu0 0.0
    %3153 = vmatprep.subr.mxu0 0.0
    %3154 = vmatpush1.msra.mxu0 0.0
    %3155 = vmatprep.subr.mxu0 0.0
    %3156 = vmatpush1.msra.mxu0 0.0
    %3157 = vmatprep.subr.mxu0 0.0
    %3158 = vmatpush1.msra.mxu0 0.0
    %3159 = vmatprep.subr.mxu0 0.0
    %3160 = vmatpush1.msra.mxu0 0.0
    %3161 = vmatprep.subr.mxu0 0.0
    %3162 = vmatpush1.msra.mxu0 0.0
    %3163 = vmatprep.subr.mxu0 0.0
    %3164 = vmatpush1.msra.mxu0 0.0
    %3165 = vmatprep.subr.mxu0 0.0
    %3166 = vmatpush1.msra.mxu0 0.0
    %3167 = vmatprep.subr.mxu0 0.0
    %3168 = vmatpush1.msra.mxu0 0.0
    %3169 = vmatprep.subr.mxu0 0.0
    %3170 = vmatpush1.msra.mxu0 0.0
    %3171 = vmatprep.subr.mxu0 %v2964
    %3172 = vmatpush1.msra.mxu0 %v2962
    %3173 = vmatprep.subr.mxu0 0.0
    %3174 = vmatpush2.msra.mxu0 0.0
    %3175 = vmatprep.subr.mxu0 0.0
    %3176 = vmatpush2.msra.mxu0 0.0
    %3177 = vmatprep.subr.mxu0 0.0
    %3178 = vmatpush2.msra.mxu0 0.0
    %3179 = vmatprep.subr.mxu0 0.0
    %3180 = vmatpush2.msra.mxu0 0.0
    %3181 = vmatprep.subr.mxu0 0.0
    %3182 = vmatpush2.msra.mxu0 0.0
    %3183 = vmatprep.subr.mxu0 0.0
    %3184 = vmatpush2.msra.mxu0 0.0
    %3185 = vmatprep.subr.mxu0 0.0
    %3186 = vmatpush2.msra.mxu0 0.0
    %3187 = vmatprep.subr.mxu0 0.0
    %3188 = vmatpush2.msra.mxu0 0.0
    %3189 = vmatprep.subr.mxu0 0.0
    %3190 = vmatpush2.msra.mxu0 0.0
    %3191 = vmatprep.subr.mxu0 0.0
    %3192 = vmatpush2.msra.mxu0 0.0
    %3193 = vmatprep.subr.mxu0 0.0
    %3194 = vmatpush2.msra.mxu0 0.0
    %3195 = vmatprep.subr.mxu0 0.0
    %3196 = vmatpush2.msra.mxu0 0.0
    %3197 = vmatprep.subr.mxu0 0.0
    %3198 = vmatpush2.msra.mxu0 0.0
    %3199 = vmatprep.subr.mxu0 0.0
    %3200 = vmatpush2.msra.mxu0 0.0
    %3201 = vmatprep.subr.mxu0 0.0
    %3202 = vmatpush2.msra.mxu0 0.0
    %3203 = vmatprep.subr.mxu0 0.0
    %3204 = vmatpush2.msra.mxu0 0.0
    %3205 = vmatprep.mubr.f32.mxu0 0.0
    %3206 = vmatmul.mubr.f32.gmra.mxu0 %v2949
    %v3207 = vpop.f32.mrf.mxu0
    %v3208 = vadd.f32 0.0, %v3207
    %v3209 = vpop.f32.mrf.mxu0
    %v3210 = vadd.f32 0.0, %v3209
    %3211 = vmatprep.mubr.f32.mxu0 0.0
    %3212 = vmatmul.mubr.f32.gmra.mxu0 %v2952
    %v3213 = vpop.f32.mrf.mxu0
    %v3214 = vadd.f32 0.0, %v3213
    %v3215 = vpop.f32.mrf.mxu0
    %v3216 = vadd.f32 0.0, %v3215
    %3217 = vdwg.mxu0
    %3218 = vmatprep.subr.mxu0 0.0
    %3219 = vmatpush1.msra.mxu0 0.0
    %3220 = vmatprep.subr.mxu0 0.0
    %3221 = vmatpush1.msra.mxu0 0.0
    %3222 = vmatprep.subr.mxu0 0.0
    %3223 = vmatpush1.msra.mxu0 0.0
    %3224 = vmatprep.subr.mxu0 0.0
    %3225 = vmatpush1.msra.mxu0 0.0
    %3226 = vmatprep.subr.mxu0 0.0
    %3227 = vmatpush1.msra.mxu0 0.0
    %3228 = vmatprep.subr.mxu0 0.0
    %3229 = vmatpush1.msra.mxu0 0.0
    %3230 = vmatprep.subr.mxu0 0.0
    %3231 = vmatpush1.msra.mxu0 0.0
    %3232 = vmatprep.subr.mxu0 0.0
    %3233 = vmatpush1.msra.mxu0 0.0
    %3234 = vmatprep.subr.mxu0 0.0
    %3235 = vmatpush1.msra.mxu0 0.0
    %3236 = vmatprep.subr.mxu0 0.0
    %3237 = vmatpush1.msra.mxu0 0.0
    %3238 = vmatprep.subr.mxu0 0.0
    %3239 = vmatpush1.msra.mxu0 0.0
    %3240 = vmatprep.subr.mxu0 0.0
    %3241 = vmatpush1.msra.mxu0 0.0
    %3242 = vmatprep.subr.mxu0 0.0
    %3243 = vmatpush1.msra.mxu0 0.0
    %3244 = vmatprep.subr.mxu0 0.0
    %3245 = vmatpush1.msra.mxu0 0.0
    %3246 = vmatprep.subr.mxu0 0.0
    %3247 = vmatpush1.msra.mxu0 0.0
    %3248 = vmatprep.subr.mxu0 %v2968
    %3249 = vmatpush1.msra.mxu0 %v2966
    %3250 = vmatprep.subr.mxu0 0.0
    %3251 = vmatpush2.msra.mxu0 0.0
    %3252 = vmatprep.subr.mxu0 0.0
    %3253 = vmatpush2.msra.mxu0 0.0
    %3254 = vmatprep.subr.mxu0 0.0
    %3255 = vmatpush2.msra.mxu0 0.0
    %3256 = vmatprep.subr.mxu0 0.0
    %3257 = vmatpush2.msra.mxu0 0.0
    %3258 = vmatprep.subr.mxu0 0.0
    %3259 = vmatpush2.msra.mxu0 0.0
    %3260 = vmatprep.subr.mxu0 0.0
    %3261 = vmatpush2.msra.mxu0 0.0
    %3262 = vmatprep.subr.mxu0 0.0
    %3263 = vmatpush2.msra.mxu0 0.0
    %3264 = vmatprep.subr.mxu0 0.0
    %3265 = vmatpush2.msra.mxu0 0.0
    %3266 = vmatprep.subr.mxu0 0.0
    %3267 = vmatpush2.msra.mxu0 0.0
    %3268 = vmatprep.subr.mxu0 0.0
    %3269 = vmatpush2.msra.mxu0 0.0
    %3270 = vmatprep.subr.mxu0 0.0
    %3271 = vmatpush2.msra.mxu0 0.0
    %3272 = vmatprep.subr.mxu0 0.0
    %3273 = vmatpush2.msra.mxu0 0.0
    %3274 = vmatprep.subr.mxu0 0.0
    %3275 = vmatpush2.msra.mxu0 0.0
    %3276 = vmatprep.subr.mxu0 0.0
    %3277 = vmatpush2.msra.mxu0 0.0
    %3278 = vmatprep.subr.mxu0 0.0
    %3279 = vmatpush2.msra.mxu0 0.0
    %3280 = vmatprep.subr.mxu0 0.0
    %3281 = vmatpush2.msra.mxu0 0.0
    %3282 = vmatprep.mubr.f32.mxu0 0.0
    %3283 = vmatmul.mubr.f32.gmra.mxu0 %v2949
    %v3284 = vpop.f32.mrf.mxu0
    %v3285 = vadd.f32 0.0, %v3284
    %v3286 = vpop.f32.mrf.mxu0
    %v3287 = vadd.f32 0.0, %v3286
    %3288 = vmatprep.mubr.f32.mxu0 0.0
    %3289 = vmatmul.mubr.f32.gmra.mxu0 %v2952
    %v3290 = vpop.f32.mrf.mxu0
    %v3291 = vadd.f32 0.0, %v3290
    %v3292 = vpop.f32.mrf.mxu0
    %v3293 = vadd.f32 0.0, %v3292
    %3294 = vdwg.mxu0
    %3295 = vmatprep.subr.mxu0 0.0
    %3296 = vmatpush1.msra.mxu0 0.0
    %3297 = vmatprep.subr.mxu0 0.0
    %3298 = vmatpush1.msra.mxu0 0.0
    %3299 = vmatprep.subr.mxu0 0.0
    %3300 = vmatpush1.msra.mxu0 0.0
    %3301 = vmatprep.subr.mxu0 0.0
    %3302 = vmatpush1.msra.mxu0 0.0
    %3303 = vmatprep.subr.mxu0 0.0
    %3304 = vmatpush1.msra.mxu0 0.0
    %3305 = vmatprep.subr.mxu0 0.0
    %3306 = vmatpush1.msra.mxu0 0.0
    %3307 = vmatprep.subr.mxu0 0.0
    %3308 = vmatpush1.msra.mxu0 0.0
    %3309 = vmatprep.subr.mxu0 0.0
    %3310 = vmatpush1.msra.mxu0 0.0
    %3311 = vmatprep.subr.mxu0 0.0
    %3312 = vmatpush1.msra.mxu0 0.0
    %3313 = vmatprep.subr.mxu0 0.0
    %3314 = vmatpush1.msra.mxu0 0.0
    %3315 = vmatprep.subr.mxu0 0.0
    %3316 = vmatpush1.msra.mxu0 0.0
    %3317 = vmatprep.subr.mxu0 0.0
    %3318 = vmatpush1.msra.mxu0 0.0
    %3319 = vmatprep.subr.mxu0 0.0
    %3320 = vmatpush1.msra.mxu0 0.0
    %3321 = vmatprep.subr.mxu0 0.0
    %3322 = vmatpush1.msra.mxu0 0.0
    %3323 = vmatprep.subr.mxu0 0.0
    %3324 = vmatpush1.msra.mxu0 0.0
    %3325 = vmatprep.subr.mxu0 %v2972
    %3326 = vmatpush1.msra.mxu0 %v2970
    %3327 = vmatprep.subr.mxu0 0.0
    %3328 = vmatpush2.msra.mxu0 0.0
    %3329 = vmatprep.subr.mxu0 0.0
    %3330 = vmatpush2.msra.mxu0 0.0
    %3331 = vmatprep.subr.mxu0 0.0
    %3332 = vmatpush2.msra.mxu0 0.0
    %3333 = vmatprep.subr.mxu0 0.0
    %3334 = vmatpush2.msra.mxu0 0.0
    %3335 = vmatprep.subr.mxu0 0.0
    %3336 = vmatpush2.msra.mxu0 0.0
    %3337 = vmatprep.subr.mxu0 0.0
    %3338 = vmatpush2.msra.mxu0 0.0
    %3339 = vmatprep.subr.mxu0 0.0
    %3340 = vmatpush2.msra.mxu0 0.0
    %3341 = vmatprep.subr.mxu0 0.0
    %3342 = vmatpush2.msra.mxu0 0.0
    %3343 = vmatprep.subr.mxu0 0.0
    %3344 = vmatpush2.msra.mxu0 0.0
    %3345 = vmatprep.subr.mxu0 0.0
    %3346 = vmatpush2.msra.mxu0 0.0
    %3347 = vmatprep.subr.mxu0 0.0
    %3348 = vmatpush2.msra.mxu0 0.0
    %3349 = vmatprep.subr.mxu0 0.0
    %3350 = vmatpush2.msra.mxu0 0.0
    %3351 = vmatprep.subr.mxu0 0.0
    %3352 = vmatpush2.msra.mxu0 0.0
    %3353 = vmatprep.subr.mxu0 0.0
    %3354 = vmatpush2.msra.mxu0 0.0
    %3355 = vmatprep.subr.mxu0 0.0
    %3356 = vmatpush2.msra.mxu0 0.0
    %3357 = vmatprep.subr.mxu0 0.0
    %3358 = vmatpush2.msra.mxu0 0.0
    %3359 = vmatprep.mubr.f32.mxu0 0.0
    %3360 = vmatmul.mubr.f32.gmra.mxu0 %v2949
    %v3361 = vpop.f32.mrf.mxu0
    %v3362 = vadd.f32 0.0, %v3361
    %v3363 = vpop.f32.mrf.mxu0
    %v3364 = vadd.f32 0.0, %v3363
    %3365 = vmatprep.mubr.f32.mxu0 0.0
    %3366 = vmatmul.mubr.f32.gmra.mxu0 %v2952
    %v3367 = vpop.f32.mrf.mxu0
    %v3368 = vadd.f32 0.0, %v3367
    %v3369 = vpop.f32.mrf.mxu0
    %v3370 = vadd.f32 0.0, %v3369
    %3371 = vdwg.mxu0
    %3372 = vmatprep.subr.mxu0 0.0
    %3373 = vmatpush1.msra.mxu0 0.0
    %3374 = vmatprep.subr.mxu0 0.0
    %3375 = vmatpush1.msra.mxu0 0.0
    %3376 = vmatprep.subr.mxu0 0.0
    %3377 = vmatpush1.msra.mxu0 0.0
    %3378 = vmatprep.subr.mxu0 0.0
    %3379 = vmatpush1.msra.mxu0 0.0
    %3380 = vmatprep.subr.mxu0 0.0
    %3381 = vmatpush1.msra.mxu0 0.0
    %3382 = vmatprep.subr.mxu0 0.0
    %3383 = vmatpush1.msra.mxu0 0.0
    %3384 = vmatprep.subr.mxu0 0.0
    %3385 = vmatpush1.msra.mxu0 0.0
    %3386 = vmatprep.subr.mxu0 0.0
    %3387 = vmatpush1.msra.mxu0 0.0
    %3388 = vmatprep.subr.mxu0 0.0
    %3389 = vmatpush1.msra.mxu0 0.0
    %3390 = vmatprep.subr.mxu0 0.0
    %3391 = vmatpush1.msra.mxu0 0.0
    %3392 = vmatprep.subr.mxu0 0.0
    %3393 = vmatpush1.msra.mxu0 0.0
    %3394 = vmatprep.subr.mxu0 0.0
    %3395 = vmatpush1.msra.mxu0 0.0
    %3396 = vmatprep.subr.mxu0 0.0
    %3397 = vmatpush1.msra.mxu0 0.0
    %3398 = vmatprep.subr.mxu0 0.0
    %3399 = vmatpush1.msra.mxu0 0.0
    %3400 = vmatprep.subr.mxu0 0.0
    %3401 = vmatpush1.msra.mxu0 0.0
    %3402 = vmatprep.subr.mxu0 %v2976
    %3403 = vmatpush1.msra.mxu0 %v2974
    %3404 = vmatprep.subr.mxu0 0.0
    %3405 = vmatpush2.msra.mxu0 0.0
    %3406 = vmatprep.subr.mxu0 0.0
    %3407 = vmatpush2.msra.mxu0 0.0
    %3408 = vmatprep.subr.mxu0 0.0
    %3409 = vmatpush2.msra.mxu0 0.0
    %3410 = vmatprep.subr.mxu0 0.0
    %3411 = vmatpush2.msra.mxu0 0.0
    %3412 = vmatprep.subr.mxu0 0.0
    %3413 = vmatpush2.msra.mxu0 0.0
    %3414 = vmatprep.subr.mxu0 0.0
    %3415 = vmatpush2.msra.mxu0 0.0
    %3416 = vmatprep.subr.mxu0 0.0
    %3417 = vmatpush2.msra.mxu0 0.0
    %3418 = vmatprep.subr.mxu0 0.0
    %3419 = vmatpush2.msra.mxu0 0.0
    %3420 = vmatprep.subr.mxu0 0.0
    %3421 = vmatpush2.msra.mxu0 0.0
    %3422 = vmatprep.subr.mxu0 0.0
    %3423 = vmatpush2.msra.mxu0 0.0
    %3424 = vmatprep.subr.mxu0 0.0
    %3425 = vmatpush2.msra.mxu0 0.0
    %3426 = vmatprep.subr.mxu0 0.0
    %3427 = vmatpush2.msra.mxu0 0.0
    %3428 = vmatprep.subr.mxu0 0.0
    %3429 = vmatpush2.msra.mxu0 0.0
    %3430 = vmatprep.subr.mxu0 0.0
    %3431 = vmatpush2.msra.mxu0 0.0
    %3432 = vmatprep.subr.mxu0 0.0
    %3433 = vmatpush2.msra.mxu0 0.0
    %3434 = vmatprep.subr.mxu0 0.0
    %3435 = vmatpush2.msra.mxu0 0.0
    %3436 = vmatprep.mubr.f32.mxu0 0.0
    %3437 = vmatmul.mubr.f32.gmra.mxu0 %v2949
    %v3438 = vpop.f32.mrf.mxu0
    %v3439 = vadd.f32 0.0, %v3438
    %v3440 = vpop.f32.mrf.mxu0
    %v3441 = vadd.f32 0.0, %v3440
    %3442 = vmatprep.mubr.f32.mxu0 0.0
    %3443 = vmatmul.mubr.f32.gmra.mxu0 %v2952
    %v3444 = vpop.f32.mrf.mxu0
    %v3445 = vadd.f32 0.0, %v3444
    %v3446 = vpop.f32.mrf.mxu0
    %v3447 = vadd.f32 0.0, %v3446
    %3448 = vdwg.mxu0
    %3449 = vmatprep.subr.mxu0 0.0
    %3450 = vmatpush1.msra.mxu0 0.0
    %3451 = vmatprep.subr.mxu0 0.0
    %3452 = vmatpush1.msra.mxu0 0.0
    %3453 = vmatprep.subr.mxu0 0.0
    %3454 = vmatpush1.msra.mxu0 0.0
    %3455 = vmatprep.subr.mxu0 0.0
    %3456 = vmatpush1.msra.mxu0 0.0
    %3457 = vmatprep.subr.mxu0 0.0
    %3458 = vmatpush1.msra.mxu0 0.0
    %3459 = vmatprep.subr.mxu0 0.0
    %3460 = vmatpush1.msra.mxu0 0.0
    %3461 = vmatprep.subr.mxu0 0.0
    %3462 = vmatpush1.msra.mxu0 0.0
    %3463 = vmatprep.subr.mxu0 0.0
    %3464 = vmatpush1.msra.mxu0 0.0
    %3465 = vmatprep.subr.mxu0 0.0
    %3466 = vmatpush1.msra.mxu0 0.0
    %3467 = vmatprep.subr.mxu0 0.0
    %3468 = vmatpush1.msra.mxu0 0.0
    %3469 = vmatprep.subr.mxu0 0.0
    %3470 = vmatpush1.msra.mxu0 0.0
    %3471 = vmatprep.subr.mxu0 0.0
    %3472 = vmatpush1.msra.mxu0 0.0
    %3473 = vmatprep.subr.mxu0 0.0
    %3474 = vmatpush1.msra.mxu0 0.0
    %3475 = vmatprep.subr.mxu0 0.0
    %3476 = vmatpush1.msra.mxu0 0.0
    %3477 = vmatprep.subr.mxu0 0.0
    %3478 = vmatpush1.msra.mxu0 0.0
    %3479 = vmatprep.subr.mxu0 %v2980
    %3480 = vmatpush1.msra.mxu0 %v2978
    %3481 = vmatprep.subr.mxu0 0.0
    %3482 = vmatpush2.msra.mxu0 0.0
    %3483 = vmatprep.subr.mxu0 0.0
    %3484 = vmatpush2.msra.mxu0 0.0
    %3485 = vmatprep.subr.mxu0 0.0
    %3486 = vmatpush2.msra.mxu0 0.0
    %3487 = vmatprep.subr.mxu0 0.0
    %3488 = vmatpush2.msra.mxu0 0.0
    %3489 = vmatprep.subr.mxu0 0.0
    %3490 = vmatpush2.msra.mxu0 0.0
    %3491 = vmatprep.subr.mxu0 0.0
    %3492 = vmatpush2.msra.mxu0 0.0
    %3493 = vmatprep.subr.mxu0 0.0
    %3494 = vmatpush2.msra.mxu0 0.0
    %3495 = vmatprep.subr.mxu0 0.0
    %3496 = vmatpush2.msra.mxu0 0.0
    %3497 = vmatprep.subr.mxu0 0.0
    %3498 = vmatpush2.msra.mxu0 0.0
    %3499 = vmatprep.subr.mxu0 0.0
    %3500 = vmatpush2.msra.mxu0 0.0
    %3501 = vmatprep.subr.mxu0 0.0
    %3502 = vmatpush2.msra.mxu0 0.0
    %3503 = vmatprep.subr.mxu0 0.0
    %3504 = vmatpush2.msra.mxu0 0.0
    %3505 = vmatprep.subr.mxu0 0.0
    %3506 = vmatpush2.msra.mxu0 0.0
    %3507 = vmatprep.subr.mxu0 0.0
    %3508 = vmatpush2.msra.mxu0 0.0
    %3509 = vmatprep.subr.mxu0 0.0
    %3510 = vmatpush2.msra.mxu0 0.0
    %3511 = vmatprep.subr.mxu0 0.0
    %3512 = vmatpush2.msra.mxu0 0.0
    %3513 = vmatprep.mubr.f32.mxu0 0.0
    %3514 = vmatmul.mubr.f32.gmra.mxu0 %v2949
    %v3515 = vpop.f32.mrf.mxu0
    %v3516 = vadd.f32 0.0, %v3515
    %v3517 = vpop.f32.mrf.mxu0
    %v3518 = vadd.f32 0.0, %v3517
    %3519 = vmatprep.mubr.f32.mxu0 0.0
    %3520 = vmatmul.mubr.f32.gmra.mxu0 %v2952
    %v3521 = vpop.f32.mrf.mxu0
    %v3522 = vadd.f32 0.0, %v3521
    %v3523 = vpop.f32.mrf.mxu0
    %v3524 = vadd.f32 0.0, %v3523
    %3525 = vdwg.mxu0
    %3526 = vmatprep.subr.mxu0 0.0
    %3527 = vmatpush1.msra.mxu0 0.0
    %3528 = vmatprep.subr.mxu0 0.0
    %3529 = vmatpush1.msra.mxu0 0.0
    %3530 = vmatprep.subr.mxu0 0.0
    %3531 = vmatpush1.msra.mxu0 0.0
    %3532 = vmatprep.subr.mxu0 0.0
    %3533 = vmatpush1.msra.mxu0 0.0
    %3534 = vmatprep.subr.mxu0 0.0
    %3535 = vmatpush1.msra.mxu0 0.0
    %3536 = vmatprep.subr.mxu0 0.0
    %3537 = vmatpush1.msra.mxu0 0.0
    %3538 = vmatprep.subr.mxu0 0.0
    %3539 = vmatpush1.msra.mxu0 0.0
    %3540 = vmatprep.subr.mxu0 0.0
    %3541 = vmatpush1.msra.mxu0 0.0
    %3542 = vmatprep.subr.mxu0 0.0
    %3543 = vmatpush1.msra.mxu0 0.0
    %3544 = vmatprep.subr.mxu0 0.0
    %3545 = vmatpush1.msra.mxu0 0.0
    %3546 = vmatprep.subr.mxu0 0.0
    %3547 = vmatpush1.msra.mxu0 0.0
    %3548 = vmatprep.subr.mxu0 0.0
    %3549 = vmatpush1.msra.mxu0 0.0
    %3550 = vmatprep.subr.mxu0 0.0
    %3551 = vmatpush1.msra.mxu0 0.0
    %3552 = vmatprep.subr.mxu0 0.0
    %3553 = vmatpush1.msra.mxu0 0.0
    %3554 = vmatprep.subr.mxu0 0.0
    %3555 = vmatpush1.msra.mxu0 0.0
    %3556 = vmatprep.subr.mxu0 %v2985
    %3557 = vmatpush1.msra.mxu0 %v2982
    %3558 = vmatprep.subr.mxu0 0.0
    %3559 = vmatpush2.msra.mxu0 0.0
    %3560 = vmatprep.subr.mxu0 0.0
    %3561 = vmatpush2.msra.mxu0 0.0
    %3562 = vmatprep.subr.mxu0 0.0
    %3563 = vmatpush2.msra.mxu0 0.0
    %3564 = vmatprep.subr.mxu0 0.0
    %3565 = vmatpush2.msra.mxu0 0.0
    %3566 = vmatprep.subr.mxu0 0.0
    %3567 = vmatpush2.msra.mxu0 0.0
    %3568 = vmatprep.subr.mxu0 0.0
    %3569 = vmatpush2.msra.mxu0 0.0
    %3570 = vmatprep.subr.mxu0 0.0
    %3571 = vmatpush2.msra.mxu0 0.0
    %3572 = vmatprep.subr.mxu0 0.0
    %3573 = vmatpush2.msra.mxu0 0.0
    %3574 = vmatprep.subr.mxu0 0.0
    %3575 = vmatpush2.msra.mxu0 0.0
    %3576 = vmatprep.subr.mxu0 0.0
    %3577 = vmatpush2.msra.mxu0 0.0
    %3578 = vmatprep.subr.mxu0 0.0
    %3579 = vmatpush2.msra.mxu0 0.0
    %3580 = vmatprep.subr.mxu0 0.0
    %3581 = vmatpush2.msra.mxu0 0.0
    %3582 = vmatprep.subr.mxu0 0.0
    %3583 = vmatpush2.msra.mxu0 0.0
    %3584 = vmatprep.subr.mxu0 0.0
    %3585 = vmatpush2.msra.mxu0 0.0
    %3586 = vmatprep.subr.mxu0 0.0
    %3587 = vmatpush2.msra.mxu0 0.0
    %3588 = vmatprep.subr.mxu0 0.0
    %3589 = vmatpush2.msra.mxu0 0.0
    %3590 = vmatprep.mubr.f32.mxu0 0.0
    %3591 = vmatmul.mubr.f32.gmra.mxu0 %v2949
    %v3592 = vpop.f32.mrf.mxu0
    %v3593 = vadd.f32 0.0, %v3592
    %v3594 = vpop.f32.mrf.mxu0
    %v3595 = vadd.f32 0.0, %v3594
    %3596 = vmatprep.mubr.f32.mxu0 0.0
    %3597 = vmatmul.mubr.f32.gmra.mxu0 %v2952
    %v3598 = vpop.f32.mrf.mxu0
    %v3599 = vadd.f32 0.0, %v3598
    %v3600 = vpop.f32.mrf.mxu0
    %v3601 = vadd.f32 0.0, %v3600
    %3602 = vdwg.mxu0
    %v3603 = vadd.f32 %v2862, %v3054
    %v3604 = vadd.f32 %v2863, %v3056
    %v3605 = vadd.f32 %v2864, %v3131
    %v3606 = vadd.f32 %v2865, %v3133
    %v3607 = vadd.f32 %v2866, %v3208
    %v3608 = vadd.f32 %v2867, %v3210
    %v3609 = vadd.f32 %v2868, %v3285
    %v3610 = vadd.f32 %v2869, %v3287
    %v3611 = vadd.f32 %v2870, %v3362
    %v3612 = vadd.f32 %v2871, %v3364
    %v3613 = vadd.f32 %v2872, %v3439
    %v3614 = vadd.f32 %v2873, %v3441
    %v3615 = vadd.f32 %v2874, %v3516
    %v3616 = vadd.f32 %v2875, %v3518
    %v3617 = vadd.f32 %v2876, %v3593
    %v3618 = vadd.f32 %v2877, %v3595
    %v3619 = vadd.f32 %v2878, %v3060
    %v3620 = vadd.f32 %v2879, %v3062
    %v3621 = vadd.f32 %v2880, %v3137
    %v3622 = vadd.f32 %v2881, %v3139
    %v3623 = vadd.f32 %v2882, %v3214
    %v3624 = vadd.f32 %v2883, %v3216
    %v3625 = vadd.f32 %v2884, %v3291
    %v3626 = vadd.f32 %v2885, %v3293
    %v3627 = vadd.f32 %v2886, %v3368
    %v3628 = vadd.f32 %v2887, %v3370
    %v3629 = vadd.f32 %v2888, %v3445
    %v3630 = vadd.f32 %v2889, %v3447
    %v3631 = vadd.f32 %v2890, %v3522
    %v3632 = vadd.f32 %v2891, %v3524
    %v3633 = vadd.f32 %v2892, %v3599
    %v3634 = vadd.f32 %v2893, %v3601
    %3635 = vrot.lane.b32.xlu0 %v21, 94
    %v3636 = vpop.permute.xlu0 %3635
    %3637 = vrot.lane.b32.xlu0 %v39, 94
    %v3638 = vpop.permute.xlu0 %3637
    %3639 = vrot.lane.b32.xlu0 %v22, 94
    %v3640 = vpop.permute.xlu0 %3639
    %3641 = vrot.lane.b32.xlu0 %v40, 94
    %v3642 = vpop.permute.xlu0 %3641
    %3643 = vrot.lane.b32.xlu0 %v23, 94
    %v3644 = vpop.permute.xlu0 %3643
    %3645 = vrot.lane.b32.xlu0 %v41, 94
    %v3646 = vpop.permute.xlu0 %3645
    %3647 = vrot.lane.b32.xlu0 %v24, 94
    %v3648 = vpop.permute.xlu0 %3647
    %3649 = vrot.lane.b32.xlu0 %v42, 94
    %v3650 = vpop.permute.xlu0 %3649
    %3651 = vrot.lane.b32.xlu0 %v25, 94
    %v3652 = vpop.permute.xlu0 %3651
    %3653 = vrot.lane.b32.xlu0 %v43, 94
    %v3654 = vpop.permute.xlu0 %3653
    %3655 = vrot.lane.b32.xlu0 %v26, 94
    %v3656 = vpop.permute.xlu0 %3655
    %3657 = vrot.lane.b32.xlu0 %v44, 94
    %v3658 = vpop.permute.xlu0 %3657
    %3659 = vrot.lane.b32.xlu0 %v27, 94
    %v3660 = vpop.permute.xlu0 %3659
    %3661 = vrot.lane.b32.xlu0 %v45, 94
    %v3662 = vpop.permute.xlu0 %3661
    %3663 = vrot.lane.b32.xlu0 %v28, 94
    %v3664 = vpop.permute.xlu0 %3663
    %3665 = vrot.lane.b32.xlu0 %v46, 94
    %v3666 = vpop.permute.xlu0 %3665
    %vm3667 = vcmask 769024
    %v3668 = vsel %vm3667, %v3636, %v3638
    %v3669 = vsel %vm3667, %v3638, %v3640
    %v3670 = vsel %vm3667, %v3640, %v3642
    %v3671 = vsel %vm3667, %v3642, %v3644
    %v3672 = vsel %vm3667, %v3644, %v3646
    %v3673 = vsel %vm3667, %v3646, %v3648
    %v3674 = vsel %vm3667, %v3648, %v3650
    %v3675 = vsel %vm3667, %v3650, %v3652
    %v3676 = vsel %vm3667, %v3652, %v3654
    %v3677 = vsel %vm3667, %v3654, %v3656
    %v3678 = vsel %vm3667, %v3656, %v3658
    %v3679 = vsel %vm3667, %v3658, %v3660
    %v3680 = vsel %vm3667, %v3660, %v3662
    %v3681 = vsel %vm3667, %v3662, %v3664
    %v3682 = vsel %vm3667, %v3664, %v3666
    %v3685 = vsel %vm3667, %v3666, %v3636
    %s3686 = scalar_lea.vmem %s1, 80
    %v3687 = vld [vmem:[%s3686] sm:$0xff]
    %v3688 = vld [vmem:[%s3686 + $0x8] sm:$0x3]
    %v3690 = vsel %vm101, %v3687, 0
    %v3693 = vsel %vm101, %v3688, 0
    %v3695 = vsel %vm108, %v3668, 0
    %v3697 = vsel %vm108, %v3669, 0
    %v3699 = vsel %vm108, %v3670, 0
    %v3701 = vsel %vm108, %v3671, 0
    %v3703 = vsel %vm108, %v3672, 0
    %v3705 = vsel %vm108, %v3673, 0
    %v3707 = vsel %vm108, %v3674, 0
    %v3709 = vsel %vm108, %v3675, 0
    %v3711 = vsel %vm108, %v3676, 0
    %v3713 = vsel %vm108, %v3677, 0
    %v3715 = vsel %vm108, %v3678, 0
    %v3717 = vsel %vm108, %v3679, 0
    %v3719 = vsel %vm108, %v3680, 0
    %v3721 = vsel %vm108, %v3681, 0
    %v3723 = vsel %vm108, %v3682, 0
    %v3726 = vsel %vm108, %v3685, 0
    %3728 = vmatprep.subr.mxu0 0.0
    %3729 = vmatpush1.msra.mxu0 0.0
    %3730 = vmatprep.subr.mxu0 0.0
    %3731 = vmatpush1.msra.mxu0 0.0
    %3732 = vmatprep.subr.mxu0 0.0
    %3733 = vmatpush1.msra.mxu0 0.0
    %3734 = vmatprep.subr.mxu0 0.0
    %3735 = vmatpush1.msra.mxu0 0.0
    %3736 = vmatprep.subr.mxu0 0.0
    %3737 = vmatpush1.msra.mxu0 0.0
    %3738 = vmatprep.subr.mxu0 0.0
    %3739 = vmatpush1.msra.mxu0 0.0
    %3740 = vmatprep.subr.mxu0 0.0
    %3741 = vmatpush1.msra.mxu0 0.0
    %3742 = vmatprep.subr.mxu0 0.0
    %3743 = vmatpush1.msra.mxu0 0.0
    %3744 = vmatprep.subr.mxu0 0.0
    %3745 = vmatpush1.msra.mxu0 0.0
    %3746 = vmatprep.subr.mxu0 0.0
    %3747 = vmatpush1.msra.mxu0 0.0
    %3748 = vmatprep.subr.mxu0 0.0
    %3749 = vmatpush1.msra.mxu0 0.0
    %3750 = vmatprep.subr.mxu0 0.0
    %3751 = vmatpush1.msra.mxu0 0.0
    %3752 = vmatprep.subr.mxu0 0.0
    %3753 = vmatpush1.msra.mxu0 0.0
    %3754 = vmatprep.subr.mxu0 0.0
    %3755 = vmatpush1.msra.mxu0 0.0
    %3756 = vmatprep.subr.mxu0 0.0
    %3757 = vmatpush1.msra.mxu0 0.0
    %3758 = vmatprep.subr.mxu0 %v3697
    %3759 = vmatpush1.msra.mxu0 %v3695
    %3760 = vmatprep.subr.mxu0 0.0
    %3761 = vmatpush2.msra.mxu0 0.0
    %3762 = vmatprep.subr.mxu0 0.0
    %3763 = vmatpush2.msra.mxu0 0.0
    %3764 = vmatprep.subr.mxu0 0.0
    %3765 = vmatpush2.msra.mxu0 0.0
    %3766 = vmatprep.subr.mxu0 0.0
    %3767 = vmatpush2.msra.mxu0 0.0
    %3768 = vmatprep.subr.mxu0 0.0
    %3769 = vmatpush2.msra.mxu0 0.0
    %3770 = vmatprep.subr.mxu0 0.0
    %3771 = vmatpush2.msra.mxu0 0.0
    %3772 = vmatprep.subr.mxu0 0.0
    %3773 = vmatpush2.msra.mxu0 0.0
    %3774 = vmatprep.subr.mxu0 0.0
    %3775 = vmatpush2.msra.mxu0 0.0
    %3776 = vmatprep.subr.mxu0 0.0
    %3777 = vmatpush2.msra.mxu0 0.0
    %3778 = vmatprep.subr.mxu0 0.0
    %3779 = vmatpush2.msra.mxu0 0.0
    %3780 = vmatprep.subr.mxu0 0.0
    %3781 = vmatpush2.msra.mxu0 0.0
    %3782 = vmatprep.subr.mxu0 0.0
    %3783 = vmatpush2.msra.mxu0 0.0
    %3784 = vmatprep.subr.mxu0 0.0
    %3785 = vmatpush2.msra.mxu0 0.0
    %3786 = vmatprep.subr.mxu0 0.0
    %3787 = vmatpush2.msra.mxu0 0.0
    %3788 = vmatprep.subr.mxu0 0.0
    %3789 = vmatpush2.msra.mxu0 0.0
    %3790 = vmatprep.subr.mxu0 0.0
    %3791 = vmatpush2.msra.mxu0 0.0
    %3792 = vmatprep.mubr.f32.mxu0 0.0
    %3793 = vmatmul.mubr.f32.gmra.mxu0 %v3690
    %v3794 = vpop.f32.mrf.mxu0
    %v3795 = vadd.f32 0.0, %v3794
    %v3796 = vpop.f32.mrf.mxu0
    %v3797 = vadd.f32 0.0, %v3796
    %3798 = vmatprep.mubr.f32.mxu0 0.0
    %3799 = vmatmul.mubr.f32.gmra.mxu0 %v3693
    %v3800 = vpop.f32.mrf.mxu0
    %v3801 = vadd.f32 0.0, %v3800
    %v3802 = vpop.f32.mrf.mxu0
    %v3803 = vadd.f32 0.0, %v3802
    %3804 = vdwg.mxu0
    %3805 = vmatprep.subr.mxu0 0.0
    %3806 = vmatpush1.msra.mxu0 0.0
    %3807 = vmatprep.subr.mxu0 0.0
    %3808 = vmatpush1.msra.mxu0 0.0
    %3809 = vmatprep.subr.mxu0 0.0
    %3810 = vmatpush1.msra.mxu0 0.0
    %3811 = vmatprep.subr.mxu0 0.0
    %3812 = vmatpush1.msra.mxu0 0.0
    %3813 = vmatprep.subr.mxu0 0.0
    %3814 = vmatpush1.msra.mxu0 0.0
    %3815 = vmatprep.subr.mxu0 0.0
    %3816 = vmatpush1.msra.mxu0 0.0
    %3817 = vmatprep.subr.mxu0 0.0
    %3818 = vmatpush1.msra.mxu0 0.0
    %3819 = vmatprep.subr.mxu0 0.0
    %3820 = vmatpush1.msra.mxu0 0.0
    %3821 = vmatprep.subr.mxu0 0.0
    %3822 = vmatpush1.msra.mxu0 0.0
    %3823 = vmatprep.subr.mxu0 0.0
    %3824 = vmatpush1.msra.mxu0 0.0
    %3825 = vmatprep.subr.mxu0 0.0
    %3826 = vmatpush1.msra.mxu0 0.0
    %3827 = vmatprep.subr.mxu0 0.0
    %3828 = vmatpush1.msra.mxu0 0.0
    %3829 = vmatprep.subr.mxu0 0.0
    %3830 = vmatpush1.msra.mxu0 0.0
    %3831 = vmatprep.subr.mxu0 0.0
    %3832 = vmatpush1.msra.mxu0 0.0
    %3833 = vmatprep.subr.mxu0 0.0
    %3834 = vmatpush1.msra.mxu0 0.0
    %3835 = vmatprep.subr.mxu0 %v3701
    %3836 = vmatpush1.msra.mxu0 %v3699
    %3837 = vmatprep.subr.mxu0 0.0
    %3838 = vmatpush2.msra.mxu0 0.0
    %3839 = vmatprep.subr.mxu0 0.0
    %3840 = vmatpush2.msra.mxu0 0.0
    %3841 = vmatprep.subr.mxu0 0.0
    %3842 = vmatpush2.msra.mxu0 0.0
    %3843 = vmatprep.subr.mxu0 0.0
    %3844 = vmatpush2.msra.mxu0 0.0
    %3845 = vmatprep.subr.mxu0 0.0
    %3846 = vmatpush2.msra.mxu0 0.0
    %3847 = vmatprep.subr.mxu0 0.0
    %3848 = vmatpush2.msra.mxu0 0.0
    %3849 = vmatprep.subr.mxu0 0.0
    %3850 = vmatpush2.msra.mxu0 0.0
    %3851 = vmatprep.subr.mxu0 0.0
    %3852 = vmatpush2.msra.mxu0 0.0
    %3853 = vmatprep.subr.mxu0 0.0
    %3854 = vmatpush2.msra.mxu0 0.0
    %3855 = vmatprep.subr.mxu0 0.0
    %3856 = vmatpush2.msra.mxu0 0.0
    %3857 = vmatprep.subr.mxu0 0.0
    %3858 = vmatpush2.msra.mxu0 0.0
    %3859 = vmatprep.subr.mxu0 0.0
    %3860 = vmatpush2.msra.mxu0 0.0
    %3861 = vmatprep.subr.mxu0 0.0
    %3862 = vmatpush2.msra.mxu0 0.0
    %3863 = vmatprep.subr.mxu0 0.0
    %3864 = vmatpush2.msra.mxu0 0.0
    %3865 = vmatprep.subr.mxu0 0.0
    %3866 = vmatpush2.msra.mxu0 0.0
    %3867 = vmatprep.subr.mxu0 0.0
    %3868 = vmatpush2.msra.mxu0 0.0
    %3869 = vmatprep.mubr.f32.mxu0 0.0
    %3870 = vmatmul.mubr.f32.gmra.mxu0 %v3690
    %v3871 = vpop.f32.mrf.mxu0
    %v3872 = vadd.f32 0.0, %v3871
    %v3873 = vpop.f32.mrf.mxu0
    %v3874 = vadd.f32 0.0, %v3873
    %3875 = vmatprep.mubr.f32.mxu0 0.0
    %3876 = vmatmul.mubr.f32.gmra.mxu0 %v3693
    %v3877 = vpop.f32.mrf.mxu0
    %v3878 = vadd.f32 0.0, %v3877
    %v3879 = vpop.f32.mrf.mxu0
    %v3880 = vadd.f32 0.0, %v3879
    %3881 = vdwg.mxu0
    %3882 = vmatprep.subr.mxu0 0.0
    %3883 = vmatpush1.msra.mxu0 0.0
    %3884 = vmatprep.subr.mxu0 0.0
    %3885 = vmatpush1.msra.mxu0 0.0
    %3886 = vmatprep.subr.mxu0 0.0
    %3887 = vmatpush1.msra.mxu0 0.0
    %3888 = vmatprep.subr.mxu0 0.0
    %3889 = vmatpush1.msra.mxu0 0.0
    %3890 = vmatprep.subr.mxu0 0.0
    %3891 = vmatpush1.msra.mxu0 0.0
    %3892 = vmatprep.subr.mxu0 0.0
    %3893 = vmatpush1.msra.mxu0 0.0
    %3894 = vmatprep.subr.mxu0 0.0
    %3895 = vmatpush1.msra.mxu0 0.0
    %3896 = vmatprep.subr.mxu0 0.0
    %3897 = vmatpush1.msra.mxu0 0.0
    %3898 = vmatprep.subr.mxu0 0.0
    %3899 = vmatpush1.msra.mxu0 0.0
    %3900 = vmatprep.subr.mxu0 0.0
    %3901 = vmatpush1.msra.mxu0 0.0
    %3902 = vmatprep.subr.mxu0 0.0
    %3903 = vmatpush1.msra.mxu0 0.0
    %3904 = vmatprep.subr.mxu0 0.0
    %3905 = vmatpush1.msra.mxu0 0.0
    %3906 = vmatprep.subr.mxu0 0.0
    %3907 = vmatpush1.msra.mxu0 0.0
    %3908 = vmatprep.subr.mxu0 0.0
    %3909 = vmatpush1.msra.mxu0 0.0
    %3910 = vmatprep.subr.mxu0 0.0
    %3911 = vmatpush1.msra.mxu0 0.0
    %3912 = vmatprep.subr.mxu0 %v3705
    %3913 = vmatpush1.msra.mxu0 %v3703
    %3914 = vmatprep.subr.mxu0 0.0
    %3915 = vmatpush2.msra.mxu0 0.0
    %3916 = vmatprep.subr.mxu0 0.0
    %3917 = vmatpush2.msra.mxu0 0.0
    %3918 = vmatprep.subr.mxu0 0.0
    %3919 = vmatpush2.msra.mxu0 0.0
    %3920 = vmatprep.subr.mxu0 0.0
    %3921 = vmatpush2.msra.mxu0 0.0
    %3922 = vmatprep.subr.mxu0 0.0
    %3923 = vmatpush2.msra.mxu0 0.0
    %3924 = vmatprep.subr.mxu0 0.0
    %3925 = vmatpush2.msra.mxu0 0.0
    %3926 = vmatprep.subr.mxu0 0.0
    %3927 = vmatpush2.msra.mxu0 0.0
    %3928 = vmatprep.subr.mxu0 0.0
    %3929 = vmatpush2.msra.mxu0 0.0
    %3930 = vmatprep.subr.mxu0 0.0
    %3931 = vmatpush2.msra.mxu0 0.0
    %3932 = vmatprep.subr.mxu0 0.0
    %3933 = vmatpush2.msra.mxu0 0.0
    %3934 = vmatprep.subr.mxu0 0.0
    %3935 = vmatpush2.msra.mxu0 0.0
    %3936 = vmatprep.subr.mxu0 0.0
    %3937 = vmatpush2.msra.mxu0 0.0
    %3938 = vmatprep.subr.mxu0 0.0
    %3939 = vmatpush2.msra.mxu0 0.0
    %3940 = vmatprep.subr.mxu0 0.0
    %3941 = vmatpush2.msra.mxu0 0.0
    %3942 = vmatprep.subr.mxu0 0.0
    %3943 = vmatpush2.msra.mxu0 0.0
    %3944 = vmatprep.subr.mxu0 0.0
    %3945 = vmatpush2.msra.mxu0 0.0
    %3946 = vmatprep.mubr.f32.mxu0 0.0
    %3947 = vmatmul.mubr.f32.gmra.mxu0 %v3690
    %v3948 = vpop.f32.mrf.mxu0
    %v3949 = vadd.f32 0.0, %v3948
    %v3950 = vpop.f32.mrf.mxu0
    %v3951 = vadd.f32 0.0, %v3950
    %3952 = vmatprep.mubr.f32.mxu0 0.0
    %3953 = vmatmul.mubr.f32.gmra.mxu0 %v3693
    %v3954 = vpop.f32.mrf.mxu0
    %v3955 = vadd.f32 0.0, %v3954
    %v3956 = vpop.f32.mrf.mxu0
    %v3957 = vadd.f32 0.0, %v3956
    %3958 = vdwg.mxu0
    %3959 = vmatprep.subr.mxu0 0.0
    %3960 = vmatpush1.msra.mxu0 0.0
    %3961 = vmatprep.subr.mxu0 0.0
    %3962 = vmatpush1.msra.mxu0 0.0
    %3963 = vmatprep.subr.mxu0 0.0
    %3964 = vmatpush1.msra.mxu0 0.0
    %3965 = vmatprep.subr.mxu0 0.0
    %3966 = vmatpush1.msra.mxu0 0.0
    %3967 = vmatprep.subr.mxu0 0.0
    %3968 = vmatpush1.msra.mxu0 0.0
    %3969 = vmatprep.subr.mxu0 0.0
    %3970 = vmatpush1.msra.mxu0 0.0
    %3971 = vmatprep.subr.mxu0 0.0
    %3972 = vmatpush1.msra.mxu0 0.0
    %3973 = vmatprep.subr.mxu0 0.0
    %3974 = vmatpush1.msra.mxu0 0.0
    %3975 = vmatprep.subr.mxu0 0.0
    %3976 = vmatpush1.msra.mxu0 0.0
    %3977 = vmatprep.subr.mxu0 0.0
    %3978 = vmatpush1.msra.mxu0 0.0
    %3979 = vmatprep.subr.mxu0 0.0
    %3980 = vmatpush1.msra.mxu0 0.0
    %3981 = vmatprep.subr.mxu0 0.0
    %3982 = vmatpush1.msra.mxu0 0.0
    %3983 = vmatprep.subr.mxu0 0.0
    %3984 = vmatpush1.msra.mxu0 0.0
    %3985 = vmatprep.subr.mxu0 0.0
    %3986 = vmatpush1.msra.mxu0 0.0
    %3987 = vmatprep.subr.mxu0 0.0
    %3988 = vmatpush1.msra.mxu0 0.0
    %3989 = vmatprep.subr.mxu0 %v3709
    %3990 = vmatpush1.msra.mxu0 %v3707
    %3991 = vmatprep.subr.mxu0 0.0
    %3992 = vmatpush2.msra.mxu0 0.0
    %3993 = vmatprep.subr.mxu0 0.0
    %3994 = vmatpush2.msra.mxu0 0.0
    %3995 = vmatprep.subr.mxu0 0.0
    %3996 = vmatpush2.msra.mxu0 0.0
    %3997 = vmatprep.subr.mxu0 0.0
    %3998 = vmatpush2.msra.mxu0 0.0
    %3999 = vmatprep.subr.mxu0 0.0
    %4000 = vmatpush2.msra.mxu0 0.0
    %4001 = vmatprep.subr.mxu0 0.0
    %4002 = vmatpush2.msra.mxu0 0.0
    %4003 = vmatprep.subr.mxu0 0.0
    %4004 = vmatpush2.msra.mxu0 0.0
    %4005 = vmatprep.subr.mxu0 0.0
    %4006 = vmatpush2.msra.mxu0 0.0
    %4007 = vmatprep.subr.mxu0 0.0
    %4008 = vmatpush2.msra.mxu0 0.0
    %4009 = vmatprep.subr.mxu0 0.0
    %4010 = vmatpush2.msra.mxu0 0.0
    %4011 = vmatprep.subr.mxu0 0.0
    %4012 = vmatpush2.msra.mxu0 0.0
    %4013 = vmatprep.subr.mxu0 0.0
    %4014 = vmatpush2.msra.mxu0 0.0
    %4015 = vmatprep.subr.mxu0 0.0
    %4016 = vmatpush2.msra.mxu0 0.0
    %4017 = vmatprep.subr.mxu0 0.0
    %4018 = vmatpush2.msra.mxu0 0.0
    %4019 = vmatprep.subr.mxu0 0.0
    %4020 = vmatpush2.msra.mxu0 0.0
    %4021 = vmatprep.subr.mxu0 0.0
    %4022 = vmatpush2.msra.mxu0 0.0
    %4023 = vmatprep.mubr.f32.mxu0 0.0
    %4024 = vmatmul.mubr.f32.gmra.mxu0 %v3690
    %v4025 = vpop.f32.mrf.mxu0
    %v4026 = vadd.f32 0.0, %v4025
    %v4027 = vpop.f32.mrf.mxu0
    %v4028 = vadd.f32 0.0, %v4027
    %4029 = vmatprep.mubr.f32.mxu0 0.0
    %4030 = vmatmul.mubr.f32.gmra.mxu0 %v3693
    %v4031 = vpop.f32.mrf.mxu0
    %v4032 = vadd.f32 0.0, %v4031
    %v4033 = vpop.f32.mrf.mxu0
    %v4034 = vadd.f32 0.0, %v4033
    %4035 = vdwg.mxu0
    %4036 = vmatprep.subr.mxu0 0.0
    %4037 = vmatpush1.msra.mxu0 0.0
    %4038 = vmatprep.subr.mxu0 0.0
    %4039 = vmatpush1.msra.mxu0 0.0
    %4040 = vmatprep.subr.mxu0 0.0
    %4041 = vmatpush1.msra.mxu0 0.0
    %4042 = vmatprep.subr.mxu0 0.0
    %4043 = vmatpush1.msra.mxu0 0.0
    %4044 = vmatprep.subr.mxu0 0.0
    %4045 = vmatpush1.msra.mxu0 0.0
    %4046 = vmatprep.subr.mxu0 0.0
    %4047 = vmatpush1.msra.mxu0 0.0
    %4048 = vmatprep.subr.mxu0 0.0
    %4049 = vmatpush1.msra.mxu0 0.0
    %4050 = vmatprep.subr.mxu0 0.0
    %4051 = vmatpush1.msra.mxu0 0.0
    %4052 = vmatprep.subr.mxu0 0.0
    %4053 = vmatpush1.msra.mxu0 0.0
    %4054 = vmatprep.subr.mxu0 0.0
    %4055 = vmatpush1.msra.mxu0 0.0
    %4056 = vmatprep.subr.mxu0 0.0
    %4057 = vmatpush1.msra.mxu0 0.0
    %4058 = vmatprep.subr.mxu0 0.0
    %4059 = vmatpush1.msra.mxu0 0.0
    %4060 = vmatprep.subr.mxu0 0.0
    %4061 = vmatpush1.msra.mxu0 0.0
    %4062 = vmatprep.subr.mxu0 0.0
    %4063 = vmatpush1.msra.mxu0 0.0
    %4064 = vmatprep.subr.mxu0 0.0
    %4065 = vmatpush1.msra.mxu0 0.0
    %4066 = vmatprep.subr.mxu0 %v3713
    %4067 = vmatpush1.msra.mxu0 %v3711
    %4068 = vmatprep.subr.mxu0 0.0
    %4069 = vmatpush2.msra.mxu0 0.0
    %4070 = vmatprep.subr.mxu0 0.0
    %4071 = vmatpush2.msra.mxu0 0.0
    %4072 = vmatprep.subr.mxu0 0.0
    %4073 = vmatpush2.msra.mxu0 0.0
    %4074 = vmatprep.subr.mxu0 0.0
    %4075 = vmatpush2.msra.mxu0 0.0
    %4076 = vmatprep.subr.mxu0 0.0
    %4077 = vmatpush2.msra.mxu0 0.0
    %4078 = vmatprep.subr.mxu0 0.0
    %4079 = vmatpush2.msra.mxu0 0.0
    %4080 = vmatprep.subr.mxu0 0.0
    %4081 = vmatpush2.msra.mxu0 0.0
    %4082 = vmatprep.subr.mxu0 0.0
    %4083 = vmatpush2.msra.mxu0 0.0
    %4084 = vmatprep.subr.mxu0 0.0
    %4085 = vmatpush2.msra.mxu0 0.0
    %4086 = vmatprep.subr.mxu0 0.0
    %4087 = vmatpush2.msra.mxu0 0.0
    %4088 = vmatprep.subr.mxu0 0.0
    %4089 = vmatpush2.msra.mxu0 0.0
    %4090 = vmatprep.subr.mxu0 0.0
    %4091 = vmatpush2.msra.mxu0 0.0
    %4092 = vmatprep.subr.mxu0 0.0
    %4093 = vmatpush2.msra.mxu0 0.0
    %4094 = vmatprep.subr.mxu0 0.0
    %4095 = vmatpush2.msra.mxu0 0.0
    %4096 = vmatprep.subr.mxu0 0.0
    %4097 = vmatpush2.msra.mxu0 0.0
    %4098 = vmatprep.subr.mxu0 0.0
    %4099 = vmatpush2.msra.mxu0 0.0
    %4100 = vmatprep.mubr.f32.mxu0 0.0
    %4101 = vmatmul.mubr.f32.gmra.mxu0 %v3690
    %v4102 = vpop.f32.mrf.mxu0
    %v4103 = vadd.f32 0.0, %v4102
    %v4104 = vpop.f32.mrf.mxu0
    %v4105 = vadd.f32 0.0, %v4104
    %4106 = vmatprep.mubr.f32.mxu0 0.0
    %4107 = vmatmul.mubr.f32.gmra.mxu0 %v3693
    %v4108 = vpop.f32.mrf.mxu0
    %v4109 = vadd.f32 0.0, %v4108
    %v4110 = vpop.f32.mrf.mxu0
    %v4111 = vadd.f32 0.0, %v4110
    %4112 = vdwg.mxu0
    %4113 = vmatprep.subr.mxu0 0.0
    %4114 = vmatpush1.msra.mxu0 0.0
    %4115 = vmatprep.subr.mxu0 0.0
    %4116 = vmatpush1.msra.mxu0 0.0
    %4117 = vmatprep.subr.mxu0 0.0
    %4118 = vmatpush1.msra.mxu0 0.0
    %4119 = vmatprep.subr.mxu0 0.0
    %4120 = vmatpush1.msra.mxu0 0.0
    %4121 = vmatprep.subr.mxu0 0.0
    %4122 = vmatpush1.msra.mxu0 0.0
    %4123 = vmatprep.subr.mxu0 0.0
    %4124 = vmatpush1.msra.mxu0 0.0
    %4125 = vmatprep.subr.mxu0 0.0
    %4126 = vmatpush1.msra.mxu0 0.0
    %4127 = vmatprep.subr.mxu0 0.0
    %4128 = vmatpush1.msra.mxu0 0.0
    %4129 = vmatprep.subr.mxu0 0.0
    %4130 = vmatpush1.msra.mxu0 0.0
    %4131 = vmatprep.subr.mxu0 0.0
    %4132 = vmatpush1.msra.mxu0 0.0
    %4133 = vmatprep.subr.mxu0 0.0
    %4134 = vmatpush1.msra.mxu0 0.0
    %4135 = vmatprep.subr.mxu0 0.0
    %4136 = vmatpush1.msra.mxu0 0.0
    %4137 = vmatprep.subr.mxu0 0.0
    %4138 = vmatpush1.msra.mxu0 0.0
    %4139 = vmatprep.subr.mxu0 0.0
    %4140 = vmatpush1.msra.mxu0 0.0
    %4141 = vmatprep.subr.mxu0 0.0
    %4142 = vmatpush1.msra.mxu0 0.0
    %4143 = vmatprep.subr.mxu0 %v3717
    %4144 = vmatpush1.msra.mxu0 %v3715
    %4145 = vmatprep.subr.mxu0 0.0
    %4146 = vmatpush2.msra.mxu0 0.0
    %4147 = vmatprep.subr.mxu0 0.0
    %4148 = vmatpush2.msra.mxu0 0.0
    %4149 = vmatprep.subr.mxu0 0.0
    %4150 = vmatpush2.msra.mxu0 0.0
    %4151 = vmatprep.subr.mxu0 0.0
    %4152 = vmatpush2.msra.mxu0 0.0
    %4153 = vmatprep.subr.mxu0 0.0
    %4154 = vmatpush2.msra.mxu0 0.0
    %4155 = vmatprep.subr.mxu0 0.0
    %4156 = vmatpush2.msra.mxu0 0.0
    %4157 = vmatprep.subr.mxu0 0.0
    %4158 = vmatpush2.msra.mxu0 0.0
    %4159 = vmatprep.subr.mxu0 0.0
    %4160 = vmatpush2.msra.mxu0 0.0
    %4161 = vmatprep.subr.mxu0 0.0
    %4162 = vmatpush2.msra.mxu0 0.0
    %4163 = vmatprep.subr.mxu0 0.0
    %4164 = vmatpush2.msra.mxu0 0.0
    %4165 = vmatprep.subr.mxu0 0.0
    %4166 = vmatpush2.msra.mxu0 0.0
    %4167 = vmatprep.subr.mxu0 0.0
    %4168 = vmatpush2.msra.mxu0 0.0
    %4169 = vmatprep.subr.mxu0 0.0
    %4170 = vmatpush2.msra.mxu0 0.0
    %4171 = vmatprep.subr.mxu0 0.0
    %4172 = vmatpush2.msra.mxu0 0.0
    %4173 = vmatprep.subr.mxu0 0.0
    %4174 = vmatpush2.msra.mxu0 0.0
    %4175 = vmatprep.subr.mxu0 0.0
    %4176 = vmatpush2.msra.mxu0 0.0
    %4177 = vmatprep.mubr.f32.mxu0 0.0
    %4178 = vmatmul.mubr.f32.gmra.mxu0 %v3690
    %v4179 = vpop.f32.mrf.mxu0
    %v4180 = vadd.f32 0.0, %v4179
    %v4181 = vpop.f32.mrf.mxu0
    %v4182 = vadd.f32 0.0, %v4181
    %4183 = vmatprep.mubr.f32.mxu0 0.0
    %4184 = vmatmul.mubr.f32.gmra.mxu0 %v3693
    %v4185 = vpop.f32.mrf.mxu0
    %v4186 = vadd.f32 0.0, %v4185
    %v4187 = vpop.f32.mrf.mxu0
    %v4188 = vadd.f32 0.0, %v4187
    %4189 = vdwg.mxu0
    %4190 = vmatprep.subr.mxu0 0.0
    %4191 = vmatpush1.msra.mxu0 0.0
    %4192 = vmatprep.subr.mxu0 0.0
    %4193 = vmatpush1.msra.mxu0 0.0
    %4194 = vmatprep.subr.mxu0 0.0
    %4195 = vmatpush1.msra.mxu0 0.0
    %4196 = vmatprep.subr.mxu0 0.0
    %4197 = vmatpush1.msra.mxu0 0.0
    %4198 = vmatprep.subr.mxu0 0.0
    %4199 = vmatpush1.msra.mxu0 0.0
    %4200 = vmatprep.subr.mxu0 0.0
    %4201 = vmatpush1.msra.mxu0 0.0
    %4202 = vmatprep.subr.mxu0 0.0
    %4203 = vmatpush1.msra.mxu0 0.0
    %4204 = vmatprep.subr.mxu0 0.0
    %4205 = vmatpush1.msra.mxu0 0.0
    %4206 = vmatprep.subr.mxu0 0.0
    %4207 = vmatpush1.msra.mxu0 0.0
    %4208 = vmatprep.subr.mxu0 0.0
    %4209 = vmatpush1.msra.mxu0 0.0
    %4210 = vmatprep.subr.mxu0 0.0
    %4211 = vmatpush1.msra.mxu0 0.0
    %4212 = vmatprep.subr.mxu0 0.0
    %4213 = vmatpush1.msra.mxu0 0.0
    %4214 = vmatprep.subr.mxu0 0.0
    %4215 = vmatpush1.msra.mxu0 0.0
    %4216 = vmatprep.subr.mxu0 0.0
    %4217 = vmatpush1.msra.mxu0 0.0
    %4218 = vmatprep.subr.mxu0 0.0
    %4219 = vmatpush1.msra.mxu0 0.0
    %4220 = vmatprep.subr.mxu0 %v3721
    %4221 = vmatpush1.msra.mxu0 %v3719
    %4222 = vmatprep.subr.mxu0 0.0
    %4223 = vmatpush2.msra.mxu0 0.0
    %4224 = vmatprep.subr.mxu0 0.0
    %4225 = vmatpush2.msra.mxu0 0.0
    %4226 = vmatprep.subr.mxu0 0.0
    %4227 = vmatpush2.msra.mxu0 0.0
    %4228 = vmatprep.subr.mxu0 0.0
    %4229 = vmatpush2.msra.mxu0 0.0
    %4230 = vmatprep.subr.mxu0 0.0
    %4231 = vmatpush2.msra.mxu0 0.0
    %4232 = vmatprep.subr.mxu0 0.0
    %4233 = vmatpush2.msra.mxu0 0.0
    %4234 = vmatprep.subr.mxu0 0.0
    %4235 = vmatpush2.msra.mxu0 0.0
    %4236 = vmatprep.subr.mxu0 0.0
    %4237 = vmatpush2.msra.mxu0 0.0
    %4238 = vmatprep.subr.mxu0 0.0
    %4239 = vmatpush2.msra.mxu0 0.0
    %4240 = vmatprep.subr.mxu0 0.0
    %4241 = vmatpush2.msra.mxu0 0.0
    %4242 = vmatprep.subr.mxu0 0.0
    %4243 = vmatpush2.msra.mxu0 0.0
    %4244 = vmatprep.subr.mxu0 0.0
    %4245 = vmatpush2.msra.mxu0 0.0
    %4246 = vmatprep.subr.mxu0 0.0
    %4247 = vmatpush2.msra.mxu0 0.0
    %4248 = vmatprep.subr.mxu0 0.0
    %4249 = vmatpush2.msra.mxu0 0.0
    %4250 = vmatprep.subr.mxu0 0.0
    %4251 = vmatpush2.msra.mxu0 0.0
    %4252 = vmatprep.subr.mxu0 0.0
    %4253 = vmatpush2.msra.mxu0 0.0
    %4254 = vmatprep.mubr.f32.mxu0 0.0
    %4255 = vmatmul.mubr.f32.gmra.mxu0 %v3690
    %v4256 = vpop.f32.mrf.mxu0
    %v4257 = vadd.f32 0.0, %v4256
    %v4258 = vpop.f32.mrf.mxu0
    %v4259 = vadd.f32 0.0, %v4258
    %4260 = vmatprep.mubr.f32.mxu0 0.0
    %4261 = vmatmul.mubr.f32.gmra.mxu0 %v3693
    %v4262 = vpop.f32.mrf.mxu0
    %v4263 = vadd.f32 0.0, %v4262
    %v4264 = vpop.f32.mrf.mxu0
    %v4265 = vadd.f32 0.0, %v4264
    %4266 = vdwg.mxu0
    %4267 = vmatprep.subr.mxu0 0.0
    %4268 = vmatpush1.msra.mxu0 0.0
    %4269 = vmatprep.subr.mxu0 0.0
    %4270 = vmatpush1.msra.mxu0 0.0
    %4271 = vmatprep.subr.mxu0 0.0
    %4272 = vmatpush1.msra.mxu0 0.0
    %4273 = vmatprep.subr.mxu0 0.0
    %4274 = vmatpush1.msra.mxu0 0.0
    %4275 = vmatprep.subr.mxu0 0.0
    %4276 = vmatpush1.msra.mxu0 0.0
    %4277 = vmatprep.subr.mxu0 0.0
    %4278 = vmatpush1.msra.mxu0 0.0
    %4279 = vmatprep.subr.mxu0 0.0
    %4280 = vmatpush1.msra.mxu0 0.0
    %4281 = vmatprep.subr.mxu0 0.0
    %4282 = vmatpush1.msra.mxu0 0.0
    %4283 = vmatprep.subr.mxu0 0.0
    %4284 = vmatpush1.msra.mxu0 0.0
    %4285 = vmatprep.subr.mxu0 0.0
    %4286 = vmatpush1.msra.mxu0 0.0
    %4287 = vmatprep.subr.mxu0 0.0
    %4288 = vmatpush1.msra.mxu0 0.0
    %4289 = vmatprep.subr.mxu0 0.0
    %4290 = vmatpush1.msra.mxu0 0.0
    %4291 = vmatprep.subr.mxu0 0.0
    %4292 = vmatpush1.msra.mxu0 0.0
    %4293 = vmatprep.subr.mxu0 0.0
    %4294 = vmatpush1.msra.mxu0 0.0
    %4295 = vmatprep.subr.mxu0 0.0
    %4296 = vmatpush1.msra.mxu0 0.0
    %4297 = vmatprep.subr.mxu0 %v3726
    %4298 = vmatpush1.msra.mxu0 %v3723
    %4299 = vmatprep.subr.mxu0 0.0
    %4300 = vmatpush2.msra.mxu0 0.0
    %4301 = vmatprep.subr.mxu0 0.0
    %4302 = vmatpush2.msra.mxu0 0.0
    %4303 = vmatprep.subr.mxu0 0.0
    %4304 = vmatpush2.msra.mxu0 0.0
    %4305 = vmatprep.subr.mxu0 0.0
    %4306 = vmatpush2.msra.mxu0 0.0
    %4307 = vmatprep.subr.mxu0 0.0
    %4308 = vmatpush2.msra.mxu0 0.0
    %4309 = vmatprep.subr.mxu0 0.0
    %4310 = vmatpush2.msra.mxu0 0.0
    %4311 = vmatprep.subr.mxu0 0.0
    %4312 = vmatpush2.msra.mxu0 0.0
    %4313 = vmatprep.subr.mxu0 0.0
    %4314 = vmatpush2.msra.mxu0 0.0
    %4315 = vmatprep.subr.mxu0 0.0
    %4316 = vmatpush2.msra.mxu0 0.0
    %4317 = vmatprep.subr.mxu0 0.0
    %4318 = vmatpush2.msra.mxu0 0.0
    %4319 = vmatprep.subr.mxu0 0.0
    %4320 = vmatpush2.msra.mxu0 0.0
    %4321 = vmatprep.subr.mxu0 0.0
    %4322 = vmatpush2.msra.mxu0 0.0
    %4323 = vmatprep.subr.mxu0 0.0
    %4324 = vmatpush2.msra.mxu0 0.0
    %4325 = vmatprep.subr.mxu0 0.0
    %4326 = vmatpush2.msra.mxu0 0.0
    %4327 = vmatprep.subr.mxu0 0.0
    %4328 = vmatpush2.msra.mxu0 0.0
    %4329 = vmatprep.subr.mxu0 0.0
    %4330 = vmatpush2.msra.mxu0 0.0
    %4331 = vmatprep.mubr.f32.mxu0 0.0
    %4332 = vmatmul.mubr.f32.gmra.mxu0 %v3690
    %v4333 = vpop.f32.mrf.mxu0
    %v4334 = vadd.f32 0.0, %v4333
    %v4335 = vpop.f32.mrf.mxu0
    %v4336 = vadd.f32 0.0, %v4335
    %4337 = vmatprep.mubr.f32.mxu0 0.0
    %4338 = vmatmul.mubr.f32.gmra.mxu0 %v3693
    %v4339 = vpop.f32.mrf.mxu0
    %v4340 = vadd.f32 0.0, %v4339
    %v4341 = vpop.f32.mrf.mxu0
    %v4342 = vadd.f32 0.0, %v4341
    %4343 = vdwg.mxu0
    %v4344 = vadd.f32 %v3603, %v3795
    %v4345 = vadd.f32 %v3604, %v3797
    %v4346 = vadd.f32 %v3605, %v3872
    %v4347 = vadd.f32 %v3606, %v3874
    %v4348 = vadd.f32 %v3607, %v3949
    %v4349 = vadd.f32 %v3608, %v3951
    %v4350 = vadd.f32 %v3609, %v4026
    %v4351 = vadd.f32 %v3610, %v4028
    %v4352 = vadd.f32 %v3611, %v4103
    %v4353 = vadd.f32 %v3612, %v4105
    %v4354 = vadd.f32 %v3613, %v4180
    %v4355 = vadd.f32 %v3614, %v4182
    %v4356 = vadd.f32 %v3615, %v4257
    %v4357 = vadd.f32 %v3616, %v4259
    %v4358 = vadd.f32 %v3617, %v4334
    %v4359 = vadd.f32 %v3618, %v4336
    %v4360 = vadd.f32 %v3619, %v3801
    %v4361 = vadd.f32 %v3620, %v3803
    %v4362 = vadd.f32 %v3621, %v3878
    %v4363 = vadd.f32 %v3622, %v3880
    %v4364 = vadd.f32 %v3623, %v3955
    %v4365 = vadd.f32 %v3624, %v3957
    %v4366 = vadd.f32 %v3625, %v4032
    %v4367 = vadd.f32 %v3626, %v4034
    %v4368 = vadd.f32 %v3627, %v4109
    %v4369 = vadd.f32 %v3628, %v4111
    %v4370 = vadd.f32 %v3629, %v4186
    %v4371 = vadd.f32 %v3630, %v4188
    %v4372 = vadd.f32 %v3631, %v4263
    %v4373 = vadd.f32 %v3632, %v4265
    %v4374 = vadd.f32 %v3633, %v4340
    %v4375 = vadd.f32 %v3634, %v4342
    %4376 = vrot.lane.b32.xlu0 %v21, 64
    %v4377 = vpop.permute.xlu0 %4376
    %4378 = vrot.lane.b32.xlu0 %v39, 64
    %v4379 = vpop.permute.xlu0 %4378
    %4380 = vrot.lane.b32.xlu0 %v22, 64
    %v4381 = vpop.permute.xlu0 %4380
    %4382 = vrot.lane.b32.xlu0 %v40, 64
    %v4383 = vpop.permute.xlu0 %4382
    %4384 = vrot.lane.b32.xlu0 %v23, 64
    %v4385 = vpop.permute.xlu0 %4384
    %4386 = vrot.lane.b32.xlu0 %v41, 64
    %v4387 = vpop.permute.xlu0 %4386
    %4388 = vrot.lane.b32.xlu0 %v24, 64
    %v4389 = vpop.permute.xlu0 %4388
    %4390 = vrot.lane.b32.xlu0 %v42, 64
    %v4391 = vpop.permute.xlu0 %4390
    %4392 = vrot.lane.b32.xlu0 %v25, 64
    %v4393 = vpop.permute.xlu0 %4392
    %4394 = vrot.lane.b32.xlu0 %v43, 64
    %v4395 = vpop.permute.xlu0 %4394
    %4396 = vrot.lane.b32.xlu0 %v26, 64
    %v4397 = vpop.permute.xlu0 %4396
    %4398 = vrot.lane.b32.xlu0 %v44, 64
    %v4399 = vpop.permute.xlu0 %4398
    %4400 = vrot.lane.b32.xlu0 %v27, 64
    %v4401 = vpop.permute.xlu0 %4400
    %4402 = vrot.lane.b32.xlu0 %v45, 64
    %v4403 = vpop.permute.xlu0 %4402
    %4404 = vrot.lane.b32.xlu0 %v28, 64
    %v4405 = vpop.permute.xlu0 %4404
    %4406 = vrot.lane.b32.xlu0 %v46, 64
    %v4407 = vpop.permute.xlu0 %4406
    %vm4408 = vcmask 523264
    %v4409 = vsel %vm4408, %v4377, %v4379
    %v4410 = vsel %vm4408, %v4379, %v4381
    %v4411 = vsel %vm4408, %v4381, %v4383
    %v4412 = vsel %vm4408, %v4383, %v4385
    %v4413 = vsel %vm4408, %v4385, %v4387
    %v4414 = vsel %vm4408, %v4387, %v4389
    %v4415 = vsel %vm4408, %v4389, %v4391
    %v4416 = vsel %vm4408, %v4391, %v4393
    %v4417 = vsel %vm4408, %v4393, %v4395
    %v4418 = vsel %vm4408, %v4395, %v4397
    %v4419 = vsel %vm4408, %v4397, %v4399
    %v4420 = vsel %vm4408, %v4399, %v4401
    %v4421 = vsel %vm4408, %v4401, %v4403
    %v4422 = vsel %vm4408, %v4403, %v4405
    %v4423 = vsel %vm4408, %v4405, %v4407
    %v4426 = vsel %vm4408, %v4407, %v4377
    %s4427 = scalar_lea.vmem %s1, 96
    %v4428 = vld [vmem:[%s4427] sm:$0xff]
    %v4429 = vld [vmem:[%s4427 + $0x8] sm:$0x3]
    %v4431 = vsel %vm101, %v4428, 0
    %v4434 = vsel %vm101, %v4429, 0
    %v4436 = vsel %vm108, %v4409, 0
    %v4438 = vsel %vm108, %v4410, 0
    %v4440 = vsel %vm108, %v4411, 0
    %v4442 = vsel %vm108, %v4412, 0
    %v4444 = vsel %vm108, %v4413, 0
    %v4446 = vsel %vm108, %v4414, 0
    %v4448 = vsel %vm108, %v4415, 0
    %v4450 = vsel %vm108, %v4416, 0
    %v4452 = vsel %vm108, %v4417, 0
    %v4454 = vsel %vm108, %v4418, 0
    %v4456 = vsel %vm108, %v4419, 0
    %v4458 = vsel %vm108, %v4420, 0
    %v4460 = vsel %vm108, %v4421, 0
    %v4462 = vsel %vm108, %v4422, 0
    %v4464 = vsel %vm108, %v4423, 0
    %v4467 = vsel %vm108, %v4426, 0
    %4469 = vmatprep.subr.mxu0 0.0
    %4470 = vmatpush1.msra.mxu0 0.0
    %4471 = vmatprep.subr.mxu0 0.0
    %4472 = vmatpush1.msra.mxu0 0.0
    %4473 = vmatprep.subr.mxu0 0.0
    %4474 = vmatpush1.msra.mxu0 0.0
    %4475 = vmatprep.subr.mxu0 0.0
    %4476 = vmatpush1.msra.mxu0 0.0
    %4477 = vmatprep.subr.mxu0 0.0
    %4478 = vmatpush1.msra.mxu0 0.0
    %4479 = vmatprep.subr.mxu0 0.0
    %4480 = vmatpush1.msra.mxu0 0.0
    %4481 = vmatprep.subr.mxu0 0.0
    %4482 = vmatpush1.msra.mxu0 0.0
    %4483 = vmatprep.subr.mxu0 0.0
    %4484 = vmatpush1.msra.mxu0 0.0
    %4485 = vmatprep.subr.mxu0 0.0
    %4486 = vmatpush1.msra.mxu0 0.0
    %4487 = vmatprep.subr.mxu0 0.0
    %4488 = vmatpush1.msra.mxu0 0.0
    %4489 = vmatprep.subr.mxu0 0.0
    %4490 = vmatpush1.msra.mxu0 0.0
    %4491 = vmatprep.subr.mxu0 0.0
    %4492 = vmatpush1.msra.mxu0 0.0
    %4493 = vmatprep.subr.mxu0 0.0
    %4494 = vmatpush1.msra.mxu0 0.0
    %4495 = vmatprep.subr.mxu0 0.0
    %4496 = vmatpush1.msra.mxu0 0.0
    %4497 = vmatprep.subr.mxu0 0.0
    %4498 = vmatpush1.msra.mxu0 0.0
    %4499 = vmatprep.subr.mxu0 %v4438
    %4500 = vmatpush1.msra.mxu0 %v4436
    %4501 = vmatprep.subr.mxu0 0.0
    %4502 = vmatpush2.msra.mxu0 0.0
    %4503 = vmatprep.subr.mxu0 0.0
    %4504 = vmatpush2.msra.mxu0 0.0
    %4505 = vmatprep.subr.mxu0 0.0
    %4506 = vmatpush2.msra.mxu0 0.0
    %4507 = vmatprep.subr.mxu0 0.0
    %4508 = vmatpush2.msra.mxu0 0.0
    %4509 = vmatprep.subr.mxu0 0.0
    %4510 = vmatpush2.msra.mxu0 0.0
    %4511 = vmatprep.subr.mxu0 0.0
    %4512 = vmatpush2.msra.mxu0 0.0
    %4513 = vmatprep.subr.mxu0 0.0
    %4514 = vmatpush2.msra.mxu0 0.0
    %4515 = vmatprep.subr.mxu0 0.0
    %4516 = vmatpush2.msra.mxu0 0.0
    %4517 = vmatprep.subr.mxu0 0.0
    %4518 = vmatpush2.msra.mxu0 0.0
    %4519 = vmatprep.subr.mxu0 0.0
    %4520 = vmatpush2.msra.mxu0 0.0
    %4521 = vmatprep.subr.mxu0 0.0
    %4522 = vmatpush2.msra.mxu0 0.0
    %4523 = vmatprep.subr.mxu0 0.0
    %4524 = vmatpush2.msra.mxu0 0.0
    %4525 = vmatprep.subr.mxu0 0.0
    %4526 = vmatpush2.msra.mxu0 0.0
    %4527 = vmatprep.subr.mxu0 0.0
    %4528 = vmatpush2.msra.mxu0 0.0
    %4529 = vmatprep.subr.mxu0 0.0
    %4530 = vmatpush2.msra.mxu0 0.0
    %4531 = vmatprep.subr.mxu0 0.0
    %4532 = vmatpush2.msra.mxu0 0.0
    %4533 = vmatprep.mubr.f32.mxu0 0.0
    %4534 = vmatmul.mubr.f32.gmra.mxu0 %v4431
    %v4535 = vpop.f32.mrf.mxu0
    %v4536 = vadd.f32 0.0, %v4535
    %v4537 = vpop.f32.mrf.mxu0
    %v4538 = vadd.f32 0.0, %v4537
    %4539 = vmatprep.mubr.f32.mxu0 0.0
    %4540 = vmatmul.mubr.f32.gmra.mxu0 %v4434
    %v4541 = vpop.f32.mrf.mxu0
    %v4542 = vadd.f32 0.0, %v4541
    %v4543 = vpop.f32.mrf.mxu0
    %v4544 = vadd.f32 0.0, %v4543
    %4545 = vdwg.mxu0
    %4546 = vmatprep.subr.mxu0 0.0
    %4547 = vmatpush1.msra.mxu0 0.0
    %4548 = vmatprep.subr.mxu0 0.0
    %4549 = vmatpush1.msra.mxu0 0.0
    %4550 = vmatprep.subr.mxu0 0.0
    %4551 = vmatpush1.msra.mxu0 0.0
    %4552 = vmatprep.subr.mxu0 0.0
    %4553 = vmatpush1.msra.mxu0 0.0
    %4554 = vmatprep.subr.mxu0 0.0
    %4555 = vmatpush1.msra.mxu0 0.0
    %4556 = vmatprep.subr.mxu0 0.0
    %4557 = vmatpush1.msra.mxu0 0.0
    %4558 = vmatprep.subr.mxu0 0.0
    %4559 = vmatpush1.msra.mxu0 0.0
    %4560 = vmatprep.subr.mxu0 0.0
    %4561 = vmatpush1.msra.mxu0 0.0
    %4562 = vmatprep.subr.mxu0 0.0
    %4563 = vmatpush1.msra.mxu0 0.0
    %4564 = vmatprep.subr.mxu0 0.0
    %4565 = vmatpush1.msra.mxu0 0.0
    %4566 = vmatprep.subr.mxu0 0.0
    %4567 = vmatpush1.msra.mxu0 0.0
    %4568 = vmatprep.subr.mxu0 0.0
    %4569 = vmatpush1.msra.mxu0 0.0
    %4570 = vmatprep.subr.mxu0 0.0
    %4571 = vmatpush1.msra.mxu0 0.0
    %4572 = vmatprep.subr.mxu0 0.0
    %4573 = vmatpush1.msra.mxu0 0.0
    %4574 = vmatprep.subr.mxu0 0.0
    %4575 = vmatpush1.msra.mxu0 0.0
    %4576 = vmatprep.subr.mxu0 %v4442
    %4577 = vmatpush1.msra.mxu0 %v4440
    %4578 = vmatprep.subr.mxu0 0.0
    %4579 = vmatpush2.msra.mxu0 0.0
    %4580 = vmatprep.subr.mxu0 0.0
    %4581 = vmatpush2.msra.mxu0 0.0
    %4582 = vmatprep.subr.mxu0 0.0
    %4583 = vmatpush2.msra.mxu0 0.0
    %4584 = vmatprep.subr.mxu0 0.0
    %4585 = vmatpush2.msra.mxu0 0.0
    %4586 = vmatprep.subr.mxu0 0.0
    %4587 = vmatpush2.msra.mxu0 0.0
    %4588 = vmatprep.subr.mxu0 0.0
    %4589 = vmatpush2.msra.mxu0 0.0
    %4590 = vmatprep.subr.mxu0 0.0
    %4591 = vmatpush2.msra.mxu0 0.0
    %4592 = vmatprep.subr.mxu0 0.0
    %4593 = vmatpush2.msra.mxu0 0.0
    %4594 = vmatprep.subr.mxu0 0.0
    %4595 = vmatpush2.msra.mxu0 0.0
    %4596 = vmatprep.subr.mxu0 0.0
    %4597 = vmatpush2.msra.mxu0 0.0
    %4598 = vmatprep.subr.mxu0 0.0
    %4599 = vmatpush2.msra.mxu0 0.0
    %4600 = vmatprep.subr.mxu0 0.0
    %4601 = vmatpush2.msra.mxu0 0.0
    %4602 = vmatprep.subr.mxu0 0.0
    %4603 = vmatpush2.msra.mxu0 0.0
    %4604 = vmatprep.subr.mxu0 0.0
    %4605 = vmatpush2.msra.mxu0 0.0
    %4606 = vmatprep.subr.mxu0 0.0
    %4607 = vmatpush2.msra.mxu0 0.0
    %4608 = vmatprep.subr.mxu0 0.0
    %4609 = vmatpush2.msra.mxu0 0.0
    %4610 = vmatprep.mubr.f32.mxu0 0.0
    %4611 = vmatmul.mubr.f32.gmra.mxu0 %v4431
    %v4612 = vpop.f32.mrf.mxu0
    %v4613 = vadd.f32 0.0, %v4612
    %v4614 = vpop.f32.mrf.mxu0
    %v4615 = vadd.f32 0.0, %v4614
    %4616 = vmatprep.mubr.f32.mxu0 0.0
    %4617 = vmatmul.mubr.f32.gmra.mxu0 %v4434
    %v4618 = vpop.f32.mrf.mxu0
    %v4619 = vadd.f32 0.0, %v4618
    %v4620 = vpop.f32.mrf.mxu0
    %v4621 = vadd.f32 0.0, %v4620
    %4622 = vdwg.mxu0
    %4623 = vmatprep.subr.mxu0 0.0
    %4624 = vmatpush1.msra.mxu0 0.0
    %4625 = vmatprep.subr.mxu0 0.0
    %4626 = vmatpush1.msra.mxu0 0.0
    %4627 = vmatprep.subr.mxu0 0.0
    %4628 = vmatpush1.msra.mxu0 0.0
    %4629 = vmatprep.subr.mxu0 0.0
    %4630 = vmatpush1.msra.mxu0 0.0
    %4631 = vmatprep.subr.mxu0 0.0
    %4632 = vmatpush1.msra.mxu0 0.0
    %4633 = vmatprep.subr.mxu0 0.0
    %4634 = vmatpush1.msra.mxu0 0.0
    %4635 = vmatprep.subr.mxu0 0.0
    %4636 = vmatpush1.msra.mxu0 0.0
    %4637 = vmatprep.subr.mxu0 0.0
    %4638 = vmatpush1.msra.mxu0 0.0
    %4639 = vmatprep.subr.mxu0 0.0
    %4640 = vmatpush1.msra.mxu0 0.0
    %4641 = vmatprep.subr.mxu0 0.0
    %4642 = vmatpush1.msra.mxu0 0.0
    %4643 = vmatprep.subr.mxu0 0.0
    %4644 = vmatpush1.msra.mxu0 0.0
    %4645 = vmatprep.subr.mxu0 0.0
    %4646 = vmatpush1.msra.mxu0 0.0
    %4647 = vmatprep.subr.mxu0 0.0
    %4648 = vmatpush1.msra.mxu0 0.0
    %4649 = vmatprep.subr.mxu0 0.0
    %4650 = vmatpush1.msra.mxu0 0.0
    %4651 = vmatprep.subr.mxu0 0.0
    %4652 = vmatpush1.msra.mxu0 0.0
    %4653 = vmatprep.subr.mxu0 %v4446
    %4654 = vmatpush1.msra.mxu0 %v4444
    %4655 = vmatprep.subr.mxu0 0.0
    %4656 = vmatpush2.msra.mxu0 0.0
    %4657 = vmatprep.subr.mxu0 0.0
    %4658 = vmatpush2.msra.mxu0 0.0
    %4659 = vmatprep.subr.mxu0 0.0
    %4660 = vmatpush2.msra.mxu0 0.0
    %4661 = vmatprep.subr.mxu0 0.0
    %4662 = vmatpush2.msra.mxu0 0.0
    %4663 = vmatprep.subr.mxu0 0.0
    %4664 = vmatpush2.msra.mxu0 0.0
    %4665 = vmatprep.subr.mxu0 0.0
    %4666 = vmatpush2.msra.mxu0 0.0
    %4667 = vmatprep.subr.mxu0 0.0
    %4668 = vmatpush2.msra.mxu0 0.0
    %4669 = vmatprep.subr.mxu0 0.0
    %4670 = vmatpush2.msra.mxu0 0.0
    %4671 = vmatprep.subr.mxu0 0.0
    %4672 = vmatpush2.msra.mxu0 0.0
    %4673 = vmatprep.subr.mxu0 0.0
    %4674 = vmatpush2.msra.mxu0 0.0
    %4675 = vmatprep.subr.mxu0 0.0
    %4676 = vmatpush2.msra.mxu0 0.0
    %4677 = vmatprep.subr.mxu0 0.0
    %4678 = vmatpush2.msra.mxu0 0.0
    %4679 = vmatprep.subr.mxu0 0.0
    %4680 = vmatpush2.msra.mxu0 0.0
    %4681 = vmatprep.subr.mxu0 0.0
    %4682 = vmatpush2.msra.mxu0 0.0
    %4683 = vmatprep.subr.mxu0 0.0
    %4684 = vmatpush2.msra.mxu0 0.0
    %4685 = vmatprep.subr.mxu0 0.0
    %4686 = vmatpush2.msra.mxu0 0.0
    %4687 = vmatprep.mubr.f32.mxu0 0.0
    %4688 = vmatmul.mubr.f32.gmra.mxu0 %v4431
    %v4689 = vpop.f32.mrf.mxu0
    %v4690 = vadd.f32 0.0, %v4689
    %v4691 = vpop.f32.mrf.mxu0
    %v4692 = vadd.f32 0.0, %v4691
    %4693 = vmatprep.mubr.f32.mxu0 0.0
    %4694 = vmatmul.mubr.f32.gmra.mxu0 %v4434
    %v4695 = vpop.f32.mrf.mxu0
    %v4696 = vadd.f32 0.0, %v4695
    %v4697 = vpop.f32.mrf.mxu0
    %v4698 = vadd.f32 0.0, %v4697
    %4699 = vdwg.mxu0
    %4700 = vmatprep.subr.mxu0 0.0
    %4701 = vmatpush1.msra.mxu0 0.0
    %4702 = vmatprep.subr.mxu0 0.0
    %4703 = vmatpush1.msra.mxu0 0.0
    %4704 = vmatprep.subr.mxu0 0.0
    %4705 = vmatpush1.msra.mxu0 0.0
    %4706 = vmatprep.subr.mxu0 0.0
    %4707 = vmatpush1.msra.mxu0 0.0
    %4708 = vmatprep.subr.mxu0 0.0
    %4709 = vmatpush1.msra.mxu0 0.0
    %4710 = vmatprep.subr.mxu0 0.0
    %4711 = vmatpush1.msra.mxu0 0.0
    %4712 = vmatprep.subr.mxu0 0.0
    %4713 = vmatpush1.msra.mxu0 0.0
    %4714 = vmatprep.subr.mxu0 0.0
    %4715 = vmatpush1.msra.mxu0 0.0
    %4716 = vmatprep.subr.mxu0 0.0
    %4717 = vmatpush1.msra.mxu0 0.0
    %4718 = vmatprep.subr.mxu0 0.0
    %4719 = vmatpush1.msra.mxu0 0.0
    %4720 = vmatprep.subr.mxu0 0.0
    %4721 = vmatpush1.msra.mxu0 0.0
    %4722 = vmatprep.subr.mxu0 0.0
    %4723 = vmatpush1.msra.mxu0 0.0
    %4724 = vmatprep.subr.mxu0 0.0
    %4725 = vmatpush1.msra.mxu0 0.0
    %4726 = vmatprep.subr.mxu0 0.0
    %4727 = vmatpush1.msra.mxu0 0.0
    %4728 = vmatprep.subr.mxu0 0.0
    %4729 = vmatpush1.msra.mxu0 0.0
    %4730 = vmatprep.subr.mxu0 %v4450
    %4731 = vmatpush1.msra.mxu0 %v4448
    %4732 = vmatprep.subr.mxu0 0.0
    %4733 = vmatpush2.msra.mxu0 0.0
    %4734 = vmatprep.subr.mxu0 0.0
    %4735 = vmatpush2.msra.mxu0 0.0
    %4736 = vmatprep.subr.mxu0 0.0
    %4737 = vmatpush2.msra.mxu0 0.0
    %4738 = vmatprep.subr.mxu0 0.0
    %4739 = vmatpush2.msra.mxu0 0.0
    %4740 = vmatprep.subr.mxu0 0.0
    %4741 = vmatpush2.msra.mxu0 0.0
    %4742 = vmatprep.subr.mxu0 0.0
    %4743 = vmatpush2.msra.mxu0 0.0
    %4744 = vmatprep.subr.mxu0 0.0
    %4745 = vmatpush2.msra.mxu0 0.0
    %4746 = vmatprep.subr.mxu0 0.0
    %4747 = vmatpush2.msra.mxu0 0.0
    %4748 = vmatprep.subr.mxu0 0.0
    %4749 = vmatpush2.msra.mxu0 0.0
    %4750 = vmatprep.subr.mxu0 0.0
    %4751 = vmatpush2.msra.mxu0 0.0
    %4752 = vmatprep.subr.mxu0 0.0
    %4753 = vmatpush2.msra.mxu0 0.0
    %4754 = vmatprep.subr.mxu0 0.0
    %4755 = vmatpush2.msra.mxu0 0.0
    %4756 = vmatprep.subr.mxu0 0.0
    %4757 = vmatpush2.msra.mxu0 0.0
    %4758 = vmatprep.subr.mxu0 0.0
    %4759 = vmatpush2.msra.mxu0 0.0
    %4760 = vmatprep.subr.mxu0 0.0
    %4761 = vmatpush2.msra.mxu0 0.0
    %4762 = vmatprep.subr.mxu0 0.0
    %4763 = vmatpush2.msra.mxu0 0.0
    %4764 = vmatprep.mubr.f32.mxu0 0.0
    %4765 = vmatmul.mubr.f32.gmra.mxu0 %v4431
    %v4766 = vpop.f32.mrf.mxu0
    %v4767 = vadd.f32 0.0, %v4766
    %v4768 = vpop.f32.mrf.mxu0
    %v4769 = vadd.f32 0.0, %v4768
    %4770 = vmatprep.mubr.f32.mxu0 0.0
    %4771 = vmatmul.mubr.f32.gmra.mxu0 %v4434
    %v4772 = vpop.f32.mrf.mxu0
    %v4773 = vadd.f32 0.0, %v4772
    %v4774 = vpop.f32.mrf.mxu0
    %v4775 = vadd.f32 0.0, %v4774
    %4776 = vdwg.mxu0
    %4777 = vmatprep.subr.mxu0 0.0
    %4778 = vmatpush1.msra.mxu0 0.0
    %4779 = vmatprep.subr.mxu0 0.0
    %4780 = vmatpush1.msra.mxu0 0.0
    %4781 = vmatprep.subr.mxu0 0.0
    %4782 = vmatpush1.msra.mxu0 0.0
    %4783 = vmatprep.subr.mxu0 0.0
    %4784 = vmatpush1.msra.mxu0 0.0
    %4785 = vmatprep.subr.mxu0 0.0
    %4786 = vmatpush1.msra.mxu0 0.0
    %4787 = vmatprep.subr.mxu0 0.0
    %4788 = vmatpush1.msra.mxu0 0.0
    %4789 = vmatprep.subr.mxu0 0.0
    %4790 = vmatpush1.msra.mxu0 0.0
    %4791 = vmatprep.subr.mxu0 0.0
    %4792 = vmatpush1.msra.mxu0 0.0
    %4793 = vmatprep.subr.mxu0 0.0
    %4794 = vmatpush1.msra.mxu0 0.0
    %4795 = vmatprep.subr.mxu0 0.0
    %4796 = vmatpush1.msra.mxu0 0.0
    %4797 = vmatprep.subr.mxu0 0.0
    %4798 = vmatpush1.msra.mxu0 0.0
    %4799 = vmatprep.subr.mxu0 0.0
    %4800 = vmatpush1.msra.mxu0 0.0
    %4801 = vmatprep.subr.mxu0 0.0
    %4802 = vmatpush1.msra.mxu0 0.0
    %4803 = vmatprep.subr.mxu0 0.0
    %4804 = vmatpush1.msra.mxu0 0.0
    %4805 = vmatprep.subr.mxu0 0.0
    %4806 = vmatpush1.msra.mxu0 0.0
    %4807 = vmatprep.subr.mxu0 %v4454
    %4808 = vmatpush1.msra.mxu0 %v4452
    %4809 = vmatprep.subr.mxu0 0.0
    %4810 = vmatpush2.msra.mxu0 0.0
    %4811 = vmatprep.subr.mxu0 0.0
    %4812 = vmatpush2.msra.mxu0 0.0
    %4813 = vmatprep.subr.mxu0 0.0
    %4814 = vmatpush2.msra.mxu0 0.0
    %4815 = vmatprep.subr.mxu0 0.0
    %4816 = vmatpush2.msra.mxu0 0.0
    %4817 = vmatprep.subr.mxu0 0.0
    %4818 = vmatpush2.msra.mxu0 0.0
    %4819 = vmatprep.subr.mxu0 0.0
    %4820 = vmatpush2.msra.mxu0 0.0
    %4821 = vmatprep.subr.mxu0 0.0
    %4822 = vmatpush2.msra.mxu0 0.0
    %4823 = vmatprep.subr.mxu0 0.0
    %4824 = vmatpush2.msra.mxu0 0.0
    %4825 = vmatprep.subr.mxu0 0.0
    %4826 = vmatpush2.msra.mxu0 0.0
    %4827 = vmatprep.subr.mxu0 0.0
    %4828 = vmatpush2.msra.mxu0 0.0
    %4829 = vmatprep.subr.mxu0 0.0
    %4830 = vmatpush2.msra.mxu0 0.0
    %4831 = vmatprep.subr.mxu0 0.0
    %4832 = vmatpush2.msra.mxu0 0.0
    %4833 = vmatprep.subr.mxu0 0.0
    %4834 = vmatpush2.msra.mxu0 0.0
    %4835 = vmatprep.subr.mxu0 0.0
    %4836 = vmatpush2.msra.mxu0 0.0
    %4837 = vmatprep.subr.mxu0 0.0
    %4838 = vmatpush2.msra.mxu0 0.0
    %4839 = vmatprep.subr.mxu0 0.0
    %4840 = vmatpush2.msra.mxu0 0.0
    %4841 = vmatprep.mubr.f32.mxu0 0.0
    %4842 = vmatmul.mubr.f32.gmra.mxu0 %v4431
    %v4843 = vpop.f32.mrf.mxu0
    %v4844 = vadd.f32 0.0, %v4843
    %v4845 = vpop.f32.mrf.mxu0
    %v4846 = vadd.f32 0.0, %v4845
    %4847 = vmatprep.mubr.f32.mxu0 0.0
    %4848 = vmatmul.mubr.f32.gmra.mxu0 %v4434
    %v4849 = vpop.f32.mrf.mxu0
    %v4850 = vadd.f32 0.0, %v4849
    %v4851 = vpop.f32.mrf.mxu0
    %v4852 = vadd.f32 0.0, %v4851
    %4853 = vdwg.mxu0
    %4854 = vmatprep.subr.mxu0 0.0
    %4855 = vmatpush1.msra.mxu0 0.0
    %4856 = vmatprep.subr.mxu0 0.0
    %4857 = vmatpush1.msra.mxu0 0.0
    %4858 = vmatprep.subr.mxu0 0.0
    %4859 = vmatpush1.msra.mxu0 0.0
    %4860 = vmatprep.subr.mxu0 0.0
    %4861 = vmatpush1.msra.mxu0 0.0
    %4862 = vmatprep.subr.mxu0 0.0
    %4863 = vmatpush1.msra.mxu0 0.0
    %4864 = vmatprep.subr.mxu0 0.0
    %4865 = vmatpush1.msra.mxu0 0.0
    %4866 = vmatprep.subr.mxu0 0.0
    %4867 = vmatpush1.msra.mxu0 0.0
    %4868 = vmatprep.subr.mxu0 0.0
    %4869 = vmatpush1.msra.mxu0 0.0
    %4870 = vmatprep.subr.mxu0 0.0
    %4871 = vmatpush1.msra.mxu0 0.0
    %4872 = vmatprep.subr.mxu0 0.0
    %4873 = vmatpush1.msra.mxu0 0.0
    %4874 = vmatprep.subr.mxu0 0.0
    %4875 = vmatpush1.msra.mxu0 0.0
    %4876 = vmatprep.subr.mxu0 0.0
    %4877 = vmatpush1.msra.mxu0 0.0
    %4878 = vmatprep.subr.mxu0 0.0
    %4879 = vmatpush1.msra.mxu0 0.0
    %4880 = vmatprep.subr.mxu0 0.0
    %4881 = vmatpush1.msra.mxu0 0.0
    %4882 = vmatprep.subr.mxu0 0.0
    %4883 = vmatpush1.msra.mxu0 0.0
    %4884 = vmatprep.subr.mxu0 %v4458
    %4885 = vmatpush1.msra.mxu0 %v4456
    %4886 = vmatprep.subr.mxu0 0.0
    %4887 = vmatpush2.msra.mxu0 0.0
    %4888 = vmatprep.subr.mxu0 0.0
    %4889 = vmatpush2.msra.mxu0 0.0
    %4890 = vmatprep.subr.mxu0 0.0
    %4891 = vmatpush2.msra.mxu0 0.0
    %4892 = vmatprep.subr.mxu0 0.0
    %4893 = vmatpush2.msra.mxu0 0.0
    %4894 = vmatprep.subr.mxu0 0.0
    %4895 = vmatpush2.msra.mxu0 0.0
    %4896 = vmatprep.subr.mxu0 0.0
    %4897 = vmatpush2.msra.mxu0 0.0
    %4898 = vmatprep.subr.mxu0 0.0
    %4899 = vmatpush2.msra.mxu0 0.0
    %4900 = vmatprep.subr.mxu0 0.0
    %4901 = vmatpush2.msra.mxu0 0.0
    %4902 = vmatprep.subr.mxu0 0.0
    %4903 = vmatpush2.msra.mxu0 0.0
    %4904 = vmatprep.subr.mxu0 0.0
    %4905 = vmatpush2.msra.mxu0 0.0
    %4906 = vmatprep.subr.mxu0 0.0
    %4907 = vmatpush2.msra.mxu0 0.0
    %4908 = vmatprep.subr.mxu0 0.0
    %4909 = vmatpush2.msra.mxu0 0.0
    %4910 = vmatprep.subr.mxu0 0.0
    %4911 = vmatpush2.msra.mxu0 0.0
    %4912 = vmatprep.subr.mxu0 0.0
    %4913 = vmatpush2.msra.mxu0 0.0
    %4914 = vmatprep.subr.mxu0 0.0
    %4915 = vmatpush2.msra.mxu0 0.0
    %4916 = vmatprep.subr.mxu0 0.0
    %4917 = vmatpush2.msra.mxu0 0.0
    %4918 = vmatprep.mubr.f32.mxu0 0.0
    %4919 = vmatmul.mubr.f32.gmra.mxu0 %v4431
    %v4920 = vpop.f32.mrf.mxu0
    %v4921 = vadd.f32 0.0, %v4920
    %v4922 = vpop.f32.mrf.mxu0
    %v4923 = vadd.f32 0.0, %v4922
    %4924 = vmatprep.mubr.f32.mxu0 0.0
    %4925 = vmatmul.mubr.f32.gmra.mxu0 %v4434
    %v4926 = vpop.f32.mrf.mxu0
    %v4927 = vadd.f32 0.0, %v4926
    %v4928 = vpop.f32.mrf.mxu0
    %v4929 = vadd.f32 0.0, %v4928
    %4930 = vdwg.mxu0
    %4931 = vmatprep.subr.mxu0 0.0
    %4932 = vmatpush1.msra.mxu0 0.0
    %4933 = vmatprep.subr.mxu0 0.0
    %4934 = vmatpush1.msra.mxu0 0.0
    %4935 = vmatprep.subr.mxu0 0.0
    %4936 = vmatpush1.msra.mxu0 0.0
    %4937 = vmatprep.subr.mxu0 0.0
    %4938 = vmatpush1.msra.mxu0 0.0
    %4939 = vmatprep.subr.mxu0 0.0
    %4940 = vmatpush1.msra.mxu0 0.0
    %4941 = vmatprep.subr.mxu0 0.0
    %4942 = vmatpush1.msra.mxu0 0.0
    %4943 = vmatprep.subr.mxu0 0.0
    %4944 = vmatpush1.msra.mxu0 0.0
    %4945 = vmatprep.subr.mxu0 0.0
    %4946 = vmatpush1.msra.mxu0 0.0
    %4947 = vmatprep.subr.mxu0 0.0
    %4948 = vmatpush1.msra.mxu0 0.0
    %4949 = vmatprep.subr.mxu0 0.0
    %4950 = vmatpush1.msra.mxu0 0.0
    %4951 = vmatprep.subr.mxu0 0.0
    %4952 = vmatpush1.msra.mxu0 0.0
    %4953 = vmatprep.subr.mxu0 0.0
    %4954 = vmatpush1.msra.mxu0 0.0
    %4955 = vmatprep.subr.mxu0 0.0
    %4956 = vmatpush1.msra.mxu0 0.0
    %4957 = vmatprep.subr.mxu0 0.0
    %4958 = vmatpush1.msra.mxu0 0.0
    %4959 = vmatprep.subr.mxu0 0.0
    %4960 = vmatpush1.msra.mxu0 0.0
    %4961 = vmatprep.subr.mxu0 %v4462
    %4962 = vmatpush1.msra.mxu0 %v4460
    %4963 = vmatprep.subr.mxu0 0.0
    %4964 = vmatpush2.msra.mxu0 0.0
    %4965 = vmatprep.subr.mxu0 0.0
    %4966 = vmatpush2.msra.mxu0 0.0
    %4967 = vmatprep.subr.mxu0 0.0
    %4968 = vmatpush2.msra.mxu0 0.0
    %4969 = vmatprep.subr.mxu0 0.0
    %4970 = vmatpush2.msra.mxu0 0.0
    %4971 = vmatprep.subr.mxu0 0.0
    %4972 = vmatpush2.msra.mxu0 0.0
    %4973 = vmatprep.subr.mxu0 0.0
    %4974 = vmatpush2.msra.mxu0 0.0
    %4975 = vmatprep.subr.mxu0 0.0
    %4976 = vmatpush2.msra.mxu0 0.0
    %4977 = vmatprep.subr.mxu0 0.0
    %4978 = vmatpush2.msra.mxu0 0.0
    %4979 = vmatprep.subr.mxu0 0.0
    %4980 = vmatpush2.msra.mxu0 0.0
    %4981 = vmatprep.subr.mxu0 0.0
    %4982 = vmatpush2.msra.mxu0 0.0
    %4983 = vmatprep.subr.mxu0 0.0
    %4984 = vmatpush2.msra.mxu0 0.0
    %4985 = vmatprep.subr.mxu0 0.0
    %4986 = vmatpush2.msra.mxu0 0.0
    %4987 = vmatprep.subr.mxu0 0.0
    %4988 = vmatpush2.msra.mxu0 0.0
    %4989 = vmatprep.subr.mxu0 0.0
    %4990 = vmatpush2.msra.mxu0 0.0
    %4991 = vmatprep.subr.mxu0 0.0
    %4992 = vmatpush2.msra.mxu0 0.0
    %4993 = vmatprep.subr.mxu0 0.0
    %4994 = vmatpush2.msra.mxu0 0.0
    %4995 = vmatprep.mubr.f32.mxu0 0.0
    %4996 = vmatmul.mubr.f32.gmra.mxu0 %v4431
    %v4997 = vpop.f32.mrf.mxu0
    %v4998 = vadd.f32 0.0, %v4997
    %v4999 = vpop.f32.mrf.mxu0
    %v5000 = vadd.f32 0.0, %v4999
    %5001 = vmatprep.mubr.f32.mxu0 0.0
    %5002 = vmatmul.mubr.f32.gmra.mxu0 %v4434
    %v5003 = vpop.f32.mrf.mxu0
    %v5004 = vadd.f32 0.0, %v5003
    %v5005 = vpop.f32.mrf.mxu0
    %v5006 = vadd.f32 0.0, %v5005
    %5007 = vdwg.mxu0
    %5008 = vmatprep.subr.mxu0 0.0
    %5009 = vmatpush1.msra.mxu0 0.0
    %5010 = vmatprep.subr.mxu0 0.0
    %5011 = vmatpush1.msra.mxu0 0.0
    %5012 = vmatprep.subr.mxu0 0.0
    %5013 = vmatpush1.msra.mxu0 0.0
    %5014 = vmatprep.subr.mxu0 0.0
    %5015 = vmatpush1.msra.mxu0 0.0
    %5016 = vmatprep.subr.mxu0 0.0
    %5017 = vmatpush1.msra.mxu0 0.0
    %5018 = vmatprep.subr.mxu0 0.0
    %5019 = vmatpush1.msra.mxu0 0.0
    %5020 = vmatprep.subr.mxu0 0.0
    %5021 = vmatpush1.msra.mxu0 0.0
    %5022 = vmatprep.subr.mxu0 0.0
    %5023 = vmatpush1.msra.mxu0 0.0
    %5024 = vmatprep.subr.mxu0 0.0
    %5025 = vmatpush1.msra.mxu0 0.0
    %5026 = vmatprep.subr.mxu0 0.0
    %5027 = vmatpush1.msra.mxu0 0.0
    %5028 = vmatprep.subr.mxu0 0.0
    %5029 = vmatpush1.msra.mxu0 0.0
    %5030 = vmatprep.subr.mxu0 0.0
    %5031 = vmatpush1.msra.mxu0 0.0
    %5032 = vmatprep.subr.mxu0 0.0
    %5033 = vmatpush1.msra.mxu0 0.0
    %5034 = vmatprep.subr.mxu0 0.0
    %5035 = vmatpush1.msra.mxu0 0.0
    %5036 = vmatprep.subr.mxu0 0.0
    %5037 = vmatpush1.msra.mxu0 0.0
    %5038 = vmatprep.subr.mxu0 %v4467
    %5039 = vmatpush1.msra.mxu0 %v4464
    %5040 = vmatprep.subr.mxu0 0.0
    %5041 = vmatpush2.msra.mxu0 0.0
    %5042 = vmatprep.subr.mxu0 0.0
    %5043 = vmatpush2.msra.mxu0 0.0
    %5044 = vmatprep.subr.mxu0 0.0
    %5045 = vmatpush2.msra.mxu0 0.0
    %5046 = vmatprep.subr.mxu0 0.0
    %5047 = vmatpush2.msra.mxu0 0.0
    %5048 = vmatprep.subr.mxu0 0.0
    %5049 = vmatpush2.msra.mxu0 0.0
    %5050 = vmatprep.subr.mxu0 0.0
    %5051 = vmatpush2.msra.mxu0 0.0
    %5052 = vmatprep.subr.mxu0 0.0
    %5053 = vmatpush2.msra.mxu0 0.0
    %5054 = vmatprep.subr.mxu0 0.0
    %5055 = vmatpush2.msra.mxu0 0.0
    %5056 = vmatprep.subr.mxu0 0.0
    %5057 = vmatpush2.msra.mxu0 0.0
    %5058 = vmatprep.subr.mxu0 0.0
    %5059 = vmatpush2.msra.mxu0 0.0
    %5060 = vmatprep.subr.mxu0 0.0
    %5061 = vmatpush2.msra.mxu0 0.0
    %5062 = vmatprep.subr.mxu0 0.0
    %5063 = vmatpush2.msra.mxu0 0.0
    %5064 = vmatprep.subr.mxu0 0.0
    %5065 = vmatpush2.msra.mxu0 0.0
    %5066 = vmatprep.subr.mxu0 0.0
    %5067 = vmatpush2.msra.mxu0 0.0
    %5068 = vmatprep.subr.mxu0 0.0
    %5069 = vmatpush2.msra.mxu0 0.0
    %5070 = vmatprep.subr.mxu0 0.0
    %5071 = vmatpush2.msra.mxu0 0.0
    %5072 = vmatprep.mubr.f32.mxu0 0.0
    %5073 = vmatmul.mubr.f32.gmra.mxu0 %v4431
    %v5074 = vpop.f32.mrf.mxu0
    %v5075 = vadd.f32 0.0, %v5074
    %v5076 = vpop.f32.mrf.mxu0
    %v5077 = vadd.f32 0.0, %v5076
    %5078 = vmatprep.mubr.f32.mxu0 0.0
    %5079 = vmatmul.mubr.f32.gmra.mxu0 %v4434
    %v5080 = vpop.f32.mrf.mxu0
    %v5081 = vadd.f32 0.0, %v5080
    %v5082 = vpop.f32.mrf.mxu0
    %v5083 = vadd.f32 0.0, %v5082
    %5084 = vdwg.mxu0
    %v5085 = vadd.f32 %v4344, %v4536
    %v5086 = vadd.f32 %v4345, %v4538
    %v5087 = vadd.f32 %v4346, %v4613
    %v5088 = vadd.f32 %v4347, %v4615
    %v5089 = vadd.f32 %v4348, %v4690
    %v5090 = vadd.f32 %v4349, %v4692
    %v5091 = vadd.f32 %v4350, %v4767
    %v5092 = vadd.f32 %v4351, %v4769
    %v5093 = vadd.f32 %v4352, %v4844
    %v5094 = vadd.f32 %v4353, %v4846
    %v5095 = vadd.f32 %v4354, %v4921
    %v5096 = vadd.f32 %v4355, %v4923
    %v5097 = vadd.f32 %v4356, %v4998
    %v5098 = vadd.f32 %v4357, %v5000
    %v5099 = vadd.f32 %v4358, %v5075
    %v5100 = vadd.f32 %v4359, %v5077
    %v5101 = vadd.f32 %v4360, %v4542
    %v5102 = vadd.f32 %v4361, %v4544
    %v5103 = vadd.f32 %v4362, %v4619
    %v5104 = vadd.f32 %v4363, %v4621
    %v5105 = vadd.f32 %v4364, %v4696
    %v5106 = vadd.f32 %v4365, %v4698
    %v5107 = vadd.f32 %v4366, %v4773
    %v5108 = vadd.f32 %v4367, %v4775
    %v5109 = vadd.f32 %v4368, %v4850
    %v5110 = vadd.f32 %v4369, %v4852
    %v5111 = vadd.f32 %v4370, %v4927
    %v5112 = vadd.f32 %v4371, %v4929
    %v5113 = vadd.f32 %v4372, %v5004
    %v5114 = vadd.f32 %v4373, %v5006
    %v5115 = vadd.f32 %v4374, %v5081
    %v5116 = vadd.f32 %v4375, %v5083
    %5117 = vrot.lane.b32.xlu0 %v21, 63
    %v5118 = vpop.permute.xlu0 %5117
    %5119 = vrot.lane.b32.xlu0 %v39, 63
    %v5120 = vpop.permute.xlu0 %5119
    %5121 = vrot.lane.b32.xlu0 %v22, 63
    %v5122 = vpop.permute.xlu0 %5121
    %5123 = vrot.lane.b32.xlu0 %v40, 63
    %v5124 = vpop.permute.xlu0 %5123
    %5125 = vrot.lane.b32.xlu0 %v23, 63
    %v5126 = vpop.permute.xlu0 %5125
    %5127 = vrot.lane.b32.xlu0 %v41, 63
    %v5128 = vpop.permute.xlu0 %5127
    %5129 = vrot.lane.b32.xlu0 %v24, 63
    %v5130 = vpop.permute.xlu0 %5129
    %5131 = vrot.lane.b32.xlu0 %v42, 63
    %v5132 = vpop.permute.xlu0 %5131
    %5133 = vrot.lane.b32.xlu0 %v25, 63
    %v5134 = vpop.permute.xlu0 %5133
    %5135 = vrot.lane.b32.xlu0 %v43, 63
    %v5136 = vpop.permute.xlu0 %5135
    %5137 = vrot.lane.b32.xlu0 %v26, 63
    %v5138 = vpop.permute.xlu0 %5137
    %5139 = vrot.lane.b32.xlu0 %v44, 63
    %v5140 = vpop.permute.xlu0 %5139
    %5141 = vrot.lane.b32.xlu0 %v27, 63
    %v5142 = vpop.permute.xlu0 %5141
    %5143 = vrot.lane.b32.xlu0 %v45, 63
    %v5144 = vpop.permute.xlu0 %5143
    %5145 = vrot.lane.b32.xlu0 %v28, 63
    %v5146 = vpop.permute.xlu0 %5145
    %5147 = vrot.lane.b32.xlu0 %v46, 63
    %v5148 = vpop.permute.xlu0 %5147
    %vm5149 = vcmask 515072
    %v5150 = vsel %vm5149, %v5118, %v5120
    %v5151 = vsel %vm5149, %v5120, %v5122
    %v5152 = vsel %vm5149, %v5122, %v5124
    %v5153 = vsel %vm5149, %v5124, %v5126
    %v5154 = vsel %vm5149, %v5126, %v5128
    %v5155 = vsel %vm5149, %v5128, %v5130
    %v5156 = vsel %vm5149, %v5130, %v5132
    %v5157 = vsel %vm5149, %v5132, %v5134
    %v5158 = vsel %vm5149, %v5134, %v5136
    %v5159 = vsel %vm5149, %v5136, %v5138
    %v5160 = vsel %vm5149, %v5138, %v5140
    %v5161 = vsel %vm5149, %v5140, %v5142
    %v5162 = vsel %vm5149, %v5142, %v5144
    %v5163 = vsel %vm5149, %v5144, %v5146
    %v5164 = vsel %vm5149, %v5146, %v5148
    %v5167 = vsel %vm5149, %v5148, %v5118
    %s5168 = scalar_lea.vmem %s1, 112
    %v5169 = vld [vmem:[%s5168] sm:$0xff]
    %v5170 = vld [vmem:[%s5168 + $0x8] sm:$0x3]
    %v5172 = vsel %vm101, %v5169, 0
    %v5175 = vsel %vm101, %v5170, 0
    %v5177 = vsel %vm108, %v5150, 0
    %v5179 = vsel %vm108, %v5151, 0
    %v5181 = vsel %vm108, %v5152, 0
    %v5183 = vsel %vm108, %v5153, 0
    %v5185 = vsel %vm108, %v5154, 0
    %v5187 = vsel %vm108, %v5155, 0
    %v5189 = vsel %vm108, %v5156, 0
    %v5191 = vsel %vm108, %v5157, 0
    %v5193 = vsel %vm108, %v5158, 0
    %v5195 = vsel %vm108, %v5159, 0
    %v5197 = vsel %vm108, %v5160, 0
    %v5199 = vsel %vm108, %v5161, 0
    %v5201 = vsel %vm108, %v5162, 0
    %v5203 = vsel %vm108, %v5163, 0
    %v5205 = vsel %vm108, %v5164, 0
    %v5208 = vsel %vm108, %v5167, 0
    %5210 = vmatprep.subr.mxu0 0.0
    %5211 = vmatpush1.msra.mxu0 0.0
    %5212 = vmatprep.subr.mxu0 0.0
    %5213 = vmatpush1.msra.mxu0 0.0
    %5214 = vmatprep.subr.mxu0 0.0
    %5215 = vmatpush1.msra.mxu0 0.0
    %5216 = vmatprep.subr.mxu0 0.0
    %5217 = vmatpush1.msra.mxu0 0.0
    %5218 = vmatprep.subr.mxu0 0.0
    %5219 = vmatpush1.msra.mxu0 0.0
    %5220 = vmatprep.subr.mxu0 0.0
    %5221 = vmatpush1.msra.mxu0 0.0
    %5222 = vmatprep.subr.mxu0 0.0
    %5223 = vmatpush1.msra.mxu0 0.0
    %5224 = vmatprep.subr.mxu0 0.0
    %5225 = vmatpush1.msra.mxu0 0.0
    %5226 = vmatprep.subr.mxu0 0.0
    %5227 = vmatpush1.msra.mxu0 0.0
    %5228 = vmatprep.subr.mxu0 0.0
    %5229 = vmatpush1.msra.mxu0 0.0
    %5230 = vmatprep.subr.mxu0 0.0
    %5231 = vmatpush1.msra.mxu0 0.0
    %5232 = vmatprep.subr.mxu0 0.0
    %5233 = vmatpush1.msra.mxu0 0.0
    %5234 = vmatprep.subr.mxu0 0.0
    %5235 = vmatpush1.msra.mxu0 0.0
    %5236 = vmatprep.subr.mxu0 0.0
    %5237 = vmatpush1.msra.mxu0 0.0
    %5238 = vmatprep.subr.mxu0 0.0
    %5239 = vmatpush1.msra.mxu0 0.0
    %5240 = vmatprep.subr.mxu0 %v5179
    %5241 = vmatpush1.msra.mxu0 %v5177
    %5242 = vmatprep.subr.mxu0 0.0
    %5243 = vmatpush2.msra.mxu0 0.0
    %5244 = vmatprep.subr.mxu0 0.0
    %5245 = vmatpush2.msra.mxu0 0.0
    %5246 = vmatprep.subr.mxu0 0.0
    %5247 = vmatpush2.msra.mxu0 0.0
    %5248 = vmatprep.subr.mxu0 0.0
    %5249 = vmatpush2.msra.mxu0 0.0
    %5250 = vmatprep.subr.mxu0 0.0
    %5251 = vmatpush2.msra.mxu0 0.0
    %5252 = vmatprep.subr.mxu0 0.0
    %5253 = vmatpush2.msra.mxu0 0.0
    %5254 = vmatprep.subr.mxu0 0.0
    %5255 = vmatpush2.msra.mxu0 0.0
    %5256 = vmatprep.subr.mxu0 0.0
    %5257 = vmatpush2.msra.mxu0 0.0
    %5258 = vmatprep.subr.mxu0 0.0
    %5259 = vmatpush2.msra.mxu0 0.0
    %5260 = vmatprep.subr.mxu0 0.0
    %5261 = vmatpush2.msra.mxu0 0.0
    %5262 = vmatprep.subr.mxu0 0.0
    %5263 = vmatpush2.msra.mxu0 0.0
    %5264 = vmatprep.subr.mxu0 0.0
    %5265 = vmatpush2.msra.mxu0 0.0
    %5266 = vmatprep.subr.mxu0 0.0
    %5267 = vmatpush2.msra.mxu0 0.0
    %5268 = vmatprep.subr.mxu0 0.0
    %5269 = vmatpush2.msra.mxu0 0.0
    %5270 = vmatprep.subr.mxu0 0.0
    %5271 = vmatpush2.msra.mxu0 0.0
    %5272 = vmatprep.subr.mxu0 0.0
    %5273 = vmatpush2.msra.mxu0 0.0
    %5274 = vmatprep.mubr.f32.mxu0 0.0
    %5275 = vmatmul.mubr.f32.gmra.mxu0 %v5172
    %v5276 = vpop.f32.mrf.mxu0
    %v5277 = vadd.f32 0.0, %v5276
    %v5278 = vpop.f32.mrf.mxu0
    %v5279 = vadd.f32 0.0, %v5278
    %5280 = vmatprep.mubr.f32.mxu0 0.0
    %5281 = vmatmul.mubr.f32.gmra.mxu0 %v5175
    %v5282 = vpop.f32.mrf.mxu0
    %v5283 = vadd.f32 0.0, %v5282
    %v5284 = vpop.f32.mrf.mxu0
    %v5285 = vadd.f32 0.0, %v5284
    %5286 = vdwg.mxu0
    %5287 = vmatprep.subr.mxu0 0.0
    %5288 = vmatpush1.msra.mxu0 0.0
    %5289 = vmatprep.subr.mxu0 0.0
    %5290 = vmatpush1.msra.mxu0 0.0
    %5291 = vmatprep.subr.mxu0 0.0
    %5292 = vmatpush1.msra.mxu0 0.0
    %5293 = vmatprep.subr.mxu0 0.0
    %5294 = vmatpush1.msra.mxu0 0.0
    %5295 = vmatprep.subr.mxu0 0.0
    %5296 = vmatpush1.msra.mxu0 0.0
    %5297 = vmatprep.subr.mxu0 0.0
    %5298 = vmatpush1.msra.mxu0 0.0
    %5299 = vmatprep.subr.mxu0 0.0
    %5300 = vmatpush1.msra.mxu0 0.0
    %5301 = vmatprep.subr.mxu0 0.0
    %5302 = vmatpush1.msra.mxu0 0.0
    %5303 = vmatprep.subr.mxu0 0.0
    %5304 = vmatpush1.msra.mxu0 0.0
    %5305 = vmatprep.subr.mxu0 0.0
    %5306 = vmatpush1.msra.mxu0 0.0
    %5307 = vmatprep.subr.mxu0 0.0
    %5308 = vmatpush1.msra.mxu0 0.0
    %5309 = vmatprep.subr.mxu0 0.0
    %5310 = vmatpush1.msra.mxu0 0.0
    %5311 = vmatprep.subr.mxu0 0.0
    %5312 = vmatpush1.msra.mxu0 0.0
    %5313 = vmatprep.subr.mxu0 0.0
    %5314 = vmatpush1.msra.mxu0 0.0
    %5315 = vmatprep.subr.mxu0 0.0
    %5316 = vmatpush1.msra.mxu0 0.0
    %5317 = vmatprep.subr.mxu0 %v5183
    %5318 = vmatpush1.msra.mxu0 %v5181
    %5319 = vmatprep.subr.mxu0 0.0
    %5320 = vmatpush2.msra.mxu0 0.0
    %5321 = vmatprep.subr.mxu0 0.0
    %5322 = vmatpush2.msra.mxu0 0.0
    %5323 = vmatprep.subr.mxu0 0.0
    %5324 = vmatpush2.msra.mxu0 0.0
    %5325 = vmatprep.subr.mxu0 0.0
    %5326 = vmatpush2.msra.mxu0 0.0
    %5327 = vmatprep.subr.mxu0 0.0
    %5328 = vmatpush2.msra.mxu0 0.0
    %5329 = vmatprep.subr.mxu0 0.0
    %5330 = vmatpush2.msra.mxu0 0.0
    %5331 = vmatprep.subr.mxu0 0.0
    %5332 = vmatpush2.msra.mxu0 0.0
    %5333 = vmatprep.subr.mxu0 0.0
    %5334 = vmatpush2.msra.mxu0 0.0
    %5335 = vmatprep.subr.mxu0 0.0
    %5336 = vmatpush2.msra.mxu0 0.0
    %5337 = vmatprep.subr.mxu0 0.0
    %5338 = vmatpush2.msra.mxu0 0.0
    %5339 = vmatprep.subr.mxu0 0.0
    %5340 = vmatpush2.msra.mxu0 0.0
    %5341 = vmatprep.subr.mxu0 0.0
    %5342 = vmatpush2.msra.mxu0 0.0
    %5343 = vmatprep.subr.mxu0 0.0
    %5344 = vmatpush2.msra.mxu0 0.0
    %5345 = vmatprep.subr.mxu0 0.0
    %5346 = vmatpush2.msra.mxu0 0.0
    %5347 = vmatprep.subr.mxu0 0.0
    %5348 = vmatpush2.msra.mxu0 0.0
    %5349 = vmatprep.subr.mxu0 0.0
    %5350 = vmatpush2.msra.mxu0 0.0
    %5351 = vmatprep.mubr.f32.mxu0 0.0
    %5352 = vmatmul.mubr.f32.gmra.mxu0 %v5172
    %v5353 = vpop.f32.mrf.mxu0
    %v5354 = vadd.f32 0.0, %v5353
    %v5355 = vpop.f32.mrf.mxu0
    %v5356 = vadd.f32 0.0, %v5355
    %5357 = vmatprep.mubr.f32.mxu0 0.0
    %5358 = vmatmul.mubr.f32.gmra.mxu0 %v5175
    %v5359 = vpop.f32.mrf.mxu0
    %v5360 = vadd.f32 0.0, %v5359
    %v5361 = vpop.f32.mrf.mxu0
    %v5362 = vadd.f32 0.0, %v5361
    %5363 = vdwg.mxu0
    %5364 = vmatprep.subr.mxu0 0.0
    %5365 = vmatpush1.msra.mxu0 0.0
    %5366 = vmatprep.subr.mxu0 0.0
    %5367 = vmatpush1.msra.mxu0 0.0
    %5368 = vmatprep.subr.mxu0 0.0
    %5369 = vmatpush1.msra.mxu0 0.0
    %5370 = vmatprep.subr.mxu0 0.0
    %5371 = vmatpush1.msra.mxu0 0.0
    %5372 = vmatprep.subr.mxu0 0.0
    %5373 = vmatpush1.msra.mxu0 0.0
    %5374 = vmatprep.subr.mxu0 0.0
    %5375 = vmatpush1.msra.mxu0 0.0
    %5376 = vmatprep.subr.mxu0 0.0
    %5377 = vmatpush1.msra.mxu0 0.0
    %5378 = vmatprep.subr.mxu0 0.0
    %5379 = vmatpush1.msra.mxu0 0.0
    %5380 = vmatprep.subr.mxu0 0.0
    %5381 = vmatpush1.msra.mxu0 0.0
    %5382 = vmatprep.subr.mxu0 0.0
    %5383 = vmatpush1.msra.mxu0 0.0
    %5384 = vmatprep.subr.mxu0 0.0
    %5385 = vmatpush1.msra.mxu0 0.0
    %5386 = vmatprep.subr.mxu0 0.0
    %5387 = vmatpush1.msra.mxu0 0.0
    %5388 = vmatprep.subr.mxu0 0.0
    %5389 = vmatpush1.msra.mxu0 0.0
    %5390 = vmatprep.subr.mxu0 0.0
    %5391 = vmatpush1.msra.mxu0 0.0
    %5392 = vmatprep.subr.mxu0 0.0
    %5393 = vmatpush1.msra.mxu0 0.0
    %5394 = vmatprep.subr.mxu0 %v5187
    %5395 = vmatpush1.msra.mxu0 %v5185
    %5396 = vmatprep.subr.mxu0 0.0
    %5397 = vmatpush2.msra.mxu0 0.0
    %5398 = vmatprep.subr.mxu0 0.0
    %5399 = vmatpush2.msra.mxu0 0.0
    %5400 = vmatprep.subr.mxu0 0.0
    %5401 = vmatpush2.msra.mxu0 0.0
    %5402 = vmatprep.subr.mxu0 0.0
    %5403 = vmatpush2.msra.mxu0 0.0
    %5404 = vmatprep.subr.mxu0 0.0
    %5405 = vmatpush2.msra.mxu0 0.0
    %5406 = vmatprep.subr.mxu0 0.0
    %5407 = vmatpush2.msra.mxu0 0.0
    %5408 = vmatprep.subr.mxu0 0.0
    %5409 = vmatpush2.msra.mxu0 0.0
    %5410 = vmatprep.subr.mxu0 0.0
    %5411 = vmatpush2.msra.mxu0 0.0
    %5412 = vmatprep.subr.mxu0 0.0
    %5413 = vmatpush2.msra.mxu0 0.0
    %5414 = vmatprep.subr.mxu0 0.0
    %5415 = vmatpush2.msra.mxu0 0.0
    %5416 = vmatprep.subr.mxu0 0.0
    %5417 = vmatpush2.msra.mxu0 0.0
    %5418 = vmatprep.subr.mxu0 0.0
    %5419 = vmatpush2.msra.mxu0 0.0
    %5420 = vmatprep.subr.mxu0 0.0
    %5421 = vmatpush2.msra.mxu0 0.0
    %5422 = vmatprep.subr.mxu0 0.0
    %5423 = vmatpush2.msra.mxu0 0.0
    %5424 = vmatprep.subr.mxu0 0.0
    %5425 = vmatpush2.msra.mxu0 0.0
    %5426 = vmatprep.subr.mxu0 0.0
    %5427 = vmatpush2.msra.mxu0 0.0
    %5428 = vmatprep.mubr.f32.mxu0 0.0
    %5429 = vmatmul.mubr.f32.gmra.mxu0 %v5172
    %v5430 = vpop.f32.mrf.mxu0
    %v5431 = vadd.f32 0.0, %v5430
    %v5432 = vpop.f32.mrf.mxu0
    %v5433 = vadd.f32 0.0, %v5432
    %5434 = vmatprep.mubr.f32.mxu0 0.0
    %5435 = vmatmul.mubr.f32.gmra.mxu0 %v5175
    %v5436 = vpop.f32.mrf.mxu0
    %v5437 = vadd.f32 0.0, %v5436
    %v5438 = vpop.f32.mrf.mxu0
    %v5439 = vadd.f32 0.0, %v5438
    %5440 = vdwg.mxu0
    %5441 = vmatprep.subr.mxu0 0.0
    %5442 = vmatpush1.msra.mxu0 0.0
    %5443 = vmatprep.subr.mxu0 0.0
    %5444 = vmatpush1.msra.mxu0 0.0
    %5445 = vmatprep.subr.mxu0 0.0
    %5446 = vmatpush1.msra.mxu0 0.0
    %5447 = vmatprep.subr.mxu0 0.0
    %5448 = vmatpush1.msra.mxu0 0.0
    %5449 = vmatprep.subr.mxu0 0.0
    %5450 = vmatpush1.msra.mxu0 0.0
    %5451 = vmatprep.subr.mxu0 0.0
    %5452 = vmatpush1.msra.mxu0 0.0
    %5453 = vmatprep.subr.mxu0 0.0
    %5454 = vmatpush1.msra.mxu0 0.0
    %5455 = vmatprep.subr.mxu0 0.0
    %5456 = vmatpush1.msra.mxu0 0.0
    %5457 = vmatprep.subr.mxu0 0.0
    %5458 = vmatpush1.msra.mxu0 0.0
    %5459 = vmatprep.subr.mxu0 0.0
    %5460 = vmatpush1.msra.mxu0 0.0
    %5461 = vmatprep.subr.mxu0 0.0
    %5462 = vmatpush1.msra.mxu0 0.0
    %5463 = vmatprep.subr.mxu0 0.0
    %5464 = vmatpush1.msra.mxu0 0.0
    %5465 = vmatprep.subr.mxu0 0.0
    %5466 = vmatpush1.msra.mxu0 0.0
    %5467 = vmatprep.subr.mxu0 0.0
    %5468 = vmatpush1.msra.mxu0 0.0
    %5469 = vmatprep.subr.mxu0 0.0
    %5470 = vmatpush1.msra.mxu0 0.0
    %5471 = vmatprep.subr.mxu0 %v5191
    %5472 = vmatpush1.msra.mxu0 %v5189
    %5473 = vmatprep.subr.mxu0 0.0
    %5474 = vmatpush2.msra.mxu0 0.0
    %5475 = vmatprep.subr.mxu0 0.0
    %5476 = vmatpush2.msra.mxu0 0.0
    %5477 = vmatprep.subr.mxu0 0.0
    %5478 = vmatpush2.msra.mxu0 0.0
    %5479 = vmatprep.subr.mxu0 0.0
    %5480 = vmatpush2.msra.mxu0 0.0
    %5481 = vmatprep.subr.mxu0 0.0
    %5482 = vmatpush2.msra.mxu0 0.0
    %5483 = vmatprep.subr.mxu0 0.0
    %5484 = vmatpush2.msra.mxu0 0.0
    %5485 = vmatprep.subr.mxu0 0.0
    %5486 = vmatpush2.msra.mxu0 0.0
    %5487 = vmatprep.subr.mxu0 0.0
    %5488 = vmatpush2.msra.mxu0 0.0
    %5489 = vmatprep.subr.mxu0 0.0
    %5490 = vmatpush2.msra.mxu0 0.0
    %5491 = vmatprep.subr.mxu0 0.0
    %5492 = vmatpush2.msra.mxu0 0.0
    %5493 = vmatprep.subr.mxu0 0.0
    %5494 = vmatpush2.msra.mxu0 0.0
    %5495 = vmatprep.subr.mxu0 0.0
    %5496 = vmatpush2.msra.mxu0 0.0
    %5497 = vmatprep.subr.mxu0 0.0
    %5498 = vmatpush2.msra.mxu0 0.0
    %5499 = vmatprep.subr.mxu0 0.0
    %5500 = vmatpush2.msra.mxu0 0.0
    %5501 = vmatprep.subr.mxu0 0.0
    %5502 = vmatpush2.msra.mxu0 0.0
    %5503 = vmatprep.subr.mxu0 0.0
    %5504 = vmatpush2.msra.mxu0 0.0
    %5505 = vmatprep.mubr.f32.mxu0 0.0
    %5506 = vmatmul.mubr.f32.gmra.mxu0 %v5172
    %v5507 = vpop.f32.mrf.mxu0
    %v5508 = vadd.f32 0.0, %v5507
    %v5509 = vpop.f32.mrf.mxu0
    %v5510 = vadd.f32 0.0, %v5509
    %5511 = vmatprep.mubr.f32.mxu0 0.0
    %5512 = vmatmul.mubr.f32.gmra.mxu0 %v5175
    %v5513 = vpop.f32.mrf.mxu0
    %v5514 = vadd.f32 0.0, %v5513
    %v5515 = vpop.f32.mrf.mxu0
    %v5516 = vadd.f32 0.0, %v5515
    %5517 = vdwg.mxu0
    %5518 = vmatprep.subr.mxu0 0.0
    %5519 = vmatpush1.msra.mxu0 0.0
    %5520 = vmatprep.subr.mxu0 0.0
    %5521 = vmatpush1.msra.mxu0 0.0
    %5522 = vmatprep.subr.mxu0 0.0
    %5523 = vmatpush1.msra.mxu0 0.0
    %5524 = vmatprep.subr.mxu0 0.0
    %5525 = vmatpush1.msra.mxu0 0.0
    %5526 = vmatprep.subr.mxu0 0.0
    %5527 = vmatpush1.msra.mxu0 0.0
    %5528 = vmatprep.subr.mxu0 0.0
    %5529 = vmatpush1.msra.mxu0 0.0
    %5530 = vmatprep.subr.mxu0 0.0
    %5531 = vmatpush1.msra.mxu0 0.0
    %5532 = vmatprep.subr.mxu0 0.0
    %5533 = vmatpush1.msra.mxu0 0.0
    %5534 = vmatprep.subr.mxu0 0.0
    %5535 = vmatpush1.msra.mxu0 0.0
    %5536 = vmatprep.subr.mxu0 0.0
    %5537 = vmatpush1.msra.mxu0 0.0
    %5538 = vmatprep.subr.mxu0 0.0
    %5539 = vmatpush1.msra.mxu0 0.0
    %5540 = vmatprep.subr.mxu0 0.0
    %5541 = vmatpush1.msra.mxu0 0.0
    %5542 = vmatprep.subr.mxu0 0.0
    %5543 = vmatpush1.msra.mxu0 0.0
    %5544 = vmatprep.subr.mxu0 0.0
    %5545 = vmatpush1.msra.mxu0 0.0
    %5546 = vmatprep.subr.mxu0 0.0
    %5547 = vmatpush1.msra.mxu0 0.0
    %5548 = vmatprep.subr.mxu0 %v5195
    %5549 = vmatpush1.msra.mxu0 %v5193
    %5550 = vmatprep.subr.mxu0 0.0
    %5551 = vmatpush2.msra.mxu0 0.0
    %5552 = vmatprep.subr.mxu0 0.0
    %5553 = vmatpush2.msra.mxu0 0.0
    %5554 = vmatprep.subr.mxu0 0.0
    %5555 = vmatpush2.msra.mxu0 0.0
    %5556 = vmatprep.subr.mxu0 0.0
    %5557 = vmatpush2.msra.mxu0 0.0
    %5558 = vmatprep.subr.mxu0 0.0
    %5559 = vmatpush2.msra.mxu0 0.0
    %5560 = vmatprep.subr.mxu0 0.0
    %5561 = vmatpush2.msra.mxu0 0.0
    %5562 = vmatprep.subr.mxu0 0.0
    %5563 = vmatpush2.msra.mxu0 0.0
    %5564 = vmatprep.subr.mxu0 0.0
    %5565 = vmatpush2.msra.mxu0 0.0
    %5566 = vmatprep.subr.mxu0 0.0
    %5567 = vmatpush2.msra.mxu0 0.0
    %5568 = vmatprep.subr.mxu0 0.0
    %5569 = vmatpush2.msra.mxu0 0.0
    %5570 = vmatprep.subr.mxu0 0.0
    %5571 = vmatpush2.msra.mxu0 0.0
    %5572 = vmatprep.subr.mxu0 0.0
    %5573 = vmatpush2.msra.mxu0 0.0
    %5574 = vmatprep.subr.mxu0 0.0
    %5575 = vmatpush2.msra.mxu0 0.0
    %5576 = vmatprep.subr.mxu0 0.0
    %5577 = vmatpush2.msra.mxu0 0.0
    %5578 = vmatprep.subr.mxu0 0.0
    %5579 = vmatpush2.msra.mxu0 0.0
    %5580 = vmatprep.subr.mxu0 0.0
    %5581 = vmatpush2.msra.mxu0 0.0
    %5582 = vmatprep.mubr.f32.mxu0 0.0
    %5583 = vmatmul.mubr.f32.gmra.mxu0 %v5172
    %v5584 = vpop.f32.mrf.mxu0
    %v5585 = vadd.f32 0.0, %v5584
    %v5586 = vpop.f32.mrf.mxu0
    %v5587 = vadd.f32 0.0, %v5586
    %5588 = vmatprep.mubr.f32.mxu0 0.0
    %5589 = vmatmul.mubr.f32.gmra.mxu0 %v5175
    %v5590 = vpop.f32.mrf.mxu0
    %v5591 = vadd.f32 0.0, %v5590
    %v5592 = vpop.f32.mrf.mxu0
    %v5593 = vadd.f32 0.0, %v5592
    %5594 = vdwg.mxu0
    %5595 = vmatprep.subr.mxu0 0.0
    %5596 = vmatpush1.msra.mxu0 0.0
    %5597 = vmatprep.subr.mxu0 0.0
    %5598 = vmatpush1.msra.mxu0 0.0
    %5599 = vmatprep.subr.mxu0 0.0
    %5600 = vmatpush1.msra.mxu0 0.0
    %5601 = vmatprep.subr.mxu0 0.0
    %5602 = vmatpush1.msra.mxu0 0.0
    %5603 = vmatprep.subr.mxu0 0.0
    %5604 = vmatpush1.msra.mxu0 0.0
    %5605 = vmatprep.subr.mxu0 0.0
    %5606 = vmatpush1.msra.mxu0 0.0
    %5607 = vmatprep.subr.mxu0 0.0
    %5608 = vmatpush1.msra.mxu0 0.0
    %5609 = vmatprep.subr.mxu0 0.0
    %5610 = vmatpush1.msra.mxu0 0.0
    %5611 = vmatprep.subr.mxu0 0.0
    %5612 = vmatpush1.msra.mxu0 0.0
    %5613 = vmatprep.subr.mxu0 0.0
    %5614 = vmatpush1.msra.mxu0 0.0
    %5615 = vmatprep.subr.mxu0 0.0
    %5616 = vmatpush1.msra.mxu0 0.0
    %5617 = vmatprep.subr.mxu0 0.0
    %5618 = vmatpush1.msra.mxu0 0.0
    %5619 = vmatprep.subr.mxu0 0.0
    %5620 = vmatpush1.msra.mxu0 0.0
    %5621 = vmatprep.subr.mxu0 0.0
    %5622 = vmatpush1.msra.mxu0 0.0
    %5623 = vmatprep.subr.mxu0 0.0
    %5624 = vmatpush1.msra.mxu0 0.0
    %5625 = vmatprep.subr.mxu0 %v5199
    %5626 = vmatpush1.msra.mxu0 %v5197
    %5627 = vmatprep.subr.mxu0 0.0
    %5628 = vmatpush2.msra.mxu0 0.0
    %5629 = vmatprep.subr.mxu0 0.0
    %5630 = vmatpush2.msra.mxu0 0.0
    %5631 = vmatprep.subr.mxu0 0.0
    %5632 = vmatpush2.msra.mxu0 0.0
    %5633 = vmatprep.subr.mxu0 0.0
    %5634 = vmatpush2.msra.mxu0 0.0
    %5635 = vmatprep.subr.mxu0 0.0
    %5636 = vmatpush2.msra.mxu0 0.0
    %5637 = vmatprep.subr.mxu0 0.0
    %5638 = vmatpush2.msra.mxu0 0.0
    %5639 = vmatprep.subr.mxu0 0.0
    %5640 = vmatpush2.msra.mxu0 0.0
    %5641 = vmatprep.subr.mxu0 0.0
    %5642 = vmatpush2.msra.mxu0 0.0
    %5643 = vmatprep.subr.mxu0 0.0
    %5644 = vmatpush2.msra.mxu0 0.0
    %5645 = vmatprep.subr.mxu0 0.0
    %5646 = vmatpush2.msra.mxu0 0.0
    %5647 = vmatprep.subr.mxu0 0.0
    %5648 = vmatpush2.msra.mxu0 0.0
    %5649 = vmatprep.subr.mxu0 0.0
    %5650 = vmatpush2.msra.mxu0 0.0
    %5651 = vmatprep.subr.mxu0 0.0
    %5652 = vmatpush2.msra.mxu0 0.0
    %5653 = vmatprep.subr.mxu0 0.0
    %5654 = vmatpush2.msra.mxu0 0.0
    %5655 = vmatprep.subr.mxu0 0.0
    %5656 = vmatpush2.msra.mxu0 0.0
    %5657 = vmatprep.subr.mxu0 0.0
    %5658 = vmatpush2.msra.mxu0 0.0
    %5659 = vmatprep.mubr.f32.mxu0 0.0
    %5660 = vmatmul.mubr.f32.gmra.mxu0 %v5172
    %v5661 = vpop.f32.mrf.mxu0
    %v5662 = vadd.f32 0.0, %v5661
    %v5663 = vpop.f32.mrf.mxu0
    %v5664 = vadd.f32 0.0, %v5663
    %5665 = vmatprep.mubr.f32.mxu0 0.0
    %5666 = vmatmul.mubr.f32.gmra.mxu0 %v5175
    %v5667 = vpop.f32.mrf.mxu0
    %v5668 = vadd.f32 0.0, %v5667
    %v5669 = vpop.f32.mrf.mxu0
    %v5670 = vadd.f32 0.0, %v5669
    %5671 = vdwg.mxu0
    %5672 = vmatprep.subr.mxu0 0.0
    %5673 = vmatpush1.msra.mxu0 0.0
    %5674 = vmatprep.subr.mxu0 0.0
    %5675 = vmatpush1.msra.mxu0 0.0
    %5676 = vmatprep.subr.mxu0 0.0
    %5677 = vmatpush1.msra.mxu0 0.0
    %5678 = vmatprep.subr.mxu0 0.0
    %5679 = vmatpush1.msra.mxu0 0.0
    %5680 = vmatprep.subr.mxu0 0.0
    %5681 = vmatpush1.msra.mxu0 0.0
    %5682 = vmatprep.subr.mxu0 0.0
    %5683 = vmatpush1.msra.mxu0 0.0
    %5684 = vmatprep.subr.mxu0 0.0
    %5685 = vmatpush1.msra.mxu0 0.0
    %5686 = vmatprep.subr.mxu0 0.0
    %5687 = vmatpush1.msra.mxu0 0.0
    %5688 = vmatprep.subr.mxu0 0.0
    %5689 = vmatpush1.msra.mxu0 0.0
    %5690 = vmatprep.subr.mxu0 0.0
    %5691 = vmatpush1.msra.mxu0 0.0
    %5692 = vmatprep.subr.mxu0 0.0
    %5693 = vmatpush1.msra.mxu0 0.0
    %5694 = vmatprep.subr.mxu0 0.0
    %5695 = vmatpush1.msra.mxu0 0.0
    %5696 = vmatprep.subr.mxu0 0.0
    %5697 = vmatpush1.msra.mxu0 0.0
    %5698 = vmatprep.subr.mxu0 0.0
    %5699 = vmatpush1.msra.mxu0 0.0
    %5700 = vmatprep.subr.mxu0 0.0
    %5701 = vmatpush1.msra.mxu0 0.0
    %5702 = vmatprep.subr.mxu0 %v5203
    %5703 = vmatpush1.msra.mxu0 %v5201
    %5704 = vmatprep.subr.mxu0 0.0
    %5705 = vmatpush2.msra.mxu0 0.0
    %5706 = vmatprep.subr.mxu0 0.0
    %5707 = vmatpush2.msra.mxu0 0.0
    %5708 = vmatprep.subr.mxu0 0.0
    %5709 = vmatpush2.msra.mxu0 0.0
    %5710 = vmatprep.subr.mxu0 0.0
    %5711 = vmatpush2.msra.mxu0 0.0
    %5712 = vmatprep.subr.mxu0 0.0
    %5713 = vmatpush2.msra.mxu0 0.0
    %5714 = vmatprep.subr.mxu0 0.0
    %5715 = vmatpush2.msra.mxu0 0.0
    %5716 = vmatprep.subr.mxu0 0.0
    %5717 = vmatpush2.msra.mxu0 0.0
    %5718 = vmatprep.subr.mxu0 0.0
    %5719 = vmatpush2.msra.mxu0 0.0
    %5720 = vmatprep.subr.mxu0 0.0
    %5721 = vmatpush2.msra.mxu0 0.0
    %5722 = vmatprep.subr.mxu0 0.0
    %5723 = vmatpush2.msra.mxu0 0.0
    %5724 = vmatprep.subr.mxu0 0.0
    %5725 = vmatpush2.msra.mxu0 0.0
    %5726 = vmatprep.subr.mxu0 0.0
    %5727 = vmatpush2.msra.mxu0 0.0
    %5728 = vmatprep.subr.mxu0 0.0
    %5729 = vmatpush2.msra.mxu0 0.0
    %5730 = vmatprep.subr.mxu0 0.0
    %5731 = vmatpush2.msra.mxu0 0.0
    %5732 = vmatprep.subr.mxu0 0.0
    %5733 = vmatpush2.msra.mxu0 0.0
    %5734 = vmatprep.subr.mxu0 0.0
    %5735 = vmatpush2.msra.mxu0 0.0
    %5736 = vmatprep.mubr.f32.mxu0 0.0
    %5737 = vmatmul.mubr.f32.gmra.mxu0 %v5172
    %v5738 = vpop.f32.mrf.mxu0
    %v5739 = vadd.f32 0.0, %v5738
    %v5740 = vpop.f32.mrf.mxu0
    %v5741 = vadd.f32 0.0, %v5740
    %5742 = vmatprep.mubr.f32.mxu0 0.0
    %5743 = vmatmul.mubr.f32.gmra.mxu0 %v5175
    %v5744 = vpop.f32.mrf.mxu0
    %v5745 = vadd.f32 0.0, %v5744
    %v5746 = vpop.f32.mrf.mxu0
    %v5747 = vadd.f32 0.0, %v5746
    %5748 = vdwg.mxu0
    %5749 = vmatprep.subr.mxu0 0.0
    %5750 = vmatpush1.msra.mxu0 0.0
    %5751 = vmatprep.subr.mxu0 0.0
    %5752 = vmatpush1.msra.mxu0 0.0
    %5753 = vmatprep.subr.mxu0 0.0
    %5754 = vmatpush1.msra.mxu0 0.0
    %5755 = vmatprep.subr.mxu0 0.0
    %5756 = vmatpush1.msra.mxu0 0.0
    %5757 = vmatprep.subr.mxu0 0.0
    %5758 = vmatpush1.msra.mxu0 0.0
    %5759 = vmatprep.subr.mxu0 0.0
    %5760 = vmatpush1.msra.mxu0 0.0
    %5761 = vmatprep.subr.mxu0 0.0
    %5762 = vmatpush1.msra.mxu0 0.0
    %5763 = vmatprep.subr.mxu0 0.0
    %5764 = vmatpush1.msra.mxu0 0.0
    %5765 = vmatprep.subr.mxu0 0.0
    %5766 = vmatpush1.msra.mxu0 0.0
    %5767 = vmatprep.subr.mxu0 0.0
    %5768 = vmatpush1.msra.mxu0 0.0
    %5769 = vmatprep.subr.mxu0 0.0
    %5770 = vmatpush1.msra.mxu0 0.0
    %5771 = vmatprep.subr.mxu0 0.0
    %5772 = vmatpush1.msra.mxu0 0.0
    %5773 = vmatprep.subr.mxu0 0.0
    %5774 = vmatpush1.msra.mxu0 0.0
    %5775 = vmatprep.subr.mxu0 0.0
    %5776 = vmatpush1.msra.mxu0 0.0
    %5777 = vmatprep.subr.mxu0 0.0
    %5778 = vmatpush1.msra.mxu0 0.0
    %5779 = vmatprep.subr.mxu0 %v5208
    %5780 = vmatpush1.msra.mxu0 %v5205
    %5781 = vmatprep.subr.mxu0 0.0
    %5782 = vmatpush2.msra.mxu0 0.0
    %5783 = vmatprep.subr.mxu0 0.0
    %5784 = vmatpush2.msra.mxu0 0.0
    %5785 = vmatprep.subr.mxu0 0.0
    %5786 = vmatpush2.msra.mxu0 0.0
    %5787 = vmatprep.subr.mxu0 0.0
    %5788 = vmatpush2.msra.mxu0 0.0
    %5789 = vmatprep.subr.mxu0 0.0
    %5790 = vmatpush2.msra.mxu0 0.0
    %5791 = vmatprep.subr.mxu0 0.0
    %5792 = vmatpush2.msra.mxu0 0.0
    %5793 = vmatprep.subr.mxu0 0.0
    %5794 = vmatpush2.msra.mxu0 0.0
    %5795 = vmatprep.subr.mxu0 0.0
    %5796 = vmatpush2.msra.mxu0 0.0
    %5797 = vmatprep.subr.mxu0 0.0
    %5798 = vmatpush2.msra.mxu0 0.0
    %5799 = vmatprep.subr.mxu0 0.0
    %5800 = vmatpush2.msra.mxu0 0.0
    %5801 = vmatprep.subr.mxu0 0.0
    %5802 = vmatpush2.msra.mxu0 0.0
    %5803 = vmatprep.subr.mxu0 0.0
    %5804 = vmatpush2.msra.mxu0 0.0
    %5805 = vmatprep.subr.mxu0 0.0
    %5806 = vmatpush2.msra.mxu0 0.0
    %5807 = vmatprep.subr.mxu0 0.0
    %5808 = vmatpush2.msra.mxu0 0.0
    %5809 = vmatprep.subr.mxu0 0.0
    %5810 = vmatpush2.msra.mxu0 0.0
    %5811 = vmatprep.subr.mxu0 0.0
    %5812 = vmatpush2.msra.mxu0 0.0
    %5813 = vmatprep.mubr.f32.mxu0 0.0
    %5814 = vmatmul.mubr.f32.gmra.mxu0 %v5172
    %v5815 = vpop.f32.mrf.mxu0
    %v5816 = vadd.f32 0.0, %v5815
    %v5817 = vpop.f32.mrf.mxu0
    %v5818 = vadd.f32 0.0, %v5817
    %5819 = vmatprep.mubr.f32.mxu0 0.0
    %5820 = vmatmul.mubr.f32.gmra.mxu0 %v5175
    %v5821 = vpop.f32.mrf.mxu0
    %v5822 = vadd.f32 0.0, %v5821
    %v5823 = vpop.f32.mrf.mxu0
    %v5824 = vadd.f32 0.0, %v5823
    %5825 = vdwg.mxu0
    %v5826 = vadd.f32 %v5085, %v5277
    %v5827 = vadd.f32 %v5086, %v5279
    %v5828 = vadd.f32 %v5087, %v5354
    %v5829 = vadd.f32 %v5088, %v5356
    %v5830 = vadd.f32 %v5089, %v5431
    %v5831 = vadd.f32 %v5090, %v5433
    %v5832 = vadd.f32 %v5091, %v5508
    %v5833 = vadd.f32 %v5092, %v5510
    %v5834 = vadd.f32 %v5093, %v5585
    %v5835 = vadd.f32 %v5094, %v5587
    %v5836 = vadd.f32 %v5095, %v5662
    %v5837 = vadd.f32 %v5096, %v5664
    %v5838 = vadd.f32 %v5097, %v5739
    %v5839 = vadd.f32 %v5098, %v5741
    %v5840 = vadd.f32 %v5099, %v5816
    %v5841 = vadd.f32 %v5100, %v5818
    %v5842 = vadd.f32 %v5101, %v5283
    %v5843 = vadd.f32 %v5102, %v5285
    %v5844 = vadd.f32 %v5103, %v5360
    %v5845 = vadd.f32 %v5104, %v5362
    %v5846 = vadd.f32 %v5105, %v5437
    %v5847 = vadd.f32 %v5106, %v5439
    %v5848 = vadd.f32 %v5107, %v5514
    %v5849 = vadd.f32 %v5108, %v5516
    %v5850 = vadd.f32 %v5109, %v5591
    %v5851 = vadd.f32 %v5110, %v5593
    %v5852 = vadd.f32 %v5111, %v5668
    %v5853 = vadd.f32 %v5112, %v5670
    %v5854 = vadd.f32 %v5113, %v5745
    %v5855 = vadd.f32 %v5114, %v5747
    %v5856 = vadd.f32 %v5115, %v5822
    %v5857 = vadd.f32 %v5116, %v5824
    %5858 = vrot.lane.b32.xlu0 %v21, 62
    %v5859 = vpop.permute.xlu0 %5858
    %5860 = vrot.lane.b32.xlu0 %v39, 62
    %v5861 = vpop.permute.xlu0 %5860
    %5862 = vrot.lane.b32.xlu0 %v22, 62
    %v5863 = vpop.permute.xlu0 %5862
    %5864 = vrot.lane.b32.xlu0 %v40, 62
    %v5865 = vpop.permute.xlu0 %5864
    %5866 = vrot.lane.b32.xlu0 %v23, 62
    %v5867 = vpop.permute.xlu0 %5866
    %5868 = vrot.lane.b32.xlu0 %v41, 62
    %v5869 = vpop.permute.xlu0 %5868
    %5870 = vrot.lane.b32.xlu0 %v24, 62
    %v5871 = vpop.permute.xlu0 %5870
    %5872 = vrot.lane.b32.xlu0 %v42, 62
    %v5873 = vpop.permute.xlu0 %5872
    %5874 = vrot.lane.b32.xlu0 %v25, 62
    %v5875 = vpop.permute.xlu0 %5874
    %5876 = vrot.lane.b32.xlu0 %v43, 62
    %v5877 = vpop.permute.xlu0 %5876
    %5878 = vrot.lane.b32.xlu0 %v26, 62
    %v5879 = vpop.permute.xlu0 %5878
    %5880 = vrot.lane.b32.xlu0 %v44, 62
    %v5881 = vpop.permute.xlu0 %5880
    %5882 = vrot.lane.b32.xlu0 %v27, 62
    %v5883 = vpop.permute.xlu0 %5882
    %5884 = vrot.lane.b32.xlu0 %v45, 62
    %v5885 = vpop.permute.xlu0 %5884
    %5886 = vrot.lane.b32.xlu0 %v28, 62
    %v5887 = vpop.permute.xlu0 %5886
    %5888 = vrot.lane.b32.xlu0 %v46, 62
    %v5889 = vpop.permute.xlu0 %5888
    %vm5890 = vcmask 506880
    %v5891 = vsel %vm5890, %v5859, %v5861
    %v5892 = vsel %vm5890, %v5861, %v5863
    %v5893 = vsel %vm5890, %v5863, %v5865
    %v5894 = vsel %vm5890, %v5865, %v5867
    %v5895 = vsel %vm5890, %v5867, %v5869
    %v5896 = vsel %vm5890, %v5869, %v5871
    %v5897 = vsel %vm5890, %v5871, %v5873
    %v5898 = vsel %vm5890, %v5873, %v5875
    %v5899 = vsel %vm5890, %v5875, %v5877
    %v5900 = vsel %vm5890, %v5877, %v5879
    %v5901 = vsel %vm5890, %v5879, %v5881
    %v5902 = vsel %vm5890, %v5881, %v5883
    %v5903 = vsel %vm5890, %v5883, %v5885
    %v5904 = vsel %vm5890, %v5885, %v5887
    %v5905 = vsel %vm5890, %v5887, %v5889
    %v5908 = vsel %vm5890, %v5889, %v5859
    %s5909 = scalar_lea.vmem %s1, 128
    %v5910 = vld [vmem:[%s5909] sm:$0xff]
    %v5911 = vld [vmem:[%s5909 + $0x8] sm:$0x3]
    %v5913 = vsel %vm101, %v5910, 0
    %v5916 = vsel %vm101, %v5911, 0
    %v5918 = vsel %vm108, %v5891, 0
    %v5920 = vsel %vm108, %v5892, 0
    %v5922 = vsel %vm108, %v5893, 0
    %v5924 = vsel %vm108, %v5894, 0
    %v5926 = vsel %vm108, %v5895, 0
    %v5928 = vsel %vm108, %v5896, 0
    %v5930 = vsel %vm108, %v5897, 0
    %v5932 = vsel %vm108, %v5898, 0
    %v5934 = vsel %vm108, %v5899, 0
    %v5936 = vsel %vm108, %v5900, 0
    %v5938 = vsel %vm108, %v5901, 0
    %v5940 = vsel %vm108, %v5902, 0
    %v5942 = vsel %vm108, %v5903, 0
    %v5944 = vsel %vm108, %v5904, 0
    %v5946 = vsel %vm108, %v5905, 0
    %v5949 = vsel %vm108, %v5908, 0
    %5951 = vmatprep.subr.mxu0 0.0
    %5952 = vmatpush1.msra.mxu0 0.0
    %5953 = vmatprep.subr.mxu0 0.0
    %5954 = vmatpush1.msra.mxu0 0.0
    %5955 = vmatprep.subr.mxu0 0.0
    %5956 = vmatpush1.msra.mxu0 0.0
    %5957 = vmatprep.subr.mxu0 0.0
    %5958 = vmatpush1.msra.mxu0 0.0
    %5959 = vmatprep.subr.mxu0 0.0
    %5960 = vmatpush1.msra.mxu0 0.0
    %5961 = vmatprep.subr.mxu0 0.0
    %5962 = vmatpush1.msra.mxu0 0.0
    %5963 = vmatprep.subr.mxu0 0.0
    %5964 = vmatpush1.msra.mxu0 0.0
    %5965 = vmatprep.subr.mxu0 0.0
    %5966 = vmatpush1.msra.mxu0 0.0
    %5967 = vmatprep.subr.mxu0 0.0
    %5968 = vmatpush1.msra.mxu0 0.0
    %5969 = vmatprep.subr.mxu0 0.0
    %5970 = vmatpush1.msra.mxu0 0.0
    %5971 = vmatprep.subr.mxu0 0.0
    %5972 = vmatpush1.msra.mxu0 0.0
    %5973 = vmatprep.subr.mxu0 0.0
    %5974 = vmatpush1.msra.mxu0 0.0
    %5975 = vmatprep.subr.mxu0 0.0
    %5976 = vmatpush1.msra.mxu0 0.0
    %5977 = vmatprep.subr.mxu0 0.0
    %5978 = vmatpush1.msra.mxu0 0.0
    %5979 = vmatprep.subr.mxu0 0.0
    %5980 = vmatpush1.msra.mxu0 0.0
    %5981 = vmatprep.subr.mxu0 %v5920
    %5982 = vmatpush1.msra.mxu0 %v5918
    %5983 = vmatprep.subr.mxu0 0.0
    %5984 = vmatpush2.msra.mxu0 0.0
    %5985 = vmatprep.subr.mxu0 0.0
    %5986 = vmatpush2.msra.mxu0 0.0
    %5987 = vmatprep.subr.mxu0 0.0
    %5988 = vmatpush2.msra.mxu0 0.0
    %5989 = vmatprep.subr.mxu0 0.0
    %5990 = vmatpush2.msra.mxu0 0.0
    %5991 = vmatprep.subr.mxu0 0.0
    %5992 = vmatpush2.msra.mxu0 0.0
    %5993 = vmatprep.subr.mxu0 0.0
    %5994 = vmatpush2.msra.mxu0 0.0
    %5995 = vmatprep.subr.mxu0 0.0
    %5996 = vmatpush2.msra.mxu0 0.0
    %5997 = vmatprep.subr.mxu0 0.0
    %5998 = vmatpush2.msra.mxu0 0.0
    %5999 = vmatprep.subr.mxu0 0.0
    %6000 = vmatpush2.msra.mxu0 0.0
    %6001 = vmatprep.subr.mxu0 0.0
    %6002 = vmatpush2.msra.mxu0 0.0
    %6003 = vmatprep.subr.mxu0 0.0
    %6004 = vmatpush2.msra.mxu0 0.0
    %6005 = vmatprep.subr.mxu0 0.0
    %6006 = vmatpush2.msra.mxu0 0.0
    %6007 = vmatprep.subr.mxu0 0.0
    %6008 = vmatpush2.msra.mxu0 0.0
    %6009 = vmatprep.subr.mxu0 0.0
    %6010 = vmatpush2.msra.mxu0 0.0
    %6011 = vmatprep.subr.mxu0 0.0
    %6012 = vmatpush2.msra.mxu0 0.0
    %6013 = vmatprep.subr.mxu0 0.0
    %6014 = vmatpush2.msra.mxu0 0.0
    %6015 = vmatprep.mubr.f32.mxu0 0.0
    %6016 = vmatmul.mubr.f32.gmra.mxu0 %v5913
    %v6017 = vpop.f32.mrf.mxu0
    %v6018 = vadd.f32 0.0, %v6017
    %v6019 = vpop.f32.mrf.mxu0
    %v6020 = vadd.f32 0.0, %v6019
    %6021 = vmatprep.mubr.f32.mxu0 0.0
    %6022 = vmatmul.mubr.f32.gmra.mxu0 %v5916
    %v6023 = vpop.f32.mrf.mxu0
    %v6024 = vadd.f32 0.0, %v6023
    %v6025 = vpop.f32.mrf.mxu0
    %v6026 = vadd.f32 0.0, %v6025
    %6027 = vdwg.mxu0
    %6028 = vmatprep.subr.mxu0 0.0
    %6029 = vmatpush1.msra.mxu0 0.0
    %6030 = vmatprep.subr.mxu0 0.0
    %6031 = vmatpush1.msra.mxu0 0.0
    %6032 = vmatprep.subr.mxu0 0.0
    %6033 = vmatpush1.msra.mxu0 0.0
    %6034 = vmatprep.subr.mxu0 0.0
    %6035 = vmatpush1.msra.mxu0 0.0
    %6036 = vmatprep.subr.mxu0 0.0
    %6037 = vmatpush1.msra.mxu0 0.0
    %6038 = vmatprep.subr.mxu0 0.0
    %6039 = vmatpush1.msra.mxu0 0.0
    %6040 = vmatprep.subr.mxu0 0.0
    %6041 = vmatpush1.msra.mxu0 0.0
    %6042 = vmatprep.subr.mxu0 0.0
    %6043 = vmatpush1.msra.mxu0 0.0
    %6044 = vmatprep.subr.mxu0 0.0
    %6045 = vmatpush1.msra.mxu0 0.0
    %6046 = vmatprep.subr.mxu0 0.0
    %6047 = vmatpush1.msra.mxu0 0.0
    %6048 = vmatprep.subr.mxu0 0.0
    %6049 = vmatpush1.msra.mxu0 0.0
    %6050 = vmatprep.subr.mxu0 0.0
    %6051 = vmatpush1.msra.mxu0 0.0
    %6052 = vmatprep.subr.mxu0 0.0
    %6053 = vmatpush1.msra.mxu0 0.0
    %6054 = vmatprep.subr.mxu0 0.0
    %6055 = vmatpush1.msra.mxu0 0.0
    %6056 = vmatprep.subr.mxu0 0.0
    %6057 = vmatpush1.msra.mxu0 0.0
    %6058 = vmatprep.subr.mxu0 %v5924
    %6059 = vmatpush1.msra.mxu0 %v5922
    %6060 = vmatprep.subr.mxu0 0.0
    %6061 = vmatpush2.msra.mxu0 0.0
    %6062 = vmatprep.subr.mxu0 0.0
    %6063 = vmatpush2.msra.mxu0 0.0
    %6064 = vmatprep.subr.mxu0 0.0
    %6065 = vmatpush2.msra.mxu0 0.0
    %6066 = vmatprep.subr.mxu0 0.0
    %6067 = vmatpush2.msra.mxu0 0.0
    %6068 = vmatprep.subr.mxu0 0.0
    %6069 = vmatpush2.msra.mxu0 0.0
    %6070 = vmatprep.subr.mxu0 0.0
    %6071 = vmatpush2.msra.mxu0 0.0
    %6072 = vmatprep.subr.mxu0 0.0
    %6073 = vmatpush2.msra.mxu0 0.0
    %6074 = vmatprep.subr.mxu0 0.0
    %6075 = vmatpush2.msra.mxu0 0.0
    %6076 = vmatprep.subr.mxu0 0.0
    %6077 = vmatpush2.msra.mxu0 0.0
    %6078 = vmatprep.subr.mxu0 0.0
    %6079 = vmatpush2.msra.mxu0 0.0
    %6080 = vmatprep.subr.mxu0 0.0
    %6081 = vmatpush2.msra.mxu0 0.0
    %6082 = vmatprep.subr.mxu0 0.0
    %6083 = vmatpush2.msra.mxu0 0.0
    %6084 = vmatprep.subr.mxu0 0.0
    %6085 = vmatpush2.msra.mxu0 0.0
    %6086 = vmatprep.subr.mxu0 0.0
    %6087 = vmatpush2.msra.mxu0 0.0
    %6088 = vmatprep.subr.mxu0 0.0
    %6089 = vmatpush2.msra.mxu0 0.0
    %6090 = vmatprep.subr.mxu0 0.0
    %6091 = vmatpush2.msra.mxu0 0.0
    %6092 = vmatprep.mubr.f32.mxu0 0.0
    %6093 = vmatmul.mubr.f32.gmra.mxu0 %v5913
    %v6094 = vpop.f32.mrf.mxu0
    %v6095 = vadd.f32 0.0, %v6094
    %v6096 = vpop.f32.mrf.mxu0
    %v6097 = vadd.f32 0.0, %v6096
    %6098 = vmatprep.mubr.f32.mxu0 0.0
    %6099 = vmatmul.mubr.f32.gmra.mxu0 %v5916
    %v6100 = vpop.f32.mrf.mxu0
    %v6101 = vadd.f32 0.0, %v6100
    %v6102 = vpop.f32.mrf.mxu0
    %v6103 = vadd.f32 0.0, %v6102
    %6104 = vdwg.mxu0
    %6105 = vmatprep.subr.mxu0 0.0
    %6106 = vmatpush1.msra.mxu0 0.0
    %6107 = vmatprep.subr.mxu0 0.0
    %6108 = vmatpush1.msra.mxu0 0.0
    %6109 = vmatprep.subr.mxu0 0.0
    %6110 = vmatpush1.msra.mxu0 0.0
    %6111 = vmatprep.subr.mxu0 0.0
    %6112 = vmatpush1.msra.mxu0 0.0
    %6113 = vmatprep.subr.mxu0 0.0
    %6114 = vmatpush1.msra.mxu0 0.0
    %6115 = vmatprep.subr.mxu0 0.0
    %6116 = vmatpush1.msra.mxu0 0.0
    %6117 = vmatprep.subr.mxu0 0.0
    %6118 = vmatpush1.msra.mxu0 0.0
    %6119 = vmatprep.subr.mxu0 0.0
    %6120 = vmatpush1.msra.mxu0 0.0
    %6121 = vmatprep.subr.mxu0 0.0
    %6122 = vmatpush1.msra.mxu0 0.0
    %6123 = vmatprep.subr.mxu0 0.0
    %6124 = vmatpush1.msra.mxu0 0.0
    %6125 = vmatprep.subr.mxu0 0.0
    %6126 = vmatpush1.msra.mxu0 0.0
    %6127 = vmatprep.subr.mxu0 0.0
    %6128 = vmatpush1.msra.mxu0 0.0
    %6129 = vmatprep.subr.mxu0 0.0
    %6130 = vmatpush1.msra.mxu0 0.0
    %6131 = vmatprep.subr.mxu0 0.0
    %6132 = vmatpush1.msra.mxu0 0.0
    %6133 = vmatprep.subr.mxu0 0.0
    %6134 = vmatpush1.msra.mxu0 0.0
    %6135 = vmatprep.subr.mxu0 %v5928
    %6136 = vmatpush1.msra.mxu0 %v5926
    %6137 = vmatprep.subr.mxu0 0.0
    %6138 = vmatpush2.msra.mxu0 0.0
    %6139 = vmatprep.subr.mxu0 0.0
    %6140 = vmatpush2.msra.mxu0 0.0
    %6141 = vmatprep.subr.mxu0 0.0
    %6142 = vmatpush2.msra.mxu0 0.0
    %6143 = vmatprep.subr.mxu0 0.0
    %6144 = vmatpush2.msra.mxu0 0.0
    %6145 = vmatprep.subr.mxu0 0.0
    %6146 = vmatpush2.msra.mxu0 0.0
    %6147 = vmatprep.subr.mxu0 0.0
    %6148 = vmatpush2.msra.mxu0 0.0
    %6149 = vmatprep.subr.mxu0 0.0
    %6150 = vmatpush2.msra.mxu0 0.0
    %6151 = vmatprep.subr.mxu0 0.0
    %6152 = vmatpush2.msra.mxu0 0.0
    %6153 = vmatprep.subr.mxu0 0.0
    %6154 = vmatpush2.msra.mxu0 0.0
    %6155 = vmatprep.subr.mxu0 0.0
    %6156 = vmatpush2.msra.mxu0 0.0
    %6157 = vmatprep.subr.mxu0 0.0
    %6158 = vmatpush2.msra.mxu0 0.0
    %6159 = vmatprep.subr.mxu0 0.0
    %6160 = vmatpush2.msra.mxu0 0.0
    %6161 = vmatprep.subr.mxu0 0.0
    %6162 = vmatpush2.msra.mxu0 0.0
    %6163 = vmatprep.subr.mxu0 0.0
    %6164 = vmatpush2.msra.mxu0 0.0
    %6165 = vmatprep.subr.mxu0 0.0
    %6166 = vmatpush2.msra.mxu0 0.0
    %6167 = vmatprep.subr.mxu0 0.0
    %6168 = vmatpush2.msra.mxu0 0.0
    %6169 = vmatprep.mubr.f32.mxu0 0.0
    %6170 = vmatmul.mubr.f32.gmra.mxu0 %v5913
    %v6171 = vpop.f32.mrf.mxu0
    %v6172 = vadd.f32 0.0, %v6171
    %v6173 = vpop.f32.mrf.mxu0
    %v6174 = vadd.f32 0.0, %v6173
    %6175 = vmatprep.mubr.f32.mxu0 0.0
    %6176 = vmatmul.mubr.f32.gmra.mxu0 %v5916
    %v6177 = vpop.f32.mrf.mxu0
    %v6178 = vadd.f32 0.0, %v6177
    %v6179 = vpop.f32.mrf.mxu0
    %v6180 = vadd.f32 0.0, %v6179
    %6181 = vdwg.mxu0
    %6182 = vmatprep.subr.mxu0 0.0
    %6183 = vmatpush1.msra.mxu0 0.0
    %6184 = vmatprep.subr.mxu0 0.0
    %6185 = vmatpush1.msra.mxu0 0.0
    %6186 = vmatprep.subr.mxu0 0.0
    %6187 = vmatpush1.msra.mxu0 0.0
    %6188 = vmatprep.subr.mxu0 0.0
    %6189 = vmatpush1.msra.mxu0 0.0
    %6190 = vmatprep.subr.mxu0 0.0
    %6191 = vmatpush1.msra.mxu0 0.0
    %6192 = vmatprep.subr.mxu0 0.0
    %6193 = vmatpush1.msra.mxu0 0.0
    %6194 = vmatprep.subr.mxu0 0.0
    %6195 = vmatpush1.msra.mxu0 0.0
    %6196 = vmatprep.subr.mxu0 0.0
    %6197 = vmatpush1.msra.mxu0 0.0
    %6198 = vmatprep.subr.mxu0 0.0
    %6199 = vmatpush1.msra.mxu0 0.0
    %6200 = vmatprep.subr.mxu0 0.0
    %6201 = vmatpush1.msra.mxu0 0.0
    %6202 = vmatprep.subr.mxu0 0.0
    %6203 = vmatpush1.msra.mxu0 0.0
    %6204 = vmatprep.subr.mxu0 0.0
    %6205 = vmatpush1.msra.mxu0 0.0
    %6206 = vmatprep.subr.mxu0 0.0
    %6207 = vmatpush1.msra.mxu0 0.0
    %6208 = vmatprep.subr.mxu0 0.0
    %6209 = vmatpush1.msra.mxu0 0.0
    %6210 = vmatprep.subr.mxu0 0.0
    %6211 = vmatpush1.msra.mxu0 0.0
    %6212 = vmatprep.subr.mxu0 %v5932
    %6213 = vmatpush1.msra.mxu0 %v5930
    %6214 = vmatprep.subr.mxu0 0.0
    %6215 = vmatpush2.msra.mxu0 0.0
    %6216 = vmatprep.subr.mxu0 0.0
    %6217 = vmatpush2.msra.mxu0 0.0
    %6218 = vmatprep.subr.mxu0 0.0
    %6219 = vmatpush2.msra.mxu0 0.0
    %6220 = vmatprep.subr.mxu0 0.0
    %6221 = vmatpush2.msra.mxu0 0.0
    %6222 = vmatprep.subr.mxu0 0.0
    %6223 = vmatpush2.msra.mxu0 0.0
    %6224 = vmatprep.subr.mxu0 0.0
    %6225 = vmatpush2.msra.mxu0 0.0
    %6226 = vmatprep.subr.mxu0 0.0
    %6227 = vmatpush2.msra.mxu0 0.0
    %6228 = vmatprep.subr.mxu0 0.0
    %6229 = vmatpush2.msra.mxu0 0.0
    %6230 = vmatprep.subr.mxu0 0.0
    %6231 = vmatpush2.msra.mxu0 0.0
    %6232 = vmatprep.subr.mxu0 0.0
    %6233 = vmatpush2.msra.mxu0 0.0
    %6234 = vmatprep.subr.mxu0 0.0
    %6235 = vmatpush2.msra.mxu0 0.0
    %6236 = vmatprep.subr.mxu0 0.0
    %6237 = vmatpush2.msra.mxu0 0.0
    %6238 = vmatprep.subr.mxu0 0.0
    %6239 = vmatpush2.msra.mxu0 0.0
    %6240 = vmatprep.subr.mxu0 0.0
    %6241 = vmatpush2.msra.mxu0 0.0
    %6242 = vmatprep.subr.mxu0 0.0
    %6243 = vmatpush2.msra.mxu0 0.0
    %6244 = vmatprep.subr.mxu0 0.0
    %6245 = vmatpush2.msra.mxu0 0.0
    %6246 = vmatprep.mubr.f32.mxu0 0.0
    %6247 = vmatmul.mubr.f32.gmra.mxu0 %v5913
    %v6248 = vpop.f32.mrf.mxu0
    %v6249 = vadd.f32 0.0, %v6248
    %v6250 = vpop.f32.mrf.mxu0
    %v6251 = vadd.f32 0.0, %v6250
    %6252 = vmatprep.mubr.f32.mxu0 0.0
    %6253 = vmatmul.mubr.f32.gmra.mxu0 %v5916
    %v6254 = vpop.f32.mrf.mxu0
    %v6255 = vadd.f32 0.0, %v6254
    %v6256 = vpop.f32.mrf.mxu0
    %v6257 = vadd.f32 0.0, %v6256
    %6258 = vdwg.mxu0
    %6259 = vmatprep.subr.mxu0 0.0
    %6260 = vmatpush1.msra.mxu0 0.0
    %6261 = vmatprep.subr.mxu0 0.0
    %6262 = vmatpush1.msra.mxu0 0.0
    %6263 = vmatprep.subr.mxu0 0.0
    %6264 = vmatpush1.msra.mxu0 0.0
    %6265 = vmatprep.subr.mxu0 0.0
    %6266 = vmatpush1.msra.mxu0 0.0
    %6267 = vmatprep.subr.mxu0 0.0
    %6268 = vmatpush1.msra.mxu0 0.0
    %6269 = vmatprep.subr.mxu0 0.0
    %6270 = vmatpush1.msra.mxu0 0.0
    %6271 = vmatprep.subr.mxu0 0.0
    %6272 = vmatpush1.msra.mxu0 0.0
    %6273 = vmatprep.subr.mxu0 0.0
    %6274 = vmatpush1.msra.mxu0 0.0
    %6275 = vmatprep.subr.mxu0 0.0
    %6276 = vmatpush1.msra.mxu0 0.0
    %6277 = vmatprep.subr.mxu0 0.0
    %6278 = vmatpush1.msra.mxu0 0.0
    %6279 = vmatprep.subr.mxu0 0.0
    %6280 = vmatpush1.msra.mxu0 0.0
    %6281 = vmatprep.subr.mxu0 0.0
    %6282 = vmatpush1.msra.mxu0 0.0
    %6283 = vmatprep.subr.mxu0 0.0
    %6284 = vmatpush1.msra.mxu0 0.0
    %6285 = vmatprep.subr.mxu0 0.0
    %6286 = vmatpush1.msra.mxu0 0.0
    %6287 = vmatprep.subr.mxu0 0.0
    %6288 = vmatpush1.msra.mxu0 0.0
    %6289 = vmatprep.subr.mxu0 %v5936
    %6290 = vmatpush1.msra.mxu0 %v5934
    %6291 = vmatprep.subr.mxu0 0.0
    %6292 = vmatpush2.msra.mxu0 0.0
    %6293 = vmatprep.subr.mxu0 0.0
    %6294 = vmatpush2.msra.mxu0 0.0
    %6295 = vmatprep.subr.mxu0 0.0
    %6296 = vmatpush2.msra.mxu0 0.0
    %6297 = vmatprep.subr.mxu0 0.0
    %6298 = vmatpush2.msra.mxu0 0.0
    %6299 = vmatprep.subr.mxu0 0.0
    %6300 = vmatpush2.msra.mxu0 0.0
    %6301 = vmatprep.subr.mxu0 0.0
    %6302 = vmatpush2.msra.mxu0 0.0
    %6303 = vmatprep.subr.mxu0 0.0
    %6304 = vmatpush2.msra.mxu0 0.0
    %6305 = vmatprep.subr.mxu0 0.0
    %6306 = vmatpush2.msra.mxu0 0.0
    %6307 = vmatprep.subr.mxu0 0.0
    %6308 = vmatpush2.msra.mxu0 0.0
    %6309 = vmatprep.subr.mxu0 0.0
    %6310 = vmatpush2.msra.mxu0 0.0
    %6311 = vmatprep.subr.mxu0 0.0
    %6312 = vmatpush2.msra.mxu0 0.0
    %6313 = vmatprep.subr.mxu0 0.0
    %6314 = vmatpush2.msra.mxu0 0.0
    %6315 = vmatprep.subr.mxu0 0.0
    %6316 = vmatpush2.msra.mxu0 0.0
    %6317 = vmatprep.subr.mxu0 0.0
    %6318 = vmatpush2.msra.mxu0 0.0
    %6319 = vmatprep.subr.mxu0 0.0
    %6320 = vmatpush2.msra.mxu0 0.0
    %6321 = vmatprep.subr.mxu0 0.0
    %6322 = vmatpush2.msra.mxu0 0.0
    %6323 = vmatprep.mubr.f32.mxu0 0.0
    %6324 = vmatmul.mubr.f32.gmra.mxu0 %v5913
    %v6325 = vpop.f32.mrf.mxu0
    %v6326 = vadd.f32 0.0, %v6325
    %v6327 = vpop.f32.mrf.mxu0
    %v6328 = vadd.f32 0.0, %v6327
    %6329 = vmatprep.mubr.f32.mxu0 0.0
    %6330 = vmatmul.mubr.f32.gmra.mxu0 %v5916
    %v6331 = vpop.f32.mrf.mxu0
    %v6332 = vadd.f32 0.0, %v6331
    %v6333 = vpop.f32.mrf.mxu0
    %v6334 = vadd.f32 0.0, %v6333
    %6335 = vdwg.mxu0
    %6336 = vmatprep.subr.mxu0 0.0
    %6337 = vmatpush1.msra.mxu0 0.0
    %6338 = vmatprep.subr.mxu0 0.0
    %6339 = vmatpush1.msra.mxu0 0.0
    %6340 = vmatprep.subr.mxu0 0.0
    %6341 = vmatpush1.msra.mxu0 0.0
    %6342 = vmatprep.subr.mxu0 0.0
    %6343 = vmatpush1.msra.mxu0 0.0
    %6344 = vmatprep.subr.mxu0 0.0
    %6345 = vmatpush1.msra.mxu0 0.0
    %6346 = vmatprep.subr.mxu0 0.0
    %6347 = vmatpush1.msra.mxu0 0.0
    %6348 = vmatprep.subr.mxu0 0.0
    %6349 = vmatpush1.msra.mxu0 0.0
    %6350 = vmatprep.subr.mxu0 0.0
    %6351 = vmatpush1.msra.mxu0 0.0
    %6352 = vmatprep.subr.mxu0 0.0
    %6353 = vmatpush1.msra.mxu0 0.0
    %6354 = vmatprep.subr.mxu0 0.0
    %6355 = vmatpush1.msra.mxu0 0.0
    %6356 = vmatprep.subr.mxu0 0.0
    %6357 = vmatpush1.msra.mxu0 0.0
    %6358 = vmatprep.subr.mxu0 0.0
    %6359 = vmatpush1.msra.mxu0 0.0
    %6360 = vmatprep.subr.mxu0 0.0
    %6361 = vmatpush1.msra.mxu0 0.0
    %6362 = vmatprep.subr.mxu0 0.0
    %6363 = vmatpush1.msra.mxu0 0.0
    %6364 = vmatprep.subr.mxu0 0.0
    %6365 = vmatpush1.msra.mxu0 0.0
    %6366 = vmatprep.subr.mxu0 %v5940
    %6367 = vmatpush1.msra.mxu0 %v5938
    %6368 = vmatprep.subr.mxu0 0.0
    %6369 = vmatpush2.msra.mxu0 0.0
    %6370 = vmatprep.subr.mxu0 0.0
    %6371 = vmatpush2.msra.mxu0 0.0
    %6372 = vmatprep.subr.mxu0 0.0
    %6373 = vmatpush2.msra.mxu0 0.0
    %6374 = vmatprep.subr.mxu0 0.0
    %6375 = vmatpush2.msra.mxu0 0.0
    %6376 = vmatprep.subr.mxu0 0.0
    %6377 = vmatpush2.msra.mxu0 0.0
    %6378 = vmatprep.subr.mxu0 0.0
    %6379 = vmatpush2.msra.mxu0 0.0
    %6380 = vmatprep.subr.mxu0 0.0
    %6381 = vmatpush2.msra.mxu0 0.0
    %6382 = vmatprep.subr.mxu0 0.0
    %6383 = vmatpush2.msra.mxu0 0.0
    %6384 = vmatprep.subr.mxu0 0.0
    %6385 = vmatpush2.msra.mxu0 0.0
    %6386 = vmatprep.subr.mxu0 0.0
    %6387 = vmatpush2.msra.mxu0 0.0
    %6388 = vmatprep.subr.mxu0 0.0
    %6389 = vmatpush2.msra.mxu0 0.0
    %6390 = vmatprep.subr.mxu0 0.0
    %6391 = vmatpush2.msra.mxu0 0.0
    %6392 = vmatprep.subr.mxu0 0.0
    %6393 = vmatpush2.msra.mxu0 0.0
    %6394 = vmatprep.subr.mxu0 0.0
    %6395 = vmatpush2.msra.mxu0 0.0
    %6396 = vmatprep.subr.mxu0 0.0
    %6397 = vmatpush2.msra.mxu0 0.0
    %6398 = vmatprep.subr.mxu0 0.0
    %6399 = vmatpush2.msra.mxu0 0.0
    %6400 = vmatprep.mubr.f32.mxu0 0.0
    %6401 = vmatmul.mubr.f32.gmra.mxu0 %v5913
    %v6402 = vpop.f32.mrf.mxu0
    %v6403 = vadd.f32 0.0, %v6402
    %v6404 = vpop.f32.mrf.mxu0
    %v6405 = vadd.f32 0.0, %v6404
    %6406 = vmatprep.mubr.f32.mxu0 0.0
    %6407 = vmatmul.mubr.f32.gmra.mxu0 %v5916
    %v6408 = vpop.f32.mrf.mxu0
    %v6409 = vadd.f32 0.0, %v6408
    %v6410 = vpop.f32.mrf.mxu0
    %v6411 = vadd.f32 0.0, %v6410
    %6412 = vdwg.mxu0
    %6413 = vmatprep.subr.mxu0 0.0
    %6414 = vmatpush1.msra.mxu0 0.0
    %6415 = vmatprep.subr.mxu0 0.0
    %6416 = vmatpush1.msra.mxu0 0.0
    %6417 = vmatprep.subr.mxu0 0.0
    %6418 = vmatpush1.msra.mxu0 0.0
    %6419 = vmatprep.subr.mxu0 0.0
    %6420 = vmatpush1.msra.mxu0 0.0
    %6421 = vmatprep.subr.mxu0 0.0
    %6422 = vmatpush1.msra.mxu0 0.0
    %6423 = vmatprep.subr.mxu0 0.0
    %6424 = vmatpush1.msra.mxu0 0.0
    %6425 = vmatprep.subr.mxu0 0.0
    %6426 = vmatpush1.msra.mxu0 0.0
    %6427 = vmatprep.subr.mxu0 0.0
    %6428 = vmatpush1.msra.mxu0 0.0
    %6429 = vmatprep.subr.mxu0 0.0
    %6430 = vmatpush1.msra.mxu0 0.0
    %6431 = vmatprep.subr.mxu0 0.0
    %6432 = vmatpush1.msra.mxu0 0.0
    %6433 = vmatprep.subr.mxu0 0.0
    %6434 = vmatpush1.msra.mxu0 0.0
    %6435 = vmatprep.subr.mxu0 0.0
    %6436 = vmatpush1.msra.mxu0 0.0
    %6437 = vmatprep.subr.mxu0 0.0
    %6438 = vmatpush1.msra.mxu0 0.0
    %6439 = vmatprep.subr.mxu0 0.0
    %6440 = vmatpush1.msra.mxu0 0.0
    %6441 = vmatprep.subr.mxu0 0.0
    %6442 = vmatpush1.msra.mxu0 0.0
    %6443 = vmatprep.subr.mxu0 %v5944
    %6444 = vmatpush1.msra.mxu0 %v5942
    %6445 = vmatprep.subr.mxu0 0.0
    %6446 = vmatpush2.msra.mxu0 0.0
    %6447 = vmatprep.subr.mxu0 0.0
    %6448 = vmatpush2.msra.mxu0 0.0
    %6449 = vmatprep.subr.mxu0 0.0
    %6450 = vmatpush2.msra.mxu0 0.0
    %6451 = vmatprep.subr.mxu0 0.0
    %6452 = vmatpush2.msra.mxu0 0.0
    %6453 = vmatprep.subr.mxu0 0.0
    %6454 = vmatpush2.msra.mxu0 0.0
    %6455 = vmatprep.subr.mxu0 0.0
    %6456 = vmatpush2.msra.mxu0 0.0
    %6457 = vmatprep.subr.mxu0 0.0
    %6458 = vmatpush2.msra.mxu0 0.0
    %6459 = vmatprep.subr.mxu0 0.0
    %6460 = vmatpush2.msra.mxu0 0.0
    %6461 = vmatprep.subr.mxu0 0.0
    %6462 = vmatpush2.msra.mxu0 0.0
    %6463 = vmatprep.subr.mxu0 0.0
    %6464 = vmatpush2.msra.mxu0 0.0
    %6465 = vmatprep.subr.mxu0 0.0
    %6466 = vmatpush2.msra.mxu0 0.0
    %6467 = vmatprep.subr.mxu0 0.0
    %6468 = vmatpush2.msra.mxu0 0.0
    %6469 = vmatprep.subr.mxu0 0.0
    %6470 = vmatpush2.msra.mxu0 0.0
    %6471 = vmatprep.subr.mxu0 0.0
    %6472 = vmatpush2.msra.mxu0 0.0
    %6473 = vmatprep.subr.mxu0 0.0
    %6474 = vmatpush2.msra.mxu0 0.0
    %6475 = vmatprep.subr.mxu0 0.0
    %6476 = vmatpush2.msra.mxu0 0.0
    %6477 = vmatprep.mubr.f32.mxu0 0.0
    %6478 = vmatmul.mubr.f32.gmra.mxu0 %v5913
    %v6479 = vpop.f32.mrf.mxu0
    %v6480 = vadd.f32 0.0, %v6479
    %v6481 = vpop.f32.mrf.mxu0
    %v6482 = vadd.f32 0.0, %v6481
    %6483 = vmatprep.mubr.f32.mxu0 0.0
    %6484 = vmatmul.mubr.f32.gmra.mxu0 %v5916
    %v6485 = vpop.f32.mrf.mxu0
    %v6486 = vadd.f32 0.0, %v6485
    %v6487 = vpop.f32.mrf.mxu0
    %v6488 = vadd.f32 0.0, %v6487
    %6489 = vdwg.mxu0
    %6490 = vmatprep.subr.mxu0 0.0
    %6491 = vmatpush1.msra.mxu0 0.0
    %6492 = vmatprep.subr.mxu0 0.0
    %6493 = vmatpush1.msra.mxu0 0.0
    %6494 = vmatprep.subr.mxu0 0.0
    %6495 = vmatpush1.msra.mxu0 0.0
    %6496 = vmatprep.subr.mxu0 0.0
    %6497 = vmatpush1.msra.mxu0 0.0
    %6498 = vmatprep.subr.mxu0 0.0
    %6499 = vmatpush1.msra.mxu0 0.0
    %6500 = vmatprep.subr.mxu0 0.0
    %6501 = vmatpush1.msra.mxu0 0.0
    %6502 = vmatprep.subr.mxu0 0.0
    %6503 = vmatpush1.msra.mxu0 0.0
    %6504 = vmatprep.subr.mxu0 0.0
    %6505 = vmatpush1.msra.mxu0 0.0
    %6506 = vmatprep.subr.mxu0 0.0
    %6507 = vmatpush1.msra.mxu0 0.0
    %6508 = vmatprep.subr.mxu0 0.0
    %6509 = vmatpush1.msra.mxu0 0.0
    %6510 = vmatprep.subr.mxu0 0.0
    %6511 = vmatpush1.msra.mxu0 0.0
    %6512 = vmatprep.subr.mxu0 0.0
    %6513 = vmatpush1.msra.mxu0 0.0
    %6514 = vmatprep.subr.mxu0 0.0
    %6515 = vmatpush1.msra.mxu0 0.0
    %6516 = vmatprep.subr.mxu0 0.0
    %6517 = vmatpush1.msra.mxu0 0.0
    %6518 = vmatprep.subr.mxu0 0.0
    %6519 = vmatpush1.msra.mxu0 0.0
    %6520 = vmatprep.subr.mxu0 %v5949
    %6521 = vmatpush1.msra.mxu0 %v5946
    %6522 = vmatprep.subr.mxu0 0.0
    %6523 = vmatpush2.msra.mxu0 0.0
    %6524 = vmatprep.subr.mxu0 0.0
    %6525 = vmatpush2.msra.mxu0 0.0
    %6526 = vmatprep.subr.mxu0 0.0
    %6527 = vmatpush2.msra.mxu0 0.0
    %6528 = vmatprep.subr.mxu0 0.0
    %6529 = vmatpush2.msra.mxu0 0.0
    %6530 = vmatprep.subr.mxu0 0.0
    %6531 = vmatpush2.msra.mxu0 0.0
    %6532 = vmatprep.subr.mxu0 0.0
    %6533 = vmatpush2.msra.mxu0 0.0
    %6534 = vmatprep.subr.mxu0 0.0
    %6535 = vmatpush2.msra.mxu0 0.0
    %6536 = vmatprep.subr.mxu0 0.0
    %6537 = vmatpush2.msra.mxu0 0.0
    %6538 = vmatprep.subr.mxu0 0.0
    %6539 = vmatpush2.msra.mxu0 0.0
    %6540 = vmatprep.subr.mxu0 0.0
    %6541 = vmatpush2.msra.mxu0 0.0
    %6542 = vmatprep.subr.mxu0 0.0
    %6543 = vmatpush2.msra.mxu0 0.0
    %6544 = vmatprep.subr.mxu0 0.0
    %6545 = vmatpush2.msra.mxu0 0.0
    %6546 = vmatprep.subr.mxu0 0.0
    %6547 = vmatpush2.msra.mxu0 0.0
    %6548 = vmatprep.subr.mxu0 0.0
    %6549 = vmatpush2.msra.mxu0 0.0
    %6550 = vmatprep.subr.mxu0 0.0
    %6551 = vmatpush2.msra.mxu0 0.0
    %6552 = vmatprep.subr.mxu0 0.0
    %6553 = vmatpush2.msra.mxu0 0.0
    %6554 = vmatprep.mubr.f32.mxu0 0.0
    %6555 = vmatmul.mubr.f32.gmra.mxu0 %v5913
    %v6556 = vpop.f32.mrf.mxu0
    %v6557 = vadd.f32 0.0, %v6556
    %v6558 = vpop.f32.mrf.mxu0
    %v6559 = vadd.f32 0.0, %v6558
    %6560 = vmatprep.mubr.f32.mxu0 0.0
    %6561 = vmatmul.mubr.f32.gmra.mxu0 %v5916
    %v6562 = vpop.f32.mrf.mxu0
    %v6563 = vadd.f32 0.0, %v6562
    %v6564 = vpop.f32.mrf.mxu0
    %v6565 = vadd.f32 0.0, %v6564
    %6566 = vdwg.mxu0
    %v6567 = vadd.f32 %v5826, %v6018
    %v6568 = vadd.f32 %v5827, %v6020
    %v6569 = vadd.f32 %v5828, %v6095
    %v6570 = vadd.f32 %v5829, %v6097
    %v6571 = vadd.f32 %v5830, %v6172
    %v6572 = vadd.f32 %v5831, %v6174
    %v6573 = vadd.f32 %v5832, %v6249
    %v6574 = vadd.f32 %v5833, %v6251
    %v6575 = vadd.f32 %v5834, %v6326
    %v6576 = vadd.f32 %v5835, %v6328
    %v6577 = vadd.f32 %v5836, %v6403
    %v6578 = vadd.f32 %v5837, %v6405
    %v6579 = vadd.f32 %v5838, %v6480
    %v6580 = vadd.f32 %v5839, %v6482
    %v6581 = vadd.f32 %v5840, %v6557
    %v6582 = vadd.f32 %v5841, %v6559
    %v6583 = vadd.f32 %v5842, %v6024
    %v6584 = vadd.f32 %v5843, %v6026
    %v6585 = vadd.f32 %v5844, %v6101
    %v6586 = vadd.f32 %v5845, %v6103
    %v6587 = vadd.f32 %v5846, %v6178
    %v6588 = vadd.f32 %v5847, %v6180
    %v6589 = vadd.f32 %v5848, %v6255
    %v6590 = vadd.f32 %v5849, %v6257
    %v6591 = vadd.f32 %v5850, %v6332
    %v6592 = vadd.f32 %v5851, %v6334
    %v6593 = vadd.f32 %v5852, %v6409
    %v6594 = vadd.f32 %v5853, %v6411
    %v6595 = vadd.f32 %v5854, %v6486
    %v6596 = vadd.f32 %v5855, %v6488
    %v6597 = vadd.f32 %v5856, %v6563
    %v6598 = vadd.f32 %v5857, %v6565
    %v6599 = vld [vmem:[%s2] sm:$0xff]
    %v6600 = vld [vmem:[%s2 + $0x8] sm:$0x3]
    %6602 = vset.pattern.permute.xlu0 0
    %6603 = vperm.xlu0 %6602, %v6599
    %v6604 = vpop.permute.xlu0 %6603
    %6607 = vset.pattern.permute.xlu0 0
    %6608 = vperm.xlu0 %6607, %v6600
    %v6609 = vpop.permute.xlu0 %6608
    %v6611 = vadd.f32 %v6567, %v6604
    %v6612 = vadd.f32 %v6568, %v6604
    %v6613 = vadd.f32 %v6569, %v6604
    %v6614 = vadd.f32 %v6570, %v6604
    %v6615 = vadd.f32 %v6571, %v6604
    %v6616 = vadd.f32 %v6572, %v6604
    %v6617 = vadd.f32 %v6573, %v6604
    %v6618 = vadd.f32 %v6574, %v6604
    %v6619 = vadd.f32 %v6575, %v6604
    %v6620 = vadd.f32 %v6576, %v6604
    %v6621 = vadd.f32 %v6577, %v6604
    %v6622 = vadd.f32 %v6578, %v6604
    %v6623 = vadd.f32 %v6579, %v6604
    %v6624 = vadd.f32 %v6580, %v6604
    %v6625 = vadd.f32 %v6581, %v6604
    %v6626 = vadd.f32 %v6582, %v6604
    %v6627 = vadd.f32 %v6583, %v6609
    %v6628 = vadd.f32 %v6584, %v6609
    %v6629 = vadd.f32 %v6585, %v6609
    %v6630 = vadd.f32 %v6586, %v6609
    %v6631 = vadd.f32 %v6587, %v6609
    %v6632 = vadd.f32 %v6588, %v6609
    %v6633 = vadd.f32 %v6589, %v6609
    %v6634 = vadd.f32 %v6590, %v6609
    %v6635 = vadd.f32 %v6591, %v6609
    %v6636 = vadd.f32 %v6592, %v6609
    %v6637 = vadd.f32 %v6593, %v6609
    %v6638 = vadd.f32 %v6594, %v6609
    %v6639 = vadd.f32 %v6595, %v6609
    %v6640 = vadd.f32 %v6596, %v6609
    %v6641 = vadd.f32 %v6597, %v6609
    %v6642 = vadd.f32 %v6598, %v6609
    %v6643 = vmax.f32 %v6611, 0.0
    %v6644 = vmax.f32 %v6612, 0.0
    %v6645 = vmax.f32 %v6613, 0.0
    %v6646 = vmax.f32 %v6614, 0.0
    %v6647 = vmax.f32 %v6615, 0.0
    %v6648 = vmax.f32 %v6616, 0.0
    %v6649 = vmax.f32 %v6617, 0.0
    %v6650 = vmax.f32 %v6618, 0.0
    %v6651 = vmax.f32 %v6619, 0.0
    %v6652 = vmax.f32 %v6620, 0.0
    %v6653 = vmax.f32 %v6621, 0.0
    %v6654 = vmax.f32 %v6622, 0.0
    %v6655 = vmax.f32 %v6623, 0.0
    %v6656 = vmax.f32 %v6624, 0.0
    %v6657 = vmax.f32 %v6625, 0.0
    %v6658 = vmax.f32 %v6626, 0.0
    %v6659 = vmax.f32 %v6627, 0.0
    %v6660 = vmax.f32 %v6628, 0.0
    %v6661 = vmax.f32 %v6629, 0.0
    %v6662 = vmax.f32 %v6630, 0.0
    %v6663 = vmax.f32 %v6631, 0.0
    %v6664 = vmax.f32 %v6632, 0.0
    %v6665 = vmax.f32 %v6633, 0.0
    %v6666 = vmax.f32 %v6634, 0.0
    %v6667 = vmax.f32 %v6635, 0.0
    %v6668 = vmax.f32 %v6636, 0.0
    %v6669 = vmax.f32 %v6637, 0.0
    %v6670 = vmax.f32 %v6638, 0.0
    %v6671 = vmax.f32 %v6639, 0.0
    %v6672 = vmax.f32 %v6640, 0.0
    %v6673 = vmax.f32 %v6641, 0.0
    %v6674 = vmax.f32 %v6642, 0.0
    %6707 = vrot.lane.b32.xlu0 %v6643, 127
    %v6708 = vpop.permute.xlu0 %6707
    %6709 = vrot.lane.b32.xlu0 %v6644, 127
    %v6710 = vpop.permute.xlu0 %6709
    %6711 = vrot.lane.b32.xlu0 %v6645, 127
    %v6712 = vpop.permute.xlu0 %6711
    %6713 = vrot.lane.b32.xlu0 %v6646, 127
    %v6714 = vpop.permute.xlu0 %6713
    %6715 = vrot.lane.b32.xlu0 %v6647, 127
    %v6716 = vpop.permute.xlu0 %6715
    %6717 = vrot.lane.b32.xlu0 %v6648, 127
    %v6718 = vpop.permute.xlu0 %6717
    %6719 = vrot.lane.b32.xlu0 %v6649, 127
    %v6720 = vpop.permute.xlu0 %6719
    %6721 = vrot.lane.b32.xlu0 %v6650, 127
    %v6722 = vpop.permute.xlu0 %6721
    %6723 = vrot.lane.b32.xlu0 %v6651, 127
    %v6724 = vpop.permute.xlu0 %6723
    %6725 = vrot.lane.b32.xlu0 %v6652, 127
    %v6726 = vpop.permute.xlu0 %6725
    %6727 = vrot.lane.b32.xlu0 %v6653, 127
    %v6728 = vpop.permute.xlu0 %6727
    %6729 = vrot.lane.b32.xlu0 %v6654, 127
    %v6730 = vpop.permute.xlu0 %6729
    %6731 = vrot.lane.b32.xlu0 %v6655, 127
    %v6732 = vpop.permute.xlu0 %6731
    %6733 = vrot.lane.b32.xlu0 %v6656, 127
    %v6734 = vpop.permute.xlu0 %6733
    %6735 = vrot.lane.b32.xlu0 %v6657, 127
    %v6736 = vpop.permute.xlu0 %6735
    %6737 = vrot.lane.b32.xlu0 %v6658, 127
    %v6738 = vpop.permute.xlu0 %6737
    %6739 = vrot.lane.b32.xlu0 %v6659, 127
    %v6740 = vpop.permute.xlu0 %6739
    %6741 = vrot.lane.b32.xlu0 %v6660, 127
    %v6742 = vpop.permute.xlu0 %6741
    %6743 = vrot.lane.b32.xlu0 %v6661, 127
    %v6744 = vpop.permute.xlu0 %6743
    %6745 = vrot.lane.b32.xlu0 %v6662, 127
    %v6746 = vpop.permute.xlu0 %6745
    %6747 = vrot.lane.b32.xlu0 %v6663, 127
    %v6748 = vpop.permute.xlu0 %6747
    %6749 = vrot.lane.b32.xlu0 %v6664, 127
    %v6750 = vpop.permute.xlu0 %6749
    %6751 = vrot.lane.b32.xlu0 %v6665, 127
    %v6752 = vpop.permute.xlu0 %6751
    %6753 = vrot.lane.b32.xlu0 %v6666, 127
    %v6754 = vpop.permute.xlu0 %6753
    %6755 = vrot.lane.b32.xlu0 %v6667, 127
    %v6756 = vpop.permute.xlu0 %6755
    %6757 = vrot.lane.b32.xlu0 %v6668, 127
    %v6758 = vpop.permute.xlu0 %6757
    %6759 = vrot.lane.b32.xlu0 %v6669, 127
    %v6760 = vpop.permute.xlu0 %6759
    %6761 = vrot.lane.b32.xlu0 %v6670, 127
    %v6762 = vpop.permute.xlu0 %6761
    %6763 = vrot.lane.b32.xlu0 %v6671, 127
    %v6764 = vpop.permute.xlu0 %6763
    %6765 = vrot.lane.b32.xlu0 %v6672, 127
    %v6766 = vpop.permute.xlu0 %6765
    %6767 = vrot.lane.b32.xlu0 %v6673, 127
    %v6768 = vpop.permute.xlu0 %6767
    %6769 = vrot.lane.b32.xlu0 %v6674, 127
    %v6770 = vpop.permute.xlu0 %6769
    %v6771 = vsel %vm79, %v6708, %v6710
    %v6772 = vsel %vm79, %v6710, %v6712
    %v6773 = vsel %vm79, %v6712, %v6714
    %v6774 = vsel %vm79, %v6714, %v6716
    %v6775 = vsel %vm79, %v6716, %v6718
    %v6776 = vsel %vm79, %v6718, %v6720
    %v6777 = vsel %vm79, %v6720, %v6722
    %v6778 = vsel %vm79, %v6722, %v6724
    %v6779 = vsel %vm79, %v6724, %v6726
    %v6780 = vsel %vm79, %v6726, %v6728
    %v6781 = vsel %vm79, %v6728, %v6730
    %v6782 = vsel %vm79, %v6730, %v6732
    %v6783 = vsel %vm79, %v6732, %v6734
    %v6784 = vsel %vm79, %v6734, %v6736
    %v6785 = vsel %vm79, %v6736, %v6738
    %v6786 = vsel %vm79, %v6740, %v6742
    %v6787 = vsel %vm79, %v6742, %v6744
    %v6788 = vsel %vm79, %v6744, %v6746
    %v6789 = vsel %vm79, %v6746, %v6748
    %v6790 = vsel %vm79, %v6748, %v6750
    %v6791 = vsel %vm79, %v6750, %v6752
    %v6792 = vsel %vm79, %v6752, %v6754
    %v6793 = vsel %vm79, %v6754, %v6756
    %v6794 = vsel %vm79, %v6756, %v6758
    %v6795 = vsel %vm79, %v6758, %v6760
    %v6796 = vsel %vm79, %v6760, %v6762
    %v6797 = vsel %vm79, %v6762, %v6764
    %v6798 = vsel %vm79, %v6764, %v6766
    %v6799 = vsel %vm79, %v6766, %v6768
    %v6800 = vsel %vm79, %v6768, %v6770
    %v6835 = vsel %vm79, %v6738, %v6708
    %v6836 = vsel %vm79, %v6770, %v6740
    %v6837 = vmax.f32 %v6643, %v6771
    %v6838 = vmax.f32 %v6644, %v6772
    %v6839 = vmax.f32 %v6645, %v6773
    %v6840 = vmax.f32 %v6646, %v6774
    %v6841 = vmax.f32 %v6647, %v6775
    %v6842 = vmax.f32 %v6648, %v6776
    %v6843 = vmax.f32 %v6649, %v6777
    %v6844 = vmax.f32 %v6650, %v6778
    %v6845 = vmax.f32 %v6651, %v6779
    %v6846 = vmax.f32 %v6652, %v6780
    %v6847 = vmax.f32 %v6653, %v6781
    %v6848 = vmax.f32 %v6654, %v6782
    %v6849 = vmax.f32 %v6655, %v6783
    %v6850 = vmax.f32 %v6656, %v6784
    %v6851 = vmax.f32 %v6657, %v6785
    %v6852 = vmax.f32 %v6658, %v6835
    %v6853 = vmax.f32 %v6659, %v6786
    %v6854 = vmax.f32 %v6660, %v6787
    %v6855 = vmax.f32 %v6661, %v6788
    %v6856 = vmax.f32 %v6662, %v6789
    %v6857 = vmax.f32 %v6663, %v6790
    %v6858 = vmax.f32 %v6664, %v6791
    %v6859 = vmax.f32 %v6665, %v6792
    %v6860 = vmax.f32 %v6666, %v6793
    %v6861 = vmax.f32 %v6667, %v6794
    %v6862 = vmax.f32 %v6668, %v6795
    %v6863 = vmax.f32 %v6669, %v6796
    %v6864 = vmax.f32 %v6670, %v6797
    %v6865 = vmax.f32 %v6671, %v6798
    %v6866 = vmax.f32 %v6672, %v6799
    %v6867 = vmax.f32 %v6673, %v6800
    %v6868 = vmax.f32 %v6674, %v6836
    %6901 = vrot.lane.b32.xlu0 %v6837, 96
    %v6902 = vpop.permute.xlu0 %6901
    %6903 = vrot.lane.b32.xlu0 %v6838, 96
    %v6904 = vpop.permute.xlu0 %6903
    %6905 = vrot.lane.b32.xlu0 %v6839, 96
    %v6906 = vpop.permute.xlu0 %6905
    %6907 = vrot.lane.b32.xlu0 %v6840, 96
    %v6908 = vpop.permute.xlu0 %6907
    %6909 = vrot.lane.b32.xlu0 %v6841, 96
    %v6910 = vpop.permute.xlu0 %6909
    %6911 = vrot.lane.b32.xlu0 %v6842, 96
    %v6912 = vpop.permute.xlu0 %6911
    %6913 = vrot.lane.b32.xlu0 %v6843, 96
    %v6914 = vpop.permute.xlu0 %6913
    %6915 = vrot.lane.b32.xlu0 %v6844, 96
    %v6916 = vpop.permute.xlu0 %6915
    %6917 = vrot.lane.b32.xlu0 %v6845, 96
    %v6918 = vpop.permute.xlu0 %6917
    %6919 = vrot.lane.b32.xlu0 %v6846, 96
    %v6920 = vpop.permute.xlu0 %6919
    %6921 = vrot.lane.b32.xlu0 %v6847, 96
    %v6922 = vpop.permute.xlu0 %6921
    %6923 = vrot.lane.b32.xlu0 %v6848, 96
    %v6924 = vpop.permute.xlu0 %6923
    %6925 = vrot.lane.b32.xlu0 %v6849, 96
    %v6926 = vpop.permute.xlu0 %6925
    %6927 = vrot.lane.b32.xlu0 %v6850, 96
    %v6928 = vpop.permute.xlu0 %6927
    %6929 = vrot.lane.b32.xlu0 %v6851, 96
    %v6930 = vpop.permute.xlu0 %6929
    %6931 = vrot.lane.b32.xlu0 %v6852, 96
    %v6932 = vpop.permute.xlu0 %6931
    %6933 = vrot.lane.b32.xlu0 %v6853, 96
    %v6934 = vpop.permute.xlu0 %6933
    %6935 = vrot.lane.b32.xlu0 %v6854, 96
    %v6936 = vpop.permute.xlu0 %6935
    %6937 = vrot.lane.b32.xlu0 %v6855, 96
    %v6938 = vpop.permute.xlu0 %6937
    %6939 = vrot.lane.b32.xlu0 %v6856, 96
    %v6940 = vpop.permute.xlu0 %6939
    %6941 = vrot.lane.b32.xlu0 %v6857, 96
    %v6942 = vpop.permute.xlu0 %6941
    %6943 = vrot.lane.b32.xlu0 %v6858, 96
    %v6944 = vpop.permute.xlu0 %6943
    %6945 = vrot.lane.b32.xlu0 %v6859, 96
    %v6946 = vpop.permute.xlu0 %6945
    %6947 = vrot.lane.b32.xlu0 %v6860, 96
    %v6948 = vpop.permute.xlu0 %6947
    %6949 = vrot.lane.b32.xlu0 %v6861, 96
    %v6950 = vpop.permute.xlu0 %6949
    %6951 = vrot.lane.b32.xlu0 %v6862, 96
    %v6952 = vpop.permute.xlu0 %6951
    %6953 = vrot.lane.b32.xlu0 %v6863, 96
    %v6954 = vpop.permute.xlu0 %6953
    %6955 = vrot.lane.b32.xlu0 %v6864, 96
    %v6956 = vpop.permute.xlu0 %6955
    %6957 = vrot.lane.b32.xlu0 %v6865, 96
    %v6958 = vpop.permute.xlu0 %6957
    %6959 = vrot.lane.b32.xlu0 %v6866, 96
    %v6960 = vpop.permute.xlu0 %6959
    %6961 = vrot.lane.b32.xlu0 %v6867, 96
    %v6962 = vpop.permute.xlu0 %6961
    %6963 = vrot.lane.b32.xlu0 %v6868, 96
    %v6964 = vpop.permute.xlu0 %6963
    %v6965 = vsel %vm2185, %v6902, %v6904
    %v6966 = vsel %vm2185, %v6904, %v6906
    %v6967 = vsel %vm2185, %v6906, %v6908
    %v6968 = vsel %vm2185, %v6908, %v6910
    %v6969 = vsel %vm2185, %v6910, %v6912
    %v6970 = vsel %vm2185, %v6912, %v6914
    %v6971 = vsel %vm2185, %v6914, %v6916
    %v6972 = vsel %vm2185, %v6916, %v6918
    %v6973 = vsel %vm2185, %v6918, %v6920
    %v6974 = vsel %vm2185, %v6920, %v6922
    %v6975 = vsel %vm2185, %v6922, %v6924
    %v6976 = vsel %vm2185, %v6924, %v6926
    %v6977 = vsel %vm2185, %v6926, %v6928
    %v6978 = vsel %vm2185, %v6928, %v6930
    %v6979 = vsel %vm2185, %v6930, %v6932
    %v6980 = vsel %vm2185, %v6934, %v6936
    %v6981 = vsel %vm2185, %v6936, %v6938
    %v6982 = vsel %vm2185, %v6938, %v6940
    %v6983 = vsel %vm2185, %v6940, %v6942
    %v6984 = vsel %vm2185, %v6942, %v6944
    %v6985 = vsel %vm2185, %v6944, %v6946
    %v6986 = vsel %vm2185, %v6946, %v6948
    %v6987 = vsel %vm2185, %v6948, %v6950
    %v6988 = vsel %vm2185, %v6950, %v6952
    %v6989 = vsel %vm2185, %v6952, %v6954
    %v6990 = vsel %vm2185, %v6954, %v6956
    %v6991 = vsel %vm2185, %v6956, %v6958
    %v6992 = vsel %vm2185, %v6958, %v6960
    %v6993 = vsel %vm2185, %v6960, %v6962
    %v6994 = vsel %vm2185, %v6962, %v6964
    %v7029 = vsel %vm2185, %v6932, %v6902
    %v7030 = vsel %vm2185, %v6964, %v6934
    %v7031 = vmax.f32 %v6837, %v6965
    %v7032 = vmax.f32 %v6838, %v6966
    %v7033 = vmax.f32 %v6839, %v6967
    %v7034 = vmax.f32 %v6840, %v6968
    %v7035 = vmax.f32 %v6841, %v6969
    %v7036 = vmax.f32 %v6842, %v6970
    %v7037 = vmax.f32 %v6843, %v6971
    %v7038 = vmax.f32 %v6844, %v6972
    %v7039 = vmax.f32 %v6845, %v6973
    %v7040 = vmax.f32 %v6846, %v6974
    %v7041 = vmax.f32 %v6847, %v6975
    %v7042 = vmax.f32 %v6848, %v6976
    %v7043 = vmax.f32 %v6849, %v6977
    %v7044 = vmax.f32 %v6850, %v6978
    %v7045 = vmax.f32 %v6851, %v6979
    %v7046 = vmax.f32 %v6852, %v7029
    %v7047 = vmax.f32 %v6853, %v6980
    %v7048 = vmax.f32 %v6854, %v6981
    %v7049 = vmax.f32 %v6855, %v6982
    %v7050 = vmax.f32 %v6856, %v6983
    %v7051 = vmax.f32 %v6857, %v6984
    %v7052 = vmax.f32 %v6858, %v6985
    %v7053 = vmax.f32 %v6859, %v6986
    %v7054 = vmax.f32 %v6860, %v6987
    %v7055 = vmax.f32 %v6861, %v6988
    %v7056 = vmax.f32 %v6862, %v6989
    %v7057 = vmax.f32 %v6863, %v6990
    %v7058 = vmax.f32 %v6864, %v6991
    %v7059 = vmax.f32 %v6865, %v6992
    %v7060 = vmax.f32 %v6866, %v6993
    %v7061 = vmax.f32 %v6867, %v6994
    %v7062 = vmax.f32 %v6868, %v7030
    %v7095 = vcombine.low %v7031, %v7032
    %v7096 = vcombine.high %v7031, %v7032
    %v7097 = vcombine.low %v7033, %v7034
    %v7098 = vcombine.high %v7033, %v7034
    %v7100 = vunpack.c.l.s4 1983009808
    %v7101 = vunpack.c.0.s8 %v7100
    %v7102 = vlaneseq
    %v7103 = vshrl.u32 %v7102, 7
    %v7104 = vsub.s32 %v7101, %v7103
    %v7105 = vrot.slane %v7095, %v7104
    %v7107 = vunpack.c.l.s4 1983009808
    %v7108 = vunpack.c.0.s8 %v7107
    %v7109 = vlaneseq
    %v7110 = vshrl.u32 %v7109, 7
    %v7111 = vsub.s32 %v7108, %v7110
    %v7112 = vrot.slane %v7096, %v7111
    %v7114 = vunpack.c.l.s4 1983009808
    %v7115 = vunpack.c.0.s8 %v7114
    %v7116 = vlaneseq
    %v7117 = vshrl.u32 %v7116, 7
    %v7118 = vsub.s32 %v7115, %v7117
    %v7119 = vrot.slane %v7097, %v7118
    %v7121 = vunpack.c.l.s4 1983009808
    %v7122 = vunpack.c.0.s8 %v7121
    %v7123 = vlaneseq
    %v7124 = vshrl.u32 %v7123, 7
    %v7125 = vsub.s32 %v7122, %v7124
    %v7126 = vrot.slane %v7098, %v7125
    %v7127 = vcombine.low %v7105, %v7119
    %v7128 = vcombine.high %v7105, %v7119
    %v7129 = vcombine.low %v7112, %v7126
    %v7130 = vcombine.high %v7112, %v7126
    %v7131 = vcombine.low %v7035, %v7036
    %v7132 = vcombine.high %v7035, %v7036
    %v7133 = vcombine.low %v7037, %v7038
    %v7134 = vcombine.high %v7037, %v7038
    %v7136 = vunpack.c.l.s4 1983009808
    %v7137 = vunpack.c.0.s8 %v7136
    %v7138 = vlaneseq
    %v7139 = vshrl.u32 %v7138, 7
    %v7140 = vsub.s32 %v7137, %v7139
    %v7141 = vrot.slane %v7131, %v7140
    %v7143 = vunpack.c.l.s4 1983009808
    %v7144 = vunpack.c.0.s8 %v7143
    %v7145 = vlaneseq
    %v7146 = vshrl.u32 %v7145, 7
    %v7147 = vsub.s32 %v7144, %v7146
    %v7148 = vrot.slane %v7132, %v7147
    %v7150 = vunpack.c.l.s4 1983009808
    %v7151 = vunpack.c.0.s8 %v7150
    %v7152 = vlaneseq
    %v7153 = vshrl.u32 %v7152, 7
    %v7154 = vsub.s32 %v7151, %v7153
    %v7155 = vrot.slane %v7133, %v7154
    %v7157 = vunpack.c.l.s4 1983009808
    %v7158 = vunpack.c.0.s8 %v7157
    %v7159 = vlaneseq
    %v7160 = vshrl.u32 %v7159, 7
    %v7161 = vsub.s32 %v7158, %v7160
    %v7162 = vrot.slane %v7134, %v7161
    %v7163 = vcombine.low %v7141, %v7155
    %v7164 = vcombine.high %v7141, %v7155
    %v7165 = vcombine.low %v7148, %v7162
    %v7166 = vcombine.high %v7148, %v7162
    %v7167 = vcombine.low %v7047, %v7048
    %v7168 = vcombine.low %v7049, %v7050
    %v7170 = vunpack.c.l.s4 1983009808
    %v7171 = vunpack.c.0.s8 %v7170
    %v7172 = vlaneseq
    %v7173 = vshrl.u32 %v7172, 7
    %v7174 = vsub.s32 %v7171, %v7173
    %v7175 = vrot.slane %v7167, %v7174
    %v7177 = vunpack.c.l.s4 1983009808
    %v7178 = vunpack.c.0.s8 %v7177
    %v7179 = vlaneseq
    %v7180 = vshrl.u32 %v7179, 7
    %v7181 = vsub.s32 %v7178, %v7180
    %v7182 = vrot.slane %v7168, %v7181
    %v7183 = vcombine.low %v7175, %v7182
    %v7184 = vcombine.low %v7051, %v7052
    %v7185 = vcombine.low %v7053, %v7054
    %v7187 = vunpack.c.l.s4 1983009808
    %v7188 = vunpack.c.0.s8 %v7187
    %v7189 = vlaneseq
    %v7190 = vshrl.u32 %v7189, 7
    %v7191 = vsub.s32 %v7188, %v7190
    %v7192 = vrot.slane %v7184, %v7191
    %v7194 = vunpack.c.l.s4 1983009808
    %v7195 = vunpack.c.0.s8 %v7194
    %v7196 = vlaneseq
    %v7197 = vshrl.u32 %v7196, 7
    %v7198 = vsub.s32 %v7195, %v7197
    %v7199 = vrot.slane %v7185, %v7198
    %v7200 = vcombine.low %v7192, %v7199
    %v7201 = vcombine.low %v7039, %v7040
    %v7202 = vcombine.high %v7039, %v7040
    %v7203 = vcombine.low %v7041, %v7042
    %v7204 = vcombine.high %v7041, %v7042
    %v7206 = vunpack.c.l.s4 1983009808
    %v7207 = vunpack.c.0.s8 %v7206
    %v7208 = vlaneseq
    %v7209 = vshrl.u32 %v7208, 7
    %v7210 = vsub.s32 %v7207, %v7209
    %v7211 = vrot.slane %v7201, %v7210
    %v7213 = vunpack.c.l.s4 1983009808
    %v7214 = vunpack.c.0.s8 %v7213
    %v7215 = vlaneseq
    %v7216 = vshrl.u32 %v7215, 7
    %v7217 = vsub.s32 %v7214, %v7216
    %v7218 = vrot.slane %v7202, %v7217
    %v7220 = vunpack.c.l.s4 1983009808
    %v7221 = vunpack.c.0.s8 %v7220
    %v7222 = vlaneseq
    %v7223 = vshrl.u32 %v7222, 7
    %v7224 = vsub.s32 %v7221, %v7223
    %v7225 = vrot.slane %v7203, %v7224
    %v7227 = vunpack.c.l.s4 1983009808
    %v7228 = vunpack.c.0.s8 %v7227
    %v7229 = vlaneseq
    %v7230 = vshrl.u32 %v7229, 7
    %v7231 = vsub.s32 %v7228, %v7230
    %v7232 = vrot.slane %v7204, %v7231
    %v7233 = vcombine.low %v7211, %v7225
    %v7234 = vcombine.high %v7211, %v7225
    %v7235 = vcombine.low %v7218, %v7232
    %v7236 = vcombine.high %v7218, %v7232
    %v7237 = vcombine.low %v7043, %v7044
    %v7238 = vcombine.high %v7043, %v7044
    %v7239 = vcombine.low %v7045, %v7046
    %v7240 = vcombine.high %v7045, %v7046
    %v7242 = vunpack.c.l.s4 1983009808
    %v7243 = vunpack.c.0.s8 %v7242
    %v7244 = vlaneseq
    %v7245 = vshrl.u32 %v7244, 7
    %v7246 = vsub.s32 %v7243, %v7245
    %v7247 = vrot.slane %v7237, %v7246
    %v7249 = vunpack.c.l.s4 1983009808
    %v7250 = vunpack.c.0.s8 %v7249
    %v7251 = vlaneseq
    %v7252 = vshrl.u32 %v7251, 7
    %v7253 = vsub.s32 %v7250, %v7252
    %v7254 = vrot.slane %v7238, %v7253
    %v7256 = vunpack.c.l.s4 1983009808
    %v7257 = vunpack.c.0.s8 %v7256
    %v7258 = vlaneseq
    %v7259 = vshrl.u32 %v7258, 7
    %v7260 = vsub.s32 %v7257, %v7259
    %v7261 = vrot.slane %v7239, %v7260
    %v7263 = vunpack.c.l.s4 1983009808
    %v7264 = vunpack.c.0.s8 %v7263
    %v7265 = vlaneseq
    %v7266 = vshrl.u32 %v7265, 7
    %v7267 = vsub.s32 %v7264, %v7266
    %v7268 = vrot.slane %v7240, %v7267
    %v7269 = vcombine.low %v7247, %v7261
    %v7270 = vcombine.high %v7247, %v7261
    %v7271 = vcombine.low %v7254, %v7268
    %v7272 = vcombine.high %v7254, %v7268
    %v7273 = vcombine.low %v7055, %v7056
    %v7274 = vcombine.low %v7057, %v7058
    %v7276 = vunpack.c.l.s4 1983009808
    %v7277 = vunpack.c.0.s8 %v7276
    %v7278 = vlaneseq
    %v7279 = vshrl.u32 %v7278, 7
    %v7280 = vsub.s32 %v7277, %v7279
    %v7281 = vrot.slane %v7273, %v7280
    %v7283 = vunpack.c.l.s4 1983009808
    %v7284 = vunpack.c.0.s8 %v7283
    %v7285 = vlaneseq
    %v7286 = vshrl.u32 %v7285, 7
    %v7287 = vsub.s32 %v7284, %v7286
    %v7288 = vrot.slane %v7274, %v7287
    %v7289 = vcombine.low %v7281, %v7288
    %v7290 = vcombine.low %v7059, %v7060
    %v7291 = vcombine.low %v7061, %v7062
    %v7293 = vunpack.c.l.s4 1983009808
    %v7294 = vunpack.c.0.s8 %v7293
    %v7295 = vlaneseq
    %v7296 = vshrl.u32 %v7295, 7
    %v7297 = vsub.s32 %v7294, %v7296
    %v7298 = vrot.slane %v7290, %v7297
    %v7300 = vunpack.c.l.s4 1983009808
    %v7301 = vunpack.c.0.s8 %v7300
    %v7302 = vlaneseq
    %v7303 = vshrl.u32 %v7302, 7
    %v7304 = vsub.s32 %v7301, %v7303
    %v7305 = vrot.slane %v7291, %v7304
    %v7306 = vcombine.low %v7298, %v7305
    %v7327 = vcombine.low %v7127, %v7233
    %v7328 = vcombine.high %v7127, %v7233
    %v7330 = vunpack.c.l.s4 1934713408
    %v7331 = vunpack.c.0.s8 %v7330
    %v7332 = vlaneseq
    %v7333 = vshrl.u32 %v7332, 7
    %v7334 = vsub.s32 %v7331, %v7333
    %v7335 = vrot.slane %v7327, %v7334
    %v7337 = vunpack.c.l.s4 1934713408
    %v7338 = vunpack.c.0.s8 %v7337
    %v7339 = vlaneseq
    %v7340 = vshrl.u32 %v7339, 7
    %v7341 = vsub.s32 %v7338, %v7340
    %v7342 = vrot.slane %v7328, %v7341
    %v7343 = vcombine.low %v7335, %v7342
    %v7344 = vcombine.high %v7335, %v7342
    %v7345 = vcombine.low %v7128, %v7234
    %v7346 = vcombine.high %v7128, %v7234
    %v7348 = vunpack.c.l.s4 1934713408
    %v7349 = vunpack.c.0.s8 %v7348
    %v7350 = vlaneseq
    %v7351 = vshrl.u32 %v7350, 7
    %v7352 = vsub.s32 %v7349, %v7351
    %v7353 = vrot.slane %v7345, %v7352
    %v7355 = vunpack.c.l.s4 1934713408
    %v7356 = vunpack.c.0.s8 %v7355
    %v7357 = vlaneseq
    %v7358 = vshrl.u32 %v7357, 7
    %v7359 = vsub.s32 %v7356, %v7358
    %v7360 = vrot.slane %v7346, %v7359
    %v7361 = vcombine.low %v7353, %v7360
    %v7362 = vcombine.high %v7353, %v7360
    %v7363 = vcombine.low %v7129, %v7235
    %v7364 = vcombine.high %v7129, %v7235
    %v7366 = vunpack.c.l.s4 1934713408
    %v7367 = vunpack.c.0.s8 %v7366
    %v7368 = vlaneseq
    %v7369 = vshrl.u32 %v7368, 7
    %v7370 = vsub.s32 %v7367, %v7369
    %v7371 = vrot.slane %v7363, %v7370
    %v7373 = vunpack.c.l.s4 1934713408
    %v7374 = vunpack.c.0.s8 %v7373
    %v7375 = vlaneseq
    %v7376 = vshrl.u32 %v7375, 7
    %v7377 = vsub.s32 %v7374, %v7376
    %v7378 = vrot.slane %v7364, %v7377
    %v7379 = vcombine.low %v7371, %v7378
    %v7380 = vcombine.high %v7371, %v7378
    %v7381 = vcombine.low %v7130, %v7236
    %v7382 = vcombine.high %v7130, %v7236
    %v7384 = vunpack.c.l.s4 1934713408
    %v7385 = vunpack.c.0.s8 %v7384
    %v7386 = vlaneseq
    %v7387 = vshrl.u32 %v7386, 7
    %v7388 = vsub.s32 %v7385, %v7387
    %v7389 = vrot.slane %v7381, %v7388
    %v7391 = vunpack.c.l.s4 1934713408
    %v7392 = vunpack.c.0.s8 %v7391
    %v7393 = vlaneseq
    %v7394 = vshrl.u32 %v7393, 7
    %v7395 = vsub.s32 %v7392, %v7394
    %v7396 = vrot.slane %v7382, %v7395
    %v7397 = vcombine.low %v7389, %v7396
    %v7398 = vcombine.high %v7389, %v7396
    %v7399 = vcombine.low %v7183, %v7289
    %v7400 = vcombine.high %v7183, %v7289
    %v7402 = vunpack.c.l.s4 1934713408
    %v7403 = vunpack.c.0.s8 %v7402
    %v7404 = vlaneseq
    %v7405 = vshrl.u32 %v7404, 7
    %v7406 = vsub.s32 %v7403, %v7405
    %v7407 = vrot.slane %v7399, %v7406
    %v7409 = vunpack.c.l.s4 1934713408
    %v7410 = vunpack.c.0.s8 %v7409
    %v7411 = vlaneseq
    %v7412 = vshrl.u32 %v7411, 7
    %v7413 = vsub.s32 %v7410, %v7412
    %v7414 = vrot.slane %v7400, %v7413
    %v7415 = vcombine.low %v7407, %v7414
    %v7416 = vcombine.high %v7407, %v7414
    %v7417 = vcombine.low %v7163, %v7269
    %v7418 = vcombine.high %v7163, %v7269
    %v7420 = vunpack.c.l.s4 1934713408
    %v7421 = vunpack.c.0.s8 %v7420
    %v7422 = vlaneseq
    %v7423 = vshrl.u32 %v7422, 7
    %v7424 = vsub.s32 %v7421, %v7423
    %v7425 = vrot.slane %v7417, %v7424
    %v7427 = vunpack.c.l.s4 1934713408
    %v7428 = vunpack.c.0.s8 %v7427
    %v7429 = vlaneseq
    %v7430 = vshrl.u32 %v7429, 7
    %v7431 = vsub.s32 %v7428, %v7430
    %v7432 = vrot.slane %v7418, %v7431
    %v7433 = vcombine.low %v7425, %v7432
    %v7434 = vcombine.high %v7425, %v7432
    %v7435 = vcombine.low %v7164, %v7270
    %v7436 = vcombine.high %v7164, %v7270
    %v7438 = vunpack.c.l.s4 1934713408
    %v7439 = vunpack.c.0.s8 %v7438
    %v7440 = vlaneseq
    %v7441 = vshrl.u32 %v7440, 7
    %v7442 = vsub.s32 %v7439, %v7441
    %v7443 = vrot.slane %v7435, %v7442
    %v7445 = vunpack.c.l.s4 1934713408
    %v7446 = vunpack.c.0.s8 %v7445
    %v7447 = vlaneseq
    %v7448 = vshrl.u32 %v7447, 7
    %v7449 = vsub.s32 %v7446, %v7448
    %v7450 = vrot.slane %v7436, %v7449
    %v7451 = vcombine.low %v7443, %v7450
    %v7452 = vcombine.high %v7443, %v7450
    %v7453 = vcombine.low %v7165, %v7271
    %v7454 = vcombine.high %v7165, %v7271
    %v7456 = vunpack.c.l.s4 1934713408
    %v7457 = vunpack.c.0.s8 %v7456
    %v7458 = vlaneseq
    %v7459 = vshrl.u32 %v7458, 7
    %v7460 = vsub.s32 %v7457, %v7459
    %v7461 = vrot.slane %v7453, %v7460
    %v7463 = vunpack.c.l.s4 1934713408
    %v7464 = vunpack.c.0.s8 %v7463
    %v7465 = vlaneseq
    %v7466 = vshrl.u32 %v7465, 7
    %v7467 = vsub.s32 %v7464, %v7466
    %v7468 = vrot.slane %v7454, %v7467
    %v7469 = vcombine.low %v7461, %v7468
    %v7470 = vcombine.high %v7461, %v7468
    %v7471 = vcombine.low %v7166, %v7272
    %v7472 = vcombine.high %v7166, %v7272
    %v7474 = vunpack.c.l.s4 1934713408
    %v7475 = vunpack.c.0.s8 %v7474
    %v7476 = vlaneseq
    %v7477 = vshrl.u32 %v7476, 7
    %v7478 = vsub.s32 %v7475, %v7477
    %v7479 = vrot.slane %v7471, %v7478
    %v7481 = vunpack.c.l.s4 1934713408
    %v7482 = vunpack.c.0.s8 %v7481
    %v7483 = vlaneseq
    %v7484 = vshrl.u32 %v7483, 7
    %v7485 = vsub.s32 %v7482, %v7484
    %v7486 = vrot.slane %v7472, %v7485
    %v7487 = vcombine.low %v7479, %v7486
    %v7488 = vcombine.high %v7479, %v7486
    %v7489 = vcombine.low %v7200, %v7306
    %v7490 = vcombine.high %v7200, %v7306
    %v7492 = vunpack.c.l.s4 1934713408
    %v7493 = vunpack.c.0.s8 %v7492
    %v7494 = vlaneseq
    %v7495 = vshrl.u32 %v7494, 7
    %v7496 = vsub.s32 %v7493, %v7495
    %v7497 = vrot.slane %v7489, %v7496
    %v7499 = vunpack.c.l.s4 1934713408
    %v7500 = vunpack.c.0.s8 %v7499
    %v7501 = vlaneseq
    %v7502 = vshrl.u32 %v7501, 7
    %v7503 = vsub.s32 %v7500, %v7502
    %v7504 = vrot.slane %v7490, %v7503
    %v7505 = vcombine.low %v7497, %v7504
    %v7506 = vcombine.high %v7497, %v7504
    %v7507 = vld [vmem:[%s3] sm:$0xff]
    %v7508 = vld [vmem:[%s3 + $0x8] sm:$0xff]
    %v7509 = vld [vmem:[%s3 + $0x10] sm:$0xff]
    %v7510 = vld [vmem:[%s3 + $0x18] sm:$0xff]
    %v7511 = vld [vmem:[%s3 + $0x20] sm:$0xff]
    %v7512 = vld [vmem:[%s3 + $0x28] sm:$0xff]
    %v7513 = vld [vmem:[%s3 + $0x30] sm:$0xff]
    %v7514 = vld [vmem:[%s3 + $0x38] sm:$0xff]
    %v7515 = vld [vmem:[%s3 + $0x40] sm:$0x3]
    %v7516 = vld [vmem:[%s3 + $0x48] sm:$0x3]
    %v7517 = vld [vmem:[%s3 + $0x50] sm:$0x3]
    %v7518 = vld [vmem:[%s3 + $0x58] sm:$0x3]
    %v7519 = vld [vmem:[%s3 + $0x60] sm:$0x3]
    %v7520 = vld [vmem:[%s3 + $0x68] sm:$0x3]
    %v7521 = vld [vmem:[%s3 + $0x70] sm:$0x3]
    %v7522 = vld [vmem:[%s3 + $0x78] sm:$0x3]
    %v7523 = vld [vmem:[%s3 + $0x80] sm:$0xff]
    %v7524 = vld [vmem:[%s3 + $0x88] sm:$0xff]
    %v7525 = vld [vmem:[%s3 + $0x90] sm:$0xff]
    %v7526 = vld [vmem:[%s3 + $0x98] sm:$0xff]
    %v7527 = vld [vmem:[%s3 + $0xa0] sm:$0xff]
    %v7528 = vld [vmem:[%s3 + $0xa8] sm:$0xff]
    %v7529 = vld [vmem:[%s3 + $0xb0] sm:$0xff]
    %v7530 = vld [vmem:[%s3 + $0xb8] sm:$0xff]
    %v7531 = vld [vmem:[%s3 + $0xc0] sm:$0x3]
    %v7532 = vld [vmem:[%s3 + $0xc8] sm:$0x3]
    %v7533 = vld [vmem:[%s3 + $0xd0] sm:$0x3]
    %v7534 = vld [vmem:[%s3 + $0xd8] sm:$0x3]
    %v7535 = vld [vmem:[%s3 + $0xe0] sm:$0x3]
    %v7536 = vld [vmem:[%s3 + $0xe8] sm:$0x3]
    %v7537 = vld [vmem:[%s3 + $0xf0] sm:$0x3]
    %v7538 = vld [vmem:[%s3 + $0xf8] sm:$0x3]
    %v7539 = vld [vmem:[%s3 + $0x100] sm:$0xff]
    %v7540 = vld [vmem:[%s3 + $0x108] sm:$0xff]
    %v7541 = vld [vmem:[%s3 + $0x110] sm:$0xff]
    %v7542 = vld [vmem:[%s3 + $0x118] sm:$0xff]
    %v7543 = vld [vmem:[%s3 + $0x120] sm:$0xff]
    %v7544 = vld [vmem:[%s3 + $0x128] sm:$0xff]
    %v7545 = vld [vmem:[%s3 + $0x130] sm:$0xff]
    %v7546 = vld [vmem:[%s3 + $0x138] sm:$0xff]
    %v7547 = vld [vmem:[%s3 + $0x140] sm:$0x3]
    %v7548 = vld [vmem:[%s3 + $0x148] sm:$0x3]
    %v7549 = vld [vmem:[%s3 + $0x150] sm:$0x3]
    %v7550 = vld [vmem:[%s3 + $0x158] sm:$0x3]
    %v7551 = vld [vmem:[%s3 + $0x160] sm:$0x3]
    %v7552 = vld [vmem:[%s3 + $0x168] sm:$0x3]
    %v7553 = vld [vmem:[%s3 + $0x170] sm:$0x3]
    %v7554 = vld [vmem:[%s3 + $0x178] sm:$0x3]
    %v7555 = vld [vmem:[%s3 + $0x180] sm:$0xff]
    %v7556 = vld [vmem:[%s3 + $0x188] sm:$0xff]
    %v7557 = vld [vmem:[%s3 + $0x190] sm:$0xff]
    %v7558 = vld [vmem:[%s3 + $0x198] sm:$0xff]
    %v7559 = vld [vmem:[%s3 + $0x1a0] sm:$0xff]
    %v7560 = vld [vmem:[%s3 + $0x1a8] sm:$0xff]
    %v7561 = vld [vmem:[%s3 + $0x1b0] sm:$0xff]
    %v7562 = vld [vmem:[%s3 + $0x1b8] sm:$0xff]
    %v7563 = vld [vmem:[%s3 + $0x1c0] sm:$0x3]
    %v7564 = vld [vmem:[%s3 + $0x1c8] sm:$0x3]
    %v7565 = vld [vmem:[%s3 + $0x1d0] sm:$0x3]
    %v7566 = vld [vmem:[%s3 + $0x1d8] sm:$0x3]
    %v7567 = vld [vmem:[%s3 + $0x1e0] sm:$0x3]
    %v7568 = vld [vmem:[%s3 + $0x1e8] sm:$0x3]
    %v7569 = vld [vmem:[%s3 + $0x1f0] sm:$0x3]
    %v7570 = vld [vmem:[%s3 + $0x1f8] sm:$0x3]
    %v7571 = vld [vmem:[%s3 + $0x200] sm:$0xff]
    %v7572 = vld [vmem:[%s3 + $0x208] sm:$0xff]
    %v7573 = vld [vmem:[%s3 + $0x210] sm:$0xff]
    %v7574 = vld [vmem:[%s3 + $0x218] sm:$0xff]
    %v7575 = vld [vmem:[%s3 + $0x220] sm:$0xff]
    %v7576 = vld [vmem:[%s3 + $0x228] sm:$0xff]
    %v7577 = vld [vmem:[%s3 + $0x230] sm:$0xff]
    %v7578 = vld [vmem:[%s3 + $0x238] sm:$0xff]
    %v7579 = vld [vmem:[%s3 + $0x240] sm:$0x3]
    %v7580 = vld [vmem:[%s3 + $0x248] sm:$0x3]
    %v7581 = vld [vmem:[%s3 + $0x250] sm:$0x3]
    %v7582 = vld [vmem:[%s3 + $0x258] sm:$0x3]
    %v7583 = vld [vmem:[%s3 + $0x260] sm:$0x3]
    %v7584 = vld [vmem:[%s3 + $0x268] sm:$0x3]
    %v7585 = vld [vmem:[%s3 + $0x270] sm:$0x3]
    %v7586 = vld [vmem:[%s3 + $0x278] sm:$0x3]
    %v7587 = vld [vmem:[%s3 + $0x280] sm:$0xff]
    %v7588 = vld [vmem:[%s3 + $0x288] sm:$0xff]
    %v7589 = vld [vmem:[%s3 + $0x290] sm:$0xff]
    %v7590 = vld [vmem:[%s3 + $0x298] sm:$0xff]
    %v7591 = vld [vmem:[%s3 + $0x2a0] sm:$0xff]
    %v7592 = vld [vmem:[%s3 + $0x2a8] sm:$0xff]
    %v7593 = vld [vmem:[%s3 + $0x2b0] sm:$0xff]
    %v7594 = vld [vmem:[%s3 + $0x2b8] sm:$0xff]
    %v7595 = vld [vmem:[%s3 + $0x2c0] sm:$0x3]
    %v7596 = vld [vmem:[%s3 + $0x2c8] sm:$0x3]
    %v7597 = vld [vmem:[%s3 + $0x2d0] sm:$0x3]
    %v7598 = vld [vmem:[%s3 + $0x2d8] sm:$0x3]
    %v7599 = vld [vmem:[%s3 + $0x2e0] sm:$0x3]
    %v7600 = vld [vmem:[%s3 + $0x2e8] sm:$0x3]
    %v7601 = vld [vmem:[%s3 + $0x2f0] sm:$0x3]
    %v7602 = vld [vmem:[%s3 + $0x2f8] sm:$0x3]
    %v7603 = vld [vmem:[%s3 + $0x300] sm:$0xff]
    %v7604 = vld [vmem:[%s3 + $0x308] sm:$0xff]
    %v7605 = vld [vmem:[%s3 + $0x310] sm:$0xff]
    %v7606 = vld [vmem:[%s3 + $0x318] sm:$0xff]
    %v7607 = vld [vmem:[%s3 + $0x320] sm:$0xff]
    %v7608 = vld [vmem:[%s3 + $0x328] sm:$0xff]
    %v7609 = vld [vmem:[%s3 + $0x330] sm:$0xff]
    %v7610 = vld [vmem:[%s3 + $0x338] sm:$0xff]
    %v7611 = vld [vmem:[%s3 + $0x340] sm:$0x3]
    %v7612 = vld [vmem:[%s3 + $0x348] sm:$0x3]
    %v7613 = vld [vmem:[%s3 + $0x350] sm:$0x3]
    %v7614 = vld [vmem:[%s3 + $0x358] sm:$0x3]
    %v7615 = vld [vmem:[%s3 + $0x360] sm:$0x3]
    %v7616 = vld [vmem:[%s3 + $0x368] sm:$0x3]
    %v7617 = vld [vmem:[%s3 + $0x370] sm:$0x3]
    %v7618 = vld [vmem:[%s3 + $0x378] sm:$0x3]
    %v7619 = vld [vmem:[%s3 + $0x380] sm:$0xff]
    %v7620 = vld [vmem:[%s3 + $0x388] sm:$0xff]
    %v7621 = vld [vmem:[%s3 + $0x390] sm:$0xff]
    %v7622 = vld [vmem:[%s3 + $0x398] sm:$0xff]
    %v7623 = vld [vmem:[%s3 + $0x3a0] sm:$0xff]
    %v7624 = vld [vmem:[%s3 + $0x3a8] sm:$0xff]
    %v7625 = vld [vmem:[%s3 + $0x3b0] sm:$0xff]
    %v7626 = vld [vmem:[%s3 + $0x3b8] sm:$0xff]
    %v7627 = vld [vmem:[%s3 + $0x3c0] sm:$0x3]
    %v7628 = vld [vmem:[%s3 + $0x3c8] sm:$0x3]
    %v7629 = vld [vmem:[%s3 + $0x3d0] sm:$0x3]
    %v7630 = vld [vmem:[%s3 + $0x3d8] sm:$0x3]
    %v7631 = vld [vmem:[%s3 + $0x3e0] sm:$0x3]
    %v7632 = vld [vmem:[%s3 + $0x3e8] sm:$0x3]
    %v7633 = vld [vmem:[%s3 + $0x3f0] sm:$0x3]
    %v7634 = vld [vmem:[%s3 + $0x3f8] sm:$0x3]
    %v7635 = vld [vmem:[%s3 + $0x400] sm:$0xff]
    %v7636 = vld [vmem:[%s3 + $0x408] sm:$0xff]
    %v7637 = vld [vmem:[%s3 + $0x410] sm:$0xff]
    %v7638 = vld [vmem:[%s3 + $0x418] sm:$0xff]
    %v7639 = vld [vmem:[%s3 + $0x420] sm:$0xff]
    %v7640 = vld [vmem:[%s3 + $0x428] sm:$0xff]
    %v7641 = vld [vmem:[%s3 + $0x430] sm:$0xff]
    %v7642 = vld [vmem:[%s3 + $0x438] sm:$0xff]
    %v7643 = vld [vmem:[%s3 + $0x440] sm:$0x3]
    %v7644 = vld [vmem:[%s3 + $0x448] sm:$0x3]
    %v7645 = vld [vmem:[%s3 + $0x450] sm:$0x3]
    %v7646 = vld [vmem:[%s3 + $0x458] sm:$0x3]
    %v7647 = vld [vmem:[%s3 + $0x460] sm:$0x3]
    %v7648 = vld [vmem:[%s3 + $0x468] sm:$0x3]
    %v7649 = vld [vmem:[%s3 + $0x470] sm:$0x3]
    %v7650 = vld [vmem:[%s3 + $0x478] sm:$0x3]
    %v7651 = vld [vmem:[%s3 + $0x480] sm:$0xff]
    %v7652 = vld [vmem:[%s3 + $0x488] sm:$0xff]
    %v7653 = vld [vmem:[%s3 + $0x490] sm:$0xff]
    %v7654 = vld [vmem:[%s3 + $0x498] sm:$0xff]
    %v7655 = vld [vmem:[%s3 + $0x4a0] sm:$0xff]
    %v7656 = vld [vmem:[%s3 + $0x4a8] sm:$0xff]
    %v7657 = vld [vmem:[%s3 + $0x4b0] sm:$0xff]
    %v7658 = vld [vmem:[%s3 + $0x4b8] sm:$0xff]
    %v7659 = vld [vmem:[%s3 + $0x4c0] sm:$0x3]
    %v7660 = vld [vmem:[%s3 + $0x4c8] sm:$0x3]
    %v7661 = vld [vmem:[%s3 + $0x4d0] sm:$0x3]
    %v7662 = vld [vmem:[%s3 + $0x4d8] sm:$0x3]
    %v7663 = vld [vmem:[%s3 + $0x4e0] sm:$0x3]
    %v7664 = vld [vmem:[%s3 + $0x4e8] sm:$0x3]
    %v7665 = vld [vmem:[%s3 + $0x4f0] sm:$0x3]
    %v7666 = vld [vmem:[%s3 + $0x4f8] sm:$0x3]
    %v7669 = vcombine.high %v7343, %v7343
    %v7671 = vunpack.c.l.s4 1983009808
    %v7672 = vunpack.c.0.s8 %v7671
    %v7673 = vlaneseq
    %v7674 = vshrl.u32 %v7673, 7
    %v7675 = vsub.s32 %v7672, %v7674
    %v7676 = vrot.slane %v7343, %v7675
    %v7678 = vunpack.c.l.s4 1983009808
    %v7679 = vunpack.c.0.s8 %v7678
    %v7680 = vlaneseq
    %v7681 = vshrl.u32 %v7680, 7
    %v7682 = vsub.s32 %v7679, %v7681
    %v7683 = vrot.slane %v7669, %v7682
    %v7684 = vcombine.high %v7676, %v7676
    %v7685 = vcombine.high %v7683, %v7683
    %v7686 = vcombine.high %v7433, %v7433
    %v7688 = vunpack.c.l.s4 1983009808
    %v7689 = vunpack.c.0.s8 %v7688
    %v7690 = vlaneseq
    %v7691 = vshrl.u32 %v7690, 7
    %v7692 = vsub.s32 %v7689, %v7691
    %v7693 = vrot.slane %v7433, %v7692
    %v7695 = vunpack.c.l.s4 1983009808
    %v7696 = vunpack.c.0.s8 %v7695
    %v7697 = vlaneseq
    %v7698 = vshrl.u32 %v7697, 7
    %v7699 = vsub.s32 %v7696, %v7698
    %v7700 = vrot.slane %v7686, %v7699
    %v7701 = vcombine.high %v7693, %v7693
    %v7702 = vcombine.high %v7700, %v7700
    %7711 = vmatprep.subr.mxu0 0.0
    %7712 = vmatpush1.xpose.msra.mxu0 0.0
    %7713 = vmatprep.subr.mxu0 0.0
    %7714 = vmatpush1.xpose.msra.mxu0 0.0
    %7715 = vmatprep.subr.mxu0 0.0
    %7716 = vmatpush1.xpose.msra.mxu0 0.0
    %7717 = vmatprep.subr.mxu0 0.0
    %7718 = vmatpush1.xpose.msra.mxu0 0.0
    %7719 = vmatprep.subr.mxu0 0.0
    %7720 = vmatpush1.xpose.msra.mxu0 0.0
    %7721 = vmatprep.subr.mxu0 0.0
    %7722 = vmatpush1.xpose.msra.mxu0 0.0
    %7723 = vmatprep.subr.mxu0 0.0
    %7724 = vmatpush1.xpose.msra.mxu0 0.0
    %7725 = vmatprep.subr.mxu0 0.0
    %7726 = vmatpush1.xpose.msra.mxu0 0.0
    %7727 = vmatprep.subr.mxu0 0.0
    %7728 = vmatpush1.xpose.msra.mxu0 0.0
    %7729 = vmatprep.subr.mxu0 0.0
    %7730 = vmatpush1.xpose.msra.mxu0 0.0
    %7731 = vmatprep.subr.mxu0 0.0
    %7732 = vmatpush1.xpose.msra.mxu0 0.0
    %7733 = vmatprep.subr.mxu0 0.0
    %7734 = vmatpush1.xpose.msra.mxu0 0.0
    %7735 = vmatprep.subr.mxu0 0.0
    %7736 = vmatpush1.xpose.msra.mxu0 0.0
    %7737 = vmatprep.subr.mxu0 0.0
    %7738 = vmatpush1.xpose.msra.mxu0 0.0
    %7739 = vmatprep.subr.mxu0 %v7516
    %7740 = vmatpush1.xpose.msra.mxu0 %v7515
    %7741 = vmatprep.subr.mxu0 %v7508
    %7742 = vmatpush1.xpose.msra.mxu0 %v7507
    %7743 = vmatprep.subr.mxu0 0.0
    %7744 = vmatpush2.xpose.msra.mxu0 0.0
    %7745 = vmatprep.subr.mxu0 0.0
    %7746 = vmatpush2.xpose.msra.mxu0 0.0
    %7747 = vmatprep.subr.mxu0 0.0
    %7748 = vmatpush2.xpose.msra.mxu0 0.0
    %7749 = vmatprep.subr.mxu0 0.0
    %7750 = vmatpush2.xpose.msra.mxu0 0.0
    %7751 = vmatprep.subr.mxu0 0.0
    %7752 = vmatpush2.xpose.msra.mxu0 0.0
    %7753 = vmatprep.subr.mxu0 0.0
    %7754 = vmatpush2.xpose.msra.mxu0 0.0
    %7755 = vmatprep.subr.mxu0 0.0
    %7756 = vmatpush2.xpose.msra.mxu0 0.0
    %7757 = vmatprep.subr.mxu0 0.0
    %7758 = vmatpush2.xpose.msra.mxu0 0.0
    %7759 = vmatprep.subr.mxu0 0.0
    %7760 = vmatpush2.xpose.msra.mxu0 0.0
    %7761 = vmatprep.subr.mxu0 0.0
    %7762 = vmatpush2.xpose.msra.mxu0 0.0
    %7763 = vmatprep.subr.mxu0 0.0
    %7764 = vmatpush2.xpose.msra.mxu0 0.0
    %7765 = vmatprep.subr.mxu0 0.0
    %7766 = vmatpush2.xpose.msra.mxu0 0.0
    %7767 = vmatprep.subr.mxu0 0.0
    %7768 = vmatpush2.xpose.msra.mxu0 0.0
    %7769 = vmatprep.subr.mxu0 0.0
    %7770 = vmatpush2.xpose.msra.mxu0 0.0
    %7771 = vmatprep.subr.mxu0 0.0
    %7772 = vmatpush2.xpose.msra.mxu0 0.0
    %7773 = vmatprep.subr.mxu0 0.0
    %7774 = vmatpush2.xpose.msra.mxu0 0.0
    %7775 = vmatprep.mubr.f32.mxu0 %v7684
    %7776 = vmatmul.mubr.f32.gmra.mxu0 %v7676
    %v7777 = vpop.f32.mrf.mxu0
    %v7778 = vadd.f32 0.0, %v7777
    %v7779 = vpop.f32.mrf.mxu0
    %7780 = vdwg.mxu0
    %7781 = vmatprep.subr.mxu0 0.0
    %7782 = vmatpush1.xpose.msra.mxu0 0.0
    %7783 = vmatprep.subr.mxu0 0.0
    %7784 = vmatpush1.xpose.msra.mxu0 0.0
    %7785 = vmatprep.subr.mxu0 0.0
    %7786 = vmatpush1.xpose.msra.mxu0 0.0
    %7787 = vmatprep.subr.mxu0 0.0
    %7788 = vmatpush1.xpose.msra.mxu0 0.0
    %7789 = vmatprep.subr.mxu0 0.0
    %7790 = vmatpush1.xpose.msra.mxu0 0.0
    %7791 = vmatprep.subr.mxu0 0.0
    %7792 = vmatpush1.xpose.msra.mxu0 0.0
    %7793 = vmatprep.subr.mxu0 0.0
    %7794 = vmatpush1.xpose.msra.mxu0 0.0
    %7795 = vmatprep.subr.mxu0 0.0
    %7796 = vmatpush1.xpose.msra.mxu0 0.0
    %7797 = vmatprep.subr.mxu0 0.0
    %7798 = vmatpush1.xpose.msra.mxu0 0.0
    %7799 = vmatprep.subr.mxu0 0.0
    %7800 = vmatpush1.xpose.msra.mxu0 0.0
    %7801 = vmatprep.subr.mxu0 0.0
    %7802 = vmatpush1.xpose.msra.mxu0 0.0
    %7803 = vmatprep.subr.mxu0 0.0
    %7804 = vmatpush1.xpose.msra.mxu0 0.0
    %7805 = vmatprep.subr.mxu0 0.0
    %7806 = vmatpush1.xpose.msra.mxu0 0.0
    %7807 = vmatprep.subr.mxu0 0.0
    %7808 = vmatpush1.xpose.msra.mxu0 0.0
    %7809 = vmatprep.subr.mxu0 %v7518
    %7810 = vmatpush1.xpose.msra.mxu0 %v7517
    %7811 = vmatprep.subr.mxu0 %v7510
    %7812 = vmatpush1.xpose.msra.mxu0 %v7509
    %7813 = vmatprep.subr.mxu0 0.0
    %7814 = vmatpush2.xpose.msra.mxu0 0.0
    %7815 = vmatprep.subr.mxu0 0.0
    %7816 = vmatpush2.xpose.msra.mxu0 0.0
    %7817 = vmatprep.subr.mxu0 0.0
    %7818 = vmatpush2.xpose.msra.mxu0 0.0
    %7819 = vmatprep.subr.mxu0 0.0
    %7820 = vmatpush2.xpose.msra.mxu0 0.0
    %7821 = vmatprep.subr.mxu0 0.0
    %7822 = vmatpush2.xpose.msra.mxu0 0.0
    %7823 = vmatprep.subr.mxu0 0.0
    %7824 = vmatpush2.xpose.msra.mxu0 0.0
    %7825 = vmatprep.subr.mxu0 0.0
    %7826 = vmatpush2.xpose.msra.mxu0 0.0
    %7827 = vmatprep.subr.mxu0 0.0
    %7828 = vmatpush2.xpose.msra.mxu0 0.0
    %7829 = vmatprep.subr.mxu0 0.0
    %7830 = vmatpush2.xpose.msra.mxu0 0.0
    %7831 = vmatprep.subr.mxu0 0.0
    %7832 = vmatpush2.xpose.msra.mxu0 0.0
    %7833 = vmatprep.subr.mxu0 0.0
    %7834 = vmatpush2.xpose.msra.mxu0 0.0
    %7835 = vmatprep.subr.mxu0 0.0
    %7836 = vmatpush2.xpose.msra.mxu0 0.0
    %7837 = vmatprep.subr.mxu0 0.0
    %7838 = vmatpush2.xpose.msra.mxu0 0.0
    %7839 = vmatprep.subr.mxu0 0.0
    %7840 = vmatpush2.xpose.msra.mxu0 0.0
    %7841 = vmatprep.subr.mxu0 0.0
    %7842 = vmatpush2.xpose.msra.mxu0 0.0
    %7843 = vmatprep.subr.mxu0 0.0
    %7844 = vmatpush2.xpose.msra.mxu0 0.0
    %7845 = vmatprep.mubr.f32.mxu0 %v7685
    %7846 = vmatmul.mubr.f32.gmra.mxu0 %v7683
    %v7847 = vpop.f32.mrf.mxu0
    %v7848 = vadd.f32 %v7778, %v7847
    %v7849 = vpop.f32.mrf.mxu0
    %7850 = vdwg.mxu0
    %7851 = vmatprep.subr.mxu0 0.0
    %7852 = vmatpush1.xpose.msra.mxu0 0.0
    %7853 = vmatprep.subr.mxu0 0.0
    %7854 = vmatpush1.xpose.msra.mxu0 0.0
    %7855 = vmatprep.subr.mxu0 0.0
    %7856 = vmatpush1.xpose.msra.mxu0 0.0
    %7857 = vmatprep.subr.mxu0 0.0
    %7858 = vmatpush1.xpose.msra.mxu0 0.0
    %7859 = vmatprep.subr.mxu0 0.0
    %7860 = vmatpush1.xpose.msra.mxu0 0.0
    %7861 = vmatprep.subr.mxu0 0.0
    %7862 = vmatpush1.xpose.msra.mxu0 0.0
    %7863 = vmatprep.subr.mxu0 0.0
    %7864 = vmatpush1.xpose.msra.mxu0 0.0
    %7865 = vmatprep.subr.mxu0 0.0
    %7866 = vmatpush1.xpose.msra.mxu0 0.0
    %7867 = vmatprep.subr.mxu0 0.0
    %7868 = vmatpush1.xpose.msra.mxu0 0.0
    %7869 = vmatprep.subr.mxu0 0.0
    %7870 = vmatpush1.xpose.msra.mxu0 0.0
    %7871 = vmatprep.subr.mxu0 0.0
    %7872 = vmatpush1.xpose.msra.mxu0 0.0
    %7873 = vmatprep.subr.mxu0 0.0
    %7874 = vmatpush1.xpose.msra.mxu0 0.0
    %7875 = vmatprep.subr.mxu0 0.0
    %7876 = vmatpush1.xpose.msra.mxu0 0.0
    %7877 = vmatprep.subr.mxu0 0.0
    %7878 = vmatpush1.xpose.msra.mxu0 0.0
    %7879 = vmatprep.subr.mxu0 %v7520
    %7880 = vmatpush1.xpose.msra.mxu0 %v7519
    %7881 = vmatprep.subr.mxu0 %v7512
    %7882 = vmatpush1.xpose.msra.mxu0 %v7511
    %7883 = vmatprep.subr.mxu0 0.0
    %7884 = vmatpush2.xpose.msra.mxu0 0.0
    %7885 = vmatprep.subr.mxu0 0.0
    %7886 = vmatpush2.xpose.msra.mxu0 0.0
    %7887 = vmatprep.subr.mxu0 0.0
    %7888 = vmatpush2.xpose.msra.mxu0 0.0
    %7889 = vmatprep.subr.mxu0 0.0
    %7890 = vmatpush2.xpose.msra.mxu0 0.0
    %7891 = vmatprep.subr.mxu0 0.0
    %7892 = vmatpush2.xpose.msra.mxu0 0.0
    %7893 = vmatprep.subr.mxu0 0.0
    %7894 = vmatpush2.xpose.msra.mxu0 0.0
    %7895 = vmatprep.subr.mxu0 0.0
    %7896 = vmatpush2.xpose.msra.mxu0 0.0
    %7897 = vmatprep.subr.mxu0 0.0
    %7898 = vmatpush2.xpose.msra.mxu0 0.0
    %7899 = vmatprep.subr.mxu0 0.0
    %7900 = vmatpush2.xpose.msra.mxu0 0.0
    %7901 = vmatprep.subr.mxu0 0.0
    %7902 = vmatpush2.xpose.msra.mxu0 0.0
    %7903 = vmatprep.subr.mxu0 0.0
    %7904 = vmatpush2.xpose.msra.mxu0 0.0
    %7905 = vmatprep.subr.mxu0 0.0
    %7906 = vmatpush2.xpose.msra.mxu0 0.0
    %7907 = vmatprep.subr.mxu0 0.0
    %7908 = vmatpush2.xpose.msra.mxu0 0.0
    %7909 = vmatprep.subr.mxu0 0.0
    %7910 = vmatpush2.xpose.msra.mxu0 0.0
    %7911 = vmatprep.subr.mxu0 0.0
    %7912 = vmatpush2.xpose.msra.mxu0 0.0
    %7913 = vmatprep.subr.mxu0 0.0
    %7914 = vmatpush2.xpose.msra.mxu0 0.0
    %7915 = vmatprep.mubr.f32.mxu0 %v7701
    %7916 = vmatmul.mubr.f32.gmra.mxu0 %v7693
    %v7917 = vpop.f32.mrf.mxu0
    %v7918 = vadd.f32 %v7848, %v7917
    %v7919 = vpop.f32.mrf.mxu0
    %7920 = vdwg.mxu0
    %7921 = vmatprep.subr.mxu0 0.0
    %7922 = vmatpush1.xpose.msra.mxu0 0.0
    %7923 = vmatprep.subr.mxu0 0.0
    %7924 = vmatpush1.xpose.msra.mxu0 0.0
    %7925 = vmatprep.subr.mxu0 0.0
    %7926 = vmatpush1.xpose.msra.mxu0 0.0
    %7927 = vmatprep.subr.mxu0 0.0
    %7928 = vmatpush1.xpose.msra.mxu0 0.0
    %7929 = vmatprep.subr.mxu0 0.0
    %7930 = vmatpush1.xpose.msra.mxu0 0.0
    %7931 = vmatprep.subr.mxu0 0.0
    %7932 = vmatpush1.xpose.msra.mxu0 0.0
    %7933 = vmatprep.subr.mxu0 0.0
    %7934 = vmatpush1.xpose.msra.mxu0 0.0
    %7935 = vmatprep.subr.mxu0 0.0
    %7936 = vmatpush1.xpose.msra.mxu0 0.0
    %7937 = vmatprep.subr.mxu0 0.0
    %7938 = vmatpush1.xpose.msra.mxu0 0.0
    %7939 = vmatprep.subr.mxu0 0.0
    %7940 = vmatpush1.xpose.msra.mxu0 0.0
    %7941 = vmatprep.subr.mxu0 0.0
    %7942 = vmatpush1.xpose.msra.mxu0 0.0
    %7943 = vmatprep.subr.mxu0 0.0
    %7944 = vmatpush1.xpose.msra.mxu0 0.0
    %7945 = vmatprep.subr.mxu0 0.0
    %7946 = vmatpush1.xpose.msra.mxu0 0.0
    %7947 = vmatprep.subr.mxu0 0.0
    %7948 = vmatpush1.xpose.msra.mxu0 0.0
    %7949 = vmatprep.subr.mxu0 %v7522
    %7950 = vmatpush1.xpose.msra.mxu0 %v7521
    %7951 = vmatprep.subr.mxu0 %v7514
    %7952 = vmatpush1.xpose.msra.mxu0 %v7513
    %7953 = vmatprep.subr.mxu0 0.0
    %7954 = vmatpush2.xpose.msra.mxu0 0.0
    %7955 = vmatprep.subr.mxu0 0.0
    %7956 = vmatpush2.xpose.msra.mxu0 0.0
    %7957 = vmatprep.subr.mxu0 0.0
    %7958 = vmatpush2.xpose.msra.mxu0 0.0
    %7959 = vmatprep.subr.mxu0 0.0
    %7960 = vmatpush2.xpose.msra.mxu0 0.0
    %7961 = vmatprep.subr.mxu0 0.0
    %7962 = vmatpush2.xpose.msra.mxu0 0.0
    %7963 = vmatprep.subr.mxu0 0.0
    %7964 = vmatpush2.xpose.msra.mxu0 0.0
    %7965 = vmatprep.subr.mxu0 0.0
    %7966 = vmatpush2.xpose.msra.mxu0 0.0
    %7967 = vmatprep.subr.mxu0 0.0
    %7968 = vmatpush2.xpose.msra.mxu0 0.0
    %7969 = vmatprep.subr.mxu0 0.0
    %7970 = vmatpush2.xpose.msra.mxu0 0.0
    %7971 = vmatprep.subr.mxu0 0.0
    %7972 = vmatpush2.xpose.msra.mxu0 0.0
    %7973 = vmatprep.subr.mxu0 0.0
    %7974 = vmatpush2.xpose.msra.mxu0 0.0
    %7975 = vmatprep.subr.mxu0 0.0
    %7976 = vmatpush2.xpose.msra.mxu0 0.0
    %7977 = vmatprep.subr.mxu0 0.0
    %7978 = vmatpush2.xpose.msra.mxu0 0.0
    %7979 = vmatprep.subr.mxu0 0.0
    %7980 = vmatpush2.xpose.msra.mxu0 0.0
    %7981 = vmatprep.subr.mxu0 0.0
    %7982 = vmatpush2.xpose.msra.mxu0 0.0
    %7983 = vmatprep.subr.mxu0 0.0
    %7984 = vmatpush2.xpose.msra.mxu0 0.0
    %7985 = vmatprep.mubr.f32.mxu0 %v7702
    %7986 = vmatmul.mubr.f32.gmra.mxu0 %v7700
    %v7987 = vpop.f32.mrf.mxu0
    %v7988 = vadd.f32 %v7918, %v7987
    %v7989 = vpop.f32.mrf.mxu0
    %7990 = vdwg.mxu0
    %v7993 = vcombine.high %v7344, %v7344
    %v7995 = vunpack.c.l.s4 1983009808
    %v7996 = vunpack.c.0.s8 %v7995
    %v7997 = vlaneseq
    %v7998 = vshrl.u32 %v7997, 7
    %v7999 = vsub.s32 %v7996, %v7998
    %v8000 = vrot.slane %v7344, %v7999
    %v8002 = vunpack.c.l.s4 1983009808
    %v8003 = vunpack.c.0.s8 %v8002
    %v8004 = vlaneseq
    %v8005 = vshrl.u32 %v8004, 7
    %v8006 = vsub.s32 %v8003, %v8005
    %v8007 = vrot.slane %v7993, %v8006
    %v8008 = vcombine.high %v8000, %v8000
    %v8009 = vcombine.high %v8007, %v8007
    %v8010 = vcombine.high %v7434, %v7434
    %v8012 = vunpack.c.l.s4 1983009808
    %v8013 = vunpack.c.0.s8 %v8012
    %v8014 = vlaneseq
    %v8015 = vshrl.u32 %v8014, 7
    %v8016 = vsub.s32 %v8013, %v8015
    %v8017 = vrot.slane %v7434, %v8016
    %v8019 = vunpack.c.l.s4 1983009808
    %v8020 = vunpack.c.0.s8 %v8019
    %v8021 = vlaneseq
    %v8022 = vshrl.u32 %v8021, 7
    %v8023 = vsub.s32 %v8020, %v8022
    %v8024 = vrot.slane %v8010, %v8023
    %v8025 = vcombine.high %v8017, %v8017
    %v8026 = vcombine.high %v8024, %v8024
    %8035 = vmatprep.subr.mxu0 0.0
    %8036 = vmatpush1.xpose.msra.mxu0 0.0
    %8037 = vmatprep.subr.mxu0 0.0
    %8038 = vmatpush1.xpose.msra.mxu0 0.0
    %8039 = vmatprep.subr.mxu0 0.0
    %8040 = vmatpush1.xpose.msra.mxu0 0.0
    %8041 = vmatprep.subr.mxu0 0.0
    %8042 = vmatpush1.xpose.msra.mxu0 0.0
    %8043 = vmatprep.subr.mxu0 0.0
    %8044 = vmatpush1.xpose.msra.mxu0 0.0
    %8045 = vmatprep.subr.mxu0 0.0
    %8046 = vmatpush1.xpose.msra.mxu0 0.0
    %8047 = vmatprep.subr.mxu0 0.0
    %8048 = vmatpush1.xpose.msra.mxu0 0.0
    %8049 = vmatprep.subr.mxu0 0.0
    %8050 = vmatpush1.xpose.msra.mxu0 0.0
    %8051 = vmatprep.subr.mxu0 0.0
    %8052 = vmatpush1.xpose.msra.mxu0 0.0
    %8053 = vmatprep.subr.mxu0 0.0
    %8054 = vmatpush1.xpose.msra.mxu0 0.0
    %8055 = vmatprep.subr.mxu0 0.0
    %8056 = vmatpush1.xpose.msra.mxu0 0.0
    %8057 = vmatprep.subr.mxu0 0.0
    %8058 = vmatpush1.xpose.msra.mxu0 0.0
    %8059 = vmatprep.subr.mxu0 0.0
    %8060 = vmatpush1.xpose.msra.mxu0 0.0
    %8061 = vmatprep.subr.mxu0 0.0
    %8062 = vmatpush1.xpose.msra.mxu0 0.0
    %8063 = vmatprep.subr.mxu0 %v7532
    %8064 = vmatpush1.xpose.msra.mxu0 %v7531
    %8065 = vmatprep.subr.mxu0 %v7524
    %8066 = vmatpush1.xpose.msra.mxu0 %v7523
    %8067 = vmatprep.subr.mxu0 0.0
    %8068 = vmatpush2.xpose.msra.mxu0 0.0
    %8069 = vmatprep.subr.mxu0 0.0
    %8070 = vmatpush2.xpose.msra.mxu0 0.0
    %8071 = vmatprep.subr.mxu0 0.0
    %8072 = vmatpush2.xpose.msra.mxu0 0.0
    %8073 = vmatprep.subr.mxu0 0.0
    %8074 = vmatpush2.xpose.msra.mxu0 0.0
    %8075 = vmatprep.subr.mxu0 0.0
    %8076 = vmatpush2.xpose.msra.mxu0 0.0
    %8077 = vmatprep.subr.mxu0 0.0
    %8078 = vmatpush2.xpose.msra.mxu0 0.0
    %8079 = vmatprep.subr.mxu0 0.0
    %8080 = vmatpush2.xpose.msra.mxu0 0.0
    %8081 = vmatprep.subr.mxu0 0.0
    %8082 = vmatpush2.xpose.msra.mxu0 0.0
    %8083 = vmatprep.subr.mxu0 0.0
    %8084 = vmatpush2.xpose.msra.mxu0 0.0
    %8085 = vmatprep.subr.mxu0 0.0
    %8086 = vmatpush2.xpose.msra.mxu0 0.0
    %8087 = vmatprep.subr.mxu0 0.0
    %8088 = vmatpush2.xpose.msra.mxu0 0.0
    %8089 = vmatprep.subr.mxu0 0.0
    %8090 = vmatpush2.xpose.msra.mxu0 0.0
    %8091 = vmatprep.subr.mxu0 0.0
    %8092 = vmatpush2.xpose.msra.mxu0 0.0
    %8093 = vmatprep.subr.mxu0 0.0
    %8094 = vmatpush2.xpose.msra.mxu0 0.0
    %8095 = vmatprep.subr.mxu0 0.0
    %8096 = vmatpush2.xpose.msra.mxu0 0.0
    %8097 = vmatprep.subr.mxu0 0.0
    %8098 = vmatpush2.xpose.msra.mxu0 0.0
    %8099 = vmatprep.mubr.f32.mxu0 %v8008
    %8100 = vmatmul.mubr.f32.gmra.mxu0 %v8000
    %v8101 = vpop.f32.mrf.mxu0
    %v8102 = vadd.f32 0.0, %v8101
    %v8103 = vpop.f32.mrf.mxu0
    %8104 = vdwg.mxu0
    %8105 = vmatprep.subr.mxu0 0.0
    %8106 = vmatpush1.xpose.msra.mxu0 0.0
    %8107 = vmatprep.subr.mxu0 0.0
    %8108 = vmatpush1.xpose.msra.mxu0 0.0
    %8109 = vmatprep.subr.mxu0 0.0
    %8110 = vmatpush1.xpose.msra.mxu0 0.0
    %8111 = vmatprep.subr.mxu0 0.0
    %8112 = vmatpush1.xpose.msra.mxu0 0.0
    %8113 = vmatprep.subr.mxu0 0.0
    %8114 = vmatpush1.xpose.msra.mxu0 0.0
    %8115 = vmatprep.subr.mxu0 0.0
    %8116 = vmatpush1.xpose.msra.mxu0 0.0
    %8117 = vmatprep.subr.mxu0 0.0
    %8118 = vmatpush1.xpose.msra.mxu0 0.0
    %8119 = vmatprep.subr.mxu0 0.0
    %8120 = vmatpush1.xpose.msra.mxu0 0.0
    %8121 = vmatprep.subr.mxu0 0.0
    %8122 = vmatpush1.xpose.msra.mxu0 0.0
    %8123 = vmatprep.subr.mxu0 0.0
    %8124 = vmatpush1.xpose.msra.mxu0 0.0
    %8125 = vmatprep.subr.mxu0 0.0
    %8126 = vmatpush1.xpose.msra.mxu0 0.0
    %8127 = vmatprep.subr.mxu0 0.0
    %8128 = vmatpush1.xpose.msra.mxu0 0.0
    %8129 = vmatprep.subr.mxu0 0.0
    %8130 = vmatpush1.xpose.msra.mxu0 0.0
    %8131 = vmatprep.subr.mxu0 0.0
    %8132 = vmatpush1.xpose.msra.mxu0 0.0
    %8133 = vmatprep.subr.mxu0 %v7534
    %8134 = vmatpush1.xpose.msra.mxu0 %v7533
    %8135 = vmatprep.subr.mxu0 %v7526
    %8136 = vmatpush1.xpose.msra.mxu0 %v7525
    %8137 = vmatprep.subr.mxu0 0.0
    %8138 = vmatpush2.xpose.msra.mxu0 0.0
    %8139 = vmatprep.subr.mxu0 0.0
    %8140 = vmatpush2.xpose.msra.mxu0 0.0
    %8141 = vmatprep.subr.mxu0 0.0
    %8142 = vmatpush2.xpose.msra.mxu0 0.0
    %8143 = vmatprep.subr.mxu0 0.0
    %8144 = vmatpush2.xpose.msra.mxu0 0.0
    %8145 = vmatprep.subr.mxu0 0.0
    %8146 = vmatpush2.xpose.msra.mxu0 0.0
    %8147 = vmatprep.subr.mxu0 0.0
    %8148 = vmatpush2.xpose.msra.mxu0 0.0
    %8149 = vmatprep.subr.mxu0 0.0
    %8150 = vmatpush2.xpose.msra.mxu0 0.0
    %8151 = vmatprep.subr.mxu0 0.0
    %8152 = vmatpush2.xpose.msra.mxu0 0.0
    %8153 = vmatprep.subr.mxu0 0.0
    %8154 = vmatpush2.xpose.msra.mxu0 0.0
    %8155 = vmatprep.subr.mxu0 0.0
    %8156 = vmatpush2.xpose.msra.mxu0 0.0
    %8157 = vmatprep.subr.mxu0 0.0
    %8158 = vmatpush2.xpose.msra.mxu0 0.0
    %8159 = vmatprep.subr.mxu0 0.0
    %8160 = vmatpush2.xpose.msra.mxu0 0.0
    %8161 = vmatprep.subr.mxu0 0.0
    %8162 = vmatpush2.xpose.msra.mxu0 0.0
    %8163 = vmatprep.subr.mxu0 0.0
    %8164 = vmatpush2.xpose.msra.mxu0 0.0
    %8165 = vmatprep.subr.mxu0 0.0
    %8166 = vmatpush2.xpose.msra.mxu0 0.0
    %8167 = vmatprep.subr.mxu0 0.0
    %8168 = vmatpush2.xpose.msra.mxu0 0.0
    %8169 = vmatprep.mubr.f32.mxu0 %v8009
    %8170 = vmatmul.mubr.f32.gmra.mxu0 %v8007
    %v8171 = vpop.f32.mrf.mxu0
    %v8172 = vadd.f32 %v8102, %v8171
    %v8173 = vpop.f32.mrf.mxu0
    %8174 = vdwg.mxu0
    %8175 = vmatprep.subr.mxu0 0.0
    %8176 = vmatpush1.xpose.msra.mxu0 0.0
    %8177 = vmatprep.subr.mxu0 0.0
    %8178 = vmatpush1.xpose.msra.mxu0 0.0
    %8179 = vmatprep.subr.mxu0 0.0
    %8180 = vmatpush1.xpose.msra.mxu0 0.0
    %8181 = vmatprep.subr.mxu0 0.0
    %8182 = vmatpush1.xpose.msra.mxu0 0.0
    %8183 = vmatprep.subr.mxu0 0.0
    %8184 = vmatpush1.xpose.msra.mxu0 0.0
    %8185 = vmatprep.subr.mxu0 0.0
    %8186 = vmatpush1.xpose.msra.mxu0 0.0
    %8187 = vmatprep.subr.mxu0 0.0
    %8188 = vmatpush1.xpose.msra.mxu0 0.0
    %8189 = vmatprep.subr.mxu0 0.0
    %8190 = vmatpush1.xpose.msra.mxu0 0.0
    %8191 = vmatprep.subr.mxu0 0.0
    %8192 = vmatpush1.xpose.msra.mxu0 0.0
    %8193 = vmatprep.subr.mxu0 0.0
    %8194 = vmatpush1.xpose.msra.mxu0 0.0
    %8195 = vmatprep.subr.mxu0 0.0
    %8196 = vmatpush1.xpose.msra.mxu0 0.0
    %8197 = vmatprep.subr.mxu0 0.0
    %8198 = vmatpush1.xpose.msra.mxu0 0.0
    %8199 = vmatprep.subr.mxu0 0.0
    %8200 = vmatpush1.xpose.msra.mxu0 0.0
    %8201 = vmatprep.subr.mxu0 0.0
    %8202 = vmatpush1.xpose.msra.mxu0 0.0
    %8203 = vmatprep.subr.mxu0 %v7536
    %8204 = vmatpush1.xpose.msra.mxu0 %v7535
    %8205 = vmatprep.subr.mxu0 %v7528
    %8206 = vmatpush1.xpose.msra.mxu0 %v7527
    %8207 = vmatprep.subr.mxu0 0.0
    %8208 = vmatpush2.xpose.msra.mxu0 0.0
    %8209 = vmatprep.subr.mxu0 0.0
    %8210 = vmatpush2.xpose.msra.mxu0 0.0
    %8211 = vmatprep.subr.mxu0 0.0
    %8212 = vmatpush2.xpose.msra.mxu0 0.0
    %8213 = vmatprep.subr.mxu0 0.0
    %8214 = vmatpush2.xpose.msra.mxu0 0.0
    %8215 = vmatprep.subr.mxu0 0.0
    %8216 = vmatpush2.xpose.msra.mxu0 0.0
    %8217 = vmatprep.subr.mxu0 0.0
    %8218 = vmatpush2.xpose.msra.mxu0 0.0
    %8219 = vmatprep.subr.mxu0 0.0
    %8220 = vmatpush2.xpose.msra.mxu0 0.0
    %8221 = vmatprep.subr.mxu0 0.0
    %8222 = vmatpush2.xpose.msra.mxu0 0.0
    %8223 = vmatprep.subr.mxu0 0.0
    %8224 = vmatpush2.xpose.msra.mxu0 0.0
    %8225 = vmatprep.subr.mxu0 0.0
    %8226 = vmatpush2.xpose.msra.mxu0 0.0
    %8227 = vmatprep.subr.mxu0 0.0
    %8228 = vmatpush2.xpose.msra.mxu0 0.0
    %8229 = vmatprep.subr.mxu0 0.0
    %8230 = vmatpush2.xpose.msra.mxu0 0.0
    %8231 = vmatprep.subr.mxu0 0.0
    %8232 = vmatpush2.xpose.msra.mxu0 0.0
    %8233 = vmatprep.subr.mxu0 0.0
    %8234 = vmatpush2.xpose.msra.mxu0 0.0
    %8235 = vmatprep.subr.mxu0 0.0
    %8236 = vmatpush2.xpose.msra.mxu0 0.0
    %8237 = vmatprep.subr.mxu0 0.0
    %8238 = vmatpush2.xpose.msra.mxu0 0.0
    %8239 = vmatprep.mubr.f32.mxu0 %v8025
    %8240 = vmatmul.mubr.f32.gmra.mxu0 %v8017
    %v8241 = vpop.f32.mrf.mxu0
    %v8242 = vadd.f32 %v8172, %v8241
    %v8243 = vpop.f32.mrf.mxu0
    %8244 = vdwg.mxu0
    %8245 = vmatprep.subr.mxu0 0.0
    %8246 = vmatpush1.xpose.msra.mxu0 0.0
    %8247 = vmatprep.subr.mxu0 0.0
    %8248 = vmatpush1.xpose.msra.mxu0 0.0
    %8249 = vmatprep.subr.mxu0 0.0
    %8250 = vmatpush1.xpose.msra.mxu0 0.0
    %8251 = vmatprep.subr.mxu0 0.0
    %8252 = vmatpush1.xpose.msra.mxu0 0.0
    %8253 = vmatprep.subr.mxu0 0.0
    %8254 = vmatpush1.xpose.msra.mxu0 0.0
    %8255 = vmatprep.subr.mxu0 0.0
    %8256 = vmatpush1.xpose.msra.mxu0 0.0
    %8257 = vmatprep.subr.mxu0 0.0
    %8258 = vmatpush1.xpose.msra.mxu0 0.0
    %8259 = vmatprep.subr.mxu0 0.0
    %8260 = vmatpush1.xpose.msra.mxu0 0.0
    %8261 = vmatprep.subr.mxu0 0.0
    %8262 = vmatpush1.xpose.msra.mxu0 0.0
    %8263 = vmatprep.subr.mxu0 0.0
    %8264 = vmatpush1.xpose.msra.mxu0 0.0
    %8265 = vmatprep.subr.mxu0 0.0
    %8266 = vmatpush1.xpose.msra.mxu0 0.0
    %8267 = vmatprep.subr.mxu0 0.0
    %8268 = vmatpush1.xpose.msra.mxu0 0.0
    %8269 = vmatprep.subr.mxu0 0.0
    %8270 = vmatpush1.xpose.msra.mxu0 0.0
    %8271 = vmatprep.subr.mxu0 0.0
    %8272 = vmatpush1.xpose.msra.mxu0 0.0
    %8273 = vmatprep.subr.mxu0 %v7538
    %8274 = vmatpush1.xpose.msra.mxu0 %v7537
    %8275 = vmatprep.subr.mxu0 %v7530
    %8276 = vmatpush1.xpose.msra.mxu0 %v7529
    %8277 = vmatprep.subr.mxu0 0.0
    %8278 = vmatpush2.xpose.msra.mxu0 0.0
    %8279 = vmatprep.subr.mxu0 0.0
    %8280 = vmatpush2.xpose.msra.mxu0 0.0
    %8281 = vmatprep.subr.mxu0 0.0
    %8282 = vmatpush2.xpose.msra.mxu0 0.0
    %8283 = vmatprep.subr.mxu0 0.0
    %8284 = vmatpush2.xpose.msra.mxu0 0.0
    %8285 = vmatprep.subr.mxu0 0.0
    %8286 = vmatpush2.xpose.msra.mxu0 0.0
    %8287 = vmatprep.subr.mxu0 0.0
    %8288 = vmatpush2.xpose.msra.mxu0 0.0
    %8289 = vmatprep.subr.mxu0 0.0
    %8290 = vmatpush2.xpose.msra.mxu0 0.0
    %8291 = vmatprep.subr.mxu0 0.0
    %8292 = vmatpush2.xpose.msra.mxu0 0.0
    %8293 = vmatprep.subr.mxu0 0.0
    %8294 = vmatpush2.xpose.msra.mxu0 0.0
    %8295 = vmatprep.subr.mxu0 0.0
    %8296 = vmatpush2.xpose.msra.mxu0 0.0
    %8297 = vmatprep.subr.mxu0 0.0
    %8298 = vmatpush2.xpose.msra.mxu0 0.0
    %8299 = vmatprep.subr.mxu0 0.0
    %8300 = vmatpush2.xpose.msra.mxu0 0.0
    %8301 = vmatprep.subr.mxu0 0.0
    %8302 = vmatpush2.xpose.msra.mxu0 0.0
    %8303 = vmatprep.subr.mxu0 0.0
    %8304 = vmatpush2.xpose.msra.mxu0 0.0
    %8305 = vmatprep.subr.mxu0 0.0
    %8306 = vmatpush2.xpose.msra.mxu0 0.0
    %8307 = vmatprep.subr.mxu0 0.0
    %8308 = vmatpush2.xpose.msra.mxu0 0.0
    %8309 = vmatprep.mubr.f32.mxu0 %v8026
    %8310 = vmatmul.mubr.f32.gmra.mxu0 %v8024
    %v8311 = vpop.f32.mrf.mxu0
    %v8312 = vadd.f32 %v8242, %v8311
    %v8313 = vpop.f32.mrf.mxu0
    %8314 = vdwg.mxu0
    %v8317 = vcombine.high %v7361, %v7361
    %v8319 = vunpack.c.l.s4 1983009808
    %v8320 = vunpack.c.0.s8 %v8319
    %v8321 = vlaneseq
    %v8322 = vshrl.u32 %v8321, 7
    %v8323 = vsub.s32 %v8320, %v8322
    %v8324 = vrot.slane %v7361, %v8323
    %v8326 = vunpack.c.l.s4 1983009808
    %v8327 = vunpack.c.0.s8 %v8326
    %v8328 = vlaneseq
    %v8329 = vshrl.u32 %v8328, 7
    %v8330 = vsub.s32 %v8327, %v8329
    %v8331 = vrot.slane %v8317, %v8330
    %v8332 = vcombine.high %v8324, %v8324
    %v8333 = vcombine.high %v8331, %v8331
    %v8334 = vcombine.high %v7451, %v7451
    %v8336 = vunpack.c.l.s4 1983009808
    %v8337 = vunpack.c.0.s8 %v8336
    %v8338 = vlaneseq
    %v8339 = vshrl.u32 %v8338, 7
    %v8340 = vsub.s32 %v8337, %v8339
    %v8341 = vrot.slane %v7451, %v8340
    %v8343 = vunpack.c.l.s4 1983009808
    %v8344 = vunpack.c.0.s8 %v8343
    %v8345 = vlaneseq
    %v8346 = vshrl.u32 %v8345, 7
    %v8347 = vsub.s32 %v8344, %v8346
    %v8348 = vrot.slane %v8334, %v8347
    %v8349 = vcombine.high %v8341, %v8341
    %v8350 = vcombine.high %v8348, %v8348
    %8359 = vmatprep.subr.mxu0 0.0
    %8360 = vmatpush1.xpose.msra.mxu0 0.0
    %8361 = vmatprep.subr.mxu0 0.0
    %8362 = vmatpush1.xpose.msra.mxu0 0.0
    %8363 = vmatprep.subr.mxu0 0.0
    %8364 = vmatpush1.xpose.msra.mxu0 0.0
    %8365 = vmatprep.subr.mxu0 0.0
    %8366 = vmatpush1.xpose.msra.mxu0 0.0
    %8367 = vmatprep.subr.mxu0 0.0
    %8368 = vmatpush1.xpose.msra.mxu0 0.0
    %8369 = vmatprep.subr.mxu0 0.0
    %8370 = vmatpush1.xpose.msra.mxu0 0.0
    %8371 = vmatprep.subr.mxu0 0.0
    %8372 = vmatpush1.xpose.msra.mxu0 0.0
    %8373 = vmatprep.subr.mxu0 0.0
    %8374 = vmatpush1.xpose.msra.mxu0 0.0
    %8375 = vmatprep.subr.mxu0 0.0
    %8376 = vmatpush1.xpose.msra.mxu0 0.0
    %8377 = vmatprep.subr.mxu0 0.0
    %8378 = vmatpush1.xpose.msra.mxu0 0.0
    %8379 = vmatprep.subr.mxu0 0.0
    %8380 = vmatpush1.xpose.msra.mxu0 0.0
    %8381 = vmatprep.subr.mxu0 0.0
    %8382 = vmatpush1.xpose.msra.mxu0 0.0
    %8383 = vmatprep.subr.mxu0 0.0
    %8384 = vmatpush1.xpose.msra.mxu0 0.0
    %8385 = vmatprep.subr.mxu0 0.0
    %8386 = vmatpush1.xpose.msra.mxu0 0.0
    %8387 = vmatprep.subr.mxu0 %v7548
    %8388 = vmatpush1.xpose.msra.mxu0 %v7547
    %8389 = vmatprep.subr.mxu0 %v7540
    %8390 = vmatpush1.xpose.msra.mxu0 %v7539
    %8391 = vmatprep.subr.mxu0 0.0
    %8392 = vmatpush2.xpose.msra.mxu0 0.0
    %8393 = vmatprep.subr.mxu0 0.0
    %8394 = vmatpush2.xpose.msra.mxu0 0.0
    %8395 = vmatprep.subr.mxu0 0.0
    %8396 = vmatpush2.xpose.msra.mxu0 0.0
    %8397 = vmatprep.subr.mxu0 0.0
    %8398 = vmatpush2.xpose.msra.mxu0 0.0
    %8399 = vmatprep.subr.mxu0 0.0
    %8400 = vmatpush2.xpose.msra.mxu0 0.0
    %8401 = vmatprep.subr.mxu0 0.0
    %8402 = vmatpush2.xpose.msra.mxu0 0.0
    %8403 = vmatprep.subr.mxu0 0.0
    %8404 = vmatpush2.xpose.msra.mxu0 0.0
    %8405 = vmatprep.subr.mxu0 0.0
    %8406 = vmatpush2.xpose.msra.mxu0 0.0
    %8407 = vmatprep.subr.mxu0 0.0
    %8408 = vmatpush2.xpose.msra.mxu0 0.0
    %8409 = vmatprep.subr.mxu0 0.0
    %8410 = vmatpush2.xpose.msra.mxu0 0.0
    %8411 = vmatprep.subr.mxu0 0.0
    %8412 = vmatpush2.xpose.msra.mxu0 0.0
    %8413 = vmatprep.subr.mxu0 0.0
    %8414 = vmatpush2.xpose.msra.mxu0 0.0
    %8415 = vmatprep.subr.mxu0 0.0
    %8416 = vmatpush2.xpose.msra.mxu0 0.0
    %8417 = vmatprep.subr.mxu0 0.0
    %8418 = vmatpush2.xpose.msra.mxu0 0.0
    %8419 = vmatprep.subr.mxu0 0.0
    %8420 = vmatpush2.xpose.msra.mxu0 0.0
    %8421 = vmatprep.subr.mxu0 0.0
    %8422 = vmatpush2.xpose.msra.mxu0 0.0
    %8423 = vmatprep.mubr.f32.mxu0 %v8332
    %8424 = vmatmul.mubr.f32.gmra.mxu0 %v8324
    %v8425 = vpop.f32.mrf.mxu0
    %v8426 = vadd.f32 0.0, %v8425
    %v8427 = vpop.f32.mrf.mxu0
    %8428 = vdwg.mxu0
    %8429 = vmatprep.subr.mxu0 0.0
    %8430 = vmatpush1.xpose.msra.mxu0 0.0
    %8431 = vmatprep.subr.mxu0 0.0
    %8432 = vmatpush1.xpose.msra.mxu0 0.0
    %8433 = vmatprep.subr.mxu0 0.0
    %8434 = vmatpush1.xpose.msra.mxu0 0.0
    %8435 = vmatprep.subr.mxu0 0.0
    %8436 = vmatpush1.xpose.msra.mxu0 0.0
    %8437 = vmatprep.subr.mxu0 0.0
    %8438 = vmatpush1.xpose.msra.mxu0 0.0
    %8439 = vmatprep.subr.mxu0 0.0
    %8440 = vmatpush1.xpose.msra.mxu0 0.0
    %8441 = vmatprep.subr.mxu0 0.0
    %8442 = vmatpush1.xpose.msra.mxu0 0.0
    %8443 = vmatprep.subr.mxu0 0.0
    %8444 = vmatpush1.xpose.msra.mxu0 0.0
    %8445 = vmatprep.subr.mxu0 0.0
    %8446 = vmatpush1.xpose.msra.mxu0 0.0
    %8447 = vmatprep.subr.mxu0 0.0
    %8448 = vmatpush1.xpose.msra.mxu0 0.0
    %8449 = vmatprep.subr.mxu0 0.0
    %8450 = vmatpush1.xpose.msra.mxu0 0.0
    %8451 = vmatprep.subr.mxu0 0.0
    %8452 = vmatpush1.xpose.msra.mxu0 0.0
    %8453 = vmatprep.subr.mxu0 0.0
    %8454 = vmatpush1.xpose.msra.mxu0 0.0
    %8455 = vmatprep.subr.mxu0 0.0
    %8456 = vmatpush1.xpose.msra.mxu0 0.0
    %8457 = vmatprep.subr.mxu0 %v7550
    %8458 = vmatpush1.xpose.msra.mxu0 %v7549
    %8459 = vmatprep.subr.mxu0 %v7542
    %8460 = vmatpush1.xpose.msra.mxu0 %v7541
    %8461 = vmatprep.subr.mxu0 0.0
    %8462 = vmatpush2.xpose.msra.mxu0 0.0
    %8463 = vmatprep.subr.mxu0 0.0
    %8464 = vmatpush2.xpose.msra.mxu0 0.0
    %8465 = vmatprep.subr.mxu0 0.0
    %8466 = vmatpush2.xpose.msra.mxu0 0.0
    %8467 = vmatprep.subr.mxu0 0.0
    %8468 = vmatpush2.xpose.msra.mxu0 0.0
    %8469 = vmatprep.subr.mxu0 0.0
    %8470 = vmatpush2.xpose.msra.mxu0 0.0
    %8471 = vmatprep.subr.mxu0 0.0
    %8472 = vmatpush2.xpose.msra.mxu0 0.0
    %8473 = vmatprep.subr.mxu0 0.0
    %8474 = vmatpush2.xpose.msra.mxu0 0.0
    %8475 = vmatprep.subr.mxu0 0.0
    %8476 = vmatpush2.xpose.msra.mxu0 0.0
    %8477 = vmatprep.subr.mxu0 0.0
    %8478 = vmatpush2.xpose.msra.mxu0 0.0
    %8479 = vmatprep.subr.mxu0 0.0
    %8480 = vmatpush2.xpose.msra.mxu0 0.0
    %8481 = vmatprep.subr.mxu0 0.0
    %8482 = vmatpush2.xpose.msra.mxu0 0.0
    %8483 = vmatprep.subr.mxu0 0.0
    %8484 = vmatpush2.xpose.msra.mxu0 0.0
    %8485 = vmatprep.subr.mxu0 0.0
    %8486 = vmatpush2.xpose.msra.mxu0 0.0
    %8487 = vmatprep.subr.mxu0 0.0
    %8488 = vmatpush2.xpose.msra.mxu0 0.0
    %8489 = vmatprep.subr.mxu0 0.0
    %8490 = vmatpush2.xpose.msra.mxu0 0.0
    %8491 = vmatprep.subr.mxu0 0.0
    %8492 = vmatpush2.xpose.msra.mxu0 0.0
    %8493 = vmatprep.mubr.f32.mxu0 %v8333
    %8494 = vmatmul.mubr.f32.gmra.mxu0 %v8331
    %v8495 = vpop.f32.mrf.mxu0
    %v8496 = vadd.f32 %v8426, %v8495
    %v8497 = vpop.f32.mrf.mxu0
    %8498 = vdwg.mxu0
    %8499 = vmatprep.subr.mxu0 0.0
    %8500 = vmatpush1.xpose.msra.mxu0 0.0
    %8501 = vmatprep.subr.mxu0 0.0
    %8502 = vmatpush1.xpose.msra.mxu0 0.0
    %8503 = vmatprep.subr.mxu0 0.0
    %8504 = vmatpush1.xpose.msra.mxu0 0.0
    %8505 = vmatprep.subr.mxu0 0.0
    %8506 = vmatpush1.xpose.msra.mxu0 0.0
    %8507 = vmatprep.subr.mxu0 0.0
    %8508 = vmatpush1.xpose.msra.mxu0 0.0
    %8509 = vmatprep.subr.mxu0 0.0
    %8510 = vmatpush1.xpose.msra.mxu0 0.0
    %8511 = vmatprep.subr.mxu0 0.0
    %8512 = vmatpush1.xpose.msra.mxu0 0.0
    %8513 = vmatprep.subr.mxu0 0.0
    %8514 = vmatpush1.xpose.msra.mxu0 0.0
    %8515 = vmatprep.subr.mxu0 0.0
    %8516 = vmatpush1.xpose.msra.mxu0 0.0
    %8517 = vmatprep.subr.mxu0 0.0
    %8518 = vmatpush1.xpose.msra.mxu0 0.0
    %8519 = vmatprep.subr.mxu0 0.0
    %8520 = vmatpush1.xpose.msra.mxu0 0.0
    %8521 = vmatprep.subr.mxu0 0.0
    %8522 = vmatpush1.xpose.msra.mxu0 0.0
    %8523 = vmatprep.subr.mxu0 0.0
    %8524 = vmatpush1.xpose.msra.mxu0 0.0
    %8525 = vmatprep.subr.mxu0 0.0
    %8526 = vmatpush1.xpose.msra.mxu0 0.0
    %8527 = vmatprep.subr.mxu0 %v7552
    %8528 = vmatpush1.xpose.msra.mxu0 %v7551
    %8529 = vmatprep.subr.mxu0 %v7544
    %8530 = vmatpush1.xpose.msra.mxu0 %v7543
    %8531 = vmatprep.subr.mxu0 0.0
    %8532 = vmatpush2.xpose.msra.mxu0 0.0
    %8533 = vmatprep.subr.mxu0 0.0
    %8534 = vmatpush2.xpose.msra.mxu0 0.0
    %8535 = vmatprep.subr.mxu0 0.0
    %8536 = vmatpush2.xpose.msra.mxu0 0.0
    %8537 = vmatprep.subr.mxu0 0.0
    %8538 = vmatpush2.xpose.msra.mxu0 0.0
    %8539 = vmatprep.subr.mxu0 0.0
    %8540 = vmatpush2.xpose.msra.mxu0 0.0
    %8541 = vmatprep.subr.mxu0 0.0
    %8542 = vmatpush2.xpose.msra.mxu0 0.0
    %8543 = vmatprep.subr.mxu0 0.0
    %8544 = vmatpush2.xpose.msra.mxu0 0.0
    %8545 = vmatprep.subr.mxu0 0.0
    %8546 = vmatpush2.xpose.msra.mxu0 0.0
    %8547 = vmatprep.subr.mxu0 0.0
    %8548 = vmatpush2.xpose.msra.mxu0 0.0
    %8549 = vmatprep.subr.mxu0 0.0
    %8550 = vmatpush2.xpose.msra.mxu0 0.0
    %8551 = vmatprep.subr.mxu0 0.0
    %8552 = vmatpush2.xpose.msra.mxu0 0.0
    %8553 = vmatprep.subr.mxu0 0.0
    %8554 = vmatpush2.xpose.msra.mxu0 0.0
    %8555 = vmatprep.subr.mxu0 0.0
    %8556 = vmatpush2.xpose.msra.mxu0 0.0
    %8557 = vmatprep.subr.mxu0 0.0
    %8558 = vmatpush2.xpose.msra.mxu0 0.0
    %8559 = vmatprep.subr.mxu0 0.0
    %8560 = vmatpush2.xpose.msra.mxu0 0.0
    %8561 = vmatprep.subr.mxu0 0.0
    %8562 = vmatpush2.xpose.msra.mxu0 0.0
    %8563 = vmatprep.mubr.f32.mxu0 %v8349
    %8564 = vmatmul.mubr.f32.gmra.mxu0 %v8341
    %v8565 = vpop.f32.mrf.mxu0
    %v8566 = vadd.f32 %v8496, %v8565
    %v8567 = vpop.f32.mrf.mxu0
    %8568 = vdwg.mxu0
    %8569 = vmatprep.subr.mxu0 0.0
    %8570 = vmatpush1.xpose.msra.mxu0 0.0
    %8571 = vmatprep.subr.mxu0 0.0
    %8572 = vmatpush1.xpose.msra.mxu0 0.0
    %8573 = vmatprep.subr.mxu0 0.0
    %8574 = vmatpush1.xpose.msra.mxu0 0.0
    %8575 = vmatprep.subr.mxu0 0.0
    %8576 = vmatpush1.xpose.msra.mxu0 0.0
    %8577 = vmatprep.subr.mxu0 0.0
    %8578 = vmatpush1.xpose.msra.mxu0 0.0
    %8579 = vmatprep.subr.mxu0 0.0
    %8580 = vmatpush1.xpose.msra.mxu0 0.0
    %8581 = vmatprep.subr.mxu0 0.0
    %8582 = vmatpush1.xpose.msra.mxu0 0.0
    %8583 = vmatprep.subr.mxu0 0.0
    %8584 = vmatpush1.xpose.msra.mxu0 0.0
    %8585 = vmatprep.subr.mxu0 0.0
    %8586 = vmatpush1.xpose.msra.mxu0 0.0
    %8587 = vmatprep.subr.mxu0 0.0
    %8588 = vmatpush1.xpose.msra.mxu0 0.0
    %8589 = vmatprep.subr.mxu0 0.0
    %8590 = vmatpush1.xpose.msra.mxu0 0.0
    %8591 = vmatprep.subr.mxu0 0.0
    %8592 = vmatpush1.xpose.msra.mxu0 0.0
    %8593 = vmatprep.subr.mxu0 0.0
    %8594 = vmatpush1.xpose.msra.mxu0 0.0
    %8595 = vmatprep.subr.mxu0 0.0
    %8596 = vmatpush1.xpose.msra.mxu0 0.0
    %8597 = vmatprep.subr.mxu0 %v7554
    %8598 = vmatpush1.xpose.msra.mxu0 %v7553
    %8599 = vmatprep.subr.mxu0 %v7546
    %8600 = vmatpush1.xpose.msra.mxu0 %v7545
    %8601 = vmatprep.subr.mxu0 0.0
    %8602 = vmatpush2.xpose.msra.mxu0 0.0
    %8603 = vmatprep.subr.mxu0 0.0
    %8604 = vmatpush2.xpose.msra.mxu0 0.0
    %8605 = vmatprep.subr.mxu0 0.0
    %8606 = vmatpush2.xpose.msra.mxu0 0.0
    %8607 = vmatprep.subr.mxu0 0.0
    %8608 = vmatpush2.xpose.msra.mxu0 0.0
    %8609 = vmatprep.subr.mxu0 0.0
    %8610 = vmatpush2.xpose.msra.mxu0 0.0
    %8611 = vmatprep.subr.mxu0 0.0
    %8612 = vmatpush2.xpose.msra.mxu0 0.0
    %8613 = vmatprep.subr.mxu0 0.0
    %8614 = vmatpush2.xpose.msra.mxu0 0.0
    %8615 = vmatprep.subr.mxu0 0.0
    %8616 = vmatpush2.xpose.msra.mxu0 0.0
    %8617 = vmatprep.subr.mxu0 0.0
    %8618 = vmatpush2.xpose.msra.mxu0 0.0
    %8619 = vmatprep.subr.mxu0 0.0
    %8620 = vmatpush2.xpose.msra.mxu0 0.0
    %8621 = vmatprep.subr.mxu0 0.0
    %8622 = vmatpush2.xpose.msra.mxu0 0.0
    %8623 = vmatprep.subr.mxu0 0.0
    %8624 = vmatpush2.xpose.msra.mxu0 0.0
    %8625 = vmatprep.subr.mxu0 0.0
    %8626 = vmatpush2.xpose.msra.mxu0 0.0
    %8627 = vmatprep.subr.mxu0 0.0
    %8628 = vmatpush2.xpose.msra.mxu0 0.0
    %8629 = vmatprep.subr.mxu0 0.0
    %8630 = vmatpush2.xpose.msra.mxu0 0.0
    %8631 = vmatprep.subr.mxu0 0.0
    %8632 = vmatpush2.xpose.msra.mxu0 0.0
    %8633 = vmatprep.mubr.f32.mxu0 %v8350
    %8634 = vmatmul.mubr.f32.gmra.mxu0 %v8348
    %v8635 = vpop.f32.mrf.mxu0
    %v8636 = vadd.f32 %v8566, %v8635
    %v8637 = vpop.f32.mrf.mxu0
    %8638 = vdwg.mxu0
    %v8641 = vcombine.high %v7362, %v7362
    %v8643 = vunpack.c.l.s4 1983009808
    %v8644 = vunpack.c.0.s8 %v8643
    %v8645 = vlaneseq
    %v8646 = vshrl.u32 %v8645, 7
    %v8647 = vsub.s32 %v8644, %v8646
    %v8648 = vrot.slane %v7362, %v8647
    %v8650 = vunpack.c.l.s4 1983009808
    %v8651 = vunpack.c.0.s8 %v8650
    %v8652 = vlaneseq
    %v8653 = vshrl.u32 %v8652, 7
    %v8654 = vsub.s32 %v8651, %v8653
    %v8655 = vrot.slane %v8641, %v8654
    %v8656 = vcombine.high %v8648, %v8648
    %v8657 = vcombine.high %v8655, %v8655
    %v8658 = vcombine.high %v7452, %v7452
    %v8660 = vunpack.c.l.s4 1983009808
    %v8661 = vunpack.c.0.s8 %v8660
    %v8662 = vlaneseq
    %v8663 = vshrl.u32 %v8662, 7
    %v8664 = vsub.s32 %v8661, %v8663
    %v8665 = vrot.slane %v7452, %v8664
    %v8667 = vunpack.c.l.s4 1983009808
    %v8668 = vunpack.c.0.s8 %v8667
    %v8669 = vlaneseq
    %v8670 = vshrl.u32 %v8669, 7
    %v8671 = vsub.s32 %v8668, %v8670
    %v8672 = vrot.slane %v8658, %v8671
    %v8673 = vcombine.high %v8665, %v8665
    %v8674 = vcombine.high %v8672, %v8672
    %8683 = vmatprep.subr.mxu0 0.0
    %8684 = vmatpush1.xpose.msra.mxu0 0.0
    %8685 = vmatprep.subr.mxu0 0.0
    %8686 = vmatpush1.xpose.msra.mxu0 0.0
    %8687 = vmatprep.subr.mxu0 0.0
    %8688 = vmatpush1.xpose.msra.mxu0 0.0
    %8689 = vmatprep.subr.mxu0 0.0
    %8690 = vmatpush1.xpose.msra.mxu0 0.0
    %8691 = vmatprep.subr.mxu0 0.0
    %8692 = vmatpush1.xpose.msra.mxu0 0.0
    %8693 = vmatprep.subr.mxu0 0.0
    %8694 = vmatpush1.xpose.msra.mxu0 0.0
    %8695 = vmatprep.subr.mxu0 0.0
    %8696 = vmatpush1.xpose.msra.mxu0 0.0
    %8697 = vmatprep.subr.mxu0 0.0
    %8698 = vmatpush1.xpose.msra.mxu0 0.0
    %8699 = vmatprep.subr.mxu0 0.0
    %8700 = vmatpush1.xpose.msra.mxu0 0.0
    %8701 = vmatprep.subr.mxu0 0.0
    %8702 = vmatpush1.xpose.msra.mxu0 0.0
    %8703 = vmatprep.subr.mxu0 0.0
    %8704 = vmatpush1.xpose.msra.mxu0 0.0
    %8705 = vmatprep.subr.mxu0 0.0
    %8706 = vmatpush1.xpose.msra.mxu0 0.0
    %8707 = vmatprep.subr.mxu0 0.0
    %8708 = vmatpush1.xpose.msra.mxu0 0.0
    %8709 = vmatprep.subr.mxu0 0.0
    %8710 = vmatpush1.xpose.msra.mxu0 0.0
    %8711 = vmatprep.subr.mxu0 %v7564
    %8712 = vmatpush1.xpose.msra.mxu0 %v7563
    %8713 = vmatprep.subr.mxu0 %v7556
    %8714 = vmatpush1.xpose.msra.mxu0 %v7555
    %8715 = vmatprep.subr.mxu0 0.0
    %8716 = vmatpush2.xpose.msra.mxu0 0.0
    %8717 = vmatprep.subr.mxu0 0.0
    %8718 = vmatpush2.xpose.msra.mxu0 0.0
    %8719 = vmatprep.subr.mxu0 0.0
    %8720 = vmatpush2.xpose.msra.mxu0 0.0
    %8721 = vmatprep.subr.mxu0 0.0
    %8722 = vmatpush2.xpose.msra.mxu0 0.0
    %8723 = vmatprep.subr.mxu0 0.0
    %8724 = vmatpush2.xpose.msra.mxu0 0.0
    %8725 = vmatprep.subr.mxu0 0.0
    %8726 = vmatpush2.xpose.msra.mxu0 0.0
    %8727 = vmatprep.subr.mxu0 0.0
    %8728 = vmatpush2.xpose.msra.mxu0 0.0
    %8729 = vmatprep.subr.mxu0 0.0
    %8730 = vmatpush2.xpose.msra.mxu0 0.0
    %8731 = vmatprep.subr.mxu0 0.0
    %8732 = vmatpush2.xpose.msra.mxu0 0.0
    %8733 = vmatprep.subr.mxu0 0.0
    %8734 = vmatpush2.xpose.msra.mxu0 0.0
    %8735 = vmatprep.subr.mxu0 0.0
    %8736 = vmatpush2.xpose.msra.mxu0 0.0
    %8737 = vmatprep.subr.mxu0 0.0
    %8738 = vmatpush2.xpose.msra.mxu0 0.0
    %8739 = vmatprep.subr.mxu0 0.0
    %8740 = vmatpush2.xpose.msra.mxu0 0.0
    %8741 = vmatprep.subr.mxu0 0.0
    %8742 = vmatpush2.xpose.msra.mxu0 0.0
    %8743 = vmatprep.subr.mxu0 0.0
    %8744 = vmatpush2.xpose.msra.mxu0 0.0
    %8745 = vmatprep.subr.mxu0 0.0
    %8746 = vmatpush2.xpose.msra.mxu0 0.0
    %8747 = vmatprep.mubr.f32.mxu0 %v8656
    %8748 = vmatmul.mubr.f32.gmra.mxu0 %v8648
    %v8749 = vpop.f32.mrf.mxu0
    %v8750 = vadd.f32 0.0, %v8749
    %v8751 = vpop.f32.mrf.mxu0
    %8752 = vdwg.mxu0
    %8753 = vmatprep.subr.mxu0 0.0
    %8754 = vmatpush1.xpose.msra.mxu0 0.0
    %8755 = vmatprep.subr.mxu0 0.0
    %8756 = vmatpush1.xpose.msra.mxu0 0.0
    %8757 = vmatprep.subr.mxu0 0.0
    %8758 = vmatpush1.xpose.msra.mxu0 0.0
    %8759 = vmatprep.subr.mxu0 0.0
    %8760 = vmatpush1.xpose.msra.mxu0 0.0
    %8761 = vmatprep.subr.mxu0 0.0
    %8762 = vmatpush1.xpose.msra.mxu0 0.0
    %8763 = vmatprep.subr.mxu0 0.0
    %8764 = vmatpush1.xpose.msra.mxu0 0.0
    %8765 = vmatprep.subr.mxu0 0.0
    %8766 = vmatpush1.xpose.msra.mxu0 0.0
    %8767 = vmatprep.subr.mxu0 0.0
    %8768 = vmatpush1.xpose.msra.mxu0 0.0
    %8769 = vmatprep.subr.mxu0 0.0
    %8770 = vmatpush1.xpose.msra.mxu0 0.0
    %8771 = vmatprep.subr.mxu0 0.0
    %8772 = vmatpush1.xpose.msra.mxu0 0.0
    %8773 = vmatprep.subr.mxu0 0.0
    %8774 = vmatpush1.xpose.msra.mxu0 0.0
    %8775 = vmatprep.subr.mxu0 0.0
    %8776 = vmatpush1.xpose.msra.mxu0 0.0
    %8777 = vmatprep.subr.mxu0 0.0
    %8778 = vmatpush1.xpose.msra.mxu0 0.0
    %8779 = vmatprep.subr.mxu0 0.0
    %8780 = vmatpush1.xpose.msra.mxu0 0.0
    %8781 = vmatprep.subr.mxu0 %v7566
    %8782 = vmatpush1.xpose.msra.mxu0 %v7565
    %8783 = vmatprep.subr.mxu0 %v7558
    %8784 = vmatpush1.xpose.msra.mxu0 %v7557
    %8785 = vmatprep.subr.mxu0 0.0
    %8786 = vmatpush2.xpose.msra.mxu0 0.0
    %8787 = vmatprep.subr.mxu0 0.0
    %8788 = vmatpush2.xpose.msra.mxu0 0.0
    %8789 = vmatprep.subr.mxu0 0.0
    %8790 = vmatpush2.xpose.msra.mxu0 0.0
    %8791 = vmatprep.subr.mxu0 0.0
    %8792 = vmatpush2.xpose.msra.mxu0 0.0
    %8793 = vmatprep.subr.mxu0 0.0
    %8794 = vmatpush2.xpose.msra.mxu0 0.0
    %8795 = vmatprep.subr.mxu0 0.0
    %8796 = vmatpush2.xpose.msra.mxu0 0.0
    %8797 = vmatprep.subr.mxu0 0.0
    %8798 = vmatpush2.xpose.msra.mxu0 0.0
    %8799 = vmatprep.subr.mxu0 0.0
    %8800 = vmatpush2.xpose.msra.mxu0 0.0
    %8801 = vmatprep.subr.mxu0 0.0
    %8802 = vmatpush2.xpose.msra.mxu0 0.0
    %8803 = vmatprep.subr.mxu0 0.0
    %8804 = vmatpush2.xpose.msra.mxu0 0.0
    %8805 = vmatprep.subr.mxu0 0.0
    %8806 = vmatpush2.xpose.msra.mxu0 0.0
    %8807 = vmatprep.subr.mxu0 0.0
    %8808 = vmatpush2.xpose.msra.mxu0 0.0
    %8809 = vmatprep.subr.mxu0 0.0
    %8810 = vmatpush2.xpose.msra.mxu0 0.0
    %8811 = vmatprep.subr.mxu0 0.0
    %8812 = vmatpush2.xpose.msra.mxu0 0.0
    %8813 = vmatprep.subr.mxu0 0.0
    %8814 = vmatpush2.xpose.msra.mxu0 0.0
    %8815 = vmatprep.subr.mxu0 0.0
    %8816 = vmatpush2.xpose.msra.mxu0 0.0
    %8817 = vmatprep.mubr.f32.mxu0 %v8657
    %8818 = vmatmul.mubr.f32.gmra.mxu0 %v8655
    %v8819 = vpop.f32.mrf.mxu0
    %v8820 = vadd.f32 %v8750, %v8819
    %v8821 = vpop.f32.mrf.mxu0
    %8822 = vdwg.mxu0
    %8823 = vmatprep.subr.mxu0 0.0
    %8824 = vmatpush1.xpose.msra.mxu0 0.0
    %8825 = vmatprep.subr.mxu0 0.0
    %8826 = vmatpush1.xpose.msra.mxu0 0.0
    %8827 = vmatprep.subr.mxu0 0.0
    %8828 = vmatpush1.xpose.msra.mxu0 0.0
    %8829 = vmatprep.subr.mxu0 0.0
    %8830 = vmatpush1.xpose.msra.mxu0 0.0
    %8831 = vmatprep.subr.mxu0 0.0
    %8832 = vmatpush1.xpose.msra.mxu0 0.0
    %8833 = vmatprep.subr.mxu0 0.0
    %8834 = vmatpush1.xpose.msra.mxu0 0.0
    %8835 = vmatprep.subr.mxu0 0.0
    %8836 = vmatpush1.xpose.msra.mxu0 0.0
    %8837 = vmatprep.subr.mxu0 0.0
    %8838 = vmatpush1.xpose.msra.mxu0 0.0
    %8839 = vmatprep.subr.mxu0 0.0
    %8840 = vmatpush1.xpose.msra.mxu0 0.0
    %8841 = vmatprep.subr.mxu0 0.0
    %8842 = vmatpush1.xpose.msra.mxu0 0.0
    %8843 = vmatprep.subr.mxu0 0.0
    %8844 = vmatpush1.xpose.msra.mxu0 0.0
    %8845 = vmatprep.subr.mxu0 0.0
    %8846 = vmatpush1.xpose.msra.mxu0 0.0
    %8847 = vmatprep.subr.mxu0 0.0
    %8848 = vmatpush1.xpose.msra.mxu0 0.0
    %8849 = vmatprep.subr.mxu0 0.0
    %8850 = vmatpush1.xpose.msra.mxu0 0.0
    %8851 = vmatprep.subr.mxu0 %v7568
    %8852 = vmatpush1.xpose.msra.mxu0 %v7567
    %8853 = vmatprep.subr.mxu0 %v7560
    %8854 = vmatpush1.xpose.msra.mxu0 %v7559
    %8855 = vmatprep.subr.mxu0 0.0
    %8856 = vmatpush2.xpose.msra.mxu0 0.0
    %8857 = vmatprep.subr.mxu0 0.0
    %8858 = vmatpush2.xpose.msra.mxu0 0.0
    %8859 = vmatprep.subr.mxu0 0.0
    %8860 = vmatpush2.xpose.msra.mxu0 0.0
    %8861 = vmatprep.subr.mxu0 0.0
    %8862 = vmatpush2.xpose.msra.mxu0 0.0
    %8863 = vmatprep.subr.mxu0 0.0
    %8864 = vmatpush2.xpose.msra.mxu0 0.0
    %8865 = vmatprep.subr.mxu0 0.0
    %8866 = vmatpush2.xpose.msra.mxu0 0.0
    %8867 = vmatprep.subr.mxu0 0.0
    %8868 = vmatpush2.xpose.msra.mxu0 0.0
    %8869 = vmatprep.subr.mxu0 0.0
    %8870 = vmatpush2.xpose.msra.mxu0 0.0
    %8871 = vmatprep.subr.mxu0 0.0
    %8872 = vmatpush2.xpose.msra.mxu0 0.0
    %8873 = vmatprep.subr.mxu0 0.0
    %8874 = vmatpush2.xpose.msra.mxu0 0.0
    %8875 = vmatprep.subr.mxu0 0.0
    %8876 = vmatpush2.xpose.msra.mxu0 0.0
    %8877 = vmatprep.subr.mxu0 0.0
    %8878 = vmatpush2.xpose.msra.mxu0 0.0
    %8879 = vmatprep.subr.mxu0 0.0
    %8880 = vmatpush2.xpose.msra.mxu0 0.0
    %8881 = vmatprep.subr.mxu0 0.0
    %8882 = vmatpush2.xpose.msra.mxu0 0.0
    %8883 = vmatprep.subr.mxu0 0.0
    %8884 = vmatpush2.xpose.msra.mxu0 0.0
    %8885 = vmatprep.subr.mxu0 0.0
    %8886 = vmatpush2.xpose.msra.mxu0 0.0
    %8887 = vmatprep.mubr.f32.mxu0 %v8673
    %8888 = vmatmul.mubr.f32.gmra.mxu0 %v8665
    %v8889 = vpop.f32.mrf.mxu0
    %v8890 = vadd.f32 %v8820, %v8889
    %v8891 = vpop.f32.mrf.mxu0
    %8892 = vdwg.mxu0
    %8893 = vmatprep.subr.mxu0 0.0
    %8894 = vmatpush1.xpose.msra.mxu0 0.0
    %8895 = vmatprep.subr.mxu0 0.0
    %8896 = vmatpush1.xpose.msra.mxu0 0.0
    %8897 = vmatprep.subr.mxu0 0.0
    %8898 = vmatpush1.xpose.msra.mxu0 0.0
    %8899 = vmatprep.subr.mxu0 0.0
    %8900 = vmatpush1.xpose.msra.mxu0 0.0
    %8901 = vmatprep.subr.mxu0 0.0
    %8902 = vmatpush1.xpose.msra.mxu0 0.0
    %8903 = vmatprep.subr.mxu0 0.0
    %8904 = vmatpush1.xpose.msra.mxu0 0.0
    %8905 = vmatprep.subr.mxu0 0.0
    %8906 = vmatpush1.xpose.msra.mxu0 0.0
    %8907 = vmatprep.subr.mxu0 0.0
    %8908 = vmatpush1.xpose.msra.mxu0 0.0
    %8909 = vmatprep.subr.mxu0 0.0
    %8910 = vmatpush1.xpose.msra.mxu0 0.0
    %8911 = vmatprep.subr.mxu0 0.0
    %8912 = vmatpush1.xpose.msra.mxu0 0.0
    %8913 = vmatprep.subr.mxu0 0.0
    %8914 = vmatpush1.xpose.msra.mxu0 0.0
    %8915 = vmatprep.subr.mxu0 0.0
    %8916 = vmatpush1.xpose.msra.mxu0 0.0
    %8917 = vmatprep.subr.mxu0 0.0
    %8918 = vmatpush1.xpose.msra.mxu0 0.0
    %8919 = vmatprep.subr.mxu0 0.0
    %8920 = vmatpush1.xpose.msra.mxu0 0.0
    %8921 = vmatprep.subr.mxu0 %v7570
    %8922 = vmatpush1.xpose.msra.mxu0 %v7569
    %8923 = vmatprep.subr.mxu0 %v7562
    %8924 = vmatpush1.xpose.msra.mxu0 %v7561
    %8925 = vmatprep.subr.mxu0 0.0
    %8926 = vmatpush2.xpose.msra.mxu0 0.0
    %8927 = vmatprep.subr.mxu0 0.0
    %8928 = vmatpush2.xpose.msra.mxu0 0.0
    %8929 = vmatprep.subr.mxu0 0.0
    %8930 = vmatpush2.xpose.msra.mxu0 0.0
    %8931 = vmatprep.subr.mxu0 0.0
    %8932 = vmatpush2.xpose.msra.mxu0 0.0
    %8933 = vmatprep.subr.mxu0 0.0
    %8934 = vmatpush2.xpose.msra.mxu0 0.0
    %8935 = vmatprep.subr.mxu0 0.0
    %8936 = vmatpush2.xpose.msra.mxu0 0.0
    %8937 = vmatprep.subr.mxu0 0.0
    %8938 = vmatpush2.xpose.msra.mxu0 0.0
    %8939 = vmatprep.subr.mxu0 0.0
    %8940 = vmatpush2.xpose.msra.mxu0 0.0
    %8941 = vmatprep.subr.mxu0 0.0
    %8942 = vmatpush2.xpose.msra.mxu0 0.0
    %8943 = vmatprep.subr.mxu0 0.0
    %8944 = vmatpush2.xpose.msra.mxu0 0.0
    %8945 = vmatprep.subr.mxu0 0.0
    %8946 = vmatpush2.xpose.msra.mxu0 0.0
    %8947 = vmatprep.subr.mxu0 0.0
    %8948 = vmatpush2.xpose.msra.mxu0 0.0
    %8949 = vmatprep.subr.mxu0 0.0
    %8950 = vmatpush2.xpose.msra.mxu0 0.0
    %8951 = vmatprep.subr.mxu0 0.0
    %8952 = vmatpush2.xpose.msra.mxu0 0.0
    %8953 = vmatprep.subr.mxu0 0.0
    %8954 = vmatpush2.xpose.msra.mxu0 0.0
    %8955 = vmatprep.subr.mxu0 0.0
    %8956 = vmatpush2.xpose.msra.mxu0 0.0
    %8957 = vmatprep.mubr.f32.mxu0 %v8674
    %8958 = vmatmul.mubr.f32.gmra.mxu0 %v8672
    %v8959 = vpop.f32.mrf.mxu0
    %v8960 = vadd.f32 %v8890, %v8959
    %v8961 = vpop.f32.mrf.mxu0
    %8962 = vdwg.mxu0
    %v8965 = vcombine.high %v7379, %v7379
    %v8967 = vunpack.c.l.s4 1983009808
    %v8968 = vunpack.c.0.s8 %v8967
    %v8969 = vlaneseq
    %v8970 = vshrl.u32 %v8969, 7
    %v8971 = vsub.s32 %v8968, %v8970
    %v8972 = vrot.slane %v7379, %v8971
    %v8974 = vunpack.c.l.s4 1983009808
    %v8975 = vunpack.c.0.s8 %v8974
    %v8976 = vlaneseq
    %v8977 = vshrl.u32 %v8976, 7
    %v8978 = vsub.s32 %v8975, %v8977
    %v8979 = vrot.slane %v8965, %v8978
    %v8980 = vcombine.high %v8972, %v8972
    %v8981 = vcombine.high %v8979, %v8979
    %v8982 = vcombine.high %v7469, %v7469
    %v8984 = vunpack.c.l.s4 1983009808
    %v8985 = vunpack.c.0.s8 %v8984
    %v8986 = vlaneseq
    %v8987 = vshrl.u32 %v8986, 7
    %v8988 = vsub.s32 %v8985, %v8987
    %v8989 = vrot.slane %v7469, %v8988
    %v8991 = vunpack.c.l.s4 1983009808
    %v8992 = vunpack.c.0.s8 %v8991
    %v8993 = vlaneseq
    %v8994 = vshrl.u32 %v8993, 7
    %v8995 = vsub.s32 %v8992, %v8994
    %v8996 = vrot.slane %v8982, %v8995
    %v8997 = vcombine.high %v8989, %v8989
    %v8998 = vcombine.high %v8996, %v8996
    %9007 = vmatprep.subr.mxu0 0.0
    %9008 = vmatpush1.xpose.msra.mxu0 0.0
    %9009 = vmatprep.subr.mxu0 0.0
    %9010 = vmatpush1.xpose.msra.mxu0 0.0
    %9011 = vmatprep.subr.mxu0 0.0
    %9012 = vmatpush1.xpose.msra.mxu0 0.0
    %9013 = vmatprep.subr.mxu0 0.0
    %9014 = vmatpush1.xpose.msra.mxu0 0.0
    %9015 = vmatprep.subr.mxu0 0.0
    %9016 = vmatpush1.xpose.msra.mxu0 0.0
    %9017 = vmatprep.subr.mxu0 0.0
    %9018 = vmatpush1.xpose.msra.mxu0 0.0
    %9019 = vmatprep.subr.mxu0 0.0
    %9020 = vmatpush1.xpose.msra.mxu0 0.0
    %9021 = vmatprep.subr.mxu0 0.0
    %9022 = vmatpush1.xpose.msra.mxu0 0.0
    %9023 = vmatprep.subr.mxu0 0.0
    %9024 = vmatpush1.xpose.msra.mxu0 0.0
    %9025 = vmatprep.subr.mxu0 0.0
    %9026 = vmatpush1.xpose.msra.mxu0 0.0
    %9027 = vmatprep.subr.mxu0 0.0
    %9028 = vmatpush1.xpose.msra.mxu0 0.0
    %9029 = vmatprep.subr.mxu0 0.0
    %9030 = vmatpush1.xpose.msra.mxu0 0.0
    %9031 = vmatprep.subr.mxu0 0.0
    %9032 = vmatpush1.xpose.msra.mxu0 0.0
    %9033 = vmatprep.subr.mxu0 0.0
    %9034 = vmatpush1.xpose.msra.mxu0 0.0
    %9035 = vmatprep.subr.mxu0 %v7580
    %9036 = vmatpush1.xpose.msra.mxu0 %v7579
    %9037 = vmatprep.subr.mxu0 %v7572
    %9038 = vmatpush1.xpose.msra.mxu0 %v7571
    %9039 = vmatprep.subr.mxu0 0.0
    %9040 = vmatpush2.xpose.msra.mxu0 0.0
    %9041 = vmatprep.subr.mxu0 0.0
    %9042 = vmatpush2.xpose.msra.mxu0 0.0
    %9043 = vmatprep.subr.mxu0 0.0
    %9044 = vmatpush2.xpose.msra.mxu0 0.0
    %9045 = vmatprep.subr.mxu0 0.0
    %9046 = vmatpush2.xpose.msra.mxu0 0.0
    %9047 = vmatprep.subr.mxu0 0.0
    %9048 = vmatpush2.xpose.msra.mxu0 0.0
    %9049 = vmatprep.subr.mxu0 0.0
    %9050 = vmatpush2.xpose.msra.mxu0 0.0
    %9051 = vmatprep.subr.mxu0 0.0
    %9052 = vmatpush2.xpose.msra.mxu0 0.0
    %9053 = vmatprep.subr.mxu0 0.0
    %9054 = vmatpush2.xpose.msra.mxu0 0.0
    %9055 = vmatprep.subr.mxu0 0.0
    %9056 = vmatpush2.xpose.msra.mxu0 0.0
    %9057 = vmatprep.subr.mxu0 0.0
    %9058 = vmatpush2.xpose.msra.mxu0 0.0
    %9059 = vmatprep.subr.mxu0 0.0
    %9060 = vmatpush2.xpose.msra.mxu0 0.0
    %9061 = vmatprep.subr.mxu0 0.0
    %9062 = vmatpush2.xpose.msra.mxu0 0.0
    %9063 = vmatprep.subr.mxu0 0.0
    %9064 = vmatpush2.xpose.msra.mxu0 0.0
    %9065 = vmatprep.subr.mxu0 0.0
    %9066 = vmatpush2.xpose.msra.mxu0 0.0
    %9067 = vmatprep.subr.mxu0 0.0
    %9068 = vmatpush2.xpose.msra.mxu0 0.0
    %9069 = vmatprep.subr.mxu0 0.0
    %9070 = vmatpush2.xpose.msra.mxu0 0.0
    %9071 = vmatprep.mubr.f32.mxu0 %v8980
    %9072 = vmatmul.mubr.f32.gmra.mxu0 %v8972
    %v9073 = vpop.f32.mrf.mxu0
    %v9074 = vadd.f32 0.0, %v9073
    %v9075 = vpop.f32.mrf.mxu0
    %9076 = vdwg.mxu0
    %9077 = vmatprep.subr.mxu0 0.0
    %9078 = vmatpush1.xpose.msra.mxu0 0.0
    %9079 = vmatprep.subr.mxu0 0.0
    %9080 = vmatpush1.xpose.msra.mxu0 0.0
    %9081 = vmatprep.subr.mxu0 0.0
    %9082 = vmatpush1.xpose.msra.mxu0 0.0
    %9083 = vmatprep.subr.mxu0 0.0
    %9084 = vmatpush1.xpose.msra.mxu0 0.0
    %9085 = vmatprep.subr.mxu0 0.0
    %9086 = vmatpush1.xpose.msra.mxu0 0.0
    %9087 = vmatprep.subr.mxu0 0.0
    %9088 = vmatpush1.xpose.msra.mxu0 0.0
    %9089 = vmatprep.subr.mxu0 0.0
    %9090 = vmatpush1.xpose.msra.mxu0 0.0
    %9091 = vmatprep.subr.mxu0 0.0
    %9092 = vmatpush1.xpose.msra.mxu0 0.0
    %9093 = vmatprep.subr.mxu0 0.0
    %9094 = vmatpush1.xpose.msra.mxu0 0.0
    %9095 = vmatprep.subr.mxu0 0.0
    %9096 = vmatpush1.xpose.msra.mxu0 0.0
    %9097 = vmatprep.subr.mxu0 0.0
    %9098 = vmatpush1.xpose.msra.mxu0 0.0
    %9099 = vmatprep.subr.mxu0 0.0
    %9100 = vmatpush1.xpose.msra.mxu0 0.0
    %9101 = vmatprep.subr.mxu0 0.0
    %9102 = vmatpush1.xpose.msra.mxu0 0.0
    %9103 = vmatprep.subr.mxu0 0.0
    %9104 = vmatpush1.xpose.msra.mxu0 0.0
    %9105 = vmatprep.subr.mxu0 %v7582
    %9106 = vmatpush1.xpose.msra.mxu0 %v7581
    %9107 = vmatprep.subr.mxu0 %v7574
    %9108 = vmatpush1.xpose.msra.mxu0 %v7573
    %9109 = vmatprep.subr.mxu0 0.0
    %9110 = vmatpush2.xpose.msra.mxu0 0.0
    %9111 = vmatprep.subr.mxu0 0.0
    %9112 = vmatpush2.xpose.msra.mxu0 0.0
    %9113 = vmatprep.subr.mxu0 0.0
    %9114 = vmatpush2.xpose.msra.mxu0 0.0
    %9115 = vmatprep.subr.mxu0 0.0
    %9116 = vmatpush2.xpose.msra.mxu0 0.0
    %9117 = vmatprep.subr.mxu0 0.0
    %9118 = vmatpush2.xpose.msra.mxu0 0.0
    %9119 = vmatprep.subr.mxu0 0.0
    %9120 = vmatpush2.xpose.msra.mxu0 0.0
    %9121 = vmatprep.subr.mxu0 0.0
    %9122 = vmatpush2.xpose.msra.mxu0 0.0
    %9123 = vmatprep.subr.mxu0 0.0
    %9124 = vmatpush2.xpose.msra.mxu0 0.0
    %9125 = vmatprep.subr.mxu0 0.0
    %9126 = vmatpush2.xpose.msra.mxu0 0.0
    %9127 = vmatprep.subr.mxu0 0.0
    %9128 = vmatpush2.xpose.msra.mxu0 0.0
    %9129 = vmatprep.subr.mxu0 0.0
    %9130 = vmatpush2.xpose.msra.mxu0 0.0
    %9131 = vmatprep.subr.mxu0 0.0
    %9132 = vmatpush2.xpose.msra.mxu0 0.0
    %9133 = vmatprep.subr.mxu0 0.0
    %9134 = vmatpush2.xpose.msra.mxu0 0.0
    %9135 = vmatprep.subr.mxu0 0.0
    %9136 = vmatpush2.xpose.msra.mxu0 0.0
    %9137 = vmatprep.subr.mxu0 0.0
    %9138 = vmatpush2.xpose.msra.mxu0 0.0
    %9139 = vmatprep.subr.mxu0 0.0
    %9140 = vmatpush2.xpose.msra.mxu0 0.0
    %9141 = vmatprep.mubr.f32.mxu0 %v8981
    %9142 = vmatmul.mubr.f32.gmra.mxu0 %v8979
    %v9143 = vpop.f32.mrf.mxu0
    %v9144 = vadd.f32 %v9074, %v9143
    %v9145 = vpop.f32.mrf.mxu0
    %9146 = vdwg.mxu0
    %9147 = vmatprep.subr.mxu0 0.0
    %9148 = vmatpush1.xpose.msra.mxu0 0.0
    %9149 = vmatprep.subr.mxu0 0.0
    %9150 = vmatpush1.xpose.msra.mxu0 0.0
    %9151 = vmatprep.subr.mxu0 0.0
    %9152 = vmatpush1.xpose.msra.mxu0 0.0
    %9153 = vmatprep.subr.mxu0 0.0
    %9154 = vmatpush1.xpose.msra.mxu0 0.0
    %9155 = vmatprep.subr.mxu0 0.0
    %9156 = vmatpush1.xpose.msra.mxu0 0.0
    %9157 = vmatprep.subr.mxu0 0.0
    %9158 = vmatpush1.xpose.msra.mxu0 0.0
    %9159 = vmatprep.subr.mxu0 0.0
    %9160 = vmatpush1.xpose.msra.mxu0 0.0
    %9161 = vmatprep.subr.mxu0 0.0
    %9162 = vmatpush1.xpose.msra.mxu0 0.0
    %9163 = vmatprep.subr.mxu0 0.0
    %9164 = vmatpush1.xpose.msra.mxu0 0.0
    %9165 = vmatprep.subr.mxu0 0.0
    %9166 = vmatpush1.xpose.msra.mxu0 0.0
    %9167 = vmatprep.subr.mxu0 0.0
    %9168 = vmatpush1.xpose.msra.mxu0 0.0
    %9169 = vmatprep.subr.mxu0 0.0
    %9170 = vmatpush1.xpose.msra.mxu0 0.0
    %9171 = vmatprep.subr.mxu0 0.0
    %9172 = vmatpush1.xpose.msra.mxu0 0.0
    %9173 = vmatprep.subr.mxu0 0.0
    %9174 = vmatpush1.xpose.msra.mxu0 0.0
    %9175 = vmatprep.subr.mxu0 %v7584
    %9176 = vmatpush1.xpose.msra.mxu0 %v7583
    %9177 = vmatprep.subr.mxu0 %v7576
    %9178 = vmatpush1.xpose.msra.mxu0 %v7575
    %9179 = vmatprep.subr.mxu0 0.0
    %9180 = vmatpush2.xpose.msra.mxu0 0.0
    %9181 = vmatprep.subr.mxu0 0.0
    %9182 = vmatpush2.xpose.msra.mxu0 0.0
    %9183 = vmatprep.subr.mxu0 0.0
    %9184 = vmatpush2.xpose.msra.mxu0 0.0
    %9185 = vmatprep.subr.mxu0 0.0
    %9186 = vmatpush2.xpose.msra.mxu0 0.0
    %9187 = vmatprep.subr.mxu0 0.0
    %9188 = vmatpush2.xpose.msra.mxu0 0.0
    %9189 = vmatprep.subr.mxu0 0.0
    %9190 = vmatpush2.xpose.msra.mxu0 0.0
    %9191 = vmatprep.subr.mxu0 0.0
    %9192 = vmatpush2.xpose.msra.mxu0 0.0
    %9193 = vmatprep.subr.mxu0 0.0
    %9194 = vmatpush2.xpose.msra.mxu0 0.0
    %9195 = vmatprep.subr.mxu0 0.0
    %9196 = vmatpush2.xpose.msra.mxu0 0.0
    %9197 = vmatprep.subr.mxu0 0.0
    %9198 = vmatpush2.xpose.msra.mxu0 0.0
    %9199 = vmatprep.subr.mxu0 0.0
    %9200 = vmatpush2.xpose.msra.mxu0 0.0
    %9201 = vmatprep.subr.mxu0 0.0
    %9202 = vmatpush2.xpose.msra.mxu0 0.0
    %9203 = vmatprep.subr.mxu0 0.0
    %9204 = vmatpush2.xpose.msra.mxu0 0.0
    %9205 = vmatprep.subr.mxu0 0.0
    %9206 = vmatpush2.xpose.msra.mxu0 0.0
    %9207 = vmatprep.subr.mxu0 0.0
    %9208 = vmatpush2.xpose.msra.mxu0 0.0
    %9209 = vmatprep.subr.mxu0 0.0
    %9210 = vmatpush2.xpose.msra.mxu0 0.0
    %9211 = vmatprep.mubr.f32.mxu0 %v8997
    %9212 = vmatmul.mubr.f32.gmra.mxu0 %v8989
    %v9213 = vpop.f32.mrf.mxu0
    %v9214 = vadd.f32 %v9144, %v9213
    %v9215 = vpop.f32.mrf.mxu0
    %9216 = vdwg.mxu0
    %9217 = vmatprep.subr.mxu0 0.0
    %9218 = vmatpush1.xpose.msra.mxu0 0.0
    %9219 = vmatprep.subr.mxu0 0.0
    %9220 = vmatpush1.xpose.msra.mxu0 0.0
    %9221 = vmatprep.subr.mxu0 0.0
    %9222 = vmatpush1.xpose.msra.mxu0 0.0
    %9223 = vmatprep.subr.mxu0 0.0
    %9224 = vmatpush1.xpose.msra.mxu0 0.0
    %9225 = vmatprep.subr.mxu0 0.0
    %9226 = vmatpush1.xpose.msra.mxu0 0.0
    %9227 = vmatprep.subr.mxu0 0.0
    %9228 = vmatpush1.xpose.msra.mxu0 0.0
    %9229 = vmatprep.subr.mxu0 0.0
    %9230 = vmatpush1.xpose.msra.mxu0 0.0
    %9231 = vmatprep.subr.mxu0 0.0
    %9232 = vmatpush1.xpose.msra.mxu0 0.0
    %9233 = vmatprep.subr.mxu0 0.0
    %9234 = vmatpush1.xpose.msra.mxu0 0.0
    %9235 = vmatprep.subr.mxu0 0.0
    %9236 = vmatpush1.xpose.msra.mxu0 0.0
    %9237 = vmatprep.subr.mxu0 0.0
    %9238 = vmatpush1.xpose.msra.mxu0 0.0
    %9239 = vmatprep.subr.mxu0 0.0
    %9240 = vmatpush1.xpose.msra.mxu0 0.0
    %9241 = vmatprep.subr.mxu0 0.0
    %9242 = vmatpush1.xpose.msra.mxu0 0.0
    %9243 = vmatprep.subr.mxu0 0.0
    %9244 = vmatpush1.xpose.msra.mxu0 0.0
    %9245 = vmatprep.subr.mxu0 %v7586
    %9246 = vmatpush1.xpose.msra.mxu0 %v7585
    %9247 = vmatprep.subr.mxu0 %v7578
    %9248 = vmatpush1.xpose.msra.mxu0 %v7577
    %9249 = vmatprep.subr.mxu0 0.0
    %9250 = vmatpush2.xpose.msra.mxu0 0.0
    %9251 = vmatprep.subr.mxu0 0.0
    %9252 = vmatpush2.xpose.msra.mxu0 0.0
    %9253 = vmatprep.subr.mxu0 0.0
    %9254 = vmatpush2.xpose.msra.mxu0 0.0
    %9255 = vmatprep.subr.mxu0 0.0
    %9256 = vmatpush2.xpose.msra.mxu0 0.0
    %9257 = vmatprep.subr.mxu0 0.0
    %9258 = vmatpush2.xpose.msra.mxu0 0.0
    %9259 = vmatprep.subr.mxu0 0.0
    %9260 = vmatpush2.xpose.msra.mxu0 0.0
    %9261 = vmatprep.subr.mxu0 0.0
    %9262 = vmatpush2.xpose.msra.mxu0 0.0
    %9263 = vmatprep.subr.mxu0 0.0
    %9264 = vmatpush2.xpose.msra.mxu0 0.0
    %9265 = vmatprep.subr.mxu0 0.0
    %9266 = vmatpush2.xpose.msra.mxu0 0.0
    %9267 = vmatprep.subr.mxu0 0.0
    %9268 = vmatpush2.xpose.msra.mxu0 0.0
    %9269 = vmatprep.subr.mxu0 0.0
    %9270 = vmatpush2.xpose.msra.mxu0 0.0
    %9271 = vmatprep.subr.mxu0 0.0
    %9272 = vmatpush2.xpose.msra.mxu0 0.0
    %9273 = vmatprep.subr.mxu0 0.0
    %9274 = vmatpush2.xpose.msra.mxu0 0.0
    %9275 = vmatprep.subr.mxu0 0.0
    %9276 = vmatpush2.xpose.msra.mxu0 0.0
    %9277 = vmatprep.subr.mxu0 0.0
    %9278 = vmatpush2.xpose.msra.mxu0 0.0
    %9279 = vmatprep.subr.mxu0 0.0
    %9280 = vmatpush2.xpose.msra.mxu0 0.0
    %9281 = vmatprep.mubr.f32.mxu0 %v8998
    %9282 = vmatmul.mubr.f32.gmra.mxu0 %v8996
    %v9283 = vpop.f32.mrf.mxu0
    %v9284 = vadd.f32 %v9214, %v9283
    %v9285 = vpop.f32.mrf.mxu0
    %9286 = vdwg.mxu0
    %v9289 = vcombine.high %v7380, %v7380
    %v9291 = vunpack.c.l.s4 1983009808
    %v9292 = vunpack.c.0.s8 %v9291
    %v9293 = vlaneseq
    %v9294 = vshrl.u32 %v9293, 7
    %v9295 = vsub.s32 %v9292, %v9294
    %v9296 = vrot.slane %v7380, %v9295
    %v9298 = vunpack.c.l.s4 1983009808
    %v9299 = vunpack.c.0.s8 %v9298
    %v9300 = vlaneseq
    %v9301 = vshrl.u32 %v9300, 7
    %v9302 = vsub.s32 %v9299, %v9301
    %v9303 = vrot.slane %v9289, %v9302
    %v9304 = vcombine.high %v9296, %v9296
    %v9305 = vcombine.high %v9303, %v9303
    %v9306 = vcombine.high %v7470, %v7470
    %v9308 = vunpack.c.l.s4 1983009808
    %v9309 = vunpack.c.0.s8 %v9308
    %v9310 = vlaneseq
    %v9311 = vshrl.u32 %v9310, 7
    %v9312 = vsub.s32 %v9309, %v9311
    %v9313 = vrot.slane %v7470, %v9312
    %v9315 = vunpack.c.l.s4 1983009808
    %v9316 = vunpack.c.0.s8 %v9315
    %v9317 = vlaneseq
    %v9318 = vshrl.u32 %v9317, 7
    %v9319 = vsub.s32 %v9316, %v9318
    %v9320 = vrot.slane %v9306, %v9319
    %v9321 = vcombine.high %v9313, %v9313
    %v9322 = vcombine.high %v9320, %v9320
    %9331 = vmatprep.subr.mxu0 0.0
    %9332 = vmatpush1.xpose.msra.mxu0 0.0
    %9333 = vmatprep.subr.mxu0 0.0
    %9334 = vmatpush1.xpose.msra.mxu0 0.0
    %9335 = vmatprep.subr.mxu0 0.0
    %9336 = vmatpush1.xpose.msra.mxu0 0.0
    %9337 = vmatprep.subr.mxu0 0.0
    %9338 = vmatpush1.xpose.msra.mxu0 0.0
    %9339 = vmatprep.subr.mxu0 0.0
    %9340 = vmatpush1.xpose.msra.mxu0 0.0
    %9341 = vmatprep.subr.mxu0 0.0
    %9342 = vmatpush1.xpose.msra.mxu0 0.0
    %9343 = vmatprep.subr.mxu0 0.0
    %9344 = vmatpush1.xpose.msra.mxu0 0.0
    %9345 = vmatprep.subr.mxu0 0.0
    %9346 = vmatpush1.xpose.msra.mxu0 0.0
    %9347 = vmatprep.subr.mxu0 0.0
    %9348 = vmatpush1.xpose.msra.mxu0 0.0
    %9349 = vmatprep.subr.mxu0 0.0
    %9350 = vmatpush1.xpose.msra.mxu0 0.0
    %9351 = vmatprep.subr.mxu0 0.0
    %9352 = vmatpush1.xpose.msra.mxu0 0.0
    %9353 = vmatprep.subr.mxu0 0.0
    %9354 = vmatpush1.xpose.msra.mxu0 0.0
    %9355 = vmatprep.subr.mxu0 0.0
    %9356 = vmatpush1.xpose.msra.mxu0 0.0
    %9357 = vmatprep.subr.mxu0 0.0
    %9358 = vmatpush1.xpose.msra.mxu0 0.0
    %9359 = vmatprep.subr.mxu0 %v7596
    %9360 = vmatpush1.xpose.msra.mxu0 %v7595
    %9361 = vmatprep.subr.mxu0 %v7588
    %9362 = vmatpush1.xpose.msra.mxu0 %v7587
    %9363 = vmatprep.subr.mxu0 0.0
    %9364 = vmatpush2.xpose.msra.mxu0 0.0
    %9365 = vmatprep.subr.mxu0 0.0
    %9366 = vmatpush2.xpose.msra.mxu0 0.0
    %9367 = vmatprep.subr.mxu0 0.0
    %9368 = vmatpush2.xpose.msra.mxu0 0.0
    %9369 = vmatprep.subr.mxu0 0.0
    %9370 = vmatpush2.xpose.msra.mxu0 0.0
    %9371 = vmatprep.subr.mxu0 0.0
    %9372 = vmatpush2.xpose.msra.mxu0 0.0
    %9373 = vmatprep.subr.mxu0 0.0
    %9374 = vmatpush2.xpose.msra.mxu0 0.0
    %9375 = vmatprep.subr.mxu0 0.0
    %9376 = vmatpush2.xpose.msra.mxu0 0.0
    %9377 = vmatprep.subr.mxu0 0.0
    %9378 = vmatpush2.xpose.msra.mxu0 0.0
    %9379 = vmatprep.subr.mxu0 0.0
    %9380 = vmatpush2.xpose.msra.mxu0 0.0
    %9381 = vmatprep.subr.mxu0 0.0
    %9382 = vmatpush2.xpose.msra.mxu0 0.0
    %9383 = vmatprep.subr.mxu0 0.0
    %9384 = vmatpush2.xpose.msra.mxu0 0.0
    %9385 = vmatprep.subr.mxu0 0.0
    %9386 = vmatpush2.xpose.msra.mxu0 0.0
    %9387 = vmatprep.subr.mxu0 0.0
    %9388 = vmatpush2.xpose.msra.mxu0 0.0
    %9389 = vmatprep.subr.mxu0 0.0
    %9390 = vmatpush2.xpose.msra.mxu0 0.0
    %9391 = vmatprep.subr.mxu0 0.0
    %9392 = vmatpush2.xpose.msra.mxu0 0.0
    %9393 = vmatprep.subr.mxu0 0.0
    %9394 = vmatpush2.xpose.msra.mxu0 0.0
    %9395 = vmatprep.mubr.f32.mxu0 %v9304
    %9396 = vmatmul.mubr.f32.gmra.mxu0 %v9296
    %v9397 = vpop.f32.mrf.mxu0
    %v9398 = vadd.f32 0.0, %v9397
    %v9399 = vpop.f32.mrf.mxu0
    %9400 = vdwg.mxu0
    %9401 = vmatprep.subr.mxu0 0.0
    %9402 = vmatpush1.xpose.msra.mxu0 0.0
    %9403 = vmatprep.subr.mxu0 0.0
    %9404 = vmatpush1.xpose.msra.mxu0 0.0
    %9405 = vmatprep.subr.mxu0 0.0
    %9406 = vmatpush1.xpose.msra.mxu0 0.0
    %9407 = vmatprep.subr.mxu0 0.0
    %9408 = vmatpush1.xpose.msra.mxu0 0.0
    %9409 = vmatprep.subr.mxu0 0.0
    %9410 = vmatpush1.xpose.msra.mxu0 0.0
    %9411 = vmatprep.subr.mxu0 0.0
    %9412 = vmatpush1.xpose.msra.mxu0 0.0
    %9413 = vmatprep.subr.mxu0 0.0
    %9414 = vmatpush1.xpose.msra.mxu0 0.0
    %9415 = vmatprep.subr.mxu0 0.0
    %9416 = vmatpush1.xpose.msra.mxu0 0.0
    %9417 = vmatprep.subr.mxu0 0.0
    %9418 = vmatpush1.xpose.msra.mxu0 0.0
    %9419 = vmatprep.subr.mxu0 0.0
    %9420 = vmatpush1.xpose.msra.mxu0 0.0
    %9421 = vmatprep.subr.mxu0 0.0
    %9422 = vmatpush1.xpose.msra.mxu0 0.0
    %9423 = vmatprep.subr.mxu0 0.0
    %9424 = vmatpush1.xpose.msra.mxu0 0.0
    %9425 = vmatprep.subr.mxu0 0.0
    %9426 = vmatpush1.xpose.msra.mxu0 0.0
    %9427 = vmatprep.subr.mxu0 0.0
    %9428 = vmatpush1.xpose.msra.mxu0 0.0
    %9429 = vmatprep.subr.mxu0 %v7598
    %9430 = vmatpush1.xpose.msra.mxu0 %v7597
    %9431 = vmatprep.subr.mxu0 %v7590
    %9432 = vmatpush1.xpose.msra.mxu0 %v7589
    %9433 = vmatprep.subr.mxu0 0.0
    %9434 = vmatpush2.xpose.msra.mxu0 0.0
    %9435 = vmatprep.subr.mxu0 0.0
    %9436 = vmatpush2.xpose.msra.mxu0 0.0
    %9437 = vmatprep.subr.mxu0 0.0
    %9438 = vmatpush2.xpose.msra.mxu0 0.0
    %9439 = vmatprep.subr.mxu0 0.0
    %9440 = vmatpush2.xpose.msra.mxu0 0.0
    %9441 = vmatprep.subr.mxu0 0.0
    %9442 = vmatpush2.xpose.msra.mxu0 0.0
    %9443 = vmatprep.subr.mxu0 0.0
    %9444 = vmatpush2.xpose.msra.mxu0 0.0
    %9445 = vmatprep.subr.mxu0 0.0
    %9446 = vmatpush2.xpose.msra.mxu0 0.0
    %9447 = vmatprep.subr.mxu0 0.0
    %9448 = vmatpush2.xpose.msra.mxu0 0.0
    %9449 = vmatprep.subr.mxu0 0.0
    %9450 = vmatpush2.xpose.msra.mxu0 0.0
    %9451 = vmatprep.subr.mxu0 0.0
    %9452 = vmatpush2.xpose.msra.mxu0 0.0
    %9453 = vmatprep.subr.mxu0 0.0
    %9454 = vmatpush2.xpose.msra.mxu0 0.0
    %9455 = vmatprep.subr.mxu0 0.0
    %9456 = vmatpush2.xpose.msra.mxu0 0.0
    %9457 = vmatprep.subr.mxu0 0.0
    %9458 = vmatpush2.xpose.msra.mxu0 0.0
    %9459 = vmatprep.subr.mxu0 0.0
    %9460 = vmatpush2.xpose.msra.mxu0 0.0
    %9461 = vmatprep.subr.mxu0 0.0
    %9462 = vmatpush2.xpose.msra.mxu0 0.0
    %9463 = vmatprep.subr.mxu0 0.0
    %9464 = vmatpush2.xpose.msra.mxu0 0.0
    %9465 = vmatprep.mubr.f32.mxu0 %v9305
    %9466 = vmatmul.mubr.f32.gmra.mxu0 %v9303
    %v9467 = vpop.f32.mrf.mxu0
    %v9468 = vadd.f32 %v9398, %v9467
    %v9469 = vpop.f32.mrf.mxu0
    %9470 = vdwg.mxu0
    %9471 = vmatprep.subr.mxu0 0.0
    %9472 = vmatpush1.xpose.msra.mxu0 0.0
    %9473 = vmatprep.subr.mxu0 0.0
    %9474 = vmatpush1.xpose.msra.mxu0 0.0
    %9475 = vmatprep.subr.mxu0 0.0
    %9476 = vmatpush1.xpose.msra.mxu0 0.0
    %9477 = vmatprep.subr.mxu0 0.0
    %9478 = vmatpush1.xpose.msra.mxu0 0.0
    %9479 = vmatprep.subr.mxu0 0.0
    %9480 = vmatpush1.xpose.msra.mxu0 0.0
    %9481 = vmatprep.subr.mxu0 0.0
    %9482 = vmatpush1.xpose.msra.mxu0 0.0
    %9483 = vmatprep.subr.mxu0 0.0
    %9484 = vmatpush1.xpose.msra.mxu0 0.0
    %9485 = vmatprep.subr.mxu0 0.0
    %9486 = vmatpush1.xpose.msra.mxu0 0.0
    %9487 = vmatprep.subr.mxu0 0.0
    %9488 = vmatpush1.xpose.msra.mxu0 0.0
    %9489 = vmatprep.subr.mxu0 0.0
    %9490 = vmatpush1.xpose.msra.mxu0 0.0
    %9491 = vmatprep.subr.mxu0 0.0
    %9492 = vmatpush1.xpose.msra.mxu0 0.0
    %9493 = vmatprep.subr.mxu0 0.0
    %9494 = vmatpush1.xpose.msra.mxu0 0.0
    %9495 = vmatprep.subr.mxu0 0.0
    %9496 = vmatpush1.xpose.msra.mxu0 0.0
    %9497 = vmatprep.subr.mxu0 0.0
    %9498 = vmatpush1.xpose.msra.mxu0 0.0
    %9499 = vmatprep.subr.mxu0 %v7600
    %9500 = vmatpush1.xpose.msra.mxu0 %v7599
    %9501 = vmatprep.subr.mxu0 %v7592
    %9502 = vmatpush1.xpose.msra.mxu0 %v7591
    %9503 = vmatprep.subr.mxu0 0.0
    %9504 = vmatpush2.xpose.msra.mxu0 0.0
    %9505 = vmatprep.subr.mxu0 0.0
    %9506 = vmatpush2.xpose.msra.mxu0 0.0
    %9507 = vmatprep.subr.mxu0 0.0
    %9508 = vmatpush2.xpose.msra.mxu0 0.0
    %9509 = vmatprep.subr.mxu0 0.0
    %9510 = vmatpush2.xpose.msra.mxu0 0.0
    %9511 = vmatprep.subr.mxu0 0.0
    %9512 = vmatpush2.xpose.msra.mxu0 0.0
    %9513 = vmatprep.subr.mxu0 0.0
    %9514 = vmatpush2.xpose.msra.mxu0 0.0
    %9515 = vmatprep.subr.mxu0 0.0
    %9516 = vmatpush2.xpose.msra.mxu0 0.0
    %9517 = vmatprep.subr.mxu0 0.0
    %9518 = vmatpush2.xpose.msra.mxu0 0.0
    %9519 = vmatprep.subr.mxu0 0.0
    %9520 = vmatpush2.xpose.msra.mxu0 0.0
    %9521 = vmatprep.subr.mxu0 0.0
    %9522 = vmatpush2.xpose.msra.mxu0 0.0
    %9523 = vmatprep.subr.mxu0 0.0
    %9524 = vmatpush2.xpose.msra.mxu0 0.0
    %9525 = vmatprep.subr.mxu0 0.0
    %9526 = vmatpush2.xpose.msra.mxu0 0.0
    %9527 = vmatprep.subr.mxu0 0.0
    %9528 = vmatpush2.xpose.msra.mxu0 0.0
    %9529 = vmatprep.subr.mxu0 0.0
    %9530 = vmatpush2.xpose.msra.mxu0 0.0
    %9531 = vmatprep.subr.mxu0 0.0
    %9532 = vmatpush2.xpose.msra.mxu0 0.0
    %9533 = vmatprep.subr.mxu0 0.0
    %9534 = vmatpush2.xpose.msra.mxu0 0.0
    %9535 = vmatprep.mubr.f32.mxu0 %v9321
    %9536 = vmatmul.mubr.f32.gmra.mxu0 %v9313
    %v9537 = vpop.f32.mrf.mxu0
    %v9538 = vadd.f32 %v9468, %v9537
    %v9539 = vpop.f32.mrf.mxu0
    %9540 = vdwg.mxu0
    %9541 = vmatprep.subr.mxu0 0.0
    %9542 = vmatpush1.xpose.msra.mxu0 0.0
    %9543 = vmatprep.subr.mxu0 0.0
    %9544 = vmatpush1.xpose.msra.mxu0 0.0
    %9545 = vmatprep.subr.mxu0 0.0
    %9546 = vmatpush1.xpose.msra.mxu0 0.0
    %9547 = vmatprep.subr.mxu0 0.0
    %9548 = vmatpush1.xpose.msra.mxu0 0.0
    %9549 = vmatprep.subr.mxu0 0.0
    %9550 = vmatpush1.xpose.msra.mxu0 0.0
    %9551 = vmatprep.subr.mxu0 0.0
    %9552 = vmatpush1.xpose.msra.mxu0 0.0
    %9553 = vmatprep.subr.mxu0 0.0
    %9554 = vmatpush1.xpose.msra.mxu0 0.0
    %9555 = vmatprep.subr.mxu0 0.0
    %9556 = vmatpush1.xpose.msra.mxu0 0.0
    %9557 = vmatprep.subr.mxu0 0.0
    %9558 = vmatpush1.xpose.msra.mxu0 0.0
    %9559 = vmatprep.subr.mxu0 0.0
    %9560 = vmatpush1.xpose.msra.mxu0 0.0
    %9561 = vmatprep.subr.mxu0 0.0
    %9562 = vmatpush1.xpose.msra.mxu0 0.0
    %9563 = vmatprep.subr.mxu0 0.0
    %9564 = vmatpush1.xpose.msra.mxu0 0.0
    %9565 = vmatprep.subr.mxu0 0.0
    %9566 = vmatpush1.xpose.msra.mxu0 0.0
    %9567 = vmatprep.subr.mxu0 0.0
    %9568 = vmatpush1.xpose.msra.mxu0 0.0
    %9569 = vmatprep.subr.mxu0 %v7602
    %9570 = vmatpush1.xpose.msra.mxu0 %v7601
    %9571 = vmatprep.subr.mxu0 %v7594
    %9572 = vmatpush1.xpose.msra.mxu0 %v7593
    %9573 = vmatprep.subr.mxu0 0.0
    %9574 = vmatpush2.xpose.msra.mxu0 0.0
    %9575 = vmatprep.subr.mxu0 0.0
    %9576 = vmatpush2.xpose.msra.mxu0 0.0
    %9577 = vmatprep.subr.mxu0 0.0
    %9578 = vmatpush2.xpose.msra.mxu0 0.0
    %9579 = vmatprep.subr.mxu0 0.0
    %9580 = vmatpush2.xpose.msra.mxu0 0.0
    %9581 = vmatprep.subr.mxu0 0.0
    %9582 = vmatpush2.xpose.msra.mxu0 0.0
    %9583 = vmatprep.subr.mxu0 0.0
    %9584 = vmatpush2.xpose.msra.mxu0 0.0
    %9585 = vmatprep.subr.mxu0 0.0
    %9586 = vmatpush2.xpose.msra.mxu0 0.0
    %9587 = vmatprep.subr.mxu0 0.0
    %9588 = vmatpush2.xpose.msra.mxu0 0.0
    %9589 = vmatprep.subr.mxu0 0.0
    %9590 = vmatpush2.xpose.msra.mxu0 0.0
    %9591 = vmatprep.subr.mxu0 0.0
    %9592 = vmatpush2.xpose.msra.mxu0 0.0
    %9593 = vmatprep.subr.mxu0 0.0
    %9594 = vmatpush2.xpose.msra.mxu0 0.0
    %9595 = vmatprep.subr.mxu0 0.0
    %9596 = vmatpush2.xpose.msra.mxu0 0.0
    %9597 = vmatprep.subr.mxu0 0.0
    %9598 = vmatpush2.xpose.msra.mxu0 0.0
    %9599 = vmatprep.subr.mxu0 0.0
    %9600 = vmatpush2.xpose.msra.mxu0 0.0
    %9601 = vmatprep.subr.mxu0 0.0
    %9602 = vmatpush2.xpose.msra.mxu0 0.0
    %9603 = vmatprep.subr.mxu0 0.0
    %9604 = vmatpush2.xpose.msra.mxu0 0.0
    %9605 = vmatprep.mubr.f32.mxu0 %v9322
    %9606 = vmatmul.mubr.f32.gmra.mxu0 %v9320
    %v9607 = vpop.f32.mrf.mxu0
    %v9608 = vadd.f32 %v9538, %v9607
    %v9609 = vpop.f32.mrf.mxu0
    %9610 = vdwg.mxu0
    %v9613 = vcombine.high %v7397, %v7397
    %v9615 = vunpack.c.l.s4 1983009808
    %v9616 = vunpack.c.0.s8 %v9615
    %v9617 = vlaneseq
    %v9618 = vshrl.u32 %v9617, 7
    %v9619 = vsub.s32 %v9616, %v9618
    %v9620 = vrot.slane %v7397, %v9619
    %v9622 = vunpack.c.l.s4 1983009808
    %v9623 = vunpack.c.0.s8 %v9622
    %v9624 = vlaneseq
    %v9625 = vshrl.u32 %v9624, 7
    %v9626 = vsub.s32 %v9623, %v9625
    %v9627 = vrot.slane %v9613, %v9626
    %v9628 = vcombine.high %v9620, %v9620
    %v9629 = vcombine.high %v9627, %v9627
    %v9630 = vcombine.high %v7487, %v7487
    %v9632 = vunpack.c.l.s4 1983009808
    %v9633 = vunpack.c.0.s8 %v9632
    %v9634 = vlaneseq
    %v9635 = vshrl.u32 %v9634, 7
    %v9636 = vsub.s32 %v9633, %v9635
    %v9637 = vrot.slane %v7487, %v9636
    %v9639 = vunpack.c.l.s4 1983009808
    %v9640 = vunpack.c.0.s8 %v9639
    %v9641 = vlaneseq
    %v9642 = vshrl.u32 %v9641, 7
    %v9643 = vsub.s32 %v9640, %v9642
    %v9644 = vrot.slane %v9630, %v9643
    %v9645 = vcombine.high %v9637, %v9637
    %v9646 = vcombine.high %v9644, %v9644
    %9655 = vmatprep.subr.mxu0 0.0
    %9656 = vmatpush1.xpose.msra.mxu0 0.0
    %9657 = vmatprep.subr.mxu0 0.0
    %9658 = vmatpush1.xpose.msra.mxu0 0.0
    %9659 = vmatprep.subr.mxu0 0.0
    %9660 = vmatpush1.xpose.msra.mxu0 0.0
    %9661 = vmatprep.subr.mxu0 0.0
    %9662 = vmatpush1.xpose.msra.mxu0 0.0
    %9663 = vmatprep.subr.mxu0 0.0
    %9664 = vmatpush1.xpose.msra.mxu0 0.0
    %9665 = vmatprep.subr.mxu0 0.0
    %9666 = vmatpush1.xpose.msra.mxu0 0.0
    %9667 = vmatprep.subr.mxu0 0.0
    %9668 = vmatpush1.xpose.msra.mxu0 0.0
    %9669 = vmatprep.subr.mxu0 0.0
    %9670 = vmatpush1.xpose.msra.mxu0 0.0
    %9671 = vmatprep.subr.mxu0 0.0
    %9672 = vmatpush1.xpose.msra.mxu0 0.0
    %9673 = vmatprep.subr.mxu0 0.0
    %9674 = vmatpush1.xpose.msra.mxu0 0.0
    %9675 = vmatprep.subr.mxu0 0.0
    %9676 = vmatpush1.xpose.msra.mxu0 0.0
    %9677 = vmatprep.subr.mxu0 0.0
    %9678 = vmatpush1.xpose.msra.mxu0 0.0
    %9679 = vmatprep.subr.mxu0 0.0
    %9680 = vmatpush1.xpose.msra.mxu0 0.0
    %9681 = vmatprep.subr.mxu0 0.0
    %9682 = vmatpush1.xpose.msra.mxu0 0.0
    %9683 = vmatprep.subr.mxu0 %v7612
    %9684 = vmatpush1.xpose.msra.mxu0 %v7611
    %9685 = vmatprep.subr.mxu0 %v7604
    %9686 = vmatpush1.xpose.msra.mxu0 %v7603
    %9687 = vmatprep.subr.mxu0 0.0
    %9688 = vmatpush2.xpose.msra.mxu0 0.0
    %9689 = vmatprep.subr.mxu0 0.0
    %9690 = vmatpush2.xpose.msra.mxu0 0.0
    %9691 = vmatprep.subr.mxu0 0.0
    %9692 = vmatpush2.xpose.msra.mxu0 0.0
    %9693 = vmatprep.subr.mxu0 0.0
    %9694 = vmatpush2.xpose.msra.mxu0 0.0
    %9695 = vmatprep.subr.mxu0 0.0
    %9696 = vmatpush2.xpose.msra.mxu0 0.0
    %9697 = vmatprep.subr.mxu0 0.0
    %9698 = vmatpush2.xpose.msra.mxu0 0.0
    %9699 = vmatprep.subr.mxu0 0.0
    %9700 = vmatpush2.xpose.msra.mxu0 0.0
    %9701 = vmatprep.subr.mxu0 0.0
    %9702 = vmatpush2.xpose.msra.mxu0 0.0
    %9703 = vmatprep.subr.mxu0 0.0
    %9704 = vmatpush2.xpose.msra.mxu0 0.0
    %9705 = vmatprep.subr.mxu0 0.0
    %9706 = vmatpush2.xpose.msra.mxu0 0.0
    %9707 = vmatprep.subr.mxu0 0.0
    %9708 = vmatpush2.xpose.msra.mxu0 0.0
    %9709 = vmatprep.subr.mxu0 0.0
    %9710 = vmatpush2.xpose.msra.mxu0 0.0
    %9711 = vmatprep.subr.mxu0 0.0
    %9712 = vmatpush2.xpose.msra.mxu0 0.0
    %9713 = vmatprep.subr.mxu0 0.0
    %9714 = vmatpush2.xpose.msra.mxu0 0.0
    %9715 = vmatprep.subr.mxu0 0.0
    %9716 = vmatpush2.xpose.msra.mxu0 0.0
    %9717 = vmatprep.subr.mxu0 0.0
    %9718 = vmatpush2.xpose.msra.mxu0 0.0
    %9719 = vmatprep.mubr.f32.mxu0 %v9628
    %9720 = vmatmul.mubr.f32.gmra.mxu0 %v9620
    %v9721 = vpop.f32.mrf.mxu0
    %v9722 = vadd.f32 0.0, %v9721
    %v9723 = vpop.f32.mrf.mxu0
    %9724 = vdwg.mxu0
    %9725 = vmatprep.subr.mxu0 0.0
    %9726 = vmatpush1.xpose.msra.mxu0 0.0
    %9727 = vmatprep.subr.mxu0 0.0
    %9728 = vmatpush1.xpose.msra.mxu0 0.0
    %9729 = vmatprep.subr.mxu0 0.0
    %9730 = vmatpush1.xpose.msra.mxu0 0.0
    %9731 = vmatprep.subr.mxu0 0.0
    %9732 = vmatpush1.xpose.msra.mxu0 0.0
    %9733 = vmatprep.subr.mxu0 0.0
    %9734 = vmatpush1.xpose.msra.mxu0 0.0
    %9735 = vmatprep.subr.mxu0 0.0
    %9736 = vmatpush1.xpose.msra.mxu0 0.0
    %9737 = vmatprep.subr.mxu0 0.0
    %9738 = vmatpush1.xpose.msra.mxu0 0.0
    %9739 = vmatprep.subr.mxu0 0.0
    %9740 = vmatpush1.xpose.msra.mxu0 0.0
    %9741 = vmatprep.subr.mxu0 0.0
    %9742 = vmatpush1.xpose.msra.mxu0 0.0
    %9743 = vmatprep.subr.mxu0 0.0
    %9744 = vmatpush1.xpose.msra.mxu0 0.0
    %9745 = vmatprep.subr.mxu0 0.0
    %9746 = vmatpush1.xpose.msra.mxu0 0.0
    %9747 = vmatprep.subr.mxu0 0.0
    %9748 = vmatpush1.xpose.msra.mxu0 0.0
    %9749 = vmatprep.subr.mxu0 0.0
    %9750 = vmatpush1.xpose.msra.mxu0 0.0
    %9751 = vmatprep.subr.mxu0 0.0
    %9752 = vmatpush1.xpose.msra.mxu0 0.0
    %9753 = vmatprep.subr.mxu0 %v7614
    %9754 = vmatpush1.xpose.msra.mxu0 %v7613
    %9755 = vmatprep.subr.mxu0 %v7606
    %9756 = vmatpush1.xpose.msra.mxu0 %v7605
    %9757 = vmatprep.subr.mxu0 0.0
    %9758 = vmatpush2.xpose.msra.mxu0 0.0
    %9759 = vmatprep.subr.mxu0 0.0
    %9760 = vmatpush2.xpose.msra.mxu0 0.0
    %9761 = vmatprep.subr.mxu0 0.0
    %9762 = vmatpush2.xpose.msra.mxu0 0.0
    %9763 = vmatprep.subr.mxu0 0.0
    %9764 = vmatpush2.xpose.msra.mxu0 0.0
    %9765 = vmatprep.subr.mxu0 0.0
    %9766 = vmatpush2.xpose.msra.mxu0 0.0
    %9767 = vmatprep.subr.mxu0 0.0
    %9768 = vmatpush2.xpose.msra.mxu0 0.0
    %9769 = vmatprep.subr.mxu0 0.0
    %9770 = vmatpush2.xpose.msra.mxu0 0.0
    %9771 = vmatprep.subr.mxu0 0.0
    %9772 = vmatpush2.xpose.msra.mxu0 0.0
    %9773 = vmatprep.subr.mxu0 0.0
    %9774 = vmatpush2.xpose.msra.mxu0 0.0
    %9775 = vmatprep.subr.mxu0 0.0
    %9776 = vmatpush2.xpose.msra.mxu0 0.0
    %9777 = vmatprep.subr.mxu0 0.0
    %9778 = vmatpush2.xpose.msra.mxu0 0.0
    %9779 = vmatprep.subr.mxu0 0.0
    %9780 = vmatpush2.xpose.msra.mxu0 0.0
    %9781 = vmatprep.subr.mxu0 0.0
    %9782 = vmatpush2.xpose.msra.mxu0 0.0
    %9783 = vmatprep.subr.mxu0 0.0
    %9784 = vmatpush2.xpose.msra.mxu0 0.0
    %9785 = vmatprep.subr.mxu0 0.0
    %9786 = vmatpush2.xpose.msra.mxu0 0.0
    %9787 = vmatprep.subr.mxu0 0.0
    %9788 = vmatpush2.xpose.msra.mxu0 0.0
    %9789 = vmatprep.mubr.f32.mxu0 %v9629
    %9790 = vmatmul.mubr.f32.gmra.mxu0 %v9627
    %v9791 = vpop.f32.mrf.mxu0
    %v9792 = vadd.f32 %v9722, %v9791
    %v9793 = vpop.f32.mrf.mxu0
    %9794 = vdwg.mxu0
    %9795 = vmatprep.subr.mxu0 0.0
    %9796 = vmatpush1.xpose.msra.mxu0 0.0
    %9797 = vmatprep.subr.mxu0 0.0
    %9798 = vmatpush1.xpose.msra.mxu0 0.0
    %9799 = vmatprep.subr.mxu0 0.0
    %9800 = vmatpush1.xpose.msra.mxu0 0.0
    %9801 = vmatprep.subr.mxu0 0.0
    %9802 = vmatpush1.xpose.msra.mxu0 0.0
    %9803 = vmatprep.subr.mxu0 0.0
    %9804 = vmatpush1.xpose.msra.mxu0 0.0
    %9805 = vmatprep.subr.mxu0 0.0
    %9806 = vmatpush1.xpose.msra.mxu0 0.0
    %9807 = vmatprep.subr.mxu0 0.0
    %9808 = vmatpush1.xpose.msra.mxu0 0.0
    %9809 = vmatprep.subr.mxu0 0.0
    %9810 = vmatpush1.xpose.msra.mxu0 0.0
    %9811 = vmatprep.subr.mxu0 0.0
    %9812 = vmatpush1.xpose.msra.mxu0 0.0
    %9813 = vmatprep.subr.mxu0 0.0
    %9814 = vmatpush1.xpose.msra.mxu0 0.0
    %9815 = vmatprep.subr.mxu0 0.0
    %9816 = vmatpush1.xpose.msra.mxu0 0.0
    %9817 = vmatprep.subr.mxu0 0.0
    %9818 = vmatpush1.xpose.msra.mxu0 0.0
    %9819 = vmatprep.subr.mxu0 0.0
    %9820 = vmatpush1.xpose.msra.mxu0 0.0
    %9821 = vmatprep.subr.mxu0 0.0
    %9822 = vmatpush1.xpose.msra.mxu0 0.0
    %9823 = vmatprep.subr.mxu0 %v7616
    %9824 = vmatpush1.xpose.msra.mxu0 %v7615
    %9825 = vmatprep.subr.mxu0 %v7608
    %9826 = vmatpush1.xpose.msra.mxu0 %v7607
    %9827 = vmatprep.subr.mxu0 0.0
    %9828 = vmatpush2.xpose.msra.mxu0 0.0
    %9829 = vmatprep.subr.mxu0 0.0
    %9830 = vmatpush2.xpose.msra.mxu0 0.0
    %9831 = vmatprep.subr.mxu0 0.0
    %9832 = vmatpush2.xpose.msra.mxu0 0.0
    %9833 = vmatprep.subr.mxu0 0.0
    %9834 = vmatpush2.xpose.msra.mxu0 0.0
    %9835 = vmatprep.subr.mxu0 0.0
    %9836 = vmatpush2.xpose.msra.mxu0 0.0
    %9837 = vmatprep.subr.mxu0 0.0
    %9838 = vmatpush2.xpose.msra.mxu0 0.0
    %9839 = vmatprep.subr.mxu0 0.0
    %9840 = vmatpush2.xpose.msra.mxu0 0.0
    %9841 = vmatprep.subr.mxu0 0.0
    %9842 = vmatpush2.xpose.msra.mxu0 0.0
    %9843 = vmatprep.subr.mxu0 0.0
    %9844 = vmatpush2.xpose.msra.mxu0 0.0
    %9845 = vmatprep.subr.mxu0 0.0
    %9846 = vmatpush2.xpose.msra.mxu0 0.0
    %9847 = vmatprep.subr.mxu0 0.0
    %9848 = vmatpush2.xpose.msra.mxu0 0.0
    %9849 = vmatprep.subr.mxu0 0.0
    %9850 = vmatpush2.xpose.msra.mxu0 0.0
    %9851 = vmatprep.subr.mxu0 0.0
    %9852 = vmatpush2.xpose.msra.mxu0 0.0
    %9853 = vmatprep.subr.mxu0 0.0
    %9854 = vmatpush2.xpose.msra.mxu0 0.0
    %9855 = vmatprep.subr.mxu0 0.0
    %9856 = vmatpush2.xpose.msra.mxu0 0.0
    %9857 = vmatprep.subr.mxu0 0.0
    %9858 = vmatpush2.xpose.msra.mxu0 0.0
    %9859 = vmatprep.mubr.f32.mxu0 %v9645
    %9860 = vmatmul.mubr.f32.gmra.mxu0 %v9637
    %v9861 = vpop.f32.mrf.mxu0
    %v9862 = vadd.f32 %v9792, %v9861
    %v9863 = vpop.f32.mrf.mxu0
    %9864 = vdwg.mxu0
    %9865 = vmatprep.subr.mxu0 0.0
    %9866 = vmatpush1.xpose.msra.mxu0 0.0
    %9867 = vmatprep.subr.mxu0 0.0
    %9868 = vmatpush1.xpose.msra.mxu0 0.0
    %9869 = vmatprep.subr.mxu0 0.0
    %9870 = vmatpush1.xpose.msra.mxu0 0.0
    %9871 = vmatprep.subr.mxu0 0.0
    %9872 = vmatpush1.xpose.msra.mxu0 0.0
    %9873 = vmatprep.subr.mxu0 0.0
    %9874 = vmatpush1.xpose.msra.mxu0 0.0
    %9875 = vmatprep.subr.mxu0 0.0
    %9876 = vmatpush1.xpose.msra.mxu0 0.0
    %9877 = vmatprep.subr.mxu0 0.0
    %9878 = vmatpush1.xpose.msra.mxu0 0.0
    %9879 = vmatprep.subr.mxu0 0.0
    %9880 = vmatpush1.xpose.msra.mxu0 0.0
    %9881 = vmatprep.subr.mxu0 0.0
    %9882 = vmatpush1.xpose.msra.mxu0 0.0
    %9883 = vmatprep.subr.mxu0 0.0
    %9884 = vmatpush1.xpose.msra.mxu0 0.0
    %9885 = vmatprep.subr.mxu0 0.0
    %9886 = vmatpush1.xpose.msra.mxu0 0.0
    %9887 = vmatprep.subr.mxu0 0.0
    %9888 = vmatpush1.xpose.msra.mxu0 0.0
    %9889 = vmatprep.subr.mxu0 0.0
    %9890 = vmatpush1.xpose.msra.mxu0 0.0
    %9891 = vmatprep.subr.mxu0 0.0
    %9892 = vmatpush1.xpose.msra.mxu0 0.0
    %9893 = vmatprep.subr.mxu0 %v7618
    %9894 = vmatpush1.xpose.msra.mxu0 %v7617
    %9895 = vmatprep.subr.mxu0 %v7610
    %9896 = vmatpush1.xpose.msra.mxu0 %v7609
    %9897 = vmatprep.subr.mxu0 0.0
    %9898 = vmatpush2.xpose.msra.mxu0 0.0
    %9899 = vmatprep.subr.mxu0 0.0
    %9900 = vmatpush2.xpose.msra.mxu0 0.0
    %9901 = vmatprep.subr.mxu0 0.0
    %9902 = vmatpush2.xpose.msra.mxu0 0.0
    %9903 = vmatprep.subr.mxu0 0.0
    %9904 = vmatpush2.xpose.msra.mxu0 0.0
    %9905 = vmatprep.subr.mxu0 0.0
    %9906 = vmatpush2.xpose.msra.mxu0 0.0
    %9907 = vmatprep.subr.mxu0 0.0
    %9908 = vmatpush2.xpose.msra.mxu0 0.0
    %9909 = vmatprep.subr.mxu0 0.0
    %9910 = vmatpush2.xpose.msra.mxu0 0.0
    %9911 = vmatprep.subr.mxu0 0.0
    %9912 = vmatpush2.xpose.msra.mxu0 0.0
    %9913 = vmatprep.subr.mxu0 0.0
    %9914 = vmatpush2.xpose.msra.mxu0 0.0
    %9915 = vmatprep.subr.mxu0 0.0
    %9916 = vmatpush2.xpose.msra.mxu0 0.0
    %9917 = vmatprep.subr.mxu0 0.0
    %9918 = vmatpush2.xpose.msra.mxu0 0.0
    %9919 = vmatprep.subr.mxu0 0.0
    %9920 = vmatpush2.xpose.msra.mxu0 0.0
    %9921 = vmatprep.subr.mxu0 0.0
    %9922 = vmatpush2.xpose.msra.mxu0 0.0
    %9923 = vmatprep.subr.mxu0 0.0
    %9924 = vmatpush2.xpose.msra.mxu0 0.0
    %9925 = vmatprep.subr.mxu0 0.0
    %9926 = vmatpush2.xpose.msra.mxu0 0.0
    %9927 = vmatprep.subr.mxu0 0.0
    %9928 = vmatpush2.xpose.msra.mxu0 0.0
    %9929 = vmatprep.mubr.f32.mxu0 %v9646
    %9930 = vmatmul.mubr.f32.gmra.mxu0 %v9644
    %v9931 = vpop.f32.mrf.mxu0
    %v9932 = vadd.f32 %v9862, %v9931
    %v9933 = vpop.f32.mrf.mxu0
    %9934 = vdwg.mxu0
    %v9937 = vcombine.high %v7398, %v7398
    %v9939 = vunpack.c.l.s4 1983009808
    %v9940 = vunpack.c.0.s8 %v9939
    %v9941 = vlaneseq
    %v9942 = vshrl.u32 %v9941, 7
    %v9943 = vsub.s32 %v9940, %v9942
    %v9944 = vrot.slane %v7398, %v9943
    %v9946 = vunpack.c.l.s4 1983009808
    %v9947 = vunpack.c.0.s8 %v9946
    %v9948 = vlaneseq
    %v9949 = vshrl.u32 %v9948, 7
    %v9950 = vsub.s32 %v9947, %v9949
    %v9951 = vrot.slane %v9937, %v9950
    %v9952 = vcombine.high %v9944, %v9944
    %v9953 = vcombine.high %v9951, %v9951
    %v9954 = vcombine.high %v7488, %v7488
    %v9956 = vunpack.c.l.s4 1983009808
    %v9957 = vunpack.c.0.s8 %v9956
    %v9958 = vlaneseq
    %v9959 = vshrl.u32 %v9958, 7
    %v9960 = vsub.s32 %v9957, %v9959
    %v9961 = vrot.slane %v7488, %v9960
    %v9963 = vunpack.c.l.s4 1983009808
    %v9964 = vunpack.c.0.s8 %v9963
    %v9965 = vlaneseq
    %v9966 = vshrl.u32 %v9965, 7
    %v9967 = vsub.s32 %v9964, %v9966
    %v9968 = vrot.slane %v9954, %v9967
    %v9969 = vcombine.high %v9961, %v9961
    %v9970 = vcombine.high %v9968, %v9968
    %9979 = vmatprep.subr.mxu0 0.0
    %9980 = vmatpush1.xpose.msra.mxu0 0.0
    %9981 = vmatprep.subr.mxu0 0.0
    %9982 = vmatpush1.xpose.msra.mxu0 0.0
    %9983 = vmatprep.subr.mxu0 0.0
    %9984 = vmatpush1.xpose.msra.mxu0 0.0
    %9985 = vmatprep.subr.mxu0 0.0
    %9986 = vmatpush1.xpose.msra.mxu0 0.0
    %9987 = vmatprep.subr.mxu0 0.0
    %9988 = vmatpush1.xpose.msra.mxu0 0.0
    %9989 = vmatprep.subr.mxu0 0.0
    %9990 = vmatpush1.xpose.msra.mxu0 0.0
    %9991 = vmatprep.subr.mxu0 0.0
    %9992 = vmatpush1.xpose.msra.mxu0 0.0
    %9993 = vmatprep.subr.mxu0 0.0
    %9994 = vmatpush1.xpose.msra.mxu0 0.0
    %9995 = vmatprep.subr.mxu0 0.0
    %9996 = vmatpush1.xpose.msra.mxu0 0.0
    %9997 = vmatprep.subr.mxu0 0.0
    %9998 = vmatpush1.xpose.msra.mxu0 0.0
    %9999 = vmatprep.subr.mxu0 0.0
    %10000 = vmatpush1.xpose.msra.mxu0 0.0
    %10001 = vmatprep.subr.mxu0 0.0
    %10002 = vmatpush1.xpose.msra.mxu0 0.0
    %10003 = vmatprep.subr.mxu0 0.0
    %10004 = vmatpush1.xpose.msra.mxu0 0.0
    %10005 = vmatprep.subr.mxu0 0.0
    %10006 = vmatpush1.xpose.msra.mxu0 0.0
    %10007 = vmatprep.subr.mxu0 %v7628
    %10008 = vmatpush1.xpose.msra.mxu0 %v7627
    %10009 = vmatprep.subr.mxu0 %v7620
    %10010 = vmatpush1.xpose.msra.mxu0 %v7619
    %10011 = vmatprep.subr.mxu0 0.0
    %10012 = vmatpush2.xpose.msra.mxu0 0.0
    %10013 = vmatprep.subr.mxu0 0.0
    %10014 = vmatpush2.xpose.msra.mxu0 0.0
    %10015 = vmatprep.subr.mxu0 0.0
    %10016 = vmatpush2.xpose.msra.mxu0 0.0
    %10017 = vmatprep.subr.mxu0 0.0
    %10018 = vmatpush2.xpose.msra.mxu0 0.0
    %10019 = vmatprep.subr.mxu0 0.0
    %10020 = vmatpush2.xpose.msra.mxu0 0.0
    %10021 = vmatprep.subr.mxu0 0.0
    %10022 = vmatpush2.xpose.msra.mxu0 0.0
    %10023 = vmatprep.subr.mxu0 0.0
    %10024 = vmatpush2.xpose.msra.mxu0 0.0
    %10025 = vmatprep.subr.mxu0 0.0
    %10026 = vmatpush2.xpose.msra.mxu0 0.0
    %10027 = vmatprep.subr.mxu0 0.0
    %10028 = vmatpush2.xpose.msra.mxu0 0.0
    %10029 = vmatprep.subr.mxu0 0.0
    %10030 = vmatpush2.xpose.msra.mxu0 0.0
    %10031 = vmatprep.subr.mxu0 0.0
    %10032 = vmatpush2.xpose.msra.mxu0 0.0
    %10033 = vmatprep.subr.mxu0 0.0
    %10034 = vmatpush2.xpose.msra.mxu0 0.0
    %10035 = vmatprep.subr.mxu0 0.0
    %10036 = vmatpush2.xpose.msra.mxu0 0.0
    %10037 = vmatprep.subr.mxu0 0.0
    %10038 = vmatpush2.xpose.msra.mxu0 0.0
    %10039 = vmatprep.subr.mxu0 0.0
    %10040 = vmatpush2.xpose.msra.mxu0 0.0
    %10041 = vmatprep.subr.mxu0 0.0
    %10042 = vmatpush2.xpose.msra.mxu0 0.0
    %10043 = vmatprep.mubr.f32.mxu0 %v9952
    %10044 = vmatmul.mubr.f32.gmra.mxu0 %v9944
    %v10045 = vpop.f32.mrf.mxu0
    %v10046 = vadd.f32 0.0, %v10045
    %v10047 = vpop.f32.mrf.mxu0
    %10048 = vdwg.mxu0
    %10049 = vmatprep.subr.mxu0 0.0
    %10050 = vmatpush1.xpose.msra.mxu0 0.0
    %10051 = vmatprep.subr.mxu0 0.0
    %10052 = vmatpush1.xpose.msra.mxu0 0.0
    %10053 = vmatprep.subr.mxu0 0.0
    %10054 = vmatpush1.xpose.msra.mxu0 0.0
    %10055 = vmatprep.subr.mxu0 0.0
    %10056 = vmatpush1.xpose.msra.mxu0 0.0
    %10057 = vmatprep.subr.mxu0 0.0
    %10058 = vmatpush1.xpose.msra.mxu0 0.0
    %10059 = vmatprep.subr.mxu0 0.0
    %10060 = vmatpush1.xpose.msra.mxu0 0.0
    %10061 = vmatprep.subr.mxu0 0.0
    %10062 = vmatpush1.xpose.msra.mxu0 0.0
    %10063 = vmatprep.subr.mxu0 0.0
    %10064 = vmatpush1.xpose.msra.mxu0 0.0
    %10065 = vmatprep.subr.mxu0 0.0
    %10066 = vmatpush1.xpose.msra.mxu0 0.0
    %10067 = vmatprep.subr.mxu0 0.0
    %10068 = vmatpush1.xpose.msra.mxu0 0.0
    %10069 = vmatprep.subr.mxu0 0.0
    %10070 = vmatpush1.xpose.msra.mxu0 0.0
    %10071 = vmatprep.subr.mxu0 0.0
    %10072 = vmatpush1.xpose.msra.mxu0 0.0
    %10073 = vmatprep.subr.mxu0 0.0
    %10074 = vmatpush1.xpose.msra.mxu0 0.0
    %10075 = vmatprep.subr.mxu0 0.0
    %10076 = vmatpush1.xpose.msra.mxu0 0.0
    %10077 = vmatprep.subr.mxu0 %v7630
    %10078 = vmatpush1.xpose.msra.mxu0 %v7629
    %10079 = vmatprep.subr.mxu0 %v7622
    %10080 = vmatpush1.xpose.msra.mxu0 %v7621
    %10081 = vmatprep.subr.mxu0 0.0
    %10082 = vmatpush2.xpose.msra.mxu0 0.0
    %10083 = vmatprep.subr.mxu0 0.0
    %10084 = vmatpush2.xpose.msra.mxu0 0.0
    %10085 = vmatprep.subr.mxu0 0.0
    %10086 = vmatpush2.xpose.msra.mxu0 0.0
    %10087 = vmatprep.subr.mxu0 0.0
    %10088 = vmatpush2.xpose.msra.mxu0 0.0
    %10089 = vmatprep.subr.mxu0 0.0
    %10090 = vmatpush2.xpose.msra.mxu0 0.0
    %10091 = vmatprep.subr.mxu0 0.0
    %10092 = vmatpush2.xpose.msra.mxu0 0.0
    %10093 = vmatprep.subr.mxu0 0.0
    %10094 = vmatpush2.xpose.msra.mxu0 0.0
    %10095 = vmatprep.subr.mxu0 0.0
    %10096 = vmatpush2.xpose.msra.mxu0 0.0
    %10097 = vmatprep.subr.mxu0 0.0
    %10098 = vmatpush2.xpose.msra.mxu0 0.0
    %10099 = vmatprep.subr.mxu0 0.0
    %10100 = vmatpush2.xpose.msra.mxu0 0.0
    %10101 = vmatprep.subr.mxu0 0.0
    %10102 = vmatpush2.xpose.msra.mxu0 0.0
    %10103 = vmatprep.subr.mxu0 0.0
    %10104 = vmatpush2.xpose.msra.mxu0 0.0
    %10105 = vmatprep.subr.mxu0 0.0
    %10106 = vmatpush2.xpose.msra.mxu0 0.0
    %10107 = vmatprep.subr.mxu0 0.0
    %10108 = vmatpush2.xpose.msra.mxu0 0.0
    %10109 = vmatprep.subr.mxu0 0.0
    %10110 = vmatpush2.xpose.msra.mxu0 0.0
    %10111 = vmatprep.subr.mxu0 0.0
    %10112 = vmatpush2.xpose.msra.mxu0 0.0
    %10113 = vmatprep.mubr.f32.mxu0 %v9953
    %10114 = vmatmul.mubr.f32.gmra.mxu0 %v9951
    %v10115 = vpop.f32.mrf.mxu0
    %v10116 = vadd.f32 %v10046, %v10115
    %v10117 = vpop.f32.mrf.mxu0
    %10118 = vdwg.mxu0
    %10119 = vmatprep.subr.mxu0 0.0
    %10120 = vmatpush1.xpose.msra.mxu0 0.0
    %10121 = vmatprep.subr.mxu0 0.0
    %10122 = vmatpush1.xpose.msra.mxu0 0.0
    %10123 = vmatprep.subr.mxu0 0.0
    %10124 = vmatpush1.xpose.msra.mxu0 0.0
    %10125 = vmatprep.subr.mxu0 0.0
    %10126 = vmatpush1.xpose.msra.mxu0 0.0
    %10127 = vmatprep.subr.mxu0 0.0
    %10128 = vmatpush1.xpose.msra.mxu0 0.0
    %10129 = vmatprep.subr.mxu0 0.0
    %10130 = vmatpush1.xpose.msra.mxu0 0.0
    %10131 = vmatprep.subr.mxu0 0.0
    %10132 = vmatpush1.xpose.msra.mxu0 0.0
    %10133 = vmatprep.subr.mxu0 0.0
    %10134 = vmatpush1.xpose.msra.mxu0 0.0
    %10135 = vmatprep.subr.mxu0 0.0
    %10136 = vmatpush1.xpose.msra.mxu0 0.0
    %10137 = vmatprep.subr.mxu0 0.0
    %10138 = vmatpush1.xpose.msra.mxu0 0.0
    %10139 = vmatprep.subr.mxu0 0.0
    %10140 = vmatpush1.xpose.msra.mxu0 0.0
    %10141 = vmatprep.subr.mxu0 0.0
    %10142 = vmatpush1.xpose.msra.mxu0 0.0
    %10143 = vmatprep.subr.mxu0 0.0
    %10144 = vmatpush1.xpose.msra.mxu0 0.0
    %10145 = vmatprep.subr.mxu0 0.0
    %10146 = vmatpush1.xpose.msra.mxu0 0.0
    %10147 = vmatprep.subr.mxu0 %v7632
    %10148 = vmatpush1.xpose.msra.mxu0 %v7631
    %10149 = vmatprep.subr.mxu0 %v7624
    %10150 = vmatpush1.xpose.msra.mxu0 %v7623
    %10151 = vmatprep.subr.mxu0 0.0
    %10152 = vmatpush2.xpose.msra.mxu0 0.0
    %10153 = vmatprep.subr.mxu0 0.0
    %10154 = vmatpush2.xpose.msra.mxu0 0.0
    %10155 = vmatprep.subr.mxu0 0.0
    %10156 = vmatpush2.xpose.msra.mxu0 0.0
    %10157 = vmatprep.subr.mxu0 0.0
    %10158 = vmatpush2.xpose.msra.mxu0 0.0
    %10159 = vmatprep.subr.mxu0 0.0
    %10160 = vmatpush2.xpose.msra.mxu0 0.0
    %10161 = vmatprep.subr.mxu0 0.0
    %10162 = vmatpush2.xpose.msra.mxu0 0.0
    %10163 = vmatprep.subr.mxu0 0.0
    %10164 = vmatpush2.xpose.msra.mxu0 0.0
    %10165 = vmatprep.subr.mxu0 0.0
    %10166 = vmatpush2.xpose.msra.mxu0 0.0
    %10167 = vmatprep.subr.mxu0 0.0
    %10168 = vmatpush2.xpose.msra.mxu0 0.0
    %10169 = vmatprep.subr.mxu0 0.0
    %10170 = vmatpush2.xpose.msra.mxu0 0.0
    %10171 = vmatprep.subr.mxu0 0.0
    %10172 = vmatpush2.xpose.msra.mxu0 0.0
    %10173 = vmatprep.subr.mxu0 0.0
    %10174 = vmatpush2.xpose.msra.mxu0 0.0
    %10175 = vmatprep.subr.mxu0 0.0
    %10176 = vmatpush2.xpose.msra.mxu0 0.0
    %10177 = vmatprep.subr.mxu0 0.0
    %10178 = vmatpush2.xpose.msra.mxu0 0.0
    %10179 = vmatprep.subr.mxu0 0.0
    %10180 = vmatpush2.xpose.msra.mxu0 0.0
    %10181 = vmatprep.subr.mxu0 0.0
    %10182 = vmatpush2.xpose.msra.mxu0 0.0
    %10183 = vmatprep.mubr.f32.mxu0 %v9969
    %10184 = vmatmul.mubr.f32.gmra.mxu0 %v9961
    %v10185 = vpop.f32.mrf.mxu0
    %v10186 = vadd.f32 %v10116, %v10185
    %v10187 = vpop.f32.mrf.mxu0
    %10188 = vdwg.mxu0
    %10189 = vmatprep.subr.mxu0 0.0
    %10190 = vmatpush1.xpose.msra.mxu0 0.0
    %10191 = vmatprep.subr.mxu0 0.0
    %10192 = vmatpush1.xpose.msra.mxu0 0.0
    %10193 = vmatprep.subr.mxu0 0.0
    %10194 = vmatpush1.xpose.msra.mxu0 0.0
    %10195 = vmatprep.subr.mxu0 0.0
    %10196 = vmatpush1.xpose.msra.mxu0 0.0
    %10197 = vmatprep.subr.mxu0 0.0
    %10198 = vmatpush1.xpose.msra.mxu0 0.0
    %10199 = vmatprep.subr.mxu0 0.0
    %10200 = vmatpush1.xpose.msra.mxu0 0.0
    %10201 = vmatprep.subr.mxu0 0.0
    %10202 = vmatpush1.xpose.msra.mxu0 0.0
    %10203 = vmatprep.subr.mxu0 0.0
    %10204 = vmatpush1.xpose.msra.mxu0 0.0
    %10205 = vmatprep.subr.mxu0 0.0
    %10206 = vmatpush1.xpose.msra.mxu0 0.0
    %10207 = vmatprep.subr.mxu0 0.0
    %10208 = vmatpush1.xpose.msra.mxu0 0.0
    %10209 = vmatprep.subr.mxu0 0.0
    %10210 = vmatpush1.xpose.msra.mxu0 0.0
    %10211 = vmatprep.subr.mxu0 0.0
    %10212 = vmatpush1.xpose.msra.mxu0 0.0
    %10213 = vmatprep.subr.mxu0 0.0
    %10214 = vmatpush1.xpose.msra.mxu0 0.0
    %10215 = vmatprep.subr.mxu0 0.0
    %10216 = vmatpush1.xpose.msra.mxu0 0.0
    %10217 = vmatprep.subr.mxu0 %v7634
    %10218 = vmatpush1.xpose.msra.mxu0 %v7633
    %10219 = vmatprep.subr.mxu0 %v7626
    %10220 = vmatpush1.xpose.msra.mxu0 %v7625
    %10221 = vmatprep.subr.mxu0 0.0
    %10222 = vmatpush2.xpose.msra.mxu0 0.0
    %10223 = vmatprep.subr.mxu0 0.0
    %10224 = vmatpush2.xpose.msra.mxu0 0.0
    %10225 = vmatprep.subr.mxu0 0.0
    %10226 = vmatpush2.xpose.msra.mxu0 0.0
    %10227 = vmatprep.subr.mxu0 0.0
    %10228 = vmatpush2.xpose.msra.mxu0 0.0
    %10229 = vmatprep.subr.mxu0 0.0
    %10230 = vmatpush2.xpose.msra.mxu0 0.0
    %10231 = vmatprep.subr.mxu0 0.0
    %10232 = vmatpush2.xpose.msra.mxu0 0.0
    %10233 = vmatprep.subr.mxu0 0.0
    %10234 = vmatpush2.xpose.msra.mxu0 0.0
    %10235 = vmatprep.subr.mxu0 0.0
    %10236 = vmatpush2.xpose.msra.mxu0 0.0
    %10237 = vmatprep.subr.mxu0 0.0
    %10238 = vmatpush2.xpose.msra.mxu0 0.0
    %10239 = vmatprep.subr.mxu0 0.0
    %10240 = vmatpush2.xpose.msra.mxu0 0.0
    %10241 = vmatprep.subr.mxu0 0.0
    %10242 = vmatpush2.xpose.msra.mxu0 0.0
    %10243 = vmatprep.subr.mxu0 0.0
    %10244 = vmatpush2.xpose.msra.mxu0 0.0
    %10245 = vmatprep.subr.mxu0 0.0
    %10246 = vmatpush2.xpose.msra.mxu0 0.0
    %10247 = vmatprep.subr.mxu0 0.0
    %10248 = vmatpush2.xpose.msra.mxu0 0.0
    %10249 = vmatprep.subr.mxu0 0.0
    %10250 = vmatpush2.xpose.msra.mxu0 0.0
    %10251 = vmatprep.subr.mxu0 0.0
    %10252 = vmatpush2.xpose.msra.mxu0 0.0
    %10253 = vmatprep.mubr.f32.mxu0 %v9970
    %10254 = vmatmul.mubr.f32.gmra.mxu0 %v9968
    %v10255 = vpop.f32.mrf.mxu0
    %v10256 = vadd.f32 %v10186, %v10255
    %v10257 = vpop.f32.mrf.mxu0
    %10258 = vdwg.mxu0
    %v10261 = vcombine.high %v7415, %v7415
    %v10263 = vunpack.c.l.s4 1983009808
    %v10264 = vunpack.c.0.s8 %v10263
    %v10265 = vlaneseq
    %v10266 = vshrl.u32 %v10265, 7
    %v10267 = vsub.s32 %v10264, %v10266
    %v10268 = vrot.slane %v7415, %v10267
    %v10270 = vunpack.c.l.s4 1983009808
    %v10271 = vunpack.c.0.s8 %v10270
    %v10272 = vlaneseq
    %v10273 = vshrl.u32 %v10272, 7
    %v10274 = vsub.s32 %v10271, %v10273
    %v10275 = vrot.slane %v10261, %v10274
    %v10276 = vcombine.high %v10268, %v10268
    %v10277 = vcombine.high %v10275, %v10275
    %v10278 = vcombine.high %v7505, %v7505
    %v10280 = vunpack.c.l.s4 1983009808
    %v10281 = vunpack.c.0.s8 %v10280
    %v10282 = vlaneseq
    %v10283 = vshrl.u32 %v10282, 7
    %v10284 = vsub.s32 %v10281, %v10283
    %v10285 = vrot.slane %v7505, %v10284
    %v10287 = vunpack.c.l.s4 1983009808
    %v10288 = vunpack.c.0.s8 %v10287
    %v10289 = vlaneseq
    %v10290 = vshrl.u32 %v10289, 7
    %v10291 = vsub.s32 %v10288, %v10290
    %v10292 = vrot.slane %v10278, %v10291
    %v10293 = vcombine.high %v10285, %v10285
    %v10294 = vcombine.high %v10292, %v10292
    %10303 = vmatprep.subr.mxu0 0.0
    %10304 = vmatpush1.xpose.msra.mxu0 0.0
    %10305 = vmatprep.subr.mxu0 0.0
    %10306 = vmatpush1.xpose.msra.mxu0 0.0
    %10307 = vmatprep.subr.mxu0 0.0
    %10308 = vmatpush1.xpose.msra.mxu0 0.0
    %10309 = vmatprep.subr.mxu0 0.0
    %10310 = vmatpush1.xpose.msra.mxu0 0.0
    %10311 = vmatprep.subr.mxu0 0.0
    %10312 = vmatpush1.xpose.msra.mxu0 0.0
    %10313 = vmatprep.subr.mxu0 0.0
    %10314 = vmatpush1.xpose.msra.mxu0 0.0
    %10315 = vmatprep.subr.mxu0 0.0
    %10316 = vmatpush1.xpose.msra.mxu0 0.0
    %10317 = vmatprep.subr.mxu0 0.0
    %10318 = vmatpush1.xpose.msra.mxu0 0.0
    %10319 = vmatprep.subr.mxu0 0.0
    %10320 = vmatpush1.xpose.msra.mxu0 0.0
    %10321 = vmatprep.subr.mxu0 0.0
    %10322 = vmatpush1.xpose.msra.mxu0 0.0
    %10323 = vmatprep.subr.mxu0 0.0
    %10324 = vmatpush1.xpose.msra.mxu0 0.0
    %10325 = vmatprep.subr.mxu0 0.0
    %10326 = vmatpush1.xpose.msra.mxu0 0.0
    %10327 = vmatprep.subr.mxu0 0.0
    %10328 = vmatpush1.xpose.msra.mxu0 0.0
    %10329 = vmatprep.subr.mxu0 0.0
    %10330 = vmatpush1.xpose.msra.mxu0 0.0
    %10331 = vmatprep.subr.mxu0 %v7644
    %10332 = vmatpush1.xpose.msra.mxu0 %v7643
    %10333 = vmatprep.subr.mxu0 %v7636
    %10334 = vmatpush1.xpose.msra.mxu0 %v7635
    %10335 = vmatprep.subr.mxu0 0.0
    %10336 = vmatpush2.xpose.msra.mxu0 0.0
    %10337 = vmatprep.subr.mxu0 0.0
    %10338 = vmatpush2.xpose.msra.mxu0 0.0
    %10339 = vmatprep.subr.mxu0 0.0
    %10340 = vmatpush2.xpose.msra.mxu0 0.0
    %10341 = vmatprep.subr.mxu0 0.0
    %10342 = vmatpush2.xpose.msra.mxu0 0.0
    %10343 = vmatprep.subr.mxu0 0.0
    %10344 = vmatpush2.xpose.msra.mxu0 0.0
    %10345 = vmatprep.subr.mxu0 0.0
    %10346 = vmatpush2.xpose.msra.mxu0 0.0
    %10347 = vmatprep.subr.mxu0 0.0
    %10348 = vmatpush2.xpose.msra.mxu0 0.0
    %10349 = vmatprep.subr.mxu0 0.0
    %10350 = vmatpush2.xpose.msra.mxu0 0.0
    %10351 = vmatprep.subr.mxu0 0.0
    %10352 = vmatpush2.xpose.msra.mxu0 0.0
    %10353 = vmatprep.subr.mxu0 0.0
    %10354 = vmatpush2.xpose.msra.mxu0 0.0
    %10355 = vmatprep.subr.mxu0 0.0
    %10356 = vmatpush2.xpose.msra.mxu0 0.0
    %10357 = vmatprep.subr.mxu0 0.0
    %10358 = vmatpush2.xpose.msra.mxu0 0.0
    %10359 = vmatprep.subr.mxu0 0.0
    %10360 = vmatpush2.xpose.msra.mxu0 0.0
    %10361 = vmatprep.subr.mxu0 0.0
    %10362 = vmatpush2.xpose.msra.mxu0 0.0
    %10363 = vmatprep.subr.mxu0 0.0
    %10364 = vmatpush2.xpose.msra.mxu0 0.0
    %10365 = vmatprep.subr.mxu0 0.0
    %10366 = vmatpush2.xpose.msra.mxu0 0.0
    %10367 = vmatprep.mubr.f32.mxu0 %v10276
    %10368 = vmatmul.mubr.f32.gmra.mxu0 %v10268
    %v10369 = vpop.f32.mrf.mxu0
    %v10370 = vadd.f32 0.0, %v10369
    %v10371 = vpop.f32.mrf.mxu0
    %10372 = vdwg.mxu0
    %10373 = vmatprep.subr.mxu0 0.0
    %10374 = vmatpush1.xpose.msra.mxu0 0.0
    %10375 = vmatprep.subr.mxu0 0.0
    %10376 = vmatpush1.xpose.msra.mxu0 0.0
    %10377 = vmatprep.subr.mxu0 0.0
    %10378 = vmatpush1.xpose.msra.mxu0 0.0
    %10379 = vmatprep.subr.mxu0 0.0
    %10380 = vmatpush1.xpose.msra.mxu0 0.0
    %10381 = vmatprep.subr.mxu0 0.0
    %10382 = vmatpush1.xpose.msra.mxu0 0.0
    %10383 = vmatprep.subr.mxu0 0.0
    %10384 = vmatpush1.xpose.msra.mxu0 0.0
    %10385 = vmatprep.subr.mxu0 0.0
    %10386 = vmatpush1.xpose.msra.mxu0 0.0
    %10387 = vmatprep.subr.mxu0 0.0
    %10388 = vmatpush1.xpose.msra.mxu0 0.0
    %10389 = vmatprep.subr.mxu0 0.0
    %10390 = vmatpush1.xpose.msra.mxu0 0.0
    %10391 = vmatprep.subr.mxu0 0.0
    %10392 = vmatpush1.xpose.msra.mxu0 0.0
    %10393 = vmatprep.subr.mxu0 0.0
    %10394 = vmatpush1.xpose.msra.mxu0 0.0
    %10395 = vmatprep.subr.mxu0 0.0
    %10396 = vmatpush1.xpose.msra.mxu0 0.0
    %10397 = vmatprep.subr.mxu0 0.0
    %10398 = vmatpush1.xpose.msra.mxu0 0.0
    %10399 = vmatprep.subr.mxu0 0.0
    %10400 = vmatpush1.xpose.msra.mxu0 0.0
    %10401 = vmatprep.subr.mxu0 %v7646
    %10402 = vmatpush1.xpose.msra.mxu0 %v7645
    %10403 = vmatprep.subr.mxu0 %v7638
    %10404 = vmatpush1.xpose.msra.mxu0 %v7637
    %10405 = vmatprep.subr.mxu0 0.0
    %10406 = vmatpush2.xpose.msra.mxu0 0.0
    %10407 = vmatprep.subr.mxu0 0.0
    %10408 = vmatpush2.xpose.msra.mxu0 0.0
    %10409 = vmatprep.subr.mxu0 0.0
    %10410 = vmatpush2.xpose.msra.mxu0 0.0
    %10411 = vmatprep.subr.mxu0 0.0
    %10412 = vmatpush2.xpose.msra.mxu0 0.0
    %10413 = vmatprep.subr.mxu0 0.0
    %10414 = vmatpush2.xpose.msra.mxu0 0.0
    %10415 = vmatprep.subr.mxu0 0.0
    %10416 = vmatpush2.xpose.msra.mxu0 0.0
    %10417 = vmatprep.subr.mxu0 0.0
    %10418 = vmatpush2.xpose.msra.mxu0 0.0
    %10419 = vmatprep.subr.mxu0 0.0
    %10420 = vmatpush2.xpose.msra.mxu0 0.0
    %10421 = vmatprep.subr.mxu0 0.0
    %10422 = vmatpush2.xpose.msra.mxu0 0.0
    %10423 = vmatprep.subr.mxu0 0.0
    %10424 = vmatpush2.xpose.msra.mxu0 0.0
    %10425 = vmatprep.subr.mxu0 0.0
    %10426 = vmatpush2.xpose.msra.mxu0 0.0
    %10427 = vmatprep.subr.mxu0 0.0
    %10428 = vmatpush2.xpose.msra.mxu0 0.0
    %10429 = vmatprep.subr.mxu0 0.0
    %10430 = vmatpush2.xpose.msra.mxu0 0.0
    %10431 = vmatprep.subr.mxu0 0.0
    %10432 = vmatpush2.xpose.msra.mxu0 0.0
    %10433 = vmatprep.subr.mxu0 0.0
    %10434 = vmatpush2.xpose.msra.mxu0 0.0
    %10435 = vmatprep.subr.mxu0 0.0
    %10436 = vmatpush2.xpose.msra.mxu0 0.0
    %10437 = vmatprep.mubr.f32.mxu0 %v10277
    %10438 = vmatmul.mubr.f32.gmra.mxu0 %v10275
    %v10439 = vpop.f32.mrf.mxu0
    %v10440 = vadd.f32 %v10370, %v10439
    %v10441 = vpop.f32.mrf.mxu0
    %10442 = vdwg.mxu0
    %10443 = vmatprep.subr.mxu0 0.0
    %10444 = vmatpush1.xpose.msra.mxu0 0.0
    %10445 = vmatprep.subr.mxu0 0.0
    %10446 = vmatpush1.xpose.msra.mxu0 0.0
    %10447 = vmatprep.subr.mxu0 0.0
    %10448 = vmatpush1.xpose.msra.mxu0 0.0
    %10449 = vmatprep.subr.mxu0 0.0
    %10450 = vmatpush1.xpose.msra.mxu0 0.0
    %10451 = vmatprep.subr.mxu0 0.0
    %10452 = vmatpush1.xpose.msra.mxu0 0.0
    %10453 = vmatprep.subr.mxu0 0.0
    %10454 = vmatpush1.xpose.msra.mxu0 0.0
    %10455 = vmatprep.subr.mxu0 0.0
    %10456 = vmatpush1.xpose.msra.mxu0 0.0
    %10457 = vmatprep.subr.mxu0 0.0
    %10458 = vmatpush1.xpose.msra.mxu0 0.0
    %10459 = vmatprep.subr.mxu0 0.0
    %10460 = vmatpush1.xpose.msra.mxu0 0.0
    %10461 = vmatprep.subr.mxu0 0.0
    %10462 = vmatpush1.xpose.msra.mxu0 0.0
    %10463 = vmatprep.subr.mxu0 0.0
    %10464 = vmatpush1.xpose.msra.mxu0 0.0
    %10465 = vmatprep.subr.mxu0 0.0
    %10466 = vmatpush1.xpose.msra.mxu0 0.0
    %10467 = vmatprep.subr.mxu0 0.0
    %10468 = vmatpush1.xpose.msra.mxu0 0.0
    %10469 = vmatprep.subr.mxu0 0.0
    %10470 = vmatpush1.xpose.msra.mxu0 0.0
    %10471 = vmatprep.subr.mxu0 %v7648
    %10472 = vmatpush1.xpose.msra.mxu0 %v7647
    %10473 = vmatprep.subr.mxu0 %v7640
    %10474 = vmatpush1.xpose.msra.mxu0 %v7639
    %10475 = vmatprep.subr.mxu0 0.0
    %10476 = vmatpush2.xpose.msra.mxu0 0.0
    %10477 = vmatprep.subr.mxu0 0.0
    %10478 = vmatpush2.xpose.msra.mxu0 0.0
    %10479 = vmatprep.subr.mxu0 0.0
    %10480 = vmatpush2.xpose.msra.mxu0 0.0
    %10481 = vmatprep.subr.mxu0 0.0
    %10482 = vmatpush2.xpose.msra.mxu0 0.0
    %10483 = vmatprep.subr.mxu0 0.0
    %10484 = vmatpush2.xpose.msra.mxu0 0.0
    %10485 = vmatprep.subr.mxu0 0.0
    %10486 = vmatpush2.xpose.msra.mxu0 0.0
    %10487 = vmatprep.subr.mxu0 0.0
    %10488 = vmatpush2.xpose.msra.mxu0 0.0
    %10489 = vmatprep.subr.mxu0 0.0
    %10490 = vmatpush2.xpose.msra.mxu0 0.0
    %10491 = vmatprep.subr.mxu0 0.0
    %10492 = vmatpush2.xpose.msra.mxu0 0.0
    %10493 = vmatprep.subr.mxu0 0.0
    %10494 = vmatpush2.xpose.msra.mxu0 0.0
    %10495 = vmatprep.subr.mxu0 0.0
    %10496 = vmatpush2.xpose.msra.mxu0 0.0
    %10497 = vmatprep.subr.mxu0 0.0
    %10498 = vmatpush2.xpose.msra.mxu0 0.0
    %10499 = vmatprep.subr.mxu0 0.0
    %10500 = vmatpush2.xpose.msra.mxu0 0.0
    %10501 = vmatprep.subr.mxu0 0.0
    %10502 = vmatpush2.xpose.msra.mxu0 0.0
    %10503 = vmatprep.subr.mxu0 0.0
    %10504 = vmatpush2.xpose.msra.mxu0 0.0
    %10505 = vmatprep.subr.mxu0 0.0
    %10506 = vmatpush2.xpose.msra.mxu0 0.0
    %10507 = vmatprep.mubr.f32.mxu0 %v10293
    %10508 = vmatmul.mubr.f32.gmra.mxu0 %v10285
    %v10509 = vpop.f32.mrf.mxu0
    %v10510 = vadd.f32 %v10440, %v10509
    %v10511 = vpop.f32.mrf.mxu0
    %10512 = vdwg.mxu0
    %10513 = vmatprep.subr.mxu0 0.0
    %10514 = vmatpush1.xpose.msra.mxu0 0.0
    %10515 = vmatprep.subr.mxu0 0.0
    %10516 = vmatpush1.xpose.msra.mxu0 0.0
    %10517 = vmatprep.subr.mxu0 0.0
    %10518 = vmatpush1.xpose.msra.mxu0 0.0
    %10519 = vmatprep.subr.mxu0 0.0
    %10520 = vmatpush1.xpose.msra.mxu0 0.0
    %10521 = vmatprep.subr.mxu0 0.0
    %10522 = vmatpush1.xpose.msra.mxu0 0.0
    %10523 = vmatprep.subr.mxu0 0.0
    %10524 = vmatpush1.xpose.msra.mxu0 0.0
    %10525 = vmatprep.subr.mxu0 0.0
    %10526 = vmatpush1.xpose.msra.mxu0 0.0
    %10527 = vmatprep.subr.mxu0 0.0
    %10528 = vmatpush1.xpose.msra.mxu0 0.0
    %10529 = vmatprep.subr.mxu0 0.0
    %10530 = vmatpush1.xpose.msra.mxu0 0.0
    %10531 = vmatprep.subr.mxu0 0.0
    %10532 = vmatpush1.xpose.msra.mxu0 0.0
    %10533 = vmatprep.subr.mxu0 0.0
    %10534 = vmatpush1.xpose.msra.mxu0 0.0
    %10535 = vmatprep.subr.mxu0 0.0
    %10536 = vmatpush1.xpose.msra.mxu0 0.0
    %10537 = vmatprep.subr.mxu0 0.0
    %10538 = vmatpush1.xpose.msra.mxu0 0.0
    %10539 = vmatprep.subr.mxu0 0.0
    %10540 = vmatpush1.xpose.msra.mxu0 0.0
    %10541 = vmatprep.subr.mxu0 %v7650
    %10542 = vmatpush1.xpose.msra.mxu0 %v7649
    %10543 = vmatprep.subr.mxu0 %v7642
    %10544 = vmatpush1.xpose.msra.mxu0 %v7641
    %10545 = vmatprep.subr.mxu0 0.0
    %10546 = vmatpush2.xpose.msra.mxu0 0.0
    %10547 = vmatprep.subr.mxu0 0.0
    %10548 = vmatpush2.xpose.msra.mxu0 0.0
    %10549 = vmatprep.subr.mxu0 0.0
    %10550 = vmatpush2.xpose.msra.mxu0 0.0
    %10551 = vmatprep.subr.mxu0 0.0
    %10552 = vmatpush2.xpose.msra.mxu0 0.0
    %10553 = vmatprep.subr.mxu0 0.0
    %10554 = vmatpush2.xpose.msra.mxu0 0.0
    %10555 = vmatprep.subr.mxu0 0.0
    %10556 = vmatpush2.xpose.msra.mxu0 0.0
    %10557 = vmatprep.subr.mxu0 0.0
    %10558 = vmatpush2.xpose.msra.mxu0 0.0
    %10559 = vmatprep.subr.mxu0 0.0
    %10560 = vmatpush2.xpose.msra.mxu0 0.0
    %10561 = vmatprep.subr.mxu0 0.0
    %10562 = vmatpush2.xpose.msra.mxu0 0.0
    %10563 = vmatprep.subr.mxu0 0.0
    %10564 = vmatpush2.xpose.msra.mxu0 0.0
    %10565 = vmatprep.subr.mxu0 0.0
    %10566 = vmatpush2.xpose.msra.mxu0 0.0
    %10567 = vmatprep.subr.mxu0 0.0
    %10568 = vmatpush2.xpose.msra.mxu0 0.0
    %10569 = vmatprep.subr.mxu0 0.0
    %10570 = vmatpush2.xpose.msra.mxu0 0.0
    %10571 = vmatprep.subr.mxu0 0.0
    %10572 = vmatpush2.xpose.msra.mxu0 0.0
    %10573 = vmatprep.subr.mxu0 0.0
    %10574 = vmatpush2.xpose.msra.mxu0 0.0
    %10575 = vmatprep.subr.mxu0 0.0
    %10576 = vmatpush2.xpose.msra.mxu0 0.0
    %10577 = vmatprep.mubr.f32.mxu0 %v10294
    %10578 = vmatmul.mubr.f32.gmra.mxu0 %v10292
    %v10579 = vpop.f32.mrf.mxu0
    %v10580 = vadd.f32 %v10510, %v10579
    %v10581 = vpop.f32.mrf.mxu0
    %10582 = vdwg.mxu0
    %v10585 = vcombine.high %v7416, %v7416
    %v10587 = vunpack.c.l.s4 1983009808
    %v10588 = vunpack.c.0.s8 %v10587
    %v10589 = vlaneseq
    %v10590 = vshrl.u32 %v10589, 7
    %v10591 = vsub.s32 %v10588, %v10590
    %v10592 = vrot.slane %v7416, %v10591
    %v10594 = vunpack.c.l.s4 1983009808
    %v10595 = vunpack.c.0.s8 %v10594
    %v10596 = vlaneseq
    %v10597 = vshrl.u32 %v10596, 7
    %v10598 = vsub.s32 %v10595, %v10597
    %v10599 = vrot.slane %v10585, %v10598
    %v10600 = vcombine.high %v10592, %v10592
    %v10601 = vcombine.high %v10599, %v10599
    %v10602 = vcombine.high %v7506, %v7506
    %v10604 = vunpack.c.l.s4 1983009808
    %v10605 = vunpack.c.0.s8 %v10604
    %v10606 = vlaneseq
    %v10607 = vshrl.u32 %v10606, 7
    %v10608 = vsub.s32 %v10605, %v10607
    %v10609 = vrot.slane %v7506, %v10608
    %v10611 = vunpack.c.l.s4 1983009808
    %v10612 = vunpack.c.0.s8 %v10611
    %v10613 = vlaneseq
    %v10614 = vshrl.u32 %v10613, 7
    %v10615 = vsub.s32 %v10612, %v10614
    %v10616 = vrot.slane %v10602, %v10615
    %v10617 = vcombine.high %v10609, %v10609
    %v10618 = vcombine.high %v10616, %v10616
    %10627 = vmatprep.subr.mxu0 0.0
    %10628 = vmatpush1.xpose.msra.mxu0 0.0
    %10629 = vmatprep.subr.mxu0 0.0
    %10630 = vmatpush1.xpose.msra.mxu0 0.0
    %10631 = vmatprep.subr.mxu0 0.0
    %10632 = vmatpush1.xpose.msra.mxu0 0.0
    %10633 = vmatprep.subr.mxu0 0.0
    %10634 = vmatpush1.xpose.msra.mxu0 0.0
    %10635 = vmatprep.subr.mxu0 0.0
    %10636 = vmatpush1.xpose.msra.mxu0 0.0
    %10637 = vmatprep.subr.mxu0 0.0
    %10638 = vmatpush1.xpose.msra.mxu0 0.0
    %10639 = vmatprep.subr.mxu0 0.0
    %10640 = vmatpush1.xpose.msra.mxu0 0.0
    %10641 = vmatprep.subr.mxu0 0.0
    %10642 = vmatpush1.xpose.msra.mxu0 0.0
    %10643 = vmatprep.subr.mxu0 0.0
    %10644 = vmatpush1.xpose.msra.mxu0 0.0
    %10645 = vmatprep.subr.mxu0 0.0
    %10646 = vmatpush1.xpose.msra.mxu0 0.0
    %10647 = vmatprep.subr.mxu0 0.0
    %10648 = vmatpush1.xpose.msra.mxu0 0.0
    %10649 = vmatprep.subr.mxu0 0.0
    %10650 = vmatpush1.xpose.msra.mxu0 0.0
    %10651 = vmatprep.subr.mxu0 0.0
    %10652 = vmatpush1.xpose.msra.mxu0 0.0
    %10653 = vmatprep.subr.mxu0 0.0
    %10654 = vmatpush1.xpose.msra.mxu0 0.0
    %10655 = vmatprep.subr.mxu0 %v7660
    %10656 = vmatpush1.xpose.msra.mxu0 %v7659
    %10657 = vmatprep.subr.mxu0 %v7652
    %10658 = vmatpush1.xpose.msra.mxu0 %v7651
    %10659 = vmatprep.subr.mxu0 0.0
    %10660 = vmatpush2.xpose.msra.mxu0 0.0
    %10661 = vmatprep.subr.mxu0 0.0
    %10662 = vmatpush2.xpose.msra.mxu0 0.0
    %10663 = vmatprep.subr.mxu0 0.0
    %10664 = vmatpush2.xpose.msra.mxu0 0.0
    %10665 = vmatprep.subr.mxu0 0.0
    %10666 = vmatpush2.xpose.msra.mxu0 0.0
    %10667 = vmatprep.subr.mxu0 0.0
    %10668 = vmatpush2.xpose.msra.mxu0 0.0
    %10669 = vmatprep.subr.mxu0 0.0
    %10670 = vmatpush2.xpose.msra.mxu0 0.0
    %10671 = vmatprep.subr.mxu0 0.0
    %10672 = vmatpush2.xpose.msra.mxu0 0.0
    %10673 = vmatprep.subr.mxu0 0.0
    %10674 = vmatpush2.xpose.msra.mxu0 0.0
    %10675 = vmatprep.subr.mxu0 0.0
    %10676 = vmatpush2.xpose.msra.mxu0 0.0
    %10677 = vmatprep.subr.mxu0 0.0
    %10678 = vmatpush2.xpose.msra.mxu0 0.0
    %10679 = vmatprep.subr.mxu0 0.0
    %10680 = vmatpush2.xpose.msra.mxu0 0.0
    %10681 = vmatprep.subr.mxu0 0.0
    %10682 = vmatpush2.xpose.msra.mxu0 0.0
    %10683 = vmatprep.subr.mxu0 0.0
    %10684 = vmatpush2.xpose.msra.mxu0 0.0
    %10685 = vmatprep.subr.mxu0 0.0
    %10686 = vmatpush2.xpose.msra.mxu0 0.0
    %10687 = vmatprep.subr.mxu0 0.0
    %10688 = vmatpush2.xpose.msra.mxu0 0.0
    %10689 = vmatprep.subr.mxu0 0.0
    %10690 = vmatpush2.xpose.msra.mxu0 0.0
    %10691 = vmatprep.mubr.f32.mxu0 %v10600
    %10692 = vmatmul.mubr.f32.gmra.mxu0 %v10592
    %v10693 = vpop.f32.mrf.mxu0
    %v10694 = vadd.f32 0.0, %v10693
    %v10695 = vpop.f32.mrf.mxu0
    %10696 = vdwg.mxu0
    %10697 = vmatprep.subr.mxu0 0.0
    %10698 = vmatpush1.xpose.msra.mxu0 0.0
    %10699 = vmatprep.subr.mxu0 0.0
    %10700 = vmatpush1.xpose.msra.mxu0 0.0
    %10701 = vmatprep.subr.mxu0 0.0
    %10702 = vmatpush1.xpose.msra.mxu0 0.0
    %10703 = vmatprep.subr.mxu0 0.0
    %10704 = vmatpush1.xpose.msra.mxu0 0.0
    %10705 = vmatprep.subr.mxu0 0.0
    %10706 = vmatpush1.xpose.msra.mxu0 0.0
    %10707 = vmatprep.subr.mxu0 0.0
    %10708 = vmatpush1.xpose.msra.mxu0 0.0
    %10709 = vmatprep.subr.mxu0 0.0
    %10710 = vmatpush1.xpose.msra.mxu0 0.0
    %10711 = vmatprep.subr.mxu0 0.0
    %10712 = vmatpush1.xpose.msra.mxu0 0.0
    %10713 = vmatprep.subr.mxu0 0.0
    %10714 = vmatpush1.xpose.msra.mxu0 0.0
    %10715 = vmatprep.subr.mxu0 0.0
    %10716 = vmatpush1.xpose.msra.mxu0 0.0
    %10717 = vmatprep.subr.mxu0 0.0
    %10718 = vmatpush1.xpose.msra.mxu0 0.0
    %10719 = vmatprep.subr.mxu0 0.0
    %10720 = vmatpush1.xpose.msra.mxu0 0.0
    %10721 = vmatprep.subr.mxu0 0.0
    %10722 = vmatpush1.xpose.msra.mxu0 0.0
    %10723 = vmatprep.subr.mxu0 0.0
    %10724 = vmatpush1.xpose.msra.mxu0 0.0
    %10725 = vmatprep.subr.mxu0 %v7662
    %10726 = vmatpush1.xpose.msra.mxu0 %v7661
    %10727 = vmatprep.subr.mxu0 %v7654
    %10728 = vmatpush1.xpose.msra.mxu0 %v7653
    %10729 = vmatprep.subr.mxu0 0.0
    %10730 = vmatpush2.xpose.msra.mxu0 0.0
    %10731 = vmatprep.subr.mxu0 0.0
    %10732 = vmatpush2.xpose.msra.mxu0 0.0
    %10733 = vmatprep.subr.mxu0 0.0
    %10734 = vmatpush2.xpose.msra.mxu0 0.0
    %10735 = vmatprep.subr.mxu0 0.0
    %10736 = vmatpush2.xpose.msra.mxu0 0.0
    %10737 = vmatprep.subr.mxu0 0.0
    %10738 = vmatpush2.xpose.msra.mxu0 0.0
    %10739 = vmatprep.subr.mxu0 0.0
    %10740 = vmatpush2.xpose.msra.mxu0 0.0
    %10741 = vmatprep.subr.mxu0 0.0
    %10742 = vmatpush2.xpose.msra.mxu0 0.0
    %10743 = vmatprep.subr.mxu0 0.0
    %10744 = vmatpush2.xpose.msra.mxu0 0.0
    %10745 = vmatprep.subr.mxu0 0.0
    %10746 = vmatpush2.xpose.msra.mxu0 0.0
    %10747 = vmatprep.subr.mxu0 0.0
    %10748 = vmatpush2.xpose.msra.mxu0 0.0
    %10749 = vmatprep.subr.mxu0 0.0
    %10750 = vmatpush2.xpose.msra.mxu0 0.0
    %10751 = vmatprep.subr.mxu0 0.0
    %10752 = vmatpush2.xpose.msra.mxu0 0.0
    %10753 = vmatprep.subr.mxu0 0.0
    %10754 = vmatpush2.xpose.msra.mxu0 0.0
    %10755 = vmatprep.subr.mxu0 0.0
    %10756 = vmatpush2.xpose.msra.mxu0 0.0
    %10757 = vmatprep.subr.mxu0 0.0
    %10758 = vmatpush2.xpose.msra.mxu0 0.0
    %10759 = vmatprep.subr.mxu0 0.0
    %10760 = vmatpush2.xpose.msra.mxu0 0.0
    %10761 = vmatprep.mubr.f32.mxu0 %v10601
    %10762 = vmatmul.mubr.f32.gmra.mxu0 %v10599
    %v10763 = vpop.f32.mrf.mxu0
    %v10764 = vadd.f32 %v10694, %v10763
    %v10765 = vpop.f32.mrf.mxu0
    %10766 = vdwg.mxu0
    %10767 = vmatprep.subr.mxu0 0.0
    %10768 = vmatpush1.xpose.msra.mxu0 0.0
    %10769 = vmatprep.subr.mxu0 0.0
    %10770 = vmatpush1.xpose.msra.mxu0 0.0
    %10771 = vmatprep.subr.mxu0 0.0
    %10772 = vmatpush1.xpose.msra.mxu0 0.0
    %10773 = vmatprep.subr.mxu0 0.0
    %10774 = vmatpush1.xpose.msra.mxu0 0.0
    %10775 = vmatprep.subr.mxu0 0.0
    %10776 = vmatpush1.xpose.msra.mxu0 0.0
    %10777 = vmatprep.subr.mxu0 0.0
    %10778 = vmatpush1.xpose.msra.mxu0 0.0
    %10779 = vmatprep.subr.mxu0 0.0
    %10780 = vmatpush1.xpose.msra.mxu0 0.0
    %10781 = vmatprep.subr.mxu0 0.0
    %10782 = vmatpush1.xpose.msra.mxu0 0.0
    %10783 = vmatprep.subr.mxu0 0.0
    %10784 = vmatpush1.xpose.msra.mxu0 0.0
    %10785 = vmatprep.subr.mxu0 0.0
    %10786 = vmatpush1.xpose.msra.mxu0 0.0
    %10787 = vmatprep.subr.mxu0 0.0
    %10788 = vmatpush1.xpose.msra.mxu0 0.0
    %10789 = vmatprep.subr.mxu0 0.0
    %10790 = vmatpush1.xpose.msra.mxu0 0.0
    %10791 = vmatprep.subr.mxu0 0.0
    %10792 = vmatpush1.xpose.msra.mxu0 0.0
    %10793 = vmatprep.subr.mxu0 0.0
    %10794 = vmatpush1.xpose.msra.mxu0 0.0
    %10795 = vmatprep.subr.mxu0 %v7664
    %10796 = vmatpush1.xpose.msra.mxu0 %v7663
    %10797 = vmatprep.subr.mxu0 %v7656
    %10798 = vmatpush1.xpose.msra.mxu0 %v7655
    %10799 = vmatprep.subr.mxu0 0.0
    %10800 = vmatpush2.xpose.msra.mxu0 0.0
    %10801 = vmatprep.subr.mxu0 0.0
    %10802 = vmatpush2.xpose.msra.mxu0 0.0
    %10803 = vmatprep.subr.mxu0 0.0
    %10804 = vmatpush2.xpose.msra.mxu0 0.0
    %10805 = vmatprep.subr.mxu0 0.0
    %10806 = vmatpush2.xpose.msra.mxu0 0.0
    %10807 = vmatprep.subr.mxu0 0.0
    %10808 = vmatpush2.xpose.msra.mxu0 0.0
    %10809 = vmatprep.subr.mxu0 0.0
    %10810 = vmatpush2.xpose.msra.mxu0 0.0
    %10811 = vmatprep.subr.mxu0 0.0
    %10812 = vmatpush2.xpose.msra.mxu0 0.0
    %10813 = vmatprep.subr.mxu0 0.0
    %10814 = vmatpush2.xpose.msra.mxu0 0.0
    %10815 = vmatprep.subr.mxu0 0.0
    %10816 = vmatpush2.xpose.msra.mxu0 0.0
    %10817 = vmatprep.subr.mxu0 0.0
    %10818 = vmatpush2.xpose.msra.mxu0 0.0
    %10819 = vmatprep.subr.mxu0 0.0
    %10820 = vmatpush2.xpose.msra.mxu0 0.0
    %10821 = vmatprep.subr.mxu0 0.0
    %10822 = vmatpush2.xpose.msra.mxu0 0.0
    %10823 = vmatprep.subr.mxu0 0.0
    %10824 = vmatpush2.xpose.msra.mxu0 0.0
    %10825 = vmatprep.subr.mxu0 0.0
    %10826 = vmatpush2.xpose.msra.mxu0 0.0
    %10827 = vmatprep.subr.mxu0 0.0
    %10828 = vmatpush2.xpose.msra.mxu0 0.0
    %10829 = vmatprep.subr.mxu0 0.0
    %10830 = vmatpush2.xpose.msra.mxu0 0.0
    %10831 = vmatprep.mubr.f32.mxu0 %v10617
    %10832 = vmatmul.mubr.f32.gmra.mxu0 %v10609
    %v10833 = vpop.f32.mrf.mxu0
    %v10834 = vadd.f32 %v10764, %v10833
    %v10835 = vpop.f32.mrf.mxu0
    %10836 = vdwg.mxu0
    %10837 = vmatprep.subr.mxu0 0.0
    %10838 = vmatpush1.xpose.msra.mxu0 0.0
    %10839 = vmatprep.subr.mxu0 0.0
    %10840 = vmatpush1.xpose.msra.mxu0 0.0
    %10841 = vmatprep.subr.mxu0 0.0
    %10842 = vmatpush1.xpose.msra.mxu0 0.0
    %10843 = vmatprep.subr.mxu0 0.0
    %10844 = vmatpush1.xpose.msra.mxu0 0.0
    %10845 = vmatprep.subr.mxu0 0.0
    %10846 = vmatpush1.xpose.msra.mxu0 0.0
    %10847 = vmatprep.subr.mxu0 0.0
    %10848 = vmatpush1.xpose.msra.mxu0 0.0
    %10849 = vmatprep.subr.mxu0 0.0
    %10850 = vmatpush1.xpose.msra.mxu0 0.0
    %10851 = vmatprep.subr.mxu0 0.0
    %10852 = vmatpush1.xpose.msra.mxu0 0.0
    %10853 = vmatprep.subr.mxu0 0.0
    %10854 = vmatpush1.xpose.msra.mxu0 0.0
    %10855 = vmatprep.subr.mxu0 0.0
    %10856 = vmatpush1.xpose.msra.mxu0 0.0
    %10857 = vmatprep.subr.mxu0 0.0
    %10858 = vmatpush1.xpose.msra.mxu0 0.0
    %10859 = vmatprep.subr.mxu0 0.0
    %10860 = vmatpush1.xpose.msra.mxu0 0.0
    %10861 = vmatprep.subr.mxu0 0.0
    %10862 = vmatpush1.xpose.msra.mxu0 0.0
    %10863 = vmatprep.subr.mxu0 0.0
    %10864 = vmatpush1.xpose.msra.mxu0 0.0
    %10865 = vmatprep.subr.mxu0 %v7666
    %10866 = vmatpush1.xpose.msra.mxu0 %v7665
    %10867 = vmatprep.subr.mxu0 %v7658
    %10868 = vmatpush1.xpose.msra.mxu0 %v7657
    %10869 = vmatprep.subr.mxu0 0.0
    %10870 = vmatpush2.xpose.msra.mxu0 0.0
    %10871 = vmatprep.subr.mxu0 0.0
    %10872 = vmatpush2.xpose.msra.mxu0 0.0
    %10873 = vmatprep.subr.mxu0 0.0
    %10874 = vmatpush2.xpose.msra.mxu0 0.0
    %10875 = vmatprep.subr.mxu0 0.0
    %10876 = vmatpush2.xpose.msra.mxu0 0.0
    %10877 = vmatprep.subr.mxu0 0.0
    %10878 = vmatpush2.xpose.msra.mxu0 0.0
    %10879 = vmatprep.subr.mxu0 0.0
    %10880 = vmatpush2.xpose.msra.mxu0 0.0
    %10881 = vmatprep.subr.mxu0 0.0
    %10882 = vmatpush2.xpose.msra.mxu0 0.0
    %10883 = vmatprep.subr.mxu0 0.0
    %10884 = vmatpush2.xpose.msra.mxu0 0.0
    %10885 = vmatprep.subr.mxu0 0.0
    %10886 = vmatpush2.xpose.msra.mxu0 0.0
    %10887 = vmatprep.subr.mxu0 0.0
    %10888 = vmatpush2.xpose.msra.mxu0 0.0
    %10889 = vmatprep.subr.mxu0 0.0
    %10890 = vmatpush2.xpose.msra.mxu0 0.0
    %10891 = vmatprep.subr.mxu0 0.0
    %10892 = vmatpush2.xpose.msra.mxu0 0.0
    %10893 = vmatprep.subr.mxu0 0.0
    %10894 = vmatpush2.xpose.msra.mxu0 0.0
    %10895 = vmatprep.subr.mxu0 0.0
    %10896 = vmatpush2.xpose.msra.mxu0 0.0
    %10897 = vmatprep.subr.mxu0 0.0
    %10898 = vmatpush2.xpose.msra.mxu0 0.0
    %10899 = vmatprep.subr.mxu0 0.0
    %10900 = vmatpush2.xpose.msra.mxu0 0.0
    %10901 = vmatprep.mubr.f32.mxu0 %v10618
    %10902 = vmatmul.mubr.f32.gmra.mxu0 %v10616
    %v10903 = vpop.f32.mrf.mxu0
    %v10904 = vadd.f32 %v10834, %v10903
    %v10905 = vpop.f32.mrf.mxu0
    %10906 = vdwg.mxu0
    %vm10907 = vcmask 74752
    %v10908 = vsel %vm10907, %v7988, 0.0
    %v10909 = vsel %vm10907, %v8312, 0.0
    %v10910 = vadd.f32 %v10908, %v10909
    %v10911 = vsel %vm10907, %v8636, 0.0
    %v10912 = vadd.f32 %v10910, %v10911
    %v10913 = vsel %vm10907, %v8960, 0.0
    %v10914 = vadd.f32 %v10912, %v10913
    %v10915 = vsel %vm10907, %v9284, 0.0
    %v10916 = vadd.f32 %v10914, %v10915
    %v10917 = vsel %vm10907, %v9608, 0.0
    %v10918 = vadd.f32 %v10916, %v10917
    %v10919 = vsel %vm10907, %v9932, 0.0
    %v10920 = vadd.f32 %v10918, %v10919
    %v10921 = vsel %vm10907, %v10256, 0.0
    %v10922 = vadd.f32 %v10920, %v10921
    %v10923 = vsel %vm10907, %v10580, 0.0
    %v10924 = vadd.f32 %v10922, %v10923
    %v10925 = vsel %vm10907, %v10904, 0.0
    %v10926 = vadd.f32 %v10924, %v10925
    %v10927 = vld [vmem:[%s4] sm:$0x1]
    %v10929 = vlaneseq
    %v10930 = vshrl.u32 %v10929, 7
    %v10931 = vsub.s32 0, %v10930
    %v10932 = vrot.slane %v10927, %v10931
    %v10934 = vadd.f32 %v10926, %v10932
    %10935 = vst.msk [vmem:[#allocation2] sm:$0x3] %vm10907, %v10934
    // Predicated region
    $region22: #{my_module_forward.1} parent=1 // pred_check
      _
    $region23: #{my_module_forward.1} parent=1 // pred_check_branch
      %10937 = sbr.rel (0) target = $region25
    $region24: #{my_module_forward.1} parent=1 // pred_region
      %s10939 = ssub.s32 32, 32
      %10940 = vsyncadd [#allocation3], %s10939
      %s10942 = sshll.u32 [#allocation2], 4
      %s10943 = int_to_ptr.vmem [resolvable:$true] %s10942
      %10945 = dma.vmem_to_hbm [thread:$0]  %s10943, 32, %s5, [#allocation3]
    $region25: #{my_module_forward.1} parent=1 // pred_fallthru
      _
    // Predicated region
    $region26: #{my_module_forward.1} parent=1 // pred_check
      _
    $region27: #{my_module_forward.1} parent=1 // pred_check_branch
      %10947 = sbr.rel (0) target = $region29
    $region28: #{my_module_forward.1} parent=1 // pred_region
      %10948 = dma.done [#allocation3], 32
    $region29: #{my_module_forward.1} parent=1 // pred_fallthru
      _
    %10949 = vsyncpa [#allocation3], 1

</llo_original>
